<compile_context>
chip_gen: v5e
topology: v5e:2x2
jax: 0.10.0
libtpu: 0.0.40
codegen_flags: <defaults>
</compile_context>

<pallas_src>
import numpy as np
import jax
import jax.numpy as jnp
from jax.experimental import pallas as pl
from jax.experimental.pallas import tpu as pltpu

BN_EPS = 1e-5
LANE = 128


def _round_up(v, m):
    return ((v + m - 1) // m) * m


# ---------------------------------------------------------------------------
# In-kernel helpers
# ---------------------------------------------------------------------------
def _conv3x3_acc(xp, w_ref, stride, ho, wo):
    """3x3 'same' convolution on a spatially pre-padded (zero-halo) tile.

    xp     : (hp, wp, cin) float32 value
    w_ref  : (3, 3, cin, cout) bfloat16 ref
    returns: (ho*wo, cout) float32 accumulator

    Nine shifted (Ho*Wo, Cin) @ (Cin, Cout) MXU matmuls, bf16 operands,
    float32 accumulation.  The stride is applied in the patch slice so no
    MXU work is thrown away for strided blocks.
    """
    cin = xp.shape[-1]
    cout = w_ref.shape[-1]
    sh = stride * (ho - 1) + 1
    sw = stride * (wo - 1) + 1
    acc = jnp.zeros((ho * wo, cout), jnp.float32)
    for kh in range(3):
        for kw in range(3):
            patch = xp[kh:kh + sh:stride, kw:kw + sw:stride, :]
            patch = patch.reshape(ho * wo, cin).astype(jnp.bfloat16)
            acc = acc + jnp.dot(patch, w_ref[kh, kw],
                                preferred_element_type=jnp.float32)
    return acc


def _write_stats(acc, s_ref, q_ref):
    """Per-channel sum and sum-of-squares partials for this grid step."""
    s_ref[0] = jnp.sum(acc, axis=0, keepdims=True)
    q_ref[0] = jnp.sum(acc * acc, axis=0, keepdims=True)


# ---------------------------------------------------------------------------
# Kernel bodies (one batch image per grid step)
# ---------------------------------------------------------------------------
def _make_kernel_a(stride, ho, wo, has_sc):
    """conv1 (3x3, stride) [+ 1x1 shortcut conv] + BN stat partials."""
    def body(xp_ref, w1_ref, *rest):
        if has_sc:
            ws_ref, y1_ref, s1_ref, q1_ref, ys_ref, ss_ref, qs_ref = rest
        else:
            y1_ref, s1_ref, q1_ref = rest
        xp = xp_ref[0]                                   # (h+2, w+2, cpi) f32
        acc = _conv3x3_acc(xp, w1_ref, stride, ho, wo)
        y1_ref[0] = acc.reshape(ho, wo, acc.shape[-1])
        _write_stats(acc, s1_ref, q1_ref)
        if has_sc:
            sh = stride * (ho - 1) + 1
            sw = stride * (wo - 1) + 1
            # Interior of xp is the original x; 1x1 conv, stride in the slice.
            xs = xp[1:1 + sh:stride, 1:1 + sw:stride, :]
            xs = xs.reshape(ho * wo, xs.shape[-1]).astype(jnp.bfloat16)
            sc = jnp.dot(xs, ws_ref[...], preferred_element_type=jnp.float32)
            ys_ref[0] = sc.reshape(ho, wo, sc.shape[-1])
            _write_stats(sc, ss_ref, qs_ref)
    return body


def _make_kernel_b(ho, wo):
    """folded BN1 + ReLU + conv2 (3x3, stride 1) + BN stat partials."""
    def body(y1p_ref, w2_ref, sc1_ref, bi1_ref, y2_ref, s2_ref, q2_ref):
        y1p = y1p_ref[0]                        # (ho+2, wo+2, cpo) f32, 0 halo
        a1 = jnp.maximum(y1p * sc1_ref[...] + bi1_ref[...], 0.0)
        # The conv halo must be zero *after* BN+ReLU -> re-zero the 1-px border.
        rows = jax.lax.broadcasted_iota(jnp.int32, a1.shape, 0)
        cols = jax.lax.broadcasted_iota(jnp.int32, a1.shape, 1)
        interior = (rows >= 1) & (rows <= ho) & (cols >= 1) & (cols <= wo)
        a1 = jnp.where(interior, a1, 0.0)
        acc = _conv3x3_acc(a1, w2_ref, 1, ho, wo)
        y2_ref[0] = acc.reshape(ho, wo, acc.shape[-1])
        _write_stats(acc, s2_ref, q2_ref)
    return body


def _make_kernel_c(has_sc):
    """folded BN2 (+ folded shortcut BN / identity) + residual add + ReLU."""
    if has_sc:
        def body(y2_ref, ys_ref, sc2_ref, bi2_ref, scs_ref, bis_ref, o_ref):
            out = y2_ref[0] * sc2_ref[...] + bi2_ref[...]
            sc = ys_ref[0] * scs_ref[...] + bis_ref[...]
            o_ref[0] = jnp.maximum(out + sc, 0.0)
    else:
        def body(y2_ref, xid_ref, sc2_ref, bi2_ref, o_ref):
            out = y2_ref[0] * sc2_ref[...] + bi2_ref[...]
            o_ref[0] = jnp.maximum(out + xid_ref[0], 0.0)
    return body


# ---------------------------------------------------------------------------
# Host-side wrapper
# ---------------------------------------------------------------------------
def basic_block_forward(x, params, stride):
    """BasicBlock forward.  x: (N, H, W, Cin) float32, NHWC."""
    n, h, w, cin = x.shape
    cout = params["w1"].shape[-1]
    has_sc = (stride != 1) or (cin != cout)
    ho = (h - 1) // stride + 1
    wo = (w - 1) // stride + 1
    cpi = _round_up(cin, LANE)
    cpo = _round_up(cout, LANE)
    f32, bf16 = jnp.float32, jnp.bfloat16

    # ---- layout prep: lane-dense channel pad, spatial halo pad, bf16 weights.
    xc = jnp.pad(x.astype(f32), ((0, 0), (0, 0), (0, 0), (0, cpi - cin)))
    xp = jnp.pad(xc, ((0, 0), (1, 1), (1, 1), (0, 0)))
    w1 = jnp.pad(params["w1"],
                 ((0, 0), (0, 0), (0, cpi - cin), (0, cpo - cout))).astype(bf16)
    w2 = jnp.pad(params["w2"],
                 ((0, 0), (0, 0), (0, cpo - cout), (0, cpo - cout))).astype(bf16)

    def padc(v):
        return jnp.pad(v.astype(f32), (0, cpo - cout))

    g1, b1 = padc(params["g1"]), padc(params["b1"])
    g2, b2 = padc(params["g2"]), padc(params["b2"])

    cparams = pltpu.CompilerParams(
        dimension_semantics=("parallel",),   # megacore / 2 TCs on v7x
        vmem_limit_bytes=32 * 1024 * 1024)   # per-step working set is << this

    def img_spec(shape3):
        return pl.BlockSpec((1,) + tuple(shape3), lambda i: (i, 0, 0, 0))

    def full_spec(shape):
        nd = len(shape)
        return pl.BlockSpec(tuple(shape), lambda i, _nd=nd: (0,) * _nd)

    vec_spec = full_spec((1, 1, cpo))
    stat_spec = pl.BlockSpec((1, 1, cpo), lambda i: (i, 0, 0))
    stat_shape = jax.ShapeDtypeStruct((n, 1, cpo), f32)
    act_shape = jax.ShapeDtypeStruct((n, ho, wo, cpo), f32)
    act_spec = img_spec((ho, wo, cpo))

    # ---------------- pass A: conv1 (+ 1x1 shortcut conv) + stat partials ----
    a_in = [xp, w1]
    a_in_specs = [img_spec((h + 2, w + 2, cpi)), full_spec(w1.shape)]
    a_out_shape = [act_shape, stat_shape, stat_shape]
    a_out_specs = [act_spec, stat_spec, stat_spec]
    flops_a = 2 * n * ho * wo * 9 * cpi * cpo
    bytes_a = xp.size * 4 + w1.size * 2 + n * ho * wo * cpo * 4
    if has_sc:
        ws = jnp.pad(params["ws"],
                     ((0, cpi - cin), (0, cpo - cout))).astype(bf16)
        a_in.append(ws)
        a_in_specs.append(full_spec(ws.shape))
        a_out_shape += [act_shape, stat_shape, stat_shape]
        a_out_specs += [act_spec, stat_spec, stat_spec]
        flops_a += 2 * n * ho * wo * cpi * cpo
        bytes_a += ws.size * 2 + n * ho * wo * cpo * 4

    a_res = pl.pallas_call(
        _make_kernel_a(stride, ho, wo, has_sc),
        grid=(n,),
        in_specs=a_in_specs,
        out_specs=a_out_specs,
        out_shape=a_out_shape,
        compiler_params=cparams,
        cost_estimate=pl.CostEstimate(flops=flops_a, transcendentals=0,
                                      bytes_accessed=bytes_a),
    )(*a_in)
    if has_sc:
        y1, s1, q1, ys, ss, qs = a_res
    else:
        y1, s1, q1 = a_res

    # ---------------- host: fold BN stats into a single per-channel FMA ------
    cnt = float(n * ho * wo)

    def fold(s, q, g, b):
        mean = jnp.sum(s, axis=(0, 1)) / cnt
        var = jnp.maximum(jnp.sum(q, axis=(0, 1)) / cnt - mean * mean, 0.0)
        scale = g * jax.lax.rsqrt(var + BN_EPS)
        bias = b - mean * scale
        return scale.reshape(1, 1, cpo), bias.reshape(1, 1, cpo)

    sc1, bi1 = fold(s1, q1, g1, b1)

    # Cheap XLA halo pad of the raw conv1 output; kernel B re-zeroes the halo
    # after BN+ReLU.  No padded VMEM scratch / masked interior stores needed.
    y1p = jnp.pad(y1, ((0, 0), (1, 1), (1, 1), (0, 0)))

    # ---------------- pass B: BN1 + ReLU + conv2 + stat partials --------------
    flops_b = 2 * n * ho * wo * 9 * cpo * cpo
    bytes_b = y1p.size * 4 + w2.size * 2 + n * ho * wo * cpo * 4
    y2, s2, q2 = pl.pallas_call(
        _make_kernel_b(ho, wo),
        grid=(n,),
        in_specs=[img_spec((ho + 2, wo + 2, cpo)), full_spec(w2.shape),
                  vec_spec, vec_spec],
        out_specs=[act_spec, stat_spec, stat_spec],
        out_shape=[act_shape, stat_shape, stat_shape],
        compiler_params=cparams,
        cost_estimate=pl.CostEstimate(flops=flops_b, transcendentals=0,
                                      bytes_accessed=bytes_b),
    )(y1p, w2, sc1, bi1)

    sc2, bi2 = fold(s2, q2, g2, b2)

    # ---------------- pass C: BN2 + shortcut + add + ReLU ---------------------
    if has_sc:
        gs, bs = padc(params["gs"]), padc(params["bs"])
        scs, bis = fold(ss, qs, gs, bs)
        c_in = [y2, ys, sc2, bi2, scs, bis]
        c_in_specs = [act_spec, act_spec, vec_spec, vec_spec, vec_spec, vec_spec]
    else:
        c_in = [y2, xc, sc2, bi2]
        c_in_specs = [act_spec, img_spec((h, w, cpi)), vec_spec, vec_spec]

    out_p = pl.pallas_call(
        _make_kernel_c(has_sc),
        grid=(n,),
        in_specs=c_in_specs,
        out_specs=act_spec,
        out_shape=act_shape,
        compiler_params=cparams,
        cost_estimate=pl.CostEstimate(flops=6 * n * ho * wo * cpo,
                                      transcendentals=0,
                                      bytes_accessed=3 * n * ho * wo * cpo * 4),
    )(*c_in)

    return out_p[..., :cout]


# ---------------------------------------------------------------------------
# Deterministic parameter init (shapes follow BasicBlock.__init__)
# ---------------------------------------------------------------------------
def init_params(key, cin, cout, stride):
    ks = jax.random.split(key, 8)
    params = {
        "w1": 0.1 * jax.random.normal(ks[0], (3, 3, cin, cout), jnp.float32),
        "g1": 1.0 + 0.1 * jax.random.normal(ks[1], (cout,), jnp.float32),
        "b1": 0.1 * jax.random.normal(ks[2], (cout,), jnp.float32),
        "w2": 0.1 * jax.random.normal(ks[3], (3, 3, cout, cout), jnp.float32),
        "g2": 1.0 + 0.1 * jax.random.normal(ks[4], (cout,), jnp.float32),
        "b2": 0.1 * jax.random.normal(ks[5], (cout,), jnp.float32),
    }
    if stride != 1 or cin != cout:
        params["ws"] = 0.1 * jax.random.normal(ks[6], (cin, cout), jnp.float32)
        params["gs"] = 1.0 + 0.05 * jax.random.normal(ks[7], (cout,), jnp.float32)
        params["bs"] = jnp.zeros((cout,), jnp.float32)
    return params


# ---------------------------------------------------------------------------
# Pure-JAX reference (f32 XLA convs, train-mode BN) for correctness check
# ---------------------------------------------------------------------------
def reference(x, params, stride):
    def conv(x, w, s):
        return jax.lax.conv_general_dilated(
            x, w, (s, s), [(1, 1), (1, 1)],
            dimension_numbers=("NHWC", "HWIO", "NHWC"))

    def conv1x1(x, w, s):
        return jax.lax.conv_general_dilated(
            x, w.reshape(1, 1, *w.shape), (s, s), [(0, 0), (0, 0)],
            dimension_numbers=("NHWC", "HWIO", "NHWC"))

    def bn(x, g, b):
        mean = jnp.mean(x, axis=(0, 1, 2), keepdims=True)
        var = jnp.mean(jnp.square(x - mean), axis=(0, 1, 2), keepdims=True)
        return (g.reshape(1, 1, 1, -1) * (x - mean) * jax.lax.rsqrt(var + BN_EPS)
                + b.reshape(1, 1, 1, -1))

    out = jax.nn.relu(bn(conv(x, params["w1"], stride),
                         params["g1"], params["b1"]))
    out = bn(conv(out, params["w2"], 1), params["g2"], params["b2"])
    if "ws" in params:
        sc = bn(conv1x1(x, params["ws"], stride), params["gs"], params["bs"])
    else:
        sc = x
    return jax.nn.relu(out + sc)


if __name__ == "__main__":
    N, Cin, Cout, H, W, STRIDE = 2, 4, 8, 16, 16, 1  # Cin != Cout -> conv shortcut
    key = jax.random.PRNGKey(0)
    kx, kp = jax.random.split(key)
    x = jax.random.normal(kx, (N, H, W, Cin), jnp.float32)
    params = init_params(kp, Cin, Cout, STRIDE)

    fwd = jax.jit(basic_block_forward, static_argnums=2)
    out = jax.block_until_ready(fwd(x, params, STRIDE))

    ref = reference(x, params, STRIDE)
    # Tolerance loosened vs the f32 XLA reference because the MXU matmuls use
    # bf16 operands (f32 accumulation), and train-mode BN normalization
    # amplifies the small bf16 rounding error on these toy-variance channels.
    np.testing.assert_allclose(np.asarray(out), np.asarray(ref),
                               rtol=3e-2, atol=5e-2)
    print("KERNEL_OK")
</pallas_src>

<mosaic_0001>
module attributes {stable_mosaic.version = 11 : i64} {
  func.func @body(%arg0: i32, %arg1: memref<1x18x18x128xf32, #tpu.memory_space<vmem>>, %arg2: memref<3x3x128x128xbf16, #tpu.memory_space<vmem>>, %arg3: memref<128x128xbf16, #tpu.memory_space<vmem>>, %arg4: memref<1x16x16x128xf32, #tpu.memory_space<vmem>>, %arg5: memref<1x1x128xf32, #tpu.memory_space<vmem>>, %arg6: memref<1x1x128xf32, #tpu.memory_space<vmem>>, %arg7: memref<1x16x16x128xf32, #tpu.memory_space<vmem>>, %arg8: memref<1x1x128xf32, #tpu.memory_space<vmem>>, %arg9: memref<1x1x128xf32, #tpu.memory_space<vmem>>) attributes {dimension_semantics = [#tpu.dimension_semantics<parallel>], iteration_bounds = array<i64: 2>, scalar_prefetch = 0 : i64, scratch_operands = 0 : i64, tpu.core_type = #tpu.core_type<tc>, window_params = [{transform_indices = @transform_0, window_bounds = array<i64: 1, 18, 18, 128>}, {pipeline_mode = #tpu.pipeline_mode<synchronous>, transform_indices = @transform_1, window_bounds = array<i64: 3, 3, 128, 128>}, {pipeline_mode = #tpu.pipeline_mode<synchronous>, transform_indices = @transform_2, window_bounds = array<i64: 128, 128>}, {transform_indices = @transform_3, window_bounds = array<i64: 1, 16, 16, 128>}, {transform_indices = @transform_4, window_bounds = array<i64: 1, 1, 128>}, {transform_indices = @transform_5, window_bounds = array<i64: 1, 1, 128>}, {transform_indices = @transform_6, window_bounds = array<i64: 1, 16, 16, 128>}, {transform_indices = @transform_7, window_bounds = array<i64: 1, 1, 128>}, {transform_indices = @transform_8, window_bounds = array<i64: 1, 1, 128>}]} {
    %c0 = arith.constant 0 : index
    %c0_0 = arith.constant 0 : index
    %c0_1 = arith.constant 0 : index
    %c0_2 = arith.constant 0 : index
    %0 = vector.load %arg1[%c0, %c0_0, %c0_1, %c0_2] : memref<1x18x18x128xf32, #tpu.memory_space<vmem>>, vector<1x18x18x128xf32>
    %1 = vector.shape_cast %0 : vector<1x18x18x128xf32> to vector<18x18x128xf32>
    %cst = arith.constant 0.000000e+00 : f32
    %2 = vector.broadcast %cst : f32 to vector<256x128xf32>
    %3 = vector.extract_strided_slice %1 {offsets = [0, 0, 0], sizes = [16, 16, 128], strides = [1, 1, 1]} : vector<18x18x128xf32> to vector<16x16x128xf32>
    %4 = vector.shape_cast %3 : vector<16x16x128xf32> to vector<256x128xf32>
    %5 = arith.truncf %4 : vector<256x128xf32> to vector<256x128xbf16>
    %c0_3 = arith.constant 0 : index
    %c0_4 = arith.constant 0 : index
    %c0_5 = arith.constant 0 : index
    %c0_6 = arith.constant 0 : index
    %6 = vector.load %arg2[%c0_3, %c0_4, %c0_5, %c0_6] : memref<3x3x128x128xbf16, #tpu.memory_space<vmem>>, vector<1x1x128x128xbf16>
    %7 = vector.shape_cast %6 : vector<1x1x128x128xbf16> to vector<128x128xbf16>
    %cst_7 = arith.constant dense<0.000000e+00> : vector<256x128xf32>
    %8 = tpu.matmul %5, %7, %cst_7 {dimension_numbers = #tpu.dot_dimension_numbers<[1], [0], [0], [1], [0, 0, 1, 1], [], []>} : vector<256x128xbf16>, vector<128x128xbf16>, vector<256x128xf32> -> vector<256x128xf32>
    %9 = arith.addf %2, %8 : vector<256x128xf32>
    %10 = vector.extract_strided_slice %1 {offsets = [0, 1, 0], sizes = [16, 16, 128], strides = [1, 1, 1]} : vector<18x18x128xf32> to vector<16x16x128xf32>
    %11 = vector.shape_cast %10 : vector<16x16x128xf32> to vector<256x128xf32>
    %12 = arith.truncf %11 : vector<256x128xf32> to vector<256x128xbf16>
    %c0_8 = arith.constant 0 : index
    %c1 = arith.constant 1 : index
    %c0_9 = arith.constant 0 : index
    %c0_10 = arith.constant 0 : index
    %13 = vector.load %arg2[%c0_8, %c1, %c0_9, %c0_10] : memref<3x3x128x128xbf16, #tpu.memory_space<vmem>>, vector<1x1x128x128xbf16>
    %14 = vector.shape_cast %13 : vector<1x1x128x128xbf16> to vector<128x128xbf16>
    %cst_11 = arith.constant dense<0.000000e+00> : vector<256x128xf32>
    %15 = tpu.matmul %12, %14, %cst_11 {dimension_numbers = #tpu.dot_dimension_numbers<[1], [0], [0], [1], [0, 0, 1, 1], [], []>} : vector<256x128xbf16>, vector<128x128xbf16>, vector<256x128xf32> -> vector<256x128xf32>
    %16 = arith.addf %9, %15 : vector<256x128xf32>
    %17 = vector.extract_strided_slice %1 {offsets = [0, 2, 0], sizes = [16, 16, 128], strides = [1, 1, 1]} : vector<18x18x128xf32> to vector<16x16x128xf32>
    %18 = vector.shape_cast %17 : vector<16x16x128xf32> to vector<256x128xf32>
    %19 = arith.truncf %18 : vector<256x128xf32> to vector<256x128xbf16>
    %c0_12 = arith.constant 0 : index
    %c2 = arith.constant 2 : index
    %c0_13 = arith.constant 0 : index
    %c0_14 = arith.constant 0 : index
    %20 = vector.load %arg2[%c0_12, %c2, %c0_13, %c0_14] : memref<3x3x128x128xbf16, #tpu.memory_space<vmem>>, vector<1x1x128x128xbf16>
    %21 = vector.shape_cast %20 : vector<1x1x128x128xbf16> to vector<128x128xbf16>
    %cst_15 = arith.constant dense<0.000000e+00> : vector<256x128xf32>
    %22 = tpu.matmul %19, %21, %cst_15 {dimension_numbers = #tpu.dot_dimension_numbers<[1], [0], [0], [1], [0, 0, 1, 1], [], []>} : vector<256x128xbf16>, vector<128x128xbf16>, vector<256x128xf32> -> vector<256x128xf32>
    %23 = arith.addf %16, %22 : vector<256x128xf32>
    %24 = vector.extract_strided_slice %1 {offsets = [1, 0, 0], sizes = [16, 16, 128], strides = [1, 1, 1]} : vector<18x18x128xf32> to vector<16x16x128xf32>
    %25 = vector.shape_cast %24 : vector<16x16x128xf32> to vector<256x128xf32>
    %26 = arith.truncf %25 : vector<256x128xf32> to vector<256x128xbf16>
    %c1_16 = arith.constant 1 : index
    %c0_17 = arith.constant 0 : index
    %c0_18 = arith.constant 0 : index
    %c0_19 = arith.constant 0 : index
    %27 = vector.load %arg2[%c1_16, %c0_17, %c0_18, %c0_19] : memref<3x3x128x128xbf16, #tpu.memory_space<vmem>>, vector<1x1x128x128xbf16>
    %28 = vector.shape_cast %27 : vector<1x1x128x128xbf16> to vector<128x128xbf16>
    %cst_20 = arith.constant dense<0.000000e+00> : vector<256x128xf32>
    %29 = tpu.matmul %26, %28, %cst_20 {dimension_numbers = #tpu.dot_dimension_numbers<[1], [0], [0], [1], [0, 0, 1, 1], [], []>} : vector<256x128xbf16>, vector<128x128xbf16>, vector<256x128xf32> -> vector<256x128xf32>
    %30 = arith.addf %23, %29 : vector<256x128xf32>
    %31 = vector.extract_strided_slice %1 {offsets = [1, 1, 0], sizes = [16, 16, 128], strides = [1, 1, 1]} : vector<18x18x128xf32> to vector<16x16x128xf32>
    %32 = vector.shape_cast %31 : vector<16x16x128xf32> to vector<256x128xf32>
    %33 = arith.truncf %32 : vector<256x128xf32> to vector<256x128xbf16>
    %c1_21 = arith.constant 1 : index
    %c1_22 = arith.constant 1 : index
    %c0_23 = arith.constant 0 : index
    %c0_24 = arith.constant 0 : index
    %34 = vector.load %arg2[%c1_21, %c1_22, %c0_23, %c0_24] : memref<3x3x128x128xbf16, #tpu.memory_space<vmem>>, vector<1x1x128x128xbf16>
    %35 = vector.shape_cast %34 : vector<1x1x128x128xbf16> to vector<128x128xbf16>
    %cst_25 = arith.constant dense<0.000000e+00> : vector<256x128xf32>
    %36 = tpu.matmul %33, %35, %cst_25 {dimension_numbers = #tpu.dot_dimension_numbers<[1], [0], [0], [1], [0, 0, 1, 1], [], []>} : vector<256x128xbf16>, vector<128x128xbf16>, vector<256x128xf32> -> vector<256x128xf32>
    %37 = arith.addf %30, %36 : vector<256x128xf32>
    %38 = vector.extract_strided_slice %1 {offsets = [1, 2, 0], sizes = [16, 16, 128], strides = [1, 1, 1]} : vector<18x18x128xf32> to vector<16x16x128xf32>
    %39 = vector.shape_cast %38 : vector<16x16x128xf32> to vector<256x128xf32>
    %40 = arith.truncf %39 : vector<256x128xf32> to vector<256x128xbf16>
    %c1_26 = arith.constant 1 : index
    %c2_27 = arith.constant 2 : index
    %c0_28 = arith.constant 0 : index
    %c0_29 = arith.constant 0 : index
    %41 = vector.load %arg2[%c1_26, %c2_27, %c0_28, %c0_29] : memref<3x3x128x128xbf16, #tpu.memory_space<vmem>>, vector<1x1x128x128xbf16>
    %42 = vector.shape_cast %41 : vector<1x1x128x128xbf16> to vector<128x128xbf16>
    %cst_30 = arith.constant dense<0.000000e+00> : vector<256x128xf32>
    %43 = tpu.matmul %40, %42, %cst_30 {dimension_numbers = #tpu.dot_dimension_numbers<[1], [0], [0], [1], [0, 0, 1, 1], [], []>} : vector<256x128xbf16>, vector<128x128xbf16>, vector<256x128xf32> -> vector<256x128xf32>
    %44 = arith.addf %37, %43 : vector<256x128xf32>
    %45 = vector.extract_strided_slice %1 {offsets = [2, 0, 0], sizes = [16, 16, 128], strides = [1, 1, 1]} : vector<18x18x128xf32> to vector<16x16x128xf32>
    %46 = vector.shape_cast %45 : vector<16x16x128xf32> to vector<256x128xf32>
    %47 = arith.truncf %46 : vector<256x128xf32> to vector<256x128xbf16>
    %c2_31 = arith.constant 2 : index
    %c0_32 = arith.constant 0 : index
    %c0_33 = arith.constant 0 : index
    %c0_34 = arith.constant 0 : index
    %48 = vector.load %arg2[%c2_31, %c0_32, %c0_33, %c0_34] : memref<3x3x128x128xbf16, #tpu.memory_space<vmem>>, vector<1x1x128x128xbf16>
    %49 = vector.shape_cast %48 : vector<1x1x128x128xbf16> to vector<128x128xbf16>
    %cst_35 = arith.constant dense<0.000000e+00> : vector<256x128xf32>
    %50 = tpu.matmul %47, %49, %cst_35 {dimension_numbers = #tpu.dot_dimension_numbers<[1], [0], [0], [1], [0, 0, 1, 1], [], []>} : vector<256x128xbf16>, vector<128x128xbf16>, vector<256x128xf32> -> vector<256x128xf32>
    %51 = arith.addf %44, %50 : vector<256x128xf32>
    %52 = vector.extract_strided_slice %1 {offsets = [2, 1, 0], sizes = [16, 16, 128], strides = [1, 1, 1]} : vector<18x18x128xf32> to vector<16x16x128xf32>
    %53 = vector.shape_cast %52 : vector<16x16x128xf32> to vector<256x128xf32>
    %54 = arith.truncf %53 : vector<256x128xf32> to vector<256x128xbf16>
    %c2_36 = arith.constant 2 : index
    %c1_37 = arith.constant 1 : index
    %c0_38 = arith.constant 0 : index
    %c0_39 = arith.constant 0 : index
    %55 = vector.load %arg2[%c2_36, %c1_37, %c0_38, %c0_39] : memref<3x3x128x128xbf16, #tpu.memory_space<vmem>>, vector<1x1x128x128xbf16>
    %56 = vector.shape_cast %55 : vector<1x1x128x128xbf16> to vector<128x128xbf16>
    %cst_40 = arith.constant dense<0.000000e+00> : vector<256x128xf32>
    %57 = tpu.matmul %54, %56, %cst_40 {dimension_numbers = #tpu.dot_dimension_numbers<[1], [0], [0], [1], [0, 0, 1, 1], [], []>} : vector<256x128xbf16>, vector<128x128xbf16>, vector<256x128xf32> -> vector<256x128xf32>
    %58 = arith.addf %51, %57 : vector<256x128xf32>
    %59 = vector.extract_strided_slice %1 {offsets = [2, 2, 0], sizes = [16, 16, 128], strides = [1, 1, 1]} : vector<18x18x128xf32> to vector<16x16x128xf32>
    %60 = vector.shape_cast %59 : vector<16x16x128xf32> to vector<256x128xf32>
    %61 = arith.truncf %60 : vector<256x128xf32> to vector<256x128xbf16>
    %c2_41 = arith.constant 2 : index
    %c2_42 = arith.constant 2 : index
    %c0_43 = arith.constant 0 : index
    %c0_44 = arith.constant 0 : index
    %62 = vector.load %arg2[%c2_41, %c2_42, %c0_43, %c0_44] : memref<3x3x128x128xbf16, #tpu.memory_space<vmem>>, vector<1x1x128x128xbf16>
    %63 = vector.shape_cast %62 : vector<1x1x128x128xbf16> to vector<128x128xbf16>
    %cst_45 = arith.constant dense<0.000000e+00> : vector<256x128xf32>
    %64 = tpu.matmul %61, %63, %cst_45 {dimension_numbers = #tpu.dot_dimension_numbers<[1], [0], [0], [1], [0, 0, 1, 1], [], []>} : vector<256x128xbf16>, vector<128x128xbf16>, vector<256x128xf32> -> vector<256x128xf32>
    %65 = arith.addf %58, %64 : vector<256x128xf32>
    %66 = vector.shape_cast %65 : vector<256x128xf32> to vector<16x16x128xf32>
    %c0_46 = arith.constant 0 : index
    %c0_47 = arith.constant 0 : index
    %c0_48 = arith.constant 0 : index
    %c0_49 = arith.constant 0 : index
    %67 = vector.load %arg4[%c0_46, %c0_47, %c0_48, %c0_49] : memref<1x16x16x128xf32, #tpu.memory_space<vmem>>, vector<1x16x16x128xf32>
    %68 = vector.shape_cast %67 : vector<1x16x16x128xf32> to vector<16x16x128xf32>
    %69 = vector.shape_cast %66 : vector<16x16x128xf32> to vector<1x16x16x128xf32>
    tpu.vector_store %arg4[%c0_46, %c0_47, %c0_48, %c0_49], %69 {strides = array<i32>} : memref<1x16x16x128xf32, #tpu.memory_space<vmem>>, vector<1x16x16x128xf32>,
    %cst_50 = arith.constant dense<0.000000e+00> : vector<128xf32>
    %70 = vector.multi_reduction <add>, %65, %cst_50 [0] : vector<256x128xf32> to vector<128xf32>
    %71 = vector.shape_cast %70 : vector<128xf32> to vector<1x128xf32>
    %c0_51 = arith.constant 0 : index
    %c0_52 = arith.constant 0 : index
    %c0_53 = arith.constant 0 : index
    %72 = vector.load %arg5[%c0_51, %c0_52, %c0_53] : memref<1x1x128xf32, #tpu.memory_space<vmem>>, vector<1x1x128xf32>
    %73 = vector.shape_cast %72 : vector<1x1x128xf32> to vector<1x128xf32>
    %74 = vector.shape_cast %71 : vector<1x128xf32> to vector<1x1x128xf32>
    tpu.vector_store %arg5[%c0_51, %c0_52, %c0_53], %74 {strides = array<i32>} : memref<1x1x128xf32, #tpu.memory_space<vmem>>, vector<1x1x128xf32>,
    %75 = arith.mulf %65, %65 : vector<256x128xf32>
    %cst_54 = arith.constant dense<0.000000e+00> : vector<128xf32>
    %76 = vector.multi_reduction <add>, %75, %cst_54 [0] : vector<256x128xf32> to vector<128xf32>
    %77 = vector.shape_cast %76 : vector<128xf32> to vector<1x128xf32>
    %c0_55 = arith.constant 0 : index
    %c0_56 = arith.constant 0 : index
    %c0_57 = arith.constant 0 : index
    %78 = vector.load %arg6[%c0_55, %c0_56, %c0_57] : memref<1x1x128xf32, #tpu.memory_space<vmem>>, vector<1x1x128xf32>
    %79 = vector.shape_cast %78 : vector<1x1x128xf32> to vector<1x128xf32>
    %80 = vector.shape_cast %77 : vector<1x128xf32> to vector<1x1x128xf32>
    tpu.vector_store %arg6[%c0_55, %c0_56, %c0_57], %80 {strides = array<i32>} : memref<1x1x128xf32, #tpu.memory_space<vmem>>, vector<1x1x128xf32>,
    %81 = vector.extract_strided_slice %1 {offsets = [1, 1, 0], sizes = [16, 16, 128], strides = [1, 1, 1]} : vector<18x18x128xf32> to vector<16x16x128xf32>
    %82 = vector.shape_cast %81 : vector<16x16x128xf32> to vector<256x128xf32>
    %83 = arith.truncf %82 : vector<256x128xf32> to vector<256x128xbf16>
    %c0_58 = arith.constant 0 : index
    %c0_59 = arith.constant 0 : index
    %84 = vector.load %arg3[%c0_58, %c0_59] : memref<128x128xbf16, #tpu.memory_space<vmem>>, vector<128x128xbf16>
    %cst_60 = arith.constant dense<0.000000e+00> : vector<256x128xf32>
    %85 = tpu.matmul %83, %84, %cst_60 {dimension_numbers = #tpu.dot_dimension_numbers<[1], [0], [0], [1], [0, 0, 1, 1], [], []>} : vector<256x128xbf16>, vector<128x128xbf16>, vector<256x128xf32> -> vector<256x128xf32>
    %86 = vector.shape_cast %85 : vector<256x128xf32> to vector<16x16x128xf32>
    %c0_61 = arith.constant 0 : index
    %c0_62 = arith.constant 0 : index
    %c0_63 = arith.constant 0 : index
    %c0_64 = arith.constant 0 : index
    %87 = vector.load %arg7[%c0_61, %c0_62, %c0_63, %c0_64] : memref<1x16x16x128xf32, #tpu.memory_space<vmem>>, vector<1x16x16x128xf32>
    %88 = vector.shape_cast %87 : vector<1x16x16x128xf32> to vector<16x16x128xf32>
    %89 = vector.shape_cast %86 : vector<16x16x128xf32> to vector<1x16x16x128xf32>
    tpu.vector_store %arg7[%c0_61, %c0_62, %c0_63, %c0_64], %89 {strides = array<i32>} : memref<1x16x16x128xf32, #tpu.memory_space<vmem>>, vector<1x16x16x128xf32>,
    %cst_65 = arith.constant dense<0.000000e+00> : vector<128xf32>
    %90 = vector.multi_reduction <add>, %85, %cst_65 [0] : vector<256x128xf32> to vector<128xf32>
    %91 = vector.shape_cast %90 : vector<128xf32> to vector<1x128xf32>
    %c0_66 = arith.constant 0 : index
    %c0_67 = arith.constant 0 : index
    %c0_68 = arith.constant 0 : index
    %92 = vector.load %arg8[%c0_66, %c0_67, %c0_68] : memref<1x1x128xf32, #tpu.memory_space<vmem>>, vector<1x1x128xf32>
    %93 = vector.shape_cast %92 : vector<1x1x128xf32> to vector<1x128xf32>
    %94 = vector.shape_cast %91 : vector<1x128xf32> to vector<1x1x128xf32>
    tpu.vector_store %arg8[%c0_66, %c0_67, %c0_68], %94 {strides = array<i32>} : memref<1x1x128xf32, #tpu.memory_space<vmem>>, vector<1x1x128xf32>,
    %95 = arith.mulf %85, %85 : vector<256x128xf32>
    %cst_69 = arith.constant dense<0.000000e+00> : vector<128xf32>
    %96 = vector.multi_reduction <add>, %95, %cst_69 [0] : vector<256x128xf32> to vector<128xf32>
    %97 = vector.shape_cast %96 : vector<128xf32> to vector<1x128xf32>
    %c0_70 = arith.constant 0 : index
    %c0_71 = arith.constant 0 : index
    %c0_72 = arith.constant 0 : index
    %98 = vector.load %arg9[%c0_70, %c0_71, %c0_72] : memref<1x1x128xf32, #tpu.memory_space<vmem>>, vector<1x1x128xf32>
    %99 = vector.shape_cast %98 : vector<1x1x128xf32> to vector<1x128xf32>
    %100 = vector.shape_cast %97 : vector<1x128xf32> to vector<1x1x128xf32>
    tpu.vector_store %arg9[%c0_70, %c0_71, %c0_72], %100 {strides = array<i32>} : memref<1x1x128xf32, #tpu.memory_space<vmem>>, vector<1x1x128xf32>,
    return
  }
  func.func @transform_0(%arg0: i32) -> (i32, i32, i32, i32) {
    %c0_i32 = arith.constant 0 : i32
    %c0_i32_0 = arith.constant 0 : i32
    %c0_i32_1 = arith.constant 0 : i32
    %c0_i32_2 = arith.constant 0 : i32
    return %arg0, %c0_i32, %c0_i32_0, %c0_i32_1 : i32, i32, i32, i32
  }
  func.func @transform_1(%arg0: i32) -> (i32, i32, i32, i32) {
    %c0_i32 = arith.constant 0 : i32
    %c0_i32_0 = arith.constant 0 : i32
    %c0_i32_1 = arith.constant 0 : i32
    %c0_i32_2 = arith.constant 0 : i32
    %c0_i32_3 = arith.constant 0 : i32
    return %c0_i32, %c0_i32_0, %c0_i32_1, %c0_i32_2 : i32, i32, i32, i32
  }
  func.func @transform_2(%arg0: i32) -> (i32, i32) {
    %c0_i32 = arith.constant 0 : i32
    %c0_i32_0 = arith.constant 0 : i32
    %c0_i32_1 = arith.constant 0 : i32
    return %c0_i32, %c0_i32_0 : i32, i32
  }
  func.func @transform_3(%arg0: i32) -> (i32, i32, i32, i32) {
    %c0_i32 = arith.constant 0 : i32
    %c0_i32_0 = arith.constant 0 : i32
    %c0_i32_1 = arith.constant 0 : i32
    %c0_i32_2 = arith.constant 0 : i32
    return %arg0, %c0_i32, %c0_i32_0, %c0_i32_1 : i32, i32, i32, i32
  }
  func.func @transform_4(%arg0: i32) -> (i32, i32, i32) {
    %c0_i32 = arith.constant 0 : i32
    %c0_i32_0 = arith.constant 0 : i32
    %c0_i32_1 = arith.constant 0 : i32
    return %arg0, %c0_i32, %c0_i32_0 : i32, i32, i32
  }
  func.func @transform_5(%arg0: i32) -> (i32, i32, i32) {
    %c0_i32 = arith.constant 0 : i32
    %c0_i32_0 = arith.constant 0 : i32
    %c0_i32_1 = arith.constant 0 : i32
    return %arg0, %c0_i32, %c0_i32_0 : i32, i32, i32
  }
  func.func @transform_6(%arg0: i32) -> (i32, i32, i32, i32) {
    %c0_i32 = arith.constant 0 : i32
    %c0_i32_0 = arith.constant 0 : i32
    %c0_i32_1 = arith.constant 0 : i32
    %c0_i32_2 = arith.constant 0 : i32
    return %arg0, %c0_i32, %c0_i32_0, %c0_i32_1 : i32, i32, i32, i32
  }
  func.func @transform_7(%arg0: i32) -> (i32, i32, i32) {
    %c0_i32 = arith.constant 0 : i32
    %c0_i32_0 = arith.constant 0 : i32
    %c0_i32_1 = arith.constant 0 : i32
    return %arg0, %c0_i32, %c0_i32_0 : i32, i32, i32
  }
  func.func @transform_8(%arg0: i32) -> (i32, i32, i32) {
    %c0_i32 = arith.constant 0 : i32
    %c0_i32_0 = arith.constant 0 : i32
    %c0_i32_1 = arith.constant 0 : i32
    return %arg0, %c0_i32, %c0_i32_0 : i32, i32, i32
  }
}

module attributes {stable_mosaic.version = 11 : i64} {
  func.func @body(%arg0: i32, %arg1: memref<1x16x16x128xf32, #tpu.memory_space<vmem>>, %arg2: memref<1x16x16x128xf32, #tpu.memory_space<vmem>>, %arg3: memref<1x1x128xf32, #tpu.memory_space<vmem>>, %arg4: memref<1x1x128xf32, #tpu.memory_space<vmem>>, %arg5: memref<1x1x128xf32, #tpu.memory_space<vmem>>, %arg6: memref<1x1x128xf32, #tpu.memory_space<vmem>>, %arg7: memref<1x16x16x128xf32, #tpu.memory_space<vmem>>) attributes {dimension_semantics = [#tpu.dimension_semantics<parallel>], iteration_bounds = array<i64: 2>, scalar_prefetch = 0 : i64, scratch_operands = 0 : i64, tpu.core_type = #tpu.core_type<tc>, window_params = [{transform_indices = @transform_0, window_bounds = array<i64: 1, 16, 16, 128>}, {transform_indices = @transform_1, window_bounds = array<i64: 1, 16, 16, 128>}, {pipeline_mode = #tpu.pipeline_mode<synchronous>, transform_indices = @transform_2, window_bounds = array<i64: 1, 1, 128>}, {pipeline_mode = #tpu.pipeline_mode<synchronous>, transform_indices = @transform_3, window_bounds = array<i64: 1, 1, 128>}, {pipeline_mode = #tpu.pipeline_mode<synchronous>, transform_indices = @transform_4, window_bounds = array<i64: 1, 1, 128>}, {pipeline_mode = #tpu.pipeline_mode<synchronous>, transform_indices = @transform_5, window_bounds = array<i64: 1, 1, 128>}, {transform_indices = @transform_6, window_bounds = array<i64: 1, 16, 16, 128>}]} {
    %c0 = arith.constant 0 : index
    %c0_0 = arith.constant 0 : index
    %c0_1 = arith.constant 0 : index
    %c0_2 = arith.constant 0 : index
    %0 = vector.load %arg1[%c0, %c0_0, %c0_1, %c0_2] : memref<1x16x16x128xf32, #tpu.memory_space<vmem>>, vector<1x16x16x128xf32>
    %1 = vector.shape_cast %0 : vector<1x16x16x128xf32> to vector<16x16x128xf32>
    %c0_3 = arith.constant 0 : index
    %c0_4 = arith.constant 0 : index
    %c0_5 = arith.constant 0 : index
    %2 = vector.load %arg3[%c0_3, %c0_4, %c0_5] : memref<1x1x128xf32, #tpu.memory_space<vmem>>, vector<1x1x128xf32>
    %3 = vector.broadcast %2 : vector<1x1x128xf32> to vector<16x16x128xf32>
    %4 = arith.mulf %1, %3 : vector<16x16x128xf32>
    %c0_6 = arith.constant 0 : index
    %c0_7 = arith.constant 0 : index
    %c0_8 = arith.constant 0 : index
    %5 = vector.load %arg4[%c0_6, %c0_7, %c0_8] : memref<1x1x128xf32, #tpu.memory_space<vmem>>, vector<1x1x128xf32>
    %6 = vector.broadcast %5 : vector<1x1x128xf32> to vector<16x16x128xf32>
    %7 = arith.addf %4, %6 : vector<16x16x128xf32>
    %c0_9 = arith.constant 0 : index
    %c0_10 = arith.constant 0 : index
    %c0_11 = arith.constant 0 : index
    %c0_12 = arith.constant 0 : index
    %8 = vector.load %arg2[%c0_9, %c0_10, %c0_11, %c0_12] : memref<1x16x16x128xf32, #tpu.memory_space<vmem>>, vector<1x16x16x128xf32>
    %9 = vector.shape_cast %8 : vector<1x16x16x128xf32> to vector<16x16x128xf32>
    %c0_13 = arith.constant 0 : index
    %c0_14 = arith.constant 0 : index
    %c0_15 = arith.constant 0 : index
    %10 = vector.load %arg5[%c0_13, %c0_14, %c0_15] : memref<1x1x128xf32, #tpu.memory_space<vmem>>, vector<1x1x128xf32>
    %11 = vector.broadcast %10 : vector<1x1x128xf32> to vector<16x16x128xf32>
    %12 = arith.mulf %9, %11 : vector<16x16x128xf32>
    %c0_16 = arith.constant 0 : index
    %c0_17 = arith.constant 0 : index
    %c0_18 = arith.constant 0 : index
    %13 = vector.load %arg6[%c0_16, %c0_17, %c0_18] : memref<1x1x128xf32, #tpu.memory_space<vmem>>, vector<1x1x128xf32>
    %14 = vector.broadcast %13 : vector<1x1x128xf32> to vector<16x16x128xf32>
    %15 = arith.addf %12, %14 : vector<16x16x128xf32>
    %16 = arith.addf %7, %15 : vector<16x16x128xf32>
    %cst = arith.constant 0.000000e+00 : f32
    %17 = vector.broadcast %cst : f32 to vector<16x16x128xf32>
    %18 = arith.maximumf %16, %17 : vector<16x16x128xf32>
    %c0_19 = arith.constant 0 : index
    %c0_20 = arith.constant 0 : index
    %c0_21 = arith.constant 0 : index
    %c0_22 = arith.constant 0 : index
    %19 = vector.load %arg7[%c0_19, %c0_20, %c0_21, %c0_22] : memref<1x16x16x128xf32, #tpu.memory_space<vmem>>, vector<1x16x16x128xf32>
    %20 = vector.shape_cast %19 : vector<1x16x16x128xf32> to vector<16x16x128xf32>
    %21 = vector.shape_cast %18 : vector<16x16x128xf32> to vector<1x16x16x128xf32>
    tpu.vector_store %arg7[%c0_19, %c0_20, %c0_21, %c0_22], %21 {strides = array<i32>} : memref<1x16x16x128xf32, #tpu.memory_space<vmem>>, vector<1x16x16x128xf32>,
    return
  }
  func.func @transform_0(%arg0: i32) -> (i32, i32, i32, i32) {
    %c0_i32 = arith.constant 0 : i32
    %c0_i32_0 = arith.constant 0 : i32
    %c0_i32_1 = arith.constant 0 : i32
    %c0_i32_2 = arith.constant 0 : i32
    return %arg0, %c0_i32, %c0_i32_0, %c0_i32_1 : i32, i32, i32, i32
  }
  func.func @transform_1(%arg0: i32) -> (i32, i32, i32, i32) {
    %c0_i32 = arith.constant 0 : i32
    %c0_i32_0 = arith.constant 0 : i32
    %c0_i32_1 = arith.constant 0 : i32
    %c0_i32_2 = arith.constant 0 : i32
    return %arg0, %c0_i32, %c0_i32_0, %c0_i32_1 : i32, i32, i32, i32
  }
  func.func @transform_2(%arg0: i32) -> (i32, i32, i32) {
    %c0_i32 = arith.constant 0 : i32
    %c0_i32_0 = arith.constant 0 : i32
    %c0_i32_1 = arith.constant 0 : i32
    %c0_i32_2 = arith.constant 0 : i32
    return %c0_i32, %c0_i32_0, %c0_i32_1 : i32, i32, i32
  }
  func.func @transform_3(%arg0: i32) -> (i32, i32, i32) {
    %c0_i32 = arith.constant 0 : i32
    %c0_i32_0 = arith.constant 0 : i32
    %c0_i32_1 = arith.constant 0 : i32
    %c0_i32_2 = arith.constant 0 : i32
    return %c0_i32, %c0_i32_0, %c0_i32_1 : i32, i32, i32
  }
  func.func @transform_4(%arg0: i32) -> (i32, i32, i32) {
    %c0_i32 = arith.constant 0 : i32
    %c0_i32_0 = arith.constant 0 : i32
    %c0_i32_1 = arith.constant 0 : i32
    %c0_i32_2 = arith.constant 0 : i32
    return %c0_i32, %c0_i32_0, %c0_i32_1 : i32, i32, i32
  }
  func.func @transform_5(%arg0: i32) -> (i32, i32, i32) {
    %c0_i32 = arith.constant 0 : i32
    %c0_i32_0 = arith.constant 0 : i32
    %c0_i32_1 = arith.constant 0 : i32
    %c0_i32_2 = arith.constant 0 : i32
    return %c0_i32, %c0_i32_0, %c0_i32_1 : i32, i32, i32
  }
  func.func @transform_6(%arg0: i32) -> (i32, i32, i32, i32) {
    %c0_i32 = arith.constant 0 : i32
    %c0_i32_0 = arith.constant 0 : i32
    %c0_i32_1 = arith.constant 0 : i32
    %c0_i32_2 = arith.constant 0 : i32
    return %arg0, %c0_i32, %c0_i32_0, %c0_i32_1 : i32, i32, i32, i32
  }
}

module attributes {stable_mosaic.version = 11 : i64} {
  func.func @body(%arg0: i32, %arg1: memref<1x18x18x128xf32, #tpu.memory_space<vmem>>, %arg2: memref<3x3x128x128xbf16, #tpu.memory_space<vmem>>, %arg3: memref<1x1x128xf32, #tpu.memory_space<vmem>>, %arg4: memref<1x1x128xf32, #tpu.memory_space<vmem>>, %arg5: memref<1x16x16x128xf32, #tpu.memory_space<vmem>>, %arg6: memref<1x1x128xf32, #tpu.memory_space<vmem>>, %arg7: memref<1x1x128xf32, #tpu.memory_space<vmem>>) attributes {dimension_semantics = [#tpu.dimension_semantics<parallel>], iteration_bounds = array<i64: 2>, scalar_prefetch = 0 : i64, scratch_operands = 0 : i64, tpu.core_type = #tpu.core_type<tc>, window_params = [{transform_indices = @transform_0, window_bounds = array<i64: 1, 18, 18, 128>}, {pipeline_mode = #tpu.pipeline_mode<synchronous>, transform_indices = @transform_1, window_bounds = array<i64: 3, 3, 128, 128>}, {pipeline_mode = #tpu.pipeline_mode<synchronous>, transform_indices = @transform_2, window_bounds = array<i64: 1, 1, 128>}, {pipeline_mode = #tpu.pipeline_mode<synchronous>, transform_indices = @transform_3, window_bounds = array<i64: 1, 1, 128>}, {transform_indices = @transform_4, window_bounds = array<i64: 1, 16, 16, 128>}, {transform_indices = @transform_5, window_bounds = array<i64: 1, 1, 128>}, {transform_indices = @transform_6, window_bounds = array<i64: 1, 1, 128>}]} {
    %c0 = arith.constant 0 : index
    %c0_0 = arith.constant 0 : index
    %c0_1 = arith.constant 0 : index
    %c0_2 = arith.constant 0 : index
    %0 = vector.load %arg1[%c0, %c0_0, %c0_1, %c0_2] : memref<1x18x18x128xf32, #tpu.memory_space<vmem>>, vector<1x18x18x128xf32>
    %1 = vector.shape_cast %0 : vector<1x18x18x128xf32> to vector<18x18x128xf32>
    %c0_3 = arith.constant 0 : index
    %c0_4 = arith.constant 0 : index
    %c0_5 = arith.constant 0 : index
    %2 = vector.load %arg3[%c0_3, %c0_4, %c0_5] : memref<1x1x128xf32, #tpu.memory_space<vmem>>, vector<1x1x128xf32>
    %3 = vector.broadcast %2 : vector<1x1x128xf32> to vector<18x18x128xf32>
    %4 = arith.mulf %1, %3 : vector<18x18x128xf32>
    %c0_6 = arith.constant 0 : index
    %c0_7 = arith.constant 0 : index
    %c0_8 = arith.constant 0 : index
    %5 = vector.load %arg4[%c0_6, %c0_7, %c0_8] : memref<1x1x128xf32, #tpu.memory_space<vmem>>, vector<1x1x128xf32>
    %6 = vector.broadcast %5 : vector<1x1x128xf32> to vector<18x18x128xf32>
    %7 = arith.addf %4, %6 : vector<18x18x128xf32>
    %cst = arith.constant 0.000000e+00 : f32
    %8 = vector.broadcast %cst : f32 to vector<18x18x128xf32>
    %9 = arith.maximumf %7, %8 : vector<18x18x128xf32>
    %10 = tpu.iota {dimensions = array<i32: 0>} : vector<18x18x128xi32>
    %11 = tpu.iota {dimensions = array<i32: 1>} : vector<18x18x128xi32>
    %c1_i32 = arith.constant 1 : i32
    %12 = vector.broadcast %c1_i32 : i32 to vector<18x18x128xi32>
    %13 = arith.cmpi sge, %10, %12 : vector<18x18x128xi32>
    %c16_i32 = arith.constant 16 : i32
    %14 = vector.broadcast %c16_i32 : i32 to vector<18x18x128xi32>
    %15 = arith.cmpi sle, %10, %14 : vector<18x18x128xi32>
    %16 = arith.andi %13, %15 : vector<18x18x128xi1>
    %c1_i32_9 = arith.constant 1 : i32
    %17 = vector.broadcast %c1_i32_9 : i32 to vector<18x18x128xi32>
    %18 = arith.cmpi sge, %11, %17 : vector<18x18x128xi32>
    %19 = arith.andi %16, %18 : vector<18x18x128xi1>
    %c16_i32_10 = arith.constant 16 : i32
    %20 = vector.broadcast %c16_i32_10 : i32 to vector<18x18x128xi32>
    %21 = arith.cmpi sle, %11, %20 : vector<18x18x128xi32>
    %22 = arith.andi %19, %21 : vector<18x18x128xi1>
    %cst_11 = arith.constant 0.000000e+00 : f32
    %23 = vector.broadcast %cst_11 : f32 to vector<18x18x128xf32>
    %24 = arith.select %22, %9, %23 : vector<18x18x128xi1>, vector<18x18x128xf32>
    %cst_12 = arith.constant 0.000000e+00 : f32
    %25 = vector.broadcast %cst_12 : f32 to vector<256x128xf32>
    %26 = vector.extract_strided_slice %24 {offsets = [0, 0, 0], sizes = [16, 16, 128], strides = [1, 1, 1]} : vector<18x18x128xf32> to vector<16x16x128xf32>
    %27 = vector.shape_cast %26 : vector<16x16x128xf32> to vector<256x128xf32>
    %28 = arith.truncf %27 : vector<256x128xf32> to vector<256x128xbf16>
    %c0_13 = arith.constant 0 : index
    %c0_14 = arith.constant 0 : index
    %c0_15 = arith.constant 0 : index
    %c0_16 = arith.constant 0 : index
    %29 = vector.load %arg2[%c0_13, %c0_14, %c0_15, %c0_16] : memref<3x3x128x128xbf16, #tpu.memory_space<vmem>>, vector<1x1x128x128xbf16>
    %30 = vector.shape_cast %29 : vector<1x1x128x128xbf16> to vector<128x128xbf16>
    %cst_17 = arith.constant dense<0.000000e+00> : vector<256x128xf32>
    %31 = tpu.matmul %28, %30, %cst_17 {dimension_numbers = #tpu.dot_dimension_numbers<[1], [0], [0], [1], [0, 0, 1, 1], [], []>} : vector<256x128xbf16>, vector<128x128xbf16>, vector<256x128xf32> -> vector<256x128xf32>
    %32 = arith.addf %25, %31 : vector<256x128xf32>
    %33 = vector.extract_strided_slice %24 {offsets = [0, 1, 0], sizes = [16, 16, 128], strides = [1, 1, 1]} : vector<18x18x128xf32> to vector<16x16x128xf32>
    %34 = vector.shape_cast %33 : vector<16x16x128xf32> to vector<256x128xf32>
    %35 = arith.truncf %34 : vector<256x128xf32> to vector<256x128xbf16>
    %c0_18 = arith.constant 0 : index
    %c1 = arith.constant 1 : index
    %c0_19 = arith.constant 0 : index
    %c0_20 = arith.constant 0 : index
    %36 = vector.load %arg2[%c0_18, %c1, %c0_19, %c0_20] : memref<3x3x128x128xbf16, #tpu.memory_space<vmem>>, vector<1x1x128x128xbf16>
    %37 = vector.shape_cast %36 : vector<1x1x128x128xbf16> to vector<128x128xbf16>
    %cst_21 = arith.constant dense<0.000000e+00> : vector<256x128xf32>
    %38 = tpu.matmul %35, %37, %cst_21 {dimension_numbers = #tpu.dot_dimension_numbers<[1], [0], [0], [1], [0, 0, 1, 1], [], []>} : vector<256x128xbf16>, vector<128x128xbf16>, vector<256x128xf32> -> vector<256x128xf32>
    %39 = arith.addf %32, %38 : vector<256x128xf32>
    %40 = vector.extract_strided_slice %24 {offsets = [0, 2, 0], sizes = [16, 16, 128], strides = [1, 1, 1]} : vector<18x18x128xf32> to vector<16x16x128xf32>
    %41 = vector.shape_cast %40 : vector<16x16x128xf32> to vector<256x128xf32>
    %42 = arith.truncf %41 : vector<256x128xf32> to vector<256x128xbf16>
    %c0_22 = arith.constant 0 : index
    %c2 = arith.constant 2 : index
    %c0_23 = arith.constant 0 : index
    %c0_24 = arith.constant 0 : index
    %43 = vector.load %arg2[%c0_22, %c2, %c0_23, %c0_24] : memref<3x3x128x128xbf16, #tpu.memory_space<vmem>>, vector<1x1x128x128xbf16>
    %44 = vector.shape_cast %43 : vector<1x1x128x128xbf16> to vector<128x128xbf16>
    %cst_25 = arith.constant dense<0.000000e+00> : vector<256x128xf32>
    %45 = tpu.matmul %42, %44, %cst_25 {dimension_numbers = #tpu.dot_dimension_numbers<[1], [0], [0], [1], [0, 0, 1, 1], [], []>} : vector<256x128xbf16>, vector<128x128xbf16>, vector<256x128xf32> -> vector<256x128xf32>
    %46 = arith.addf %39, %45 : vector<256x128xf32>
    %47 = vector.extract_strided_slice %24 {offsets = [1, 0, 0], sizes = [16, 16, 128], strides = [1, 1, 1]} : vector<18x18x128xf32> to vector<16x16x128xf32>
    %48 = vector.shape_cast %47 : vector<16x16x128xf32> to vector<256x128xf32>
    %49 = arith.truncf %48 : vector<256x128xf32> to vector<256x128xbf16>
    %c1_26 = arith.constant 1 : index
    %c0_27 = arith.constant 0 : index
    %c0_28 = arith.constant 0 : index
    %c0_29 = arith.constant 0 : index
    %50 = vector.load %arg2[%c1_26, %c0_27, %c0_28, %c0_29] : memref<3x3x128x128xbf16, #tpu.memory_space<vmem>>, vector<1x1x128x128xbf16>
    %51 = vector.shape_cast %50 : vector<1x1x128x128xbf16> to vector<128x128xbf16>
    %cst_30 = arith.constant dense<0.000000e+00> : vector<256x128xf32>
    %52 = tpu.matmul %49, %51, %cst_30 {dimension_numbers = #tpu.dot_dimension_numbers<[1], [0], [0], [1], [0, 0, 1, 1], [], []>} : vector<256x128xbf16>, vector<128x128xbf16>, vector<256x128xf32> -> vector<256x128xf32>
    %53 = arith.addf %46, %52 : vector<256x128xf32>
    %54 = vector.extract_strided_slice %24 {offsets = [1, 1, 0], sizes = [16, 16, 128], strides = [1, 1, 1]} : vector<18x18x128xf32> to vector<16x16x128xf32>
    %55 = vector.shape_cast %54 : vector<16x16x128xf32> to vector<256x128xf32>
    %56 = arith.truncf %55 : vector<256x128xf32> to vector<256x128xbf16>
    %c1_31 = arith.constant 1 : index
    %c1_32 = arith.constant 1 : index
    %c0_33 = arith.constant 0 : index
    %c0_34 = arith.constant 0 : index
    %57 = vector.load %arg2[%c1_31, %c1_32, %c0_33, %c0_34] : memref<3x3x128x128xbf16, #tpu.memory_space<vmem>>, vector<1x1x128x128xbf16>
    %58 = vector.shape_cast %57 : vector<1x1x128x128xbf16> to vector<128x128xbf16>
    %cst_35 = arith.constant dense<0.000000e+00> : vector<256x128xf32>
    %59 = tpu.matmul %56, %58, %cst_35 {dimension_numbers = #tpu.dot_dimension_numbers<[1], [0], [0], [1], [0, 0, 1, 1], [], []>} : vector<256x128xbf16>, vector<128x128xbf16>, vector<256x128xf32> -> vector<256x128xf32>
    %60 = arith.addf %53, %59 : vector<256x128xf32>
    %61 = vector.extract_strided_slice %24 {offsets = [1, 2, 0], sizes = [16, 16, 128], strides = [1, 1, 1]} : vector<18x18x128xf32> to vector<16x16x128xf32>
    %62 = vector.shape_cast %61 : vector<16x16x128xf32> to vector<256x128xf32>
    %63 = arith.truncf %62 : vector<256x128xf32> to vector<256x128xbf16>
    %c1_36 = arith.constant 1 : index
    %c2_37 = arith.constant 2 : index
    %c0_38 = arith.constant 0 : index
    %c0_39 = arith.constant 0 : index
    %64 = vector.load %arg2[%c1_36, %c2_37, %c0_38, %c0_39] : memref<3x3x128x128xbf16, #tpu.memory_space<vmem>>, vector<1x1x128x128xbf16>
    %65 = vector.shape_cast %64 : vector<1x1x128x128xbf16> to vector<128x128xbf16>
    %cst_40 = arith.constant dense<0.000000e+00> : vector<256x128xf32>
    %66 = tpu.matmul %63, %65, %cst_40 {dimension_numbers = #tpu.dot_dimension_numbers<[1], [0], [0], [1], [0, 0, 1, 1], [], []>} : vector<256x128xbf16>, vector<128x128xbf16>, vector<256x128xf32> -> vector<256x128xf32>
    %67 = arith.addf %60, %66 : vector<256x128xf32>
    %68 = vector.extract_strided_slice %24 {offsets = [2, 0, 0], sizes = [16, 16, 128], strides = [1, 1, 1]} : vector<18x18x128xf32> to vector<16x16x128xf32>
    %69 = vector.shape_cast %68 : vector<16x16x128xf32> to vector<256x128xf32>
    %70 = arith.truncf %69 : vector<256x128xf32> to vector<256x128xbf16>
    %c2_41 = arith.constant 2 : index
    %c0_42 = arith.constant 0 : index
    %c0_43 = arith.constant 0 : index
    %c0_44 = arith.constant 0 : index
    %71 = vector.load %arg2[%c2_41, %c0_42, %c0_43, %c0_44] : memref<3x3x128x128xbf16, #tpu.memory_space<vmem>>, vector<1x1x128x128xbf16>
    %72 = vector.shape_cast %71 : vector<1x1x128x128xbf16> to vector<128x128xbf16>
    %cst_45 = arith.constant dense<0.000000e+00> : vector<256x128xf32>
    %73 = tpu.matmul %70, %72, %cst_45 {dimension_numbers = #tpu.dot_dimension_numbers<[1], [0], [0], [1], [0, 0, 1, 1], [], []>} : vector<256x128xbf16>, vector<128x128xbf16>, vector<256x128xf32> -> vector<256x128xf32>
    %74 = arith.addf %67, %73 : vector<256x128xf32>
    %75 = vector.extract_strided_slice %24 {offsets = [2, 1, 0], sizes = [16, 16, 128], strides = [1, 1, 1]} : vector<18x18x128xf32> to vector<16x16x128xf32>
    %76 = vector.shape_cast %75 : vector<16x16x128xf32> to vector<256x128xf32>
    %77 = arith.truncf %76 : vector<256x128xf32> to vector<256x128xbf16>
    %c2_46 = arith.constant 2 : index
    %c1_47 = arith.constant 1 : index
    %c0_48 = arith.constant 0 : index
    %c0_49 = arith.constant 0 : index
    %78 = vector.load %arg2[%c2_46, %c1_47, %c0_48, %c0_49] : memref<3x3x128x128xbf16, #tpu.memory_space<vmem>>, vector<1x1x128x128xbf16>
    %79 = vector.shape_cast %78 : vector<1x1x128x128xbf16> to vector<128x128xbf16>
    %cst_50 = arith.constant dense<0.000000e+00> : vector<256x128xf32>
    %80 = tpu.matmul %77, %79, %cst_50 {dimension_numbers = #tpu.dot_dimension_numbers<[1], [0], [0], [1], [0, 0, 1, 1], [], []>} : vector<256x128xbf16>, vector<128x128xbf16>, vector<256x128xf32> -> vector<256x128xf32>
    %81 = arith.addf %74, %80 : vector<256x128xf32>
    %82 = vector.extract_strided_slice %24 {offsets = [2, 2, 0], sizes = [16, 16, 128], strides = [1, 1, 1]} : vector<18x18x128xf32> to vector<16x16x128xf32>
    %83 = vector.shape_cast %82 : vector<16x16x128xf32> to vector<256x128xf32>
    %84 = arith.truncf %83 : vector<256x128xf32> to vector<256x128xbf16>
    %c2_51 = arith.constant 2 : index
    %c2_52 = arith.constant 2 : index
    %c0_53 = arith.constant 0 : index
    %c0_54 = arith.constant 0 : index
    %85 = vector.load %arg2[%c2_51, %c2_52, %c0_53, %c0_54] : memref<3x3x128x128xbf16, #tpu.memory_space<vmem>>, vector<1x1x128x128xbf16>
    %86 = vector.shape_cast %85 : vector<1x1x128x128xbf16> to vector<128x128xbf16>
    %cst_55 = arith.constant dense<0.000000e+00> : vector<256x128xf32>
    %87 = tpu.matmul %84, %86, %cst_55 {dimension_numbers = #tpu.dot_dimension_numbers<[1], [0], [0], [1], [0, 0, 1, 1], [], []>} : vector<256x128xbf16>, vector<128x128xbf16>, vector<256x128xf32> -> vector<256x128xf32>
    %88 = arith.addf %81, %87 : vector<256x128xf32>
    %89 = vector.shape_cast %88 : vector<256x128xf32> to vector<16x16x128xf32>
    %c0_56 = arith.constant 0 : index
    %c0_57 = arith.constant 0 : index
    %c0_58 = arith.constant 0 : index
    %c0_59 = arith.constant 0 : index
    %90 = vector.load %arg5[%c0_56, %c0_57, %c0_58, %c0_59] : memref<1x16x16x128xf32, #tpu.memory_space<vmem>>, vector<1x16x16x128xf32>
    %91 = vector.shape_cast %90 : vector<1x16x16x128xf32> to vector<16x16x128xf32>
    %92 = vector.shape_cast %89 : vector<16x16x128xf32> to vector<1x16x16x128xf32>
    tpu.vector_store %arg5[%c0_56, %c0_57, %c0_58, %c0_59], %92 {strides = array<i32>} : memref<1x16x16x128xf32, #tpu.memory_space<vmem>>, vector<1x16x16x128xf32>,
    %cst_60 = arith.constant dense<0.000000e+00> : vector<128xf32>
    %93 = vector.multi_reduction <add>, %88, %cst_60 [0] : vector<256x128xf32> to vector<128xf32>
    %94 = vector.shape_cast %93 : vector<128xf32> to vector<1x128xf32>
    %c0_61 = arith.constant 0 : index
    %c0_62 = arith.constant 0 : index
    %c0_63 = arith.constant 0 : index
    %95 = vector.load %arg6[%c0_61, %c0_62, %c0_63] : memref<1x1x128xf32, #tpu.memory_space<vmem>>, vector<1x1x128xf32>
    %96 = vector.shape_cast %95 : vector<1x1x128xf32> to vector<1x128xf32>
    %97 = vector.shape_cast %94 : vector<1x128xf32> to vector<1x1x128xf32>
    tpu.vector_store %arg6[%c0_61, %c0_62, %c0_63], %97 {strides = array<i32>} : memref<1x1x128xf32, #tpu.memory_space<vmem>>, vector<1x1x128xf32>,
    %98 = arith.mulf %88, %88 : vector<256x128xf32>
    %cst_64 = arith.constant dense<0.000000e+00> : vector<128xf32>
    %99 = vector.multi_reduction <add>, %98, %cst_64 [0] : vector<256x128xf32> to vector<128xf32>
    %100 = vector.shape_cast %99 : vector<128xf32> to vector<1x128xf32>
    %c0_65 = arith.constant 0 : index
    %c0_66 = arith.constant 0 : index
    %c0_67 = arith.constant 0 : index
    %101 = vector.load %arg7[%c0_65, %c0_66, %c0_67] : memref<1x1x128xf32, #tpu.memory_space<vmem>>, vector<1x1x128xf32>
    %102 = vector.shape_cast %101 : vector<1x1x128xf32> to vector<1x128xf32>
    %103 = vector.shape_cast %100 : vector<1x128xf32> to vector<1x1x128xf32>
    tpu.vector_store %arg7[%c0_65, %c0_66, %c0_67], %103 {strides = array<i32>} : memref<1x1x128xf32, #tpu.memory_space<vmem>>, vector<1x1x128xf32>,
    return
  }
  func.func @transform_0(%arg0: i32) -> (i32, i32, i32, i32) {
    %c0_i32 = arith.constant 0 : i32
    %c0_i32_0 = arith.constant 0 : i32
    %c0_i32_1 = arith.constant 0 : i32
    %c0_i32_2 = arith.constant 0 : i32
    return %arg0, %c0_i32, %c0_i32_0, %c0_i32_1 : i32, i32, i32, i32
  }
  func.func @transform_1(%arg0: i32) -> (i32, i32, i32, i32) {
    %c0_i32 = arith.constant 0 : i32
    %c0_i32_0 = arith.constant 0 : i32
    %c0_i32_1 = arith.constant 0 : i32
    %c0_i32_2 = arith.constant 0 : i32
    %c0_i32_3 = arith.constant 0 : i32
    return %c0_i32, %c0_i32_0, %c0_i32_1, %c0_i32_2 : i32, i32, i32, i32
  }
  func.func @transform_2(%arg0: i32) -> (i32, i32, i32) {
    %c0_i32 = arith.constant 0 : i32
    %c0_i32_0 = arith.constant 0 : i32
    %c0_i32_1 = arith.constant 0 : i32
    %c0_i32_2 = arith.constant 0 : i32
    return %c0_i32, %c0_i32_0, %c0_i32_1 : i32, i32, i32
  }
  func.func @transform_3(%arg0: i32) -> (i32, i32, i32) {
    %c0_i32 = arith.constant 0 : i32
    %c0_i32_0 = arith.constant 0 : i32
    %c0_i32_1 = arith.constant 0 : i32
    %c0_i32_2 = arith.constant 0 : i32
    return %c0_i32, %c0_i32_0, %c0_i32_1 : i32, i32, i32
  }
  func.func @transform_4(%arg0: i32) -> (i32, i32, i32, i32) {
    %c0_i32 = arith.constant 0 : i32
    %c0_i32_0 = arith.constant 0 : i32
    %c0_i32_1 = arith.constant 0 : i32
    %c0_i32_2 = arith.constant 0 : i32
    return %arg0, %c0_i32, %c0_i32_0, %c0_i32_1 : i32, i32, i32, i32
  }
  func.func @transform_5(%arg0: i32) -> (i32, i32, i32) {
    %c0_i32 = arith.constant 0 : i32
    %c0_i32_0 = arith.constant 0 : i32
    %c0_i32_1 = arith.constant 0 : i32
    return %arg0, %c0_i32, %c0_i32_0 : i32, i32, i32
  }
  func.func @transform_6(%arg0: i32) -> (i32, i32, i32) {
    %c0_i32 = arith.constant 0 : i32
    %c0_i32_0 = arith.constant 0 : i32
    %c0_i32_1 = arith.constant 0 : i32
    return %arg0, %c0_i32, %c0_i32_0 : i32, i32, i32
  }
}

</mosaic_0001>

<llo_original>
// kernel: basic_block_forward.5
$region0: #{basic_block_forward.5}
  #allocation0 [shape = 'u32[]', space=smem, size = 0x4, offset = 0x4, fixed_abs, tag = 'smem constant byte address 0x4 - core index']
  #allocation1 [shape = 'u32[72,128]{1,0:T(1,128)}', space=vmem, size = 0x9000, scoped, tag = 'internal scratch']
  %s0 = inlined_call_operand.vmem [shape: f32[2,16,16,128], index: 0, kind: input, shape index: {}]
  %s1 = inlined_call_operand.vmem [shape: f32[2,16,16,128], index: 1, kind: input, shape index: {}]
  %s2 = inlined_call_operand.vmem [shape: f32[1,1,128], index: 2, kind: input, shape index: {}]
  %s3 = inlined_call_operand.vmem [shape: f32[1,1,128], index: 3, kind: input, shape index: {}]
  %s4 = inlined_call_operand.vmem [shape: f32[1,1,128], index: 4, kind: input, shape index: {}]
  %s5 = inlined_call_operand.vmem [shape: f32[1,1,128], index: 5, kind: input, shape index: {}]
  %s6 = inlined_call_operand.vmem [shape: f32[2,16,16,128], index: 6, kind: output, shape index: {}]
  %s7 = sld [smem:[#allocation0]]
  $region57: #{basic_block_forward.5} parent=0
    _
  %s9 = ssub.s32 1, %s7
  %s10 = scalar_select 0, %s9, %s7
  loop: start=0, step=1, limit=4
  $region2: #{basic_block_forward.5} parent=0 // loop_pre_header
    _
  $region3: #{basic_block_forward.5} parent=0 // loop_header
    %s12 = sphi 0, %s16
    %p13 = scmp.ge.s32.totalorder %s12, 4
    %s22 = sphi 0, %s24
    %s25 = sphi 0, %s22
    %s26 = sphi 0, %s25
    %s42 = sphi 0, %s26
    %s48 = sphi 0, %s50
    %s51 = sphi 0, %s48
    %s52 = sphi 0, %s51
    %s68 = sphi 0, %s52
    %s72 = sphi 0, %s72
    %s74 = sphi 0, %s72
    %s75 = sphi 0, %s74
    %s89 = sphi 0, %s75
    %s93 = sphi 0, %s93
    %s95 = sphi 0, %s93
    %s96 = sphi 0, %s95
    %s110 = sphi 0, %s96
    %s114 = sphi 0, %s114
    %s116 = sphi 0, %s114
    %s117 = sphi 0, %s116
    %s131 = sphi 0, %s117
    %s135 = sphi 0, %s135
    %s137 = sphi 0, %s135
    %s138 = sphi 0, %s137
    %s152 = sphi 0, %s138
    %s158 = sphi 0, %s160
    %s161 = sphi 0, %s158
    %s162 = sphi 0, %s161
    %s178 = sphi 0, %s162
  $region4: #{basic_block_forward.5} parent=0 // loop_header_branch
    %15 = sbr.rel (%p13) target = $region8
  $region5: #{basic_block_forward.5} parent=0 // loop_body
    %s17 = ssub.s32 %s12, 1
    %s18 = ssub.s32 %s12, 2
    %s19 = sadd.s32 %s12, 1
    %s20 = ssub.s32 %s12, %s19
    %p21 = scmp.eq.s32.totalorder %s20, 0
    %s23 = sadd.s32 %s22, 1
    %s24 = scalar_select %p21, %s22, %s23
    %p27 = pneg %p21
    %p28 = scmp.eq.s32.totalorder %s12, 1
    %p29 = por %p27, %p28
    %p30 = scmp.ne.s32.totalorder %s22, %s25
    %p31 = scmp.eq.s32.totalorder %s12, 0
    %p32 = por %p30, %p31
    %p33 = scmp.ne.s32.totalorder %s22, %s25
    %p34 = scmp.eq.s32.totalorder %s17, 1
    %p35 = por %p33, %p34
    %p36 = scmp.ne.s32.totalorder %s25, %s26
    %p37 = scmp.eq.s32.totalorder %s17, 0
    %p38 = por %p36, %p37
    %p39 = scmp.ne.s32.totalorder %s25, %s26
    %p40 = scmp.eq.s32.totalorder %s18, 1
    %p41 = por %p39, %p40
    %p43 = scmp.ne.s32.totalorder %s26, %s42
    %p44 = scmp.eq.s32.totalorder %s18, 0
    %p45 = por %p43, %p44
    %s46 = ssub.s32 %s12, %s19
    %p47 = scmp.eq.s32.totalorder %s46, 0
    %s49 = sadd.s32 %s48, 1
    %s50 = scalar_select %p47, %s48, %s49
    %p53 = pneg %p47
    %p54 = scmp.eq.s32.totalorder %s12, 1
    %p55 = por %p53, %p54
    %p56 = scmp.ne.s32.totalorder %s48, %s51
    %p57 = scmp.eq.s32.totalorder %s12, 0
    %p58 = por %p56, %p57
    %p59 = scmp.ne.s32.totalorder %s48, %s51
    %p60 = scmp.eq.s32.totalorder %s17, 1
    %p61 = por %p59, %p60
    %p62 = scmp.ne.s32.totalorder %s51, %s52
    %p63 = scmp.eq.s32.totalorder %s17, 0
    %p64 = por %p62, %p63
    %p65 = scmp.ne.s32.totalorder %s51, %s52
    %p66 = scmp.eq.s32.totalorder %s18, 1
    %p67 = por %p65, %p66
    %p69 = scmp.ne.s32.totalorder %s52, %s68
    %p70 = scmp.eq.s32.totalorder %s18, 0
    %p71 = por %p69, %p70
    %s73 = sadd.s32 %s72, 1
    %p76 = scmp.eq.s32.totalorder %s12, 1
    %p77 = scmp.ne.s32.totalorder %s72, %s74
    %p78 = scmp.eq.s32.totalorder %s12, 0
    %p79 = por %p77, %p78
    %p80 = scmp.ne.s32.totalorder %s72, %s74
    %p81 = scmp.eq.s32.totalorder %s17, 1
    %p82 = por %p80, %p81
    %p83 = scmp.ne.s32.totalorder %s74, %s75
    %p84 = scmp.eq.s32.totalorder %s17, 0
    %p85 = por %p83, %p84
    %p86 = scmp.ne.s32.totalorder %s74, %s75
    %p87 = scmp.eq.s32.totalorder %s18, 1
    %p88 = por %p86, %p87
    %p90 = scmp.ne.s32.totalorder %s75, %s89
    %p91 = scmp.eq.s32.totalorder %s18, 0
    %p92 = por %p90, %p91
    %s94 = sadd.s32 %s93, 1
    %p97 = scmp.eq.s32.totalorder %s12, 1
    %p98 = scmp.ne.s32.totalorder %s93, %s95
    %p99 = scmp.eq.s32.totalorder %s12, 0
    %p100 = por %p98, %p99
    %p101 = scmp.ne.s32.totalorder %s93, %s95
    %p102 = scmp.eq.s32.totalorder %s17, 1
    %p103 = por %p101, %p102
    %p104 = scmp.ne.s32.totalorder %s95, %s96
    %p105 = scmp.eq.s32.totalorder %s17, 0
    %p106 = por %p104, %p105
    %p107 = scmp.ne.s32.totalorder %s95, %s96
    %p108 = scmp.eq.s32.totalorder %s18, 1
    %p109 = por %p107, %p108
    %p111 = scmp.ne.s32.totalorder %s96, %s110
    %p112 = scmp.eq.s32.totalorder %s18, 0
    %p113 = por %p111, %p112
    %s115 = sadd.s32 %s114, 1
    %p118 = scmp.eq.s32.totalorder %s12, 1
    %p119 = scmp.ne.s32.totalorder %s114, %s116
    %p120 = scmp.eq.s32.totalorder %s12, 0
    %p121 = por %p119, %p120
    %p122 = scmp.ne.s32.totalorder %s114, %s116
    %p123 = scmp.eq.s32.totalorder %s17, 1
    %p124 = por %p122, %p123
    %p125 = scmp.ne.s32.totalorder %s116, %s117
    %p126 = scmp.eq.s32.totalorder %s17, 0
    %p127 = por %p125, %p126
    %p128 = scmp.ne.s32.totalorder %s116, %s117
    %p129 = scmp.eq.s32.totalorder %s18, 1
    %p130 = por %p128, %p129
    %p132 = scmp.ne.s32.totalorder %s117, %s131
    %p133 = scmp.eq.s32.totalorder %s18, 0
    %p134 = por %p132, %p133
    %s136 = sadd.s32 %s135, 1
    %p139 = scmp.eq.s32.totalorder %s12, 1
    %p140 = scmp.ne.s32.totalorder %s135, %s137
    %p141 = scmp.eq.s32.totalorder %s12, 0
    %p142 = por %p140, %p141
    %p143 = scmp.ne.s32.totalorder %s135, %s137
    %p144 = scmp.eq.s32.totalorder %s17, 1
    %p145 = por %p143, %p144
    %p146 = scmp.ne.s32.totalorder %s137, %s138
    %p147 = scmp.eq.s32.totalorder %s17, 0
    %p148 = por %p146, %p147
    %p149 = scmp.ne.s32.totalorder %s137, %s138
    %p150 = scmp.eq.s32.totalorder %s18, 1
    %p151 = por %p149, %p150
    %p153 = scmp.ne.s32.totalorder %s138, %s152
    %p154 = scmp.eq.s32.totalorder %s18, 0
    %p155 = por %p153, %p154
    %s156 = ssub.s32 %s12, %s19
    %p157 = scmp.eq.s32.totalorder %s156, 0
    %s159 = sadd.s32 %s158, 1
    %s160 = scalar_select %p157, %s158, %s159
    %p163 = pneg %p157
    %p164 = scmp.eq.s32.totalorder %s12, 1
    %p165 = por %p163, %p164
    %p166 = scmp.ne.s32.totalorder %s158, %s161
    %p167 = scmp.eq.s32.totalorder %s12, 0
    %p168 = por %p166, %p167
    %p169 = scmp.ne.s32.totalorder %s158, %s161
    %p170 = scmp.eq.s32.totalorder %s17, 1
    %p171 = por %p169, %p170
    %p172 = scmp.ne.s32.totalorder %s161, %s162
    %p173 = scmp.eq.s32.totalorder %s17, 0
    %p174 = por %p172, %p173
    %p175 = scmp.ne.s32.totalorder %s161, %s162
    %p176 = scmp.eq.s32.totalorder %s18, 1
    %p177 = por %p175, %p176
    %p179 = scmp.ne.s32.totalorder %s162, %s178
    %p180 = scmp.eq.s32.totalorder %s18, 0
    %p181 = por %p179, %p180
    %p182 = scmp.le.s32.totalorder 1, %s12
    %p183 = scmp.lt.s32.totalorder %s12, 3
    %p184 = pnand %p182, %p183
    %p185 = pneg %p184
    // Predicated region
    $region9: #{basic_block_forward.5} parent=5 // pred_check
      _
    $region10: #{basic_block_forward.5} parent=5 // pred_check_branch
      %187 = sbr.rel (%p184) target = $region12
    $region11: #{basic_block_forward.5} parent=5 // pred_region
      %s188 = ssub.s32 %s12, 1
      // Predicated region
      $region13: #{basic_block_forward.5} parent=11 // pred_check
        %p189 = pneg %p85
      $region14: #{basic_block_forward.5} parent=11 // pred_check_branch
        %191 = sbr.rel (%p189) target = $region16
      $region15: #{basic_block_forward.5} parent=11 // pred_region
        _
      $region16: #{basic_block_forward.5} parent=11 // pred_fallthru
        _
      // Predicated region
      $region17: #{basic_block_forward.5} parent=11 // pred_check
        %p192 = pneg %p106
      $region18: #{basic_block_forward.5} parent=11 // pred_check_branch
        %194 = sbr.rel (%p192) target = $region20
      $region19: #{basic_block_forward.5} parent=11 // pred_region
        _
      $region20: #{basic_block_forward.5} parent=11 // pred_fallthru
        _
      // Predicated region
      $region21: #{basic_block_forward.5} parent=11 // pred_check
        %p195 = pneg %p127
      $region22: #{basic_block_forward.5} parent=11 // pred_check_branch
        %197 = sbr.rel (%p195) target = $region24
      $region23: #{basic_block_forward.5} parent=11 // pred_region
        _
      $region24: #{basic_block_forward.5} parent=11 // pred_fallthru
        _
      // Predicated region
      $region25: #{basic_block_forward.5} parent=11 // pred_check
        %p198 = pneg %p148
      $region26: #{basic_block_forward.5} parent=11 // pred_check_branch
        %200 = sbr.rel (%p198) target = $region28
      $region27: #{basic_block_forward.5} parent=11 // pred_region
        _
      $region28: #{basic_block_forward.5} parent=11 // pred_fallthru
        _
    $region12: #{basic_block_forward.5} parent=5 // pred_fallthru
      _
    %p201 = scmp.lt.s32.totalorder %s12, 2
    // Predicated region
    $region29: #{basic_block_forward.5} parent=5 // pred_check
      %p202 = pneg %p201
    $region30: #{basic_block_forward.5} parent=5 // pred_check_branch
      %204 = sbr.rel (%p202) target = $region32
    $region31: #{basic_block_forward.5} parent=5 // pred_region
      // Predicated region
      $region33: #{basic_block_forward.5} parent=31 // pred_check
        %p205 = pneg %p32
      $region34: #{basic_block_forward.5} parent=31 // pred_check_branch
        %207 = sbr.rel (%p205) target = $region36
      $region35: #{basic_block_forward.5} parent=31 // pred_region
        %p208 = scmp.lt.s32.totalorder %s12, 1
        %s209 = scalar_select %p208, %s12, 1
        %s210 = smul.addr %s209, 32
        %s211 = smul.addr %s210, 8
        %s212 = scalar_lea.vmem %s0, %s211
      $region36: #{basic_block_forward.5} parent=31 // pred_fallthru
        _
      // Predicated region
      $region37: #{basic_block_forward.5} parent=31 // pred_check
        %p213 = pneg %p58
      $region38: #{basic_block_forward.5} parent=31 // pred_check_branch
        %215 = sbr.rel (%p213) target = $region40
      $region39: #{basic_block_forward.5} parent=31 // pred_region
        %p216 = scmp.lt.s32.totalorder %s12, 1
        %s217 = scalar_select %p216, %s12, 1
        %s218 = smul.addr %s217, 32
        %s219 = smul.addr %s218, 8
        %s220 = scalar_lea.vmem %s1, %s219
      $region40: #{basic_block_forward.5} parent=31 // pred_fallthru
        _
    $region32: #{basic_block_forward.5} parent=5 // pred_fallthru
      _
    %p221 = scmp.le.s32.totalorder 1, %s12
    %p222 = scmp.lt.s32.totalorder %s12, 3
    %p223 = pnand %p221, %p222
    %p224 = pneg %p223
    // Predicated region
    $region41: #{basic_block_forward.5} parent=5 // pred_check
      _
    $region42: #{basic_block_forward.5} parent=5 // pred_check_branch
      %226 = sbr.rel (%p223) target = $region44
    $region43: #{basic_block_forward.5} parent=5 // pred_region
      %s227 = ssub.s32 %s12, 1
      %p228 = scmp.lt.s32.totalorder %s17, 1
      %s229 = scalar_select %p228, %s17, 1
      %s230 = smul.addr %s229, 32
      %s231 = smul.addr %s230, 8
      %s232 = scalar_lea.vmem %s0, %s231
      %p233 = pneg %p38
      %p234 = pneg %p35
      %p235 = scmp.lt.s32.totalorder %s17, 1
      %s236 = scalar_select %p235, %s17, 1
      %s237 = smul.addr %s236, 32
      %s238 = smul.addr %s237, 8
      %s239 = scalar_lea.vmem %s1, %s238
      %p240 = pneg %p64
      %p241 = pneg %p61
      %p242 = pneg %p85
      %p243 = pneg %p82
      %p244 = pneg %p106
      %p245 = pneg %p103
      %p246 = pneg %p127
      %p247 = pneg %p124
      %p248 = pneg %p148
      %p249 = pneg %p145
      %p250 = pneg %p174
      %p251 = pneg %p171
      %p252 = scmp.lt.s32.totalorder %s17, 1
      %s253 = scalar_select %p252, %s17, 1
      %s254 = smul.addr %s253, 32
      %s255 = smul.addr %s254, 8
      %s256 = scalar_lea.vmem %s6, %s255
      %p257 = scmp.lt.s32.totalorder %s17, 1
      %s258 = scalar_select %p257, %s17, 1
      %s259 = smul.addr %s258, 32
      %s260 = smul.addr %s259, 8
      %s261 = scalar_lea.vmem %s0, %s260
      %p262 = scmp.lt.s32.totalorder %s17, 1
      %s263 = scalar_select %p262, %s17, 1
      %s264 = smul.addr %s263, 32
      %s265 = smul.addr %s264, 8
      %s266 = scalar_lea.vmem %s1, %s265
      %p267 = scmp.lt.s32.totalorder %s17, 1
      %s268 = scalar_select %p267, %s17, 1
      %s269 = smul.addr %s268, 32
      %s270 = smul.addr %s269, 8
      %s271 = scalar_lea.vmem %s6, %s270
      %v272 = vld [vmem:[%s261] sm:$0xff]
      %v273 = vld [vmem:[%s261 + $0x8] sm:$0xff]
      %v274 = vld [vmem:[%s261 + $0x10] sm:$0xff]
      %v275 = vld [vmem:[%s261 + $0x18] sm:$0xff]
      %v276 = vld [vmem:[%s261 + $0x20] sm:$0xff]
      %v277 = vld [vmem:[%s261 + $0x28] sm:$0xff]
      %v278 = vld [vmem:[%s261 + $0x30] sm:$0xff]
      %v279 = vld [vmem:[%s261 + $0x38] sm:$0xff]
      %v280 = vld [vmem:[%s261 + $0x40] sm:$0xff]
      %v281 = vld [vmem:[%s261 + $0x48] sm:$0xff]
      %v282 = vld [vmem:[%s261 + $0x50] sm:$0xff]
      %v283 = vld [vmem:[%s261 + $0x58] sm:$0xff]
      %v284 = vld [vmem:[%s261 + $0x60] sm:$0xff]
      %v285 = vld [vmem:[%s261 + $0x68] sm:$0xff]
      %v286 = vld [vmem:[%s261 + $0x70] sm:$0xff]
      %v287 = vld [vmem:[%s261 + $0x78] sm:$0xff]
      %v288 = vld [vmem:[%s261 + $0x80] sm:$0xff]
      %v289 = vld [vmem:[%s261 + $0x88] sm:$0xff]
      %v290 = vld [vmem:[%s261 + $0x90] sm:$0xff]
      %v291 = vld [vmem:[%s261 + $0x98] sm:$0xff]
      %v292 = vld [vmem:[%s261 + $0xa0] sm:$0xff]
      %v293 = vld [vmem:[%s261 + $0xa8] sm:$0xff]
      %v294 = vld [vmem:[%s261 + $0xb0] sm:$0xff]
      %v295 = vld [vmem:[%s261 + $0xb8] sm:$0xff]
      %v296 = vld [vmem:[%s261 + $0xc0] sm:$0xff]
      %v297 = vld [vmem:[%s261 + $0xc8] sm:$0xff]
      %v298 = vld [vmem:[%s261 + $0xd0] sm:$0xff]
      %v299 = vld [vmem:[%s261 + $0xd8] sm:$0xff]
      %v300 = vld [vmem:[%s261 + $0xe0] sm:$0xff]
      %v301 = vld [vmem:[%s261 + $0xe8] sm:$0xff]
      %v302 = vld [vmem:[%s261 + $0xf0] sm:$0xff]
      %v303 = vld [vmem:[%s261 + $0xf8] sm:$0xff]
      %v304 = vld [vmem:[%s2] sm:$0x1]
      %v306 = vperm.slane %v304, 0
      %v308 = vmul.f32 %v272, %v306
      %v309 = vmul.f32 %v273, %v306
      %v310 = vmul.f32 %v274, %v306
      %v311 = vmul.f32 %v275, %v306
      %v312 = vmul.f32 %v276, %v306
      %v313 = vmul.f32 %v277, %v306
      %v314 = vmul.f32 %v278, %v306
      %v315 = vmul.f32 %v279, %v306
      %v316 = vmul.f32 %v280, %v306
      %v317 = vmul.f32 %v281, %v306
      %v318 = vmul.f32 %v282, %v306
      %v319 = vmul.f32 %v283, %v306
      %v320 = vmul.f32 %v284, %v306
      %v321 = vmul.f32 %v285, %v306
      %v322 = vmul.f32 %v286, %v306
      %v323 = vmul.f32 %v287, %v306
      %v324 = vmul.f32 %v288, %v306
      %v325 = vmul.f32 %v289, %v306
      %v326 = vmul.f32 %v290, %v306
      %v327 = vmul.f32 %v291, %v306
      %v328 = vmul.f32 %v292, %v306
      %v329 = vmul.f32 %v293, %v306
      %v330 = vmul.f32 %v294, %v306
      %v331 = vmul.f32 %v295, %v306
      %v332 = vmul.f32 %v296, %v306
      %v333 = vmul.f32 %v297, %v306
      %v334 = vmul.f32 %v298, %v306
      %v335 = vmul.f32 %v299, %v306
      %v336 = vmul.f32 %v300, %v306
      %v337 = vmul.f32 %v301, %v306
      %v338 = vmul.f32 %v302, %v306
      %v339 = vmul.f32 %v303, %v306
      %v340 = vld [vmem:[%s3] sm:$0x1]
      %v342 = vperm.slane %v340, 0
      %v344 = vadd.f32 %v308, %v342
      %v345 = vadd.f32 %v309, %v342
      %v346 = vadd.f32 %v310, %v342
      %v347 = vadd.f32 %v311, %v342
      %v348 = vadd.f32 %v312, %v342
      %v349 = vadd.f32 %v313, %v342
      %v350 = vadd.f32 %v314, %v342
      %v351 = vadd.f32 %v315, %v342
      %v352 = vadd.f32 %v316, %v342
      %v353 = vadd.f32 %v317, %v342
      %v354 = vadd.f32 %v318, %v342
      %v355 = vadd.f32 %v319, %v342
      %v356 = vadd.f32 %v320, %v342
      %v357 = vadd.f32 %v321, %v342
      %v358 = vadd.f32 %v322, %v342
      %v359 = vadd.f32 %v323, %v342
      %v360 = vadd.f32 %v324, %v342
      %v361 = vadd.f32 %v325, %v342
      %v362 = vadd.f32 %v326, %v342
      %v363 = vadd.f32 %v327, %v342
      %v364 = vadd.f32 %v328, %v342
      %v365 = vadd.f32 %v329, %v342
      %v366 = vadd.f32 %v330, %v342
      %v367 = vadd.f32 %v331, %v342
      %v368 = vadd.f32 %v332, %v342
      %v369 = vadd.f32 %v333, %v342
      %v370 = vadd.f32 %v334, %v342
      %v371 = vadd.f32 %v335, %v342
      %v372 = vadd.f32 %v336, %v342
      %v373 = vadd.f32 %v337, %v342
      %v374 = vadd.f32 %v338, %v342
      %v375 = vadd.f32 %v339, %v342
      %v376 = vld [vmem:[%s266] sm:$0xff]
      %v377 = vld [vmem:[%s266 + $0x8] sm:$0xff]
      %v378 = vld [vmem:[%s266 + $0x10] sm:$0xff]
      %v379 = vld [vmem:[%s266 + $0x18] sm:$0xff]
      %v380 = vld [vmem:[%s266 + $0x20] sm:$0xff]
      %v381 = vld [vmem:[%s266 + $0x28] sm:$0xff]
      %v382 = vld [vmem:[%s266 + $0x30] sm:$0xff]
      %v383 = vld [vmem:[%s266 + $0x38] sm:$0xff]
      %v384 = vld [vmem:[%s266 + $0x40] sm:$0xff]
      %v385 = vld [vmem:[%s266 + $0x48] sm:$0xff]
      %v386 = vld [vmem:[%s266 + $0x50] sm:$0xff]
      %v387 = vld [vmem:[%s266 + $0x58] sm:$0xff]
      %v388 = vld [vmem:[%s266 + $0x60] sm:$0xff]
      %v389 = vld [vmem:[%s266 + $0x68] sm:$0xff]
      %v390 = vld [vmem:[%s266 + $0x70] sm:$0xff]
      %v391 = vld [vmem:[%s266 + $0x78] sm:$0xff]
      %v392 = vld [vmem:[%s266 + $0x80] sm:$0xff]
      %v393 = vld [vmem:[%s266 + $0x88] sm:$0xff]
      %v394 = vld [vmem:[%s266 + $0x90] sm:$0xff]
      %v395 = vld [vmem:[%s266 + $0x98] sm:$0xff]
      %v396 = vld [vmem:[%s266 + $0xa0] sm:$0xff]
      %v397 = vld [vmem:[%s266 + $0xa8] sm:$0xff]
      %v398 = vld [vmem:[%s266 + $0xb0] sm:$0xff]
      %v399 = vld [vmem:[%s266 + $0xb8] sm:$0xff]
      %v400 = vld [vmem:[%s266 + $0xc0] sm:$0xff]
      %v401 = vld [vmem:[%s266 + $0xc8] sm:$0xff]
      %v402 = vld [vmem:[%s266 + $0xd0] sm:$0xff]
      %v403 = vld [vmem:[%s266 + $0xd8] sm:$0xff]
      %v404 = vld [vmem:[%s266 + $0xe0] sm:$0xff]
      %v405 = vld [vmem:[%s266 + $0xe8] sm:$0xff]
      %v406 = vld [vmem:[%s266 + $0xf0] sm:$0xff]
      %v407 = vld [vmem:[%s266 + $0xf8] sm:$0xff]
      %v408 = vld [vmem:[%s4] sm:$0x1]
      %v410 = vperm.slane %v408, 0
      %v412 = vmul.f32 %v376, %v410
      %v413 = vmul.f32 %v377, %v410
      %v414 = vmul.f32 %v378, %v410
      %v415 = vmul.f32 %v379, %v410
      %v416 = vmul.f32 %v380, %v410
      %v417 = vmul.f32 %v381, %v410
      %v418 = vmul.f32 %v382, %v410
      %v419 = vmul.f32 %v383, %v410
      %v420 = vmul.f32 %v384, %v410
      %v421 = vmul.f32 %v385, %v410
      %v422 = vmul.f32 %v386, %v410
      %v423 = vmul.f32 %v387, %v410
      %v424 = vmul.f32 %v388, %v410
      %v425 = vmul.f32 %v389, %v410
      %v426 = vmul.f32 %v390, %v410
      %v427 = vmul.f32 %v391, %v410
      %v428 = vmul.f32 %v392, %v410
      %v429 = vmul.f32 %v393, %v410
      %v430 = vmul.f32 %v394, %v410
      %v431 = vmul.f32 %v395, %v410
      %v432 = vmul.f32 %v396, %v410
      %v433 = vmul.f32 %v397, %v410
      %v434 = vmul.f32 %v398, %v410
      %v435 = vmul.f32 %v399, %v410
      %v436 = vmul.f32 %v400, %v410
      %v437 = vmul.f32 %v401, %v410
      %v438 = vmul.f32 %v402, %v410
      %v439 = vmul.f32 %v403, %v410
      %v440 = vmul.f32 %v404, %v410
      %v441 = vmul.f32 %v405, %v410
      %v442 = vmul.f32 %v406, %v410
      %v443 = vmul.f32 %v407, %v410
      %v444 = vld [vmem:[%s5] sm:$0x1]
      %v446 = vperm.slane %v444, 0
      %v448 = vadd.f32 %v412, %v446
      %v449 = vadd.f32 %v413, %v446
      %v450 = vadd.f32 %v414, %v446
      %v451 = vadd.f32 %v415, %v446
      %v452 = vadd.f32 %v416, %v446
      %v453 = vadd.f32 %v417, %v446
      %v454 = vadd.f32 %v418, %v446
      %v455 = vadd.f32 %v419, %v446
      %v456 = vadd.f32 %v420, %v446
      %v457 = vadd.f32 %v421, %v446
      %v458 = vadd.f32 %v422, %v446
      %v459 = vadd.f32 %v423, %v446
      %v460 = vadd.f32 %v424, %v446
      %v461 = vadd.f32 %v425, %v446
      %v462 = vadd.f32 %v426, %v446
      %v463 = vadd.f32 %v427, %v446
      %v464 = vadd.f32 %v428, %v446
      %v465 = vadd.f32 %v429, %v446
      %v466 = vadd.f32 %v430, %v446
      %v467 = vadd.f32 %v431, %v446
      %v468 = vadd.f32 %v432, %v446
      %v469 = vadd.f32 %v433, %v446
      %v470 = vadd.f32 %v434, %v446
      %v471 = vadd.f32 %v435, %v446
      %v472 = vadd.f32 %v436, %v446
      %v473 = vadd.f32 %v437, %v446
      %v474 = vadd.f32 %v438, %v446
      %v475 = vadd.f32 %v439, %v446
      %v476 = vadd.f32 %v440, %v446
      %v477 = vadd.f32 %v441, %v446
      %v478 = vadd.f32 %v442, %v446
      %v479 = vadd.f32 %v443, %v446
      %v480 = vadd.f32 %v344, %v448
      %v481 = vadd.f32 %v345, %v449
      %v482 = vadd.f32 %v346, %v450
      %v483 = vadd.f32 %v347, %v451
      %v484 = vadd.f32 %v348, %v452
      %v485 = vadd.f32 %v349, %v453
      %v486 = vadd.f32 %v350, %v454
      %v487 = vadd.f32 %v351, %v455
      %v488 = vadd.f32 %v352, %v456
      %v489 = vadd.f32 %v353, %v457
      %v490 = vadd.f32 %v354, %v458
      %v491 = vadd.f32 %v355, %v459
      %v492 = vadd.f32 %v356, %v460
      %v493 = vadd.f32 %v357, %v461
      %v494 = vadd.f32 %v358, %v462
      %v495 = vadd.f32 %v359, %v463
      %v496 = vadd.f32 %v360, %v464
      %v497 = vadd.f32 %v361, %v465
      %v498 = vadd.f32 %v362, %v466
      %v499 = vadd.f32 %v363, %v467
      %v500 = vadd.f32 %v364, %v468
      %v501 = vadd.f32 %v365, %v469
      %v502 = vadd.f32 %v366, %v470
      %v503 = vadd.f32 %v367, %v471
      %v504 = vadd.f32 %v368, %v472
      %v505 = vadd.f32 %v369, %v473
      %v506 = vadd.f32 %v370, %v474
      %v507 = vadd.f32 %v371, %v475
      %v508 = vadd.f32 %v372, %v476
      %v509 = vadd.f32 %v373, %v477
      %v510 = vadd.f32 %v374, %v478
      %v511 = vadd.f32 %v375, %v479
      %v512 = vmax.f32 %v480, 0.0
      %v513 = vmax.f32 %v481, 0.0
      %v514 = vmax.f32 %v482, 0.0
      %v515 = vmax.f32 %v483, 0.0
      %v516 = vmax.f32 %v484, 0.0
      %v517 = vmax.f32 %v485, 0.0
      %v518 = vmax.f32 %v486, 0.0
      %v519 = vmax.f32 %v487, 0.0
      %v520 = vmax.f32 %v488, 0.0
      %v521 = vmax.f32 %v489, 0.0
      %v522 = vmax.f32 %v490, 0.0
      %v523 = vmax.f32 %v491, 0.0
      %v524 = vmax.f32 %v492, 0.0
      %v525 = vmax.f32 %v493, 0.0
      %v526 = vmax.f32 %v494, 0.0
      %v527 = vmax.f32 %v495, 0.0
      %v528 = vmax.f32 %v496, 0.0
      %v529 = vmax.f32 %v497, 0.0
      %v530 = vmax.f32 %v498, 0.0
      %v531 = vmax.f32 %v499, 0.0
      %v532 = vmax.f32 %v500, 0.0
      %v533 = vmax.f32 %v501, 0.0
      %v534 = vmax.f32 %v502, 0.0
      %v535 = vmax.f32 %v503, 0.0
      %v536 = vmax.f32 %v504, 0.0
      %v537 = vmax.f32 %v505, 0.0
      %v538 = vmax.f32 %v506, 0.0
      %v539 = vmax.f32 %v507, 0.0
      %v540 = vmax.f32 %v508, 0.0
      %v541 = vmax.f32 %v509, 0.0
      %v542 = vmax.f32 %v510, 0.0
      %v543 = vmax.f32 %v511, 0.0
      %544 = vst [vmem:[%s271] sm:$0xff] %v512
      %545 = vst [vmem:[%s271 + $0x8] sm:$0xff] %v513
      %546 = vst [vmem:[%s271 + $0x10] sm:$0xff] %v514
      %547 = vst [vmem:[%s271 + $0x18] sm:$0xff] %v515
      %548 = vst [vmem:[%s271 + $0x20] sm:$0xff] %v516
      %549 = vst [vmem:[%s271 + $0x28] sm:$0xff] %v517
      %550 = vst [vmem:[%s271 + $0x30] sm:$0xff] %v518
      %551 = vst [vmem:[%s271 + $0x38] sm:$0xff] %v519
      %552 = vst [vmem:[%s271 + $0x40] sm:$0xff] %v520
      %553 = vst [vmem:[%s271 + $0x48] sm:$0xff] %v521
      %554 = vst [vmem:[%s271 + $0x50] sm:$0xff] %v522
      %555 = vst [vmem:[%s271 + $0x58] sm:$0xff] %v523
      %556 = vst [vmem:[%s271 + $0x60] sm:$0xff] %v524
      %557 = vst [vmem:[%s271 + $0x68] sm:$0xff] %v525
      %558 = vst [vmem:[%s271 + $0x70] sm:$0xff] %v526
      %559 = vst [vmem:[%s271 + $0x78] sm:$0xff] %v527
      %560 = vst [vmem:[%s271 + $0x80] sm:$0xff] %v528
      %561 = vst [vmem:[%s271 + $0x88] sm:$0xff] %v529
      %562 = vst [vmem:[%s271 + $0x90] sm:$0xff] %v530
      %563 = vst [vmem:[%s271 + $0x98] sm:$0xff] %v531
      %564 = vst [vmem:[%s271 + $0xa0] sm:$0xff] %v532
      %565 = vst [vmem:[%s271 + $0xa8] sm:$0xff] %v533
      %566 = vst [vmem:[%s271 + $0xb0] sm:$0xff] %v534
      %567 = vst [vmem:[%s271 + $0xb8] sm:$0xff] %v535
      %568 = vst [vmem:[%s271 + $0xc0] sm:$0xff] %v536
      %569 = vst [vmem:[%s271 + $0xc8] sm:$0xff] %v537
      %570 = vst [vmem:[%s271 + $0xd0] sm:$0xff] %v538
      %571 = vst [vmem:[%s271 + $0xd8] sm:$0xff] %v539
      %572 = vst [vmem:[%s271 + $0xe0] sm:$0xff] %v540
      %573 = vst [vmem:[%s271 + $0xe8] sm:$0xff] %v541
      %574 = vst [vmem:[%s271 + $0xf0] sm:$0xff] %v542
      %575 = vst [vmem:[%s271 + $0xf8] sm:$0xff] %v543
      %p576 = scmp.lt.s32.totalorder %s17, 1
      %s577 = scalar_select %p576, %s17, 1
      %s578 = smul.addr %s577, 32
      %s579 = smul.addr %s578, 8
      %s580 = scalar_lea.vmem %s6, %s579
      // Predicated region
      $region45: #{basic_block_forward.5} parent=43 // pred_check
        %p581 = pneg %p171
      $region46: #{basic_block_forward.5} parent=43 // pred_check_branch
        %583 = sbr.rel (%p581) target = $region48
      $region47: #{basic_block_forward.5} parent=43 // pred_region
        _
      $region48: #{basic_block_forward.5} parent=43 // pred_fallthru
        _
    $region44: #{basic_block_forward.5} parent=5 // pred_fallthru
      _
    %p584 = scmp.le.s32.totalorder 2, %s12
    // Predicated region
    $region49: #{basic_block_forward.5} parent=5 // pred_check
      %p585 = pneg %p584
    $region50: #{basic_block_forward.5} parent=5 // pred_check_branch
      %587 = sbr.rel (%p585) target = $region52
    $region51: #{basic_block_forward.5} parent=5 // pred_region
      %s588 = ssub.s32 %s12, 2
      // Predicated region
      $region53: #{basic_block_forward.5} parent=51 // pred_check
        %p589 = pneg %p177
      $region54: #{basic_block_forward.5} parent=51 // pred_check_branch
        %591 = sbr.rel (%p589) target = $region56
      $region55: #{basic_block_forward.5} parent=51 // pred_region
        %p592 = scmp.lt.s32.totalorder %s18, 1
        %s593 = scalar_select %p592, %s18, 1
        %s594 = smul.addr %s593, 32
        %s595 = smul.addr %s594, 8
        %s596 = scalar_lea.vmem %s6, %s595
      $region56: #{basic_block_forward.5} parent=51 // pred_fallthru
        _
    $region52: #{basic_block_forward.5} parent=5 // pred_fallthru
      _
  $region6: #{basic_block_forward.5} parent=0 // loop_footer
    %s16 = sadd.s32 1, %s12
  $region7: #{basic_block_forward.5} parent=0 // loop_footer_branch
    %11 = sbr.rel target = $region3
  $region8: #{basic_block_forward.5} parent=0 // loop_exit
    _

// kernel: basic_block_forward.4
$region0: #{basic_block_forward.4}
  #allocation0 [shape = 'u32[]', space=smem, size = 0x4, offset = 0x4, fixed_abs, tag = 'smem constant byte address 0x4 - core index']
  #allocation1 [shape = 'u32[72,128]{1,0:T(1,128)}', space=vmem, size = 0x9000, scoped, tag = 'internal scratch']
  %s0 = inlined_call_operand.vmem [shape: f32[2,18,18,128], index: 0, kind: input, shape index: {}]
  %s1 = inlined_call_operand.vmem [shape: bf16[3,3,128,128], index: 1, kind: input, shape index: {}]
  %s2 = inlined_call_operand.vmem [shape: f32[1,1,128], index: 2, kind: input, shape index: {}]
  %s3 = inlined_call_operand.vmem [shape: f32[1,1,128], index: 3, kind: input, shape index: {}]
  %s4 = inlined_call_operand.vmem [shape: f32[2,16,16,128], index: 4, kind: output, shape index: {0}]
  %s5 = inlined_call_operand.vmem [shape: f32[2,1,128], index: 5, kind: output, shape index: {1}]
  %s6 = inlined_call_operand.vmem [shape: f32[2,1,128], index: 6, kind: output, shape index: {2}]
  %7 = xla_tuple %s4, %s5, %s6
  %s8 = sld [smem:[#allocation0]]
  $region65: #{basic_block_forward.4} parent=0
    _
  %s10 = ssub.s32 1, %s8
  %s11 = scalar_select 0, %s10, %s8
  loop: start=0, step=1, limit=4
  $region2: #{basic_block_forward.4} parent=0 // loop_pre_header
    _
  $region3: #{basic_block_forward.4} parent=0 // loop_header
    %s13 = sphi 0, %s17
    %p14 = scmp.ge.s32.totalorder %s13, 4
    %s23 = sphi 0, %s25
    %s26 = sphi 0, %s23
    %s27 = sphi 0, %s26
    %s43 = sphi 0, %s27
    %s47 = sphi 0, %s47
    %s49 = sphi 0, %s47
    %s50 = sphi 0, %s49
    %s64 = sphi 0, %s50
    %s68 = sphi 0, %s68
    %s70 = sphi 0, %s68
    %s71 = sphi 0, %s70
    %s85 = sphi 0, %s71
    %s89 = sphi 0, %s89
    %s91 = sphi 0, %s89
    %s92 = sphi 0, %s91
    %s106 = sphi 0, %s92
    %s112 = sphi 0, %s114
    %s115 = sphi 0, %s112
    %s116 = sphi 0, %s115
    %s132 = sphi 0, %s116
    %s138 = sphi 0, %s140
    %s141 = sphi 0, %s138
    %s142 = sphi 0, %s141
    %s158 = sphi 0, %s142
    %s164 = sphi 0, %s166
    %s167 = sphi 0, %s164
    %s168 = sphi 0, %s167
    %s184 = sphi 0, %s168
  $region4: #{basic_block_forward.4} parent=0 // loop_header_branch
    %16 = sbr.rel (%p14) target = $region8
  $region5: #{basic_block_forward.4} parent=0 // loop_body
    %s18 = ssub.s32 %s13, 1
    %s19 = ssub.s32 %s13, 2
    %s20 = sadd.s32 %s13, 1
    %s21 = ssub.s32 %s13, %s20
    %p22 = scmp.eq.s32.totalorder %s21, 0
    %s24 = sadd.s32 %s23, 1
    %s25 = scalar_select %p22, %s23, %s24
    %p28 = pneg %p22
    %p29 = scmp.eq.s32.totalorder %s13, 1
    %p30 = por %p28, %p29
    %p31 = scmp.ne.s32.totalorder %s23, %s26
    %p32 = scmp.eq.s32.totalorder %s13, 0
    %p33 = por %p31, %p32
    %p34 = scmp.ne.s32.totalorder %s23, %s26
    %p35 = scmp.eq.s32.totalorder %s18, 1
    %p36 = por %p34, %p35
    %p37 = scmp.ne.s32.totalorder %s26, %s27
    %p38 = scmp.eq.s32.totalorder %s18, 0
    %p39 = por %p37, %p38
    %p40 = scmp.ne.s32.totalorder %s26, %s27
    %p41 = scmp.eq.s32.totalorder %s19, 1
    %p42 = por %p40, %p41
    %p44 = scmp.ne.s32.totalorder %s27, %s43
    %p45 = scmp.eq.s32.totalorder %s19, 0
    %p46 = por %p44, %p45
    %s48 = sadd.s32 %s47, 1
    %p51 = scmp.eq.s32.totalorder %s13, 1
    %p52 = scmp.ne.s32.totalorder %s47, %s49
    %p53 = scmp.eq.s32.totalorder %s13, 0
    %p54 = por %p52, %p53
    %p55 = scmp.ne.s32.totalorder %s47, %s49
    %p56 = scmp.eq.s32.totalorder %s18, 1
    %p57 = por %p55, %p56
    %p58 = scmp.ne.s32.totalorder %s49, %s50
    %p59 = scmp.eq.s32.totalorder %s18, 0
    %p60 = por %p58, %p59
    %p61 = scmp.ne.s32.totalorder %s49, %s50
    %p62 = scmp.eq.s32.totalorder %s19, 1
    %p63 = por %p61, %p62
    %p65 = scmp.ne.s32.totalorder %s50, %s64
    %p66 = scmp.eq.s32.totalorder %s19, 0
    %p67 = por %p65, %p66
    %s69 = sadd.s32 %s68, 1
    %p72 = scmp.eq.s32.totalorder %s13, 1
    %p73 = scmp.ne.s32.totalorder %s68, %s70
    %p74 = scmp.eq.s32.totalorder %s13, 0
    %p75 = por %p73, %p74
    %p76 = scmp.ne.s32.totalorder %s68, %s70
    %p77 = scmp.eq.s32.totalorder %s18, 1
    %p78 = por %p76, %p77
    %p79 = scmp.ne.s32.totalorder %s70, %s71
    %p80 = scmp.eq.s32.totalorder %s18, 0
    %p81 = por %p79, %p80
    %p82 = scmp.ne.s32.totalorder %s70, %s71
    %p83 = scmp.eq.s32.totalorder %s19, 1
    %p84 = por %p82, %p83
    %p86 = scmp.ne.s32.totalorder %s71, %s85
    %p87 = scmp.eq.s32.totalorder %s19, 0
    %p88 = por %p86, %p87
    %s90 = sadd.s32 %s89, 1
    %p93 = scmp.eq.s32.totalorder %s13, 1
    %p94 = scmp.ne.s32.totalorder %s89, %s91
    %p95 = scmp.eq.s32.totalorder %s13, 0
    %p96 = por %p94, %p95
    %p97 = scmp.ne.s32.totalorder %s89, %s91
    %p98 = scmp.eq.s32.totalorder %s18, 1
    %p99 = por %p97, %p98
    %p100 = scmp.ne.s32.totalorder %s91, %s92
    %p101 = scmp.eq.s32.totalorder %s18, 0
    %p102 = por %p100, %p101
    %p103 = scmp.ne.s32.totalorder %s91, %s92
    %p104 = scmp.eq.s32.totalorder %s19, 1
    %p105 = por %p103, %p104
    %p107 = scmp.ne.s32.totalorder %s92, %s106
    %p108 = scmp.eq.s32.totalorder %s19, 0
    %p109 = por %p107, %p108
    %s110 = ssub.s32 %s13, %s20
    %p111 = scmp.eq.s32.totalorder %s110, 0
    %s113 = sadd.s32 %s112, 1
    %s114 = scalar_select %p111, %s112, %s113
    %p117 = pneg %p111
    %p118 = scmp.eq.s32.totalorder %s13, 1
    %p119 = por %p117, %p118
    %p120 = scmp.ne.s32.totalorder %s112, %s115
    %p121 = scmp.eq.s32.totalorder %s13, 0
    %p122 = por %p120, %p121
    %p123 = scmp.ne.s32.totalorder %s112, %s115
    %p124 = scmp.eq.s32.totalorder %s18, 1
    %p125 = por %p123, %p124
    %p126 = scmp.ne.s32.totalorder %s115, %s116
    %p127 = scmp.eq.s32.totalorder %s18, 0
    %p128 = por %p126, %p127
    %p129 = scmp.ne.s32.totalorder %s115, %s116
    %p130 = scmp.eq.s32.totalorder %s19, 1
    %p131 = por %p129, %p130
    %p133 = scmp.ne.s32.totalorder %s116, %s132
    %p134 = scmp.eq.s32.totalorder %s19, 0
    %p135 = por %p133, %p134
    %s136 = ssub.s32 %s13, %s20
    %p137 = scmp.eq.s32.totalorder %s136, 0
    %s139 = sadd.s32 %s138, 1
    %s140 = scalar_select %p137, %s138, %s139
    %p143 = pneg %p137
    %p144 = scmp.eq.s32.totalorder %s13, 1
    %p145 = por %p143, %p144
    %p146 = scmp.ne.s32.totalorder %s138, %s141
    %p147 = scmp.eq.s32.totalorder %s13, 0
    %p148 = por %p146, %p147
    %p149 = scmp.ne.s32.totalorder %s138, %s141
    %p150 = scmp.eq.s32.totalorder %s18, 1
    %p151 = por %p149, %p150
    %p152 = scmp.ne.s32.totalorder %s141, %s142
    %p153 = scmp.eq.s32.totalorder %s18, 0
    %p154 = por %p152, %p153
    %p155 = scmp.ne.s32.totalorder %s141, %s142
    %p156 = scmp.eq.s32.totalorder %s19, 1
    %p157 = por %p155, %p156
    %p159 = scmp.ne.s32.totalorder %s142, %s158
    %p160 = scmp.eq.s32.totalorder %s19, 0
    %p161 = por %p159, %p160
    %s162 = ssub.s32 %s13, %s20
    %p163 = scmp.eq.s32.totalorder %s162, 0
    %s165 = sadd.s32 %s164, 1
    %s166 = scalar_select %p163, %s164, %s165
    %p169 = pneg %p163
    %p170 = scmp.eq.s32.totalorder %s13, 1
    %p171 = por %p169, %p170
    %p172 = scmp.ne.s32.totalorder %s164, %s167
    %p173 = scmp.eq.s32.totalorder %s13, 0
    %p174 = por %p172, %p173
    %p175 = scmp.ne.s32.totalorder %s164, %s167
    %p176 = scmp.eq.s32.totalorder %s18, 1
    %p177 = por %p175, %p176
    %p178 = scmp.ne.s32.totalorder %s167, %s168
    %p179 = scmp.eq.s32.totalorder %s18, 0
    %p180 = por %p178, %p179
    %p181 = scmp.ne.s32.totalorder %s167, %s168
    %p182 = scmp.eq.s32.totalorder %s19, 1
    %p183 = por %p181, %p182
    %p185 = scmp.ne.s32.totalorder %s168, %s184
    %p186 = scmp.eq.s32.totalorder %s19, 0
    %p187 = por %p185, %p186
    %p188 = scmp.le.s32.totalorder 1, %s13
    %p189 = scmp.lt.s32.totalorder %s13, 3
    %p190 = pnand %p188, %p189
    %p191 = pneg %p190
    // Predicated region
    $region9: #{basic_block_forward.4} parent=5 // pred_check
      _
    $region10: #{basic_block_forward.4} parent=5 // pred_check_branch
      %193 = sbr.rel (%p190) target = $region12
    $region11: #{basic_block_forward.4} parent=5 // pred_region
      %s194 = ssub.s32 %s13, 1
      // Predicated region
      $region13: #{basic_block_forward.4} parent=11 // pred_check
        %p195 = pneg %p60
      $region14: #{basic_block_forward.4} parent=11 // pred_check_branch
        %197 = sbr.rel (%p195) target = $region16
      $region15: #{basic_block_forward.4} parent=11 // pred_region
        _
      $region16: #{basic_block_forward.4} parent=11 // pred_fallthru
        _
      // Predicated region
      $region17: #{basic_block_forward.4} parent=11 // pred_check
        %p198 = pneg %p81
      $region18: #{basic_block_forward.4} parent=11 // pred_check_branch
        %200 = sbr.rel (%p198) target = $region20
      $region19: #{basic_block_forward.4} parent=11 // pred_region
        _
      $region20: #{basic_block_forward.4} parent=11 // pred_fallthru
        _
      // Predicated region
      $region21: #{basic_block_forward.4} parent=11 // pred_check
        %p201 = pneg %p102
      $region22: #{basic_block_forward.4} parent=11 // pred_check_branch
        %203 = sbr.rel (%p201) target = $region24
      $region23: #{basic_block_forward.4} parent=11 // pred_region
        _
      $region24: #{basic_block_forward.4} parent=11 // pred_fallthru
        _
    $region12: #{basic_block_forward.4} parent=5 // pred_fallthru
      _
    %p204 = scmp.lt.s32.totalorder %s13, 2
    // Predicated region
    $region25: #{basic_block_forward.4} parent=5 // pred_check
      %p205 = pneg %p204
    $region26: #{basic_block_forward.4} parent=5 // pred_check_branch
      %207 = sbr.rel (%p205) target = $region28
    $region27: #{basic_block_forward.4} parent=5 // pred_region
      // Predicated region
      $region29: #{basic_block_forward.4} parent=27 // pred_check
        %p208 = pneg %p33
      $region30: #{basic_block_forward.4} parent=27 // pred_check_branch
        %210 = sbr.rel (%p208) target = $region32
      $region31: #{basic_block_forward.4} parent=27 // pred_region
        %p211 = scmp.lt.s32.totalorder %s13, 1
        %s212 = scalar_select %p211, %s13, 1
        %s213 = smul.addr %s212, 54
        %s214 = smul.addr %s213, 8
        %s215 = scalar_lea.vmem %s0, %s214
      $region32: #{basic_block_forward.4} parent=27 // pred_fallthru
        _
    $region28: #{basic_block_forward.4} parent=5 // pred_fallthru
      _
    %p216 = scmp.le.s32.totalorder 1, %s13
    %p217 = scmp.lt.s32.totalorder %s13, 3
    %p218 = pnand %p216, %p217
    %p219 = pneg %p218
    // Predicated region
    $region33: #{basic_block_forward.4} parent=5 // pred_check
      _
    $region34: #{basic_block_forward.4} parent=5 // pred_check_branch
      %221 = sbr.rel (%p218) target = $region36
    $region35: #{basic_block_forward.4} parent=5 // pred_region
      %s222 = ssub.s32 %s13, 1
      %p223 = scmp.lt.s32.totalorder %s18, 1
      %s224 = scalar_select %p223, %s18, 1
      %s225 = smul.addr %s224, 54
      %s226 = smul.addr %s225, 8
      %s227 = scalar_lea.vmem %s0, %s226
      %p228 = pneg %p39
      %p229 = pneg %p36
      %p230 = pneg %p60
      %p231 = pneg %p57
      %p232 = pneg %p81
      %p233 = pneg %p78
      %p234 = pneg %p102
      %p235 = pneg %p99
      %p236 = pneg %p128
      %p237 = pneg %p125
      %p238 = scmp.lt.s32.totalorder %s18, 1
      %s239 = scalar_select %p238, %s18, 1
      %s240 = smul.addr %s239, 32
      %s241 = smul.addr %s240, 8
      %s242 = scalar_lea.vmem %s4, %s241
      %p243 = pneg %p154
      %p244 = pneg %p151
      %p245 = scmp.lt.s32.totalorder %s18, 1
      %s246 = scalar_select %p245, %s18, 1
      %s247 = scalar_lea.vmem %s5, %s246
      %p248 = pneg %p180
      %p249 = pneg %p177
      %p250 = scmp.lt.s32.totalorder %s18, 1
      %s251 = scalar_select %p250, %s18, 1
      %s252 = scalar_lea.vmem %s6, %s251
      %p253 = scmp.lt.s32.totalorder %s18, 1
      %s254 = scalar_select %p253, %s18, 1
      %s255 = smul.addr %s254, 54
      %s256 = smul.addr %s255, 8
      %s257 = scalar_lea.vmem %s0, %s256
      %p258 = scmp.lt.s32.totalorder %s18, 1
      %s259 = scalar_select %p258, %s18, 1
      %s260 = smul.addr %s259, 32
      %s261 = smul.addr %s260, 8
      %s262 = scalar_lea.vmem %s4, %s261
      %p263 = scmp.lt.s32.totalorder %s18, 1
      %s264 = scalar_select %p263, %s18, 1
      %s265 = scalar_lea.vmem %s5, %s264
      %p266 = scmp.lt.s32.totalorder %s18, 1
      %s267 = scalar_select %p266, %s18, 1
      %s268 = scalar_lea.vmem %s6, %s267
      %v269 = vld [vmem:[%s257] sm:$0xff]
      %v270 = vld [vmem:[%s257 + $0x8] sm:$0xff]
      %v271 = vld [vmem:[%s257 + $0x10] sm:$0x3]
      %v272 = vld [vmem:[%s257 + $0x18] sm:$0xff]
      %v273 = vld [vmem:[%s257 + $0x20] sm:$0xff]
      %v274 = vld [vmem:[%s257 + $0x28] sm:$0x3]
      %v275 = vld [vmem:[%s257 + $0x30] sm:$0xff]
      %v276 = vld [vmem:[%s257 + $0x38] sm:$0xff]
      %v277 = vld [vmem:[%s257 + $0x40] sm:$0x3]
      %v278 = vld [vmem:[%s257 + $0x48] sm:$0xff]
      %v279 = vld [vmem:[%s257 + $0x50] sm:$0xff]
      %v280 = vld [vmem:[%s257 + $0x58] sm:$0x3]
      %v281 = vld [vmem:[%s257 + $0x60] sm:$0xff]
      %v282 = vld [vmem:[%s257 + $0x68] sm:$0xff]
      %v283 = vld [vmem:[%s257 + $0x70] sm:$0x3]
      %v284 = vld [vmem:[%s257 + $0x78] sm:$0xff]
      %v285 = vld [vmem:[%s257 + $0x80] sm:$0xff]
      %v286 = vld [vmem:[%s257 + $0x88] sm:$0x3]
      %v287 = vld [vmem:[%s257 + $0x90] sm:$0xff]
      %v288 = vld [vmem:[%s257 + $0x98] sm:$0xff]
      %v289 = vld [vmem:[%s257 + $0xa0] sm:$0x3]
      %v290 = vld [vmem:[%s257 + $0xa8] sm:$0xff]
      %v291 = vld [vmem:[%s257 + $0xb0] sm:$0xff]
      %v292 = vld [vmem:[%s257 + $0xb8] sm:$0x3]
      %v293 = vld [vmem:[%s257 + $0xc0] sm:$0xff]
      %v294 = vld [vmem:[%s257 + $0xc8] sm:$0xff]
      %v295 = vld [vmem:[%s257 + $0xd0] sm:$0x3]
      %v296 = vld [vmem:[%s257 + $0xd8] sm:$0xff]
      %v297 = vld [vmem:[%s257 + $0xe0] sm:$0xff]
      %v298 = vld [vmem:[%s257 + $0xe8] sm:$0x3]
      %v299 = vld [vmem:[%s257 + $0xf0] sm:$0xff]
      %v300 = vld [vmem:[%s257 + $0xf8] sm:$0xff]
      %v301 = vld [vmem:[%s257 + $0x100] sm:$0x3]
      %v302 = vld [vmem:[%s257 + $0x108] sm:$0xff]
      %v303 = vld [vmem:[%s257 + $0x110] sm:$0xff]
      %v304 = vld [vmem:[%s257 + $0x118] sm:$0x3]
      %v305 = vld [vmem:[%s257 + $0x120] sm:$0xff]
      %v306 = vld [vmem:[%s257 + $0x128] sm:$0xff]
      %v307 = vld [vmem:[%s257 + $0x130] sm:$0x3]
      %v308 = vld [vmem:[%s257 + $0x138] sm:$0xff]
      %v309 = vld [vmem:[%s257 + $0x140] sm:$0xff]
      %v310 = vld [vmem:[%s257 + $0x148] sm:$0x3]
      %v311 = vld [vmem:[%s257 + $0x150] sm:$0xff]
      %v312 = vld [vmem:[%s257 + $0x158] sm:$0xff]
      %v313 = vld [vmem:[%s257 + $0x160] sm:$0x3]
      %v314 = vld [vmem:[%s257 + $0x168] sm:$0xff]
      %v315 = vld [vmem:[%s257 + $0x170] sm:$0xff]
      %v316 = vld [vmem:[%s257 + $0x178] sm:$0x3]
      %v317 = vld [vmem:[%s257 + $0x180] sm:$0xff]
      %v318 = vld [vmem:[%s257 + $0x188] sm:$0xff]
      %v319 = vld [vmem:[%s257 + $0x190] sm:$0x3]
      %v320 = vld [vmem:[%s257 + $0x198] sm:$0xff]
      %v321 = vld [vmem:[%s257 + $0x1a0] sm:$0xff]
      %v322 = vld [vmem:[%s257 + $0x1a8] sm:$0x3]
      %v323 = vld [vmem:[%s2] sm:$0x1]
      %v325 = vperm.slane %v323, 0
      %v327 = vmul.f32 %v269, %v325
      %v328 = vmul.f32 %v270, %v325
      %v329 = vmul.f32 %v271, %v325
      %v330 = vmul.f32 %v272, %v325
      %v331 = vmul.f32 %v273, %v325
      %v332 = vmul.f32 %v274, %v325
      %v333 = vmul.f32 %v275, %v325
      %v334 = vmul.f32 %v276, %v325
      %v335 = vmul.f32 %v277, %v325
      %v336 = vmul.f32 %v278, %v325
      %v337 = vmul.f32 %v279, %v325
      %v338 = vmul.f32 %v280, %v325
      %v339 = vmul.f32 %v281, %v325
      %v340 = vmul.f32 %v282, %v325
      %v341 = vmul.f32 %v283, %v325
      %v342 = vmul.f32 %v284, %v325
      %v343 = vmul.f32 %v285, %v325
      %v344 = vmul.f32 %v286, %v325
      %v345 = vmul.f32 %v287, %v325
      %v346 = vmul.f32 %v288, %v325
      %v347 = vmul.f32 %v289, %v325
      %v348 = vmul.f32 %v290, %v325
      %v349 = vmul.f32 %v291, %v325
      %v350 = vmul.f32 %v292, %v325
      %v351 = vmul.f32 %v293, %v325
      %v352 = vmul.f32 %v294, %v325
      %v353 = vmul.f32 %v295, %v325
      %v354 = vmul.f32 %v296, %v325
      %v355 = vmul.f32 %v297, %v325
      %v356 = vmul.f32 %v298, %v325
      %v357 = vmul.f32 %v299, %v325
      %v358 = vmul.f32 %v300, %v325
      %v359 = vmul.f32 %v301, %v325
      %v360 = vmul.f32 %v302, %v325
      %v361 = vmul.f32 %v303, %v325
      %v362 = vmul.f32 %v304, %v325
      %v363 = vmul.f32 %v305, %v325
      %v364 = vmul.f32 %v306, %v325
      %v365 = vmul.f32 %v307, %v325
      %v366 = vmul.f32 %v308, %v325
      %v367 = vmul.f32 %v309, %v325
      %v368 = vmul.f32 %v310, %v325
      %v369 = vmul.f32 %v311, %v325
      %v370 = vmul.f32 %v312, %v325
      %v371 = vmul.f32 %v313, %v325
      %v372 = vmul.f32 %v314, %v325
      %v373 = vmul.f32 %v315, %v325
      %v374 = vmul.f32 %v316, %v325
      %v375 = vmul.f32 %v317, %v325
      %v376 = vmul.f32 %v318, %v325
      %v377 = vmul.f32 %v319, %v325
      %v378 = vmul.f32 %v320, %v325
      %v379 = vmul.f32 %v321, %v325
      %v380 = vmul.f32 %v322, %v325
      %v381 = vld [vmem:[%s3] sm:$0x1]
      %v383 = vperm.slane %v381, 0
      %v385 = vadd.f32 %v327, %v383
      %v386 = vadd.f32 %v328, %v383
      %v387 = vadd.f32 %v329, %v383
      %v388 = vadd.f32 %v330, %v383
      %v389 = vadd.f32 %v331, %v383
      %v390 = vadd.f32 %v332, %v383
      %v391 = vadd.f32 %v333, %v383
      %v392 = vadd.f32 %v334, %v383
      %v393 = vadd.f32 %v335, %v383
      %v394 = vadd.f32 %v336, %v383
      %v395 = vadd.f32 %v337, %v383
      %v396 = vadd.f32 %v338, %v383
      %v397 = vadd.f32 %v339, %v383
      %v398 = vadd.f32 %v340, %v383
      %v399 = vadd.f32 %v341, %v383
      %v400 = vadd.f32 %v342, %v383
      %v401 = vadd.f32 %v343, %v383
      %v402 = vadd.f32 %v344, %v383
      %v403 = vadd.f32 %v345, %v383
      %v404 = vadd.f32 %v346, %v383
      %v405 = vadd.f32 %v347, %v383
      %v406 = vadd.f32 %v348, %v383
      %v407 = vadd.f32 %v349, %v383
      %v408 = vadd.f32 %v350, %v383
      %v409 = vadd.f32 %v351, %v383
      %v410 = vadd.f32 %v352, %v383
      %v411 = vadd.f32 %v353, %v383
      %v412 = vadd.f32 %v354, %v383
      %v413 = vadd.f32 %v355, %v383
      %v414 = vadd.f32 %v356, %v383
      %v415 = vadd.f32 %v357, %v383
      %v416 = vadd.f32 %v358, %v383
      %v417 = vadd.f32 %v359, %v383
      %v418 = vadd.f32 %v360, %v383
      %v419 = vadd.f32 %v361, %v383
      %v420 = vadd.f32 %v362, %v383
      %v421 = vadd.f32 %v363, %v383
      %v422 = vadd.f32 %v364, %v383
      %v423 = vadd.f32 %v365, %v383
      %v424 = vadd.f32 %v366, %v383
      %v425 = vadd.f32 %v367, %v383
      %v426 = vadd.f32 %v368, %v383
      %v427 = vadd.f32 %v369, %v383
      %v428 = vadd.f32 %v370, %v383
      %v429 = vadd.f32 %v371, %v383
      %v430 = vadd.f32 %v372, %v383
      %v431 = vadd.f32 %v373, %v383
      %v432 = vadd.f32 %v374, %v383
      %v433 = vadd.f32 %v375, %v383
      %v434 = vadd.f32 %v376, %v383
      %v435 = vadd.f32 %v377, %v383
      %v436 = vadd.f32 %v378, %v383
      %v437 = vadd.f32 %v379, %v383
      %v438 = vadd.f32 %v380, %v383
      %v439 = vmax.f32 %v385, 0.0
      %v440 = vmax.f32 %v386, 0.0
      %v441 = vmax.f32 %v387, 0.0
      %v442 = vmax.f32 %v388, 0.0
      %v443 = vmax.f32 %v389, 0.0
      %v444 = vmax.f32 %v390, 0.0
      %v445 = vmax.f32 %v391, 0.0
      %v446 = vmax.f32 %v392, 0.0
      %v447 = vmax.f32 %v393, 0.0
      %v448 = vmax.f32 %v394, 0.0
      %v449 = vmax.f32 %v395, 0.0
      %v450 = vmax.f32 %v396, 0.0
      %v451 = vmax.f32 %v397, 0.0
      %v452 = vmax.f32 %v398, 0.0
      %v453 = vmax.f32 %v399, 0.0
      %v454 = vmax.f32 %v400, 0.0
      %v455 = vmax.f32 %v401, 0.0
      %v456 = vmax.f32 %v402, 0.0
      %v457 = vmax.f32 %v403, 0.0
      %v458 = vmax.f32 %v404, 0.0
      %v459 = vmax.f32 %v405, 0.0
      %v460 = vmax.f32 %v406, 0.0
      %v461 = vmax.f32 %v407, 0.0
      %v462 = vmax.f32 %v408, 0.0
      %v463 = vmax.f32 %v409, 0.0
      %v464 = vmax.f32 %v410, 0.0
      %v465 = vmax.f32 %v411, 0.0
      %v466 = vmax.f32 %v412, 0.0
      %v467 = vmax.f32 %v413, 0.0
      %v468 = vmax.f32 %v414, 0.0
      %v469 = vmax.f32 %v415, 0.0
      %v470 = vmax.f32 %v416, 0.0
      %v471 = vmax.f32 %v417, 0.0
      %v472 = vmax.f32 %v418, 0.0
      %v473 = vmax.f32 %v419, 0.0
      %v474 = vmax.f32 %v420, 0.0
      %v475 = vmax.f32 %v421, 0.0
      %v476 = vmax.f32 %v422, 0.0
      %v477 = vmax.f32 %v423, 0.0
      %v478 = vmax.f32 %v424, 0.0
      %v479 = vmax.f32 %v425, 0.0
      %v480 = vmax.f32 %v426, 0.0
      %v481 = vmax.f32 %v427, 0.0
      %v482 = vmax.f32 %v428, 0.0
      %v483 = vmax.f32 %v429, 0.0
      %v484 = vmax.f32 %v430, 0.0
      %v485 = vmax.f32 %v431, 0.0
      %v486 = vmax.f32 %v432, 0.0
      %v487 = vmax.f32 %v433, 0.0
      %v488 = vmax.f32 %v434, 0.0
      %v489 = vmax.f32 %v435, 0.0
      %v490 = vmax.f32 %v436, 0.0
      %v491 = vmax.f32 %v437, 0.0
      %v492 = vmax.f32 %v438, 0.0
      %v493 = vlaneseq
      %v494 = vshrl.u32 %v493, 7
      %v495 = vadd.s32 %v494, 8
      %v496 = vadd.s32 %v494, 16
      %vm497 = vcmp.ge.s32.totalorder %v494, 1
      %vm498 = vcmp.ge.s32.totalorder %v495, 1
      %vm499 = vcmp.ge.s32.totalorder %v496, 1
      %vm500 = vmand 0, %vm497
      %vm501 = vmand 0, %vm498
      %vm502 = vmand 0, %vm499
      %vm503 = vmand 1, %vm497
      %vm504 = vmand 1, %vm498
      %vm505 = vmand 1, %vm499
      %vm506 = vcmp.le.s32.totalorder %v494, 16
      %vm507 = vcmp.le.s32.totalorder %v495, 16
      %vm508 = vcmp.le.s32.totalorder %v496, 16
      %vm509 = vmand %vm500, %vm506
      %vm510 = vmand %vm501, %vm507
      %vm511 = vmand %vm502, %vm508
      %vm512 = vmand %vm503, %vm506
      %vm513 = vmand %vm504, %vm507
      %vm514 = vmand %vm505, %vm508
      %v515 = vsel %vm509, %v439, 0.0
      %v516 = vsel %vm510, %v440, 0.0
      %v517 = vsel %vm511, %v441, 0.0
      %v518 = vsel %vm512, %v442, 0.0
      %v519 = vsel %vm513, %v443, 0.0
      %v520 = vsel %vm514, %v444, 0.0
      %v521 = vsel %vm512, %v445, 0.0
      %v522 = vsel %vm513, %v446, 0.0
      %v523 = vsel %vm514, %v447, 0.0
      %v524 = vsel %vm512, %v448, 0.0
      %v525 = vsel %vm513, %v449, 0.0
      %v526 = vsel %vm514, %v450, 0.0
      %v527 = vsel %vm512, %v451, 0.0
      %v528 = vsel %vm513, %v452, 0.0
      %v529 = vsel %vm514, %v453, 0.0
      %v530 = vsel %vm512, %v454, 0.0
      %v531 = vsel %vm513, %v455, 0.0
      %v532 = vsel %vm514, %v456, 0.0
      %v533 = vsel %vm512, %v457, 0.0
      %v534 = vsel %vm513, %v458, 0.0
      %v535 = vsel %vm514, %v459, 0.0
      %v536 = vsel %vm512, %v460, 0.0
      %v537 = vsel %vm513, %v461, 0.0
      %v538 = vsel %vm514, %v462, 0.0
      %v539 = vsel %vm512, %v463, 0.0
      %v540 = vsel %vm513, %v464, 0.0
      %v541 = vsel %vm514, %v465, 0.0
      %v542 = vsel %vm512, %v466, 0.0
      %v543 = vsel %vm513, %v467, 0.0
      %v544 = vsel %vm514, %v468, 0.0
      %v545 = vsel %vm512, %v469, 0.0
      %v546 = vsel %vm513, %v470, 0.0
      %v547 = vsel %vm514, %v471, 0.0
      %v548 = vsel %vm512, %v472, 0.0
      %v549 = vsel %vm513, %v473, 0.0
      %v550 = vsel %vm514, %v474, 0.0
      %v551 = vsel %vm512, %v475, 0.0
      %v552 = vsel %vm513, %v476, 0.0
      %v553 = vsel %vm514, %v477, 0.0
      %v554 = vsel %vm512, %v478, 0.0
      %v555 = vsel %vm513, %v479, 0.0
      %v556 = vsel %vm514, %v480, 0.0
      %v557 = vsel %vm512, %v481, 0.0
      %v558 = vsel %vm513, %v482, 0.0
      %v559 = vsel %vm514, %v483, 0.0
      %v560 = vsel %vm512, %v484, 0.0
      %v561 = vsel %vm513, %v485, 0.0
      %v562 = vsel %vm514, %v486, 0.0
      %v563 = vsel %vm512, %v487, 0.0
      %v564 = vsel %vm513, %v488, 0.0
      %v565 = vsel %vm514, %v489, 0.0
      %v566 = vsel %vm509, %v490, 0.0
      %v567 = vsel %vm510, %v491, 0.0
      %v568 = vsel %vm511, %v492, 0.0
      %v569 = vpack.c.bf16 %v516, %v515
      %v570 = vpack.c.bf16 %v519, %v518
      %v571 = vpack.c.bf16 %v522, %v521
      %v572 = vpack.c.bf16 %v525, %v524
      %v573 = vpack.c.bf16 %v528, %v527
      %v574 = vpack.c.bf16 %v531, %v530
      %v575 = vpack.c.bf16 %v534, %v533
      %v576 = vpack.c.bf16 %v537, %v536
      %v577 = vpack.c.bf16 %v540, %v539
      %v578 = vpack.c.bf16 %v543, %v542
      %v579 = vpack.c.bf16 %v546, %v545
      %v580 = vpack.c.bf16 %v549, %v548
      %v581 = vpack.c.bf16 %v552, %v551
      %v582 = vpack.c.bf16 %v555, %v554
      %v583 = vpack.c.bf16 %v558, %v557
      %v584 = vpack.c.bf16 %v561, %v560
      %v585 = vld [vmem:[%s1] sm:$0xf]
      %v586 = vld [vmem:[%s1 + $0x4] sm:$0xf]
      %v587 = vld [vmem:[%s1 + $0x8] sm:$0xf]
      %v588 = vld [vmem:[%s1 + $0xc] sm:$0xf]
      %v589 = vld [vmem:[%s1 + $0x10] sm:$0xf]
      %v590 = vld [vmem:[%s1 + $0x14] sm:$0xf]
      %v591 = vld [vmem:[%s1 + $0x18] sm:$0xf]
      %v592 = vld [vmem:[%s1 + $0x1c] sm:$0xf]
      %v593 = vld [vmem:[%s1 + $0x20] sm:$0xf]
      %v594 = vld [vmem:[%s1 + $0x24] sm:$0xf]
      %v595 = vld [vmem:[%s1 + $0x28] sm:$0xf]
      %v596 = vld [vmem:[%s1 + $0x2c] sm:$0xf]
      %v597 = vld [vmem:[%s1 + $0x30] sm:$0xf]
      %v598 = vld [vmem:[%s1 + $0x34] sm:$0xf]
      %v599 = vld [vmem:[%s1 + $0x38] sm:$0xf]
      %v600 = vld [vmem:[%s1 + $0x3c] sm:$0xf]
      %vm649 = vcmask 1046528
      %v650 = vrot.slane %v515, 1
      %v651 = vrot.slane %v516, 1
      %v652 = vsel %vm649, %v650, %v651
      %v653 = vrot.slane %v517, 1
      %v654 = vsel %vm649, %v651, %v653
      %v655 = vrot.slane %v518, 1
      %v656 = vrot.slane %v519, 1
      %v657 = vsel %vm649, %v655, %v656
      %v658 = vrot.slane %v520, 1
      %v659 = vsel %vm649, %v656, %v658
      %v660 = vrot.slane %v521, 1
      %v661 = vrot.slane %v522, 1
      %v662 = vsel %vm649, %v660, %v661
      %v663 = vrot.slane %v523, 1
      %v664 = vsel %vm649, %v661, %v663
      %v665 = vrot.slane %v524, 1
      %v666 = vrot.slane %v525, 1
      %v667 = vsel %vm649, %v665, %v666
      %v668 = vrot.slane %v526, 1
      %v669 = vsel %vm649, %v666, %v668
      %v670 = vrot.slane %v527, 1
      %v671 = vrot.slane %v528, 1
      %v672 = vsel %vm649, %v670, %v671
      %v673 = vrot.slane %v529, 1
      %v674 = vsel %vm649, %v671, %v673
      %v675 = vrot.slane %v530, 1
      %v676 = vrot.slane %v531, 1
      %v677 = vsel %vm649, %v675, %v676
      %v678 = vrot.slane %v532, 1
      %v679 = vsel %vm649, %v676, %v678
      %v680 = vrot.slane %v533, 1
      %v681 = vrot.slane %v534, 1
      %v682 = vsel %vm649, %v680, %v681
      %v683 = vrot.slane %v535, 1
      %v684 = vsel %vm649, %v681, %v683
      %v685 = vrot.slane %v536, 1
      %v686 = vrot.slane %v537, 1
      %v687 = vsel %vm649, %v685, %v686
      %v688 = vrot.slane %v538, 1
      %v689 = vsel %vm649, %v686, %v688
      %v690 = vrot.slane %v539, 1
      %v691 = vrot.slane %v540, 1
      %v692 = vsel %vm649, %v690, %v691
      %v693 = vrot.slane %v541, 1
      %v694 = vsel %vm649, %v691, %v693
      %v695 = vrot.slane %v542, 1
      %v696 = vrot.slane %v543, 1
      %v697 = vsel %vm649, %v695, %v696
      %v698 = vrot.slane %v544, 1
      %v699 = vsel %vm649, %v696, %v698
      %v700 = vrot.slane %v545, 1
      %v701 = vrot.slane %v546, 1
      %v702 = vsel %vm649, %v700, %v701
      %v703 = vrot.slane %v547, 1
      %v704 = vsel %vm649, %v701, %v703
      %v705 = vrot.slane %v548, 1
      %v706 = vrot.slane %v549, 1
      %v707 = vsel %vm649, %v705, %v706
      %v708 = vrot.slane %v550, 1
      %v709 = vsel %vm649, %v706, %v708
      %v710 = vrot.slane %v551, 1
      %v711 = vrot.slane %v552, 1
      %v712 = vsel %vm649, %v710, %v711
      %v713 = vrot.slane %v553, 1
      %v714 = vsel %vm649, %v711, %v713
      %v715 = vrot.slane %v554, 1
      %v716 = vrot.slane %v555, 1
      %v717 = vsel %vm649, %v715, %v716
      %v718 = vrot.slane %v556, 1
      %v719 = vsel %vm649, %v716, %v718
      %v720 = vrot.slane %v557, 1
      %v721 = vrot.slane %v558, 1
      %v722 = vsel %vm649, %v720, %v721
      %v723 = vrot.slane %v559, 1
      %v724 = vsel %vm649, %v721, %v723
      %v725 = vrot.slane %v560, 1
      %v726 = vrot.slane %v561, 1
      %v727 = vsel %vm649, %v725, %v726
      %v728 = vrot.slane %v562, 1
      %v729 = vsel %vm649, %v726, %v728
      %v762 = vpack.c.bf16 %v654, %v652
      %v763 = vpack.c.bf16 %v659, %v657
      %v764 = vpack.c.bf16 %v664, %v662
      %v765 = vpack.c.bf16 %v669, %v667
      %v766 = vpack.c.bf16 %v674, %v672
      %v767 = vpack.c.bf16 %v679, %v677
      %v768 = vpack.c.bf16 %v684, %v682
      %v769 = vpack.c.bf16 %v689, %v687
      %v770 = vpack.c.bf16 %v694, %v692
      %v771 = vpack.c.bf16 %v699, %v697
      %v772 = vpack.c.bf16 %v704, %v702
      %v773 = vpack.c.bf16 %v709, %v707
      %v774 = vpack.c.bf16 %v714, %v712
      %v775 = vpack.c.bf16 %v719, %v717
      %v776 = vpack.c.bf16 %v724, %v722
      %v777 = vpack.c.bf16 %v729, %v727
      %s778 = scalar_lea.vmem %s1, 64
      %v779 = vld [vmem:[%s778] sm:$0xf]
      %v780 = vld [vmem:[%s778 + $0x4] sm:$0xf]
      %v781 = vld [vmem:[%s778 + $0x8] sm:$0xf]
      %v782 = vld [vmem:[%s778 + $0xc] sm:$0xf]
      %v783 = vld [vmem:[%s778 + $0x10] sm:$0xf]
      %v784 = vld [vmem:[%s778 + $0x14] sm:$0xf]
      %v785 = vld [vmem:[%s778 + $0x18] sm:$0xf]
      %v786 = vld [vmem:[%s778 + $0x1c] sm:$0xf]
      %v787 = vld [vmem:[%s778 + $0x20] sm:$0xf]
      %v788 = vld [vmem:[%s778 + $0x24] sm:$0xf]
      %v789 = vld [vmem:[%s778 + $0x28] sm:$0xf]
      %v790 = vld [vmem:[%s778 + $0x2c] sm:$0xf]
      %v791 = vld [vmem:[%s778 + $0x30] sm:$0xf]
      %v792 = vld [vmem:[%s778 + $0x34] sm:$0xf]
      %v793 = vld [vmem:[%s778 + $0x38] sm:$0xf]
      %v794 = vld [vmem:[%s778 + $0x3c] sm:$0xf]
      %v811 = vunpack.c.l.b16 %v779
      %v812 = vunpack.c.l.b16 %v780
      %v813 = vunpack.c.l.b16 %v781
      %v814 = vunpack.c.l.b16 %v782
      %v815 = vunpack.c.l.b16 %v783
      %v816 = vunpack.c.l.b16 %v784
      %v817 = vunpack.c.l.b16 %v785
      %v818 = vunpack.c.l.b16 %v786
      %v819 = vunpack.c.l.b16 %v787
      %v820 = vunpack.c.l.b16 %v788
      %v821 = vunpack.c.l.b16 %v789
      %v822 = vunpack.c.l.b16 %v790
      %v823 = vunpack.c.l.b16 %v791
      %v824 = vunpack.c.l.b16 %v792
      %v825 = vunpack.c.l.b16 %v793
      %v826 = vunpack.c.l.b16 %v794
      %v827 = vpack.c.b16 %v812, %v811
      %v828 = vpack.c.b16 %v814, %v813
      %v829 = vpack.c.b16 %v816, %v815
      %v830 = vpack.c.b16 %v818, %v817
      %v831 = vpack.c.b16 %v820, %v819
      %v832 = vpack.c.b16 %v822, %v821
      %v833 = vpack.c.b16 %v824, %v823
      %v834 = vpack.c.b16 %v826, %v825
      %843 = vmatpush.bf16.msra.mxu0 %v834
      %844 = vmatpush.bf16.msra.mxu0 %v833
      %845 = vmatpush.bf16.msra.mxu0 %v832
      %846 = vmatpush.bf16.msra.mxu0 %v831
      %847 = vmatpush.bf16.msra.mxu0 %v830
      %848 = vmatpush.bf16.msra.mxu0 %v829
      %849 = vmatpush.bf16.msra.mxu0 %v828
      %850 = vmatpush.bf16.msra.mxu0 %v827
      %851 = vmatmul.bf16.gmra.mxu0 %v762
      %v852 = vpop.f32.mrf.mxu0
      %v853 = vadd.f32 0.0, %v852
      %v854 = vpop.f32.mrf.mxu0
      %v855 = vadd.f32 0.0, %v854
      %856 = vmatmul.bf16.gmra.mxu0 %v763
      %v857 = vpop.f32.mrf.mxu0
      %v858 = vadd.f32 0.0, %v857
      %v859 = vpop.f32.mrf.mxu0
      %v860 = vadd.f32 0.0, %v859
      %861 = vmatmul.bf16.gmra.mxu0 %v764
      %v862 = vpop.f32.mrf.mxu0
      %v863 = vadd.f32 0.0, %v862
      %v864 = vpop.f32.mrf.mxu0
      %v865 = vadd.f32 0.0, %v864
      %866 = vmatmul.bf16.gmra.mxu0 %v765
      %v867 = vpop.f32.mrf.mxu0
      %v868 = vadd.f32 0.0, %v867
      %v869 = vpop.f32.mrf.mxu0
      %v870 = vadd.f32 0.0, %v869
      %871 = vmatmul.bf16.gmra.mxu0 %v766
      %v872 = vpop.f32.mrf.mxu0
      %v873 = vadd.f32 0.0, %v872
      %v874 = vpop.f32.mrf.mxu0
      %v875 = vadd.f32 0.0, %v874
      %876 = vmatmul.bf16.gmra.mxu0 %v767
      %v877 = vpop.f32.mrf.mxu0
      %v878 = vadd.f32 0.0, %v877
      %v879 = vpop.f32.mrf.mxu0
      %v880 = vadd.f32 0.0, %v879
      %881 = vmatmul.bf16.gmra.mxu0 %v768
      %v882 = vpop.f32.mrf.mxu0
      %v883 = vadd.f32 0.0, %v882
      %v884 = vpop.f32.mrf.mxu0
      %v885 = vadd.f32 0.0, %v884
      %886 = vmatmul.bf16.gmra.mxu0 %v769
      %v887 = vpop.f32.mrf.mxu0
      %v888 = vadd.f32 0.0, %v887
      %v889 = vpop.f32.mrf.mxu0
      %v890 = vadd.f32 0.0, %v889
      %891 = vmatmul.bf16.gmra.mxu0 %v770
      %v892 = vpop.f32.mrf.mxu0
      %v893 = vadd.f32 0.0, %v892
      %v894 = vpop.f32.mrf.mxu0
      %v895 = vadd.f32 0.0, %v894
      %896 = vmatmul.bf16.gmra.mxu0 %v771
      %v897 = vpop.f32.mrf.mxu0
      %v898 = vadd.f32 0.0, %v897
      %v899 = vpop.f32.mrf.mxu0
      %v900 = vadd.f32 0.0, %v899
      %901 = vmatmul.bf16.gmra.mxu0 %v772
      %v902 = vpop.f32.mrf.mxu0
      %v903 = vadd.f32 0.0, %v902
      %v904 = vpop.f32.mrf.mxu0
      %v905 = vadd.f32 0.0, %v904
      %906 = vmatmul.bf16.gmra.mxu0 %v773
      %v907 = vpop.f32.mrf.mxu0
      %v908 = vadd.f32 0.0, %v907
      %v909 = vpop.f32.mrf.mxu0
      %v910 = vadd.f32 0.0, %v909
      %911 = vmatmul.bf16.gmra.mxu0 %v774
      %v912 = vpop.f32.mrf.mxu0
      %v913 = vadd.f32 0.0, %v912
      %v914 = vpop.f32.mrf.mxu0
      %v915 = vadd.f32 0.0, %v914
      %916 = vmatmul.bf16.gmra.mxu0 %v775
      %v917 = vpop.f32.mrf.mxu0
      %v918 = vadd.f32 0.0, %v917
      %v919 = vpop.f32.mrf.mxu0
      %v920 = vadd.f32 0.0, %v919
      %921 = vmatmul.bf16.gmra.mxu0 %v776
      %v922 = vpop.f32.mrf.mxu0
      %v923 = vadd.f32 0.0, %v922
      %v924 = vpop.f32.mrf.mxu0
      %v925 = vadd.f32 0.0, %v924
      %926 = vmatmul.bf16.gmra.mxu0 %v777
      %v927 = vpop.f32.mrf.mxu0
      %v928 = vadd.f32 0.0, %v927
      %v929 = vpop.f32.mrf.mxu0
      %v930 = vadd.f32 0.0, %v929
      %931 = vdwg.mxu0
      %v948 = vunpack.c.l.b16 %v585
      %v949 = vunpack.c.l.b16 %v586
      %v950 = vunpack.c.l.b16 %v587
      %v951 = vunpack.c.l.b16 %v588
      %v952 = vunpack.c.l.b16 %v589
      %v953 = vunpack.c.l.b16 %v590
      %v954 = vunpack.c.l.b16 %v591
      %v955 = vunpack.c.l.b16 %v592
      %v956 = vunpack.c.l.b16 %v593
      %v957 = vunpack.c.l.b16 %v594
      %v958 = vunpack.c.l.b16 %v595
      %v959 = vunpack.c.l.b16 %v596
      %v960 = vunpack.c.l.b16 %v597
      %v961 = vunpack.c.l.b16 %v598
      %v962 = vunpack.c.l.b16 %v599
      %v963 = vunpack.c.l.b16 %v600
      %v964 = vpack.c.b16 %v949, %v948
      %v965 = vpack.c.b16 %v951, %v950
      %v966 = vpack.c.b16 %v953, %v952
      %v967 = vpack.c.b16 %v955, %v954
      %v968 = vpack.c.b16 %v957, %v956
      %v969 = vpack.c.b16 %v959, %v958
      %v970 = vpack.c.b16 %v961, %v960
      %v971 = vpack.c.b16 %v963, %v962
      %980 = vmatpush.bf16.msra.mxu0 %v971
      %981 = vmatpush.bf16.msra.mxu0 %v970
      %982 = vmatpush.bf16.msra.mxu0 %v969
      %983 = vmatpush.bf16.msra.mxu0 %v968
      %984 = vmatpush.bf16.msra.mxu0 %v967
      %985 = vmatpush.bf16.msra.mxu0 %v966
      %986 = vmatpush.bf16.msra.mxu0 %v965
      %987 = vmatpush.bf16.msra.mxu0 %v964
      %988 = vmatmul.bf16.gmra.mxu0 %v569
      %v989 = vpop.f32.mrf.mxu0
      %v990 = vadd.f32 %v853, %v989
      %v991 = vpop.f32.mrf.mxu0
      %v992 = vadd.f32 %v855, %v991
      %993 = vmatmul.bf16.gmra.mxu0 %v570
      %v994 = vpop.f32.mrf.mxu0
      %v995 = vadd.f32 %v858, %v994
      %v996 = vpop.f32.mrf.mxu0
      %v997 = vadd.f32 %v860, %v996
      %998 = vmatmul.bf16.gmra.mxu0 %v571
      %v999 = vpop.f32.mrf.mxu0
      %v1000 = vadd.f32 %v863, %v999
      %v1001 = vpop.f32.mrf.mxu0
      %v1002 = vadd.f32 %v865, %v1001
      %1003 = vmatmul.bf16.gmra.mxu0 %v572
      %v1004 = vpop.f32.mrf.mxu0
      %v1005 = vadd.f32 %v868, %v1004
      %v1006 = vpop.f32.mrf.mxu0
      %v1007 = vadd.f32 %v870, %v1006
      %1008 = vmatmul.bf16.gmra.mxu0 %v573
      %v1009 = vpop.f32.mrf.mxu0
      %v1010 = vadd.f32 %v873, %v1009
      %v1011 = vpop.f32.mrf.mxu0
      %v1012 = vadd.f32 %v875, %v1011
      %1013 = vmatmul.bf16.gmra.mxu0 %v574
      %v1014 = vpop.f32.mrf.mxu0
      %v1015 = vadd.f32 %v878, %v1014
      %v1016 = vpop.f32.mrf.mxu0
      %v1017 = vadd.f32 %v880, %v1016
      %1018 = vmatmul.bf16.gmra.mxu0 %v575
      %v1019 = vpop.f32.mrf.mxu0
      %v1020 = vadd.f32 %v883, %v1019
      %v1021 = vpop.f32.mrf.mxu0
      %v1022 = vadd.f32 %v885, %v1021
      %1023 = vmatmul.bf16.gmra.mxu0 %v576
      %v1024 = vpop.f32.mrf.mxu0
      %v1025 = vadd.f32 %v888, %v1024
      %v1026 = vpop.f32.mrf.mxu0
      %v1027 = vadd.f32 %v890, %v1026
      %1028 = vmatmul.bf16.gmra.mxu0 %v577
      %v1029 = vpop.f32.mrf.mxu0
      %v1030 = vadd.f32 %v893, %v1029
      %v1031 = vpop.f32.mrf.mxu0
      %v1032 = vadd.f32 %v895, %v1031
      %1033 = vmatmul.bf16.gmra.mxu0 %v578
      %v1034 = vpop.f32.mrf.mxu0
      %v1035 = vadd.f32 %v898, %v1034
      %v1036 = vpop.f32.mrf.mxu0
      %v1037 = vadd.f32 %v900, %v1036
      %1038 = vmatmul.bf16.gmra.mxu0 %v579
      %v1039 = vpop.f32.mrf.mxu0
      %v1040 = vadd.f32 %v903, %v1039
      %v1041 = vpop.f32.mrf.mxu0
      %v1042 = vadd.f32 %v905, %v1041
      %1043 = vmatmul.bf16.gmra.mxu0 %v580
      %v1044 = vpop.f32.mrf.mxu0
      %v1045 = vadd.f32 %v908, %v1044
      %v1046 = vpop.f32.mrf.mxu0
      %v1047 = vadd.f32 %v910, %v1046
      %1048 = vmatmul.bf16.gmra.mxu0 %v581
      %v1049 = vpop.f32.mrf.mxu0
      %v1050 = vadd.f32 %v913, %v1049
      %v1051 = vpop.f32.mrf.mxu0
      %v1052 = vadd.f32 %v915, %v1051
      %1053 = vmatmul.bf16.gmra.mxu0 %v582
      %v1054 = vpop.f32.mrf.mxu0
      %v1055 = vadd.f32 %v918, %v1054
      %v1056 = vpop.f32.mrf.mxu0
      %v1057 = vadd.f32 %v920, %v1056
      %1058 = vmatmul.bf16.gmra.mxu0 %v583
      %v1059 = vpop.f32.mrf.mxu0
      %v1060 = vadd.f32 %v923, %v1059
      %v1061 = vpop.f32.mrf.mxu0
      %v1062 = vadd.f32 %v925, %v1061
      %1063 = vmatmul.bf16.gmra.mxu0 %v584
      %v1064 = vpop.f32.mrf.mxu0
      %v1065 = vadd.f32 %v928, %v1064
      %v1066 = vpop.f32.mrf.mxu0
      %v1067 = vadd.f32 %v930, %v1066
      %1068 = vdwg.mxu0
      %vm1069 = vcmask 1045504
      %v1070 = vrot.slane %v515, 2
      %v1071 = vrot.slane %v516, 2
      %v1072 = vsel %vm1069, %v1070, %v1071
      %v1073 = vrot.slane %v517, 2
      %v1074 = vsel %vm1069, %v1071, %v1073
      %v1075 = vrot.slane %v518, 2
      %v1076 = vrot.slane %v519, 2
      %v1077 = vsel %vm1069, %v1075, %v1076
      %v1078 = vrot.slane %v520, 2
      %v1079 = vsel %vm1069, %v1076, %v1078
      %v1080 = vrot.slane %v521, 2
      %v1081 = vrot.slane %v522, 2
      %v1082 = vsel %vm1069, %v1080, %v1081
      %v1083 = vrot.slane %v523, 2
      %v1084 = vsel %vm1069, %v1081, %v1083
      %v1085 = vrot.slane %v524, 2
      %v1086 = vrot.slane %v525, 2
      %v1087 = vsel %vm1069, %v1085, %v1086
      %v1088 = vrot.slane %v526, 2
      %v1089 = vsel %vm1069, %v1086, %v1088
      %v1090 = vrot.slane %v527, 2
      %v1091 = vrot.slane %v528, 2
      %v1092 = vsel %vm1069, %v1090, %v1091
      %v1093 = vrot.slane %v529, 2
      %v1094 = vsel %vm1069, %v1091, %v1093
      %v1095 = vrot.slane %v530, 2
      %v1096 = vrot.slane %v531, 2
      %v1097 = vsel %vm1069, %v1095, %v1096
      %v1098 = vrot.slane %v532, 2
      %v1099 = vsel %vm1069, %v1096, %v1098
      %v1100 = vrot.slane %v533, 2
      %v1101 = vrot.slane %v534, 2
      %v1102 = vsel %vm1069, %v1100, %v1101
      %v1103 = vrot.slane %v535, 2
      %v1104 = vsel %vm1069, %v1101, %v1103
      %v1105 = vrot.slane %v536, 2
      %v1106 = vrot.slane %v537, 2
      %v1107 = vsel %vm1069, %v1105, %v1106
      %v1108 = vrot.slane %v538, 2
      %v1109 = vsel %vm1069, %v1106, %v1108
      %v1110 = vrot.slane %v539, 2
      %v1111 = vrot.slane %v540, 2
      %v1112 = vsel %vm1069, %v1110, %v1111
      %v1113 = vrot.slane %v541, 2
      %v1114 = vsel %vm1069, %v1111, %v1113
      %v1115 = vrot.slane %v542, 2
      %v1116 = vrot.slane %v543, 2
      %v1117 = vsel %vm1069, %v1115, %v1116
      %v1118 = vrot.slane %v544, 2
      %v1119 = vsel %vm1069, %v1116, %v1118
      %v1120 = vrot.slane %v545, 2
      %v1121 = vrot.slane %v546, 2
      %v1122 = vsel %vm1069, %v1120, %v1121
      %v1123 = vrot.slane %v547, 2
      %v1124 = vsel %vm1069, %v1121, %v1123
      %v1125 = vrot.slane %v548, 2
      %v1126 = vrot.slane %v549, 2
      %v1127 = vsel %vm1069, %v1125, %v1126
      %v1128 = vrot.slane %v550, 2
      %v1129 = vsel %vm1069, %v1126, %v1128
      %v1130 = vrot.slane %v551, 2
      %v1131 = vrot.slane %v552, 2
      %v1132 = vsel %vm1069, %v1130, %v1131
      %v1133 = vrot.slane %v553, 2
      %v1134 = vsel %vm1069, %v1131, %v1133
      %v1135 = vrot.slane %v554, 2
      %v1136 = vrot.slane %v555, 2
      %v1137 = vsel %vm1069, %v1135, %v1136
      %v1138 = vrot.slane %v556, 2
      %v1139 = vsel %vm1069, %v1136, %v1138
      %v1140 = vrot.slane %v557, 2
      %v1141 = vrot.slane %v558, 2
      %v1142 = vsel %vm1069, %v1140, %v1141
      %v1143 = vrot.slane %v559, 2
      %v1144 = vsel %vm1069, %v1141, %v1143
      %v1145 = vrot.slane %v560, 2
      %v1146 = vrot.slane %v561, 2
      %v1147 = vsel %vm1069, %v1145, %v1146
      %v1148 = vrot.slane %v562, 2
      %v1149 = vsel %vm1069, %v1146, %v1148
      %v1182 = vpack.c.bf16 %v1074, %v1072
      %v1183 = vpack.c.bf16 %v1079, %v1077
      %v1184 = vpack.c.bf16 %v1084, %v1082
      %v1185 = vpack.c.bf16 %v1089, %v1087
      %v1186 = vpack.c.bf16 %v1094, %v1092
      %v1187 = vpack.c.bf16 %v1099, %v1097
      %v1188 = vpack.c.bf16 %v1104, %v1102
      %v1189 = vpack.c.bf16 %v1109, %v1107
      %v1190 = vpack.c.bf16 %v1114, %v1112
      %v1191 = vpack.c.bf16 %v1119, %v1117
      %v1192 = vpack.c.bf16 %v1124, %v1122
      %v1193 = vpack.c.bf16 %v1129, %v1127
      %v1194 = vpack.c.bf16 %v1134, %v1132
      %v1195 = vpack.c.bf16 %v1139, %v1137
      %v1196 = vpack.c.bf16 %v1144, %v1142
      %v1197 = vpack.c.bf16 %v1149, %v1147
      %s1198 = scalar_lea.vmem %s1, 128
      %v1199 = vld [vmem:[%s1198] sm:$0xf]
      %v1200 = vld [vmem:[%s1198 + $0x4] sm:$0xf]
      %v1201 = vld [vmem:[%s1198 + $0x8] sm:$0xf]
      %v1202 = vld [vmem:[%s1198 + $0xc] sm:$0xf]
      %v1203 = vld [vmem:[%s1198 + $0x10] sm:$0xf]
      %v1204 = vld [vmem:[%s1198 + $0x14] sm:$0xf]
      %v1205 = vld [vmem:[%s1198 + $0x18] sm:$0xf]
      %v1206 = vld [vmem:[%s1198 + $0x1c] sm:$0xf]
      %v1207 = vld [vmem:[%s1198 + $0x20] sm:$0xf]
      %v1208 = vld [vmem:[%s1198 + $0x24] sm:$0xf]
      %v1209 = vld [vmem:[%s1198 + $0x28] sm:$0xf]
      %v1210 = vld [vmem:[%s1198 + $0x2c] sm:$0xf]
      %v1211 = vld [vmem:[%s1198 + $0x30] sm:$0xf]
      %v1212 = vld [vmem:[%s1198 + $0x34] sm:$0xf]
      %v1213 = vld [vmem:[%s1198 + $0x38] sm:$0xf]
      %v1214 = vld [vmem:[%s1198 + $0x3c] sm:$0xf]
      %v1231 = vunpack.c.l.b16 %v1199
      %v1232 = vunpack.c.l.b16 %v1200
      %v1233 = vunpack.c.l.b16 %v1201
      %v1234 = vunpack.c.l.b16 %v1202
      %v1235 = vunpack.c.l.b16 %v1203
      %v1236 = vunpack.c.l.b16 %v1204
      %v1237 = vunpack.c.l.b16 %v1205
      %v1238 = vunpack.c.l.b16 %v1206
      %v1239 = vunpack.c.l.b16 %v1207
      %v1240 = vunpack.c.l.b16 %v1208
      %v1241 = vunpack.c.l.b16 %v1209
      %v1242 = vunpack.c.l.b16 %v1210
      %v1243 = vunpack.c.l.b16 %v1211
      %v1244 = vunpack.c.l.b16 %v1212
      %v1245 = vunpack.c.l.b16 %v1213
      %v1246 = vunpack.c.l.b16 %v1214
      %v1247 = vpack.c.b16 %v1232, %v1231
      %v1248 = vpack.c.b16 %v1234, %v1233
      %v1249 = vpack.c.b16 %v1236, %v1235
      %v1250 = vpack.c.b16 %v1238, %v1237
      %v1251 = vpack.c.b16 %v1240, %v1239
      %v1252 = vpack.c.b16 %v1242, %v1241
      %v1253 = vpack.c.b16 %v1244, %v1243
      %v1254 = vpack.c.b16 %v1246, %v1245
      %1263 = vmatpush.bf16.msra.mxu0 %v1254
      %1264 = vmatpush.bf16.msra.mxu0 %v1253
      %1265 = vmatpush.bf16.msra.mxu0 %v1252
      %1266 = vmatpush.bf16.msra.mxu0 %v1251
      %1267 = vmatpush.bf16.msra.mxu0 %v1250
      %1268 = vmatpush.bf16.msra.mxu0 %v1249
      %1269 = vmatpush.bf16.msra.mxu0 %v1248
      %1270 = vmatpush.bf16.msra.mxu0 %v1247
      %1271 = vmatmul.bf16.gmra.mxu0 %v1182
      %v1272 = vpop.f32.mrf.mxu0
      %v1273 = vadd.f32 0.0, %v1272
      %v1274 = vpop.f32.mrf.mxu0
      %v1275 = vadd.f32 0.0, %v1274
      %1276 = vmatmul.bf16.gmra.mxu0 %v1183
      %v1277 = vpop.f32.mrf.mxu0
      %v1278 = vadd.f32 0.0, %v1277
      %v1279 = vpop.f32.mrf.mxu0
      %v1280 = vadd.f32 0.0, %v1279
      %1281 = vmatmul.bf16.gmra.mxu0 %v1184
      %v1282 = vpop.f32.mrf.mxu0
      %v1283 = vadd.f32 0.0, %v1282
      %v1284 = vpop.f32.mrf.mxu0
      %v1285 = vadd.f32 0.0, %v1284
      %1286 = vmatmul.bf16.gmra.mxu0 %v1185
      %v1287 = vpop.f32.mrf.mxu0
      %v1288 = vadd.f32 0.0, %v1287
      %v1289 = vpop.f32.mrf.mxu0
      %v1290 = vadd.f32 0.0, %v1289
      %1291 = vmatmul.bf16.gmra.mxu0 %v1186
      %v1292 = vpop.f32.mrf.mxu0
      %v1293 = vadd.f32 0.0, %v1292
      %v1294 = vpop.f32.mrf.mxu0
      %v1295 = vadd.f32 0.0, %v1294
      %1296 = vmatmul.bf16.gmra.mxu0 %v1187
      %v1297 = vpop.f32.mrf.mxu0
      %v1298 = vadd.f32 0.0, %v1297
      %v1299 = vpop.f32.mrf.mxu0
      %v1300 = vadd.f32 0.0, %v1299
      %1301 = vmatmul.bf16.gmra.mxu0 %v1188
      %v1302 = vpop.f32.mrf.mxu0
      %v1303 = vadd.f32 0.0, %v1302
      %v1304 = vpop.f32.mrf.mxu0
      %v1305 = vadd.f32 0.0, %v1304
      %1306 = vmatmul.bf16.gmra.mxu0 %v1189
      %v1307 = vpop.f32.mrf.mxu0
      %v1308 = vadd.f32 0.0, %v1307
      %v1309 = vpop.f32.mrf.mxu0
      %v1310 = vadd.f32 0.0, %v1309
      %1311 = vmatmul.bf16.gmra.mxu0 %v1190
      %v1312 = vpop.f32.mrf.mxu0
      %v1313 = vadd.f32 0.0, %v1312
      %v1314 = vpop.f32.mrf.mxu0
      %v1315 = vadd.f32 0.0, %v1314
      %1316 = vmatmul.bf16.gmra.mxu0 %v1191
      %v1317 = vpop.f32.mrf.mxu0
      %v1318 = vadd.f32 0.0, %v1317
      %v1319 = vpop.f32.mrf.mxu0
      %v1320 = vadd.f32 0.0, %v1319
      %1321 = vmatmul.bf16.gmra.mxu0 %v1192
      %v1322 = vpop.f32.mrf.mxu0
      %v1323 = vadd.f32 0.0, %v1322
      %v1324 = vpop.f32.mrf.mxu0
      %v1325 = vadd.f32 0.0, %v1324
      %1326 = vmatmul.bf16.gmra.mxu0 %v1193
      %v1327 = vpop.f32.mrf.mxu0
      %v1328 = vadd.f32 0.0, %v1327
      %v1329 = vpop.f32.mrf.mxu0
      %v1330 = vadd.f32 0.0, %v1329
      %1331 = vmatmul.bf16.gmra.mxu0 %v1194
      %v1332 = vpop.f32.mrf.mxu0
      %v1333 = vadd.f32 0.0, %v1332
      %v1334 = vpop.f32.mrf.mxu0
      %v1335 = vadd.f32 0.0, %v1334
      %1336 = vmatmul.bf16.gmra.mxu0 %v1195
      %v1337 = vpop.f32.mrf.mxu0
      %v1338 = vadd.f32 0.0, %v1337
      %v1339 = vpop.f32.mrf.mxu0
      %v1340 = vadd.f32 0.0, %v1339
      %1341 = vmatmul.bf16.gmra.mxu0 %v1196
      %v1342 = vpop.f32.mrf.mxu0
      %v1343 = vadd.f32 0.0, %v1342
      %v1344 = vpop.f32.mrf.mxu0
      %v1345 = vadd.f32 0.0, %v1344
      %1346 = vmatmul.bf16.gmra.mxu0 %v1197
      %v1347 = vpop.f32.mrf.mxu0
      %v1348 = vadd.f32 0.0, %v1347
      %v1349 = vpop.f32.mrf.mxu0
      %v1350 = vadd.f32 0.0, %v1349
      %1351 = vdwg.mxu0
      %v1352 = vadd.f32 %v990, %v1273
      %v1353 = vadd.f32 %v992, %v1275
      %v1354 = vadd.f32 %v995, %v1278
      %v1355 = vadd.f32 %v997, %v1280
      %v1356 = vadd.f32 %v1000, %v1283
      %v1357 = vadd.f32 %v1002, %v1285
      %v1358 = vadd.f32 %v1005, %v1288
      %v1359 = vadd.f32 %v1007, %v1290
      %v1360 = vadd.f32 %v1010, %v1293
      %v1361 = vadd.f32 %v1012, %v1295
      %v1362 = vadd.f32 %v1015, %v1298
      %v1363 = vadd.f32 %v1017, %v1300
      %v1364 = vadd.f32 %v1020, %v1303
      %v1365 = vadd.f32 %v1022, %v1305
      %v1366 = vadd.f32 %v1025, %v1308
      %v1367 = vadd.f32 %v1027, %v1310
      %v1368 = vadd.f32 %v1030, %v1313
      %v1369 = vadd.f32 %v1032, %v1315
      %v1370 = vadd.f32 %v1035, %v1318
      %v1371 = vadd.f32 %v1037, %v1320
      %v1372 = vadd.f32 %v1040, %v1323
      %v1373 = vadd.f32 %v1042, %v1325
      %v1374 = vadd.f32 %v1045, %v1328
      %v1375 = vadd.f32 %v1047, %v1330
      %v1376 = vadd.f32 %v1050, %v1333
      %v1377 = vadd.f32 %v1052, %v1335
      %v1378 = vadd.f32 %v1055, %v1338
      %v1379 = vadd.f32 %v1057, %v1340
      %v1380 = vadd.f32 %v1060, %v1343
      %v1381 = vadd.f32 %v1062, %v1345
      %v1382 = vadd.f32 %v1065, %v1348
      %v1383 = vadd.f32 %v1067, %v1350
      %v1384 = vpack.c.bf16 %v564, %v563
      %s1385 = scalar_lea.vmem %s1, 192
      %v1386 = vld [vmem:[%s1385] sm:$0xf]
      %v1387 = vld [vmem:[%s1385 + $0x4] sm:$0xf]
      %v1388 = vld [vmem:[%s1385 + $0x8] sm:$0xf]
      %v1389 = vld [vmem:[%s1385 + $0xc] sm:$0xf]
      %v1390 = vld [vmem:[%s1385 + $0x10] sm:$0xf]
      %v1391 = vld [vmem:[%s1385 + $0x14] sm:$0xf]
      %v1392 = vld [vmem:[%s1385 + $0x18] sm:$0xf]
      %v1393 = vld [vmem:[%s1385 + $0x1c] sm:$0xf]
      %v1394 = vld [vmem:[%s1385 + $0x20] sm:$0xf]
      %v1395 = vld [vmem:[%s1385 + $0x24] sm:$0xf]
      %v1396 = vld [vmem:[%s1385 + $0x28] sm:$0xf]
      %v1397 = vld [vmem:[%s1385 + $0x2c] sm:$0xf]
      %v1398 = vld [vmem:[%s1385 + $0x30] sm:$0xf]
      %v1399 = vld [vmem:[%s1385 + $0x34] sm:$0xf]
      %v1400 = vld [vmem:[%s1385 + $0x38] sm:$0xf]
      %v1401 = vld [vmem:[%s1385 + $0x3c] sm:$0xf]
      %v1418 = vunpack.c.l.b16 %v1386
      %v1419 = vunpack.c.l.b16 %v1387
      %v1420 = vunpack.c.l.b16 %v1388
      %v1421 = vunpack.c.l.b16 %v1389
      %v1422 = vunpack.c.l.b16 %v1390
      %v1423 = vunpack.c.l.b16 %v1391
      %v1424 = vunpack.c.l.b16 %v1392
      %v1425 = vunpack.c.l.b16 %v1393
      %v1426 = vunpack.c.l.b16 %v1394
      %v1427 = vunpack.c.l.b16 %v1395
      %v1428 = vunpack.c.l.b16 %v1396
      %v1429 = vunpack.c.l.b16 %v1397
      %v1430 = vunpack.c.l.b16 %v1398
      %v1431 = vunpack.c.l.b16 %v1399
      %v1432 = vunpack.c.l.b16 %v1400
      %v1433 = vunpack.c.l.b16 %v1401
      %v1434 = vpack.c.b16 %v1419, %v1418
      %v1435 = vpack.c.b16 %v1421, %v1420
      %v1436 = vpack.c.b16 %v1423, %v1422
      %v1437 = vpack.c.b16 %v1425, %v1424
      %v1438 = vpack.c.b16 %v1427, %v1426
      %v1439 = vpack.c.b16 %v1429, %v1428
      %v1440 = vpack.c.b16 %v1431, %v1430
      %v1441 = vpack.c.b16 %v1433, %v1432
      %1450 = vmatpush.bf16.msra.mxu0 %v1441
      %1451 = vmatpush.bf16.msra.mxu0 %v1440
      %1452 = vmatpush.bf16.msra.mxu0 %v1439
      %1453 = vmatpush.bf16.msra.mxu0 %v1438
      %1454 = vmatpush.bf16.msra.mxu0 %v1437
      %1455 = vmatpush.bf16.msra.mxu0 %v1436
      %1456 = vmatpush.bf16.msra.mxu0 %v1435
      %1457 = vmatpush.bf16.msra.mxu0 %v1434
      %1458 = vmatmul.bf16.gmra.mxu0 %v570
      %v1459 = vpop.f32.mrf.mxu0
      %v1460 = vadd.f32 0.0, %v1459
      %v1461 = vpop.f32.mrf.mxu0
      %v1462 = vadd.f32 0.0, %v1461
      %1463 = vmatmul.bf16.gmra.mxu0 %v571
      %v1464 = vpop.f32.mrf.mxu0
      %v1465 = vadd.f32 0.0, %v1464
      %v1466 = vpop.f32.mrf.mxu0
      %v1467 = vadd.f32 0.0, %v1466
      %1468 = vmatmul.bf16.gmra.mxu0 %v572
      %v1469 = vpop.f32.mrf.mxu0
      %v1470 = vadd.f32 0.0, %v1469
      %v1471 = vpop.f32.mrf.mxu0
      %v1472 = vadd.f32 0.0, %v1471
      %1473 = vmatmul.bf16.gmra.mxu0 %v573
      %v1474 = vpop.f32.mrf.mxu0
      %v1475 = vadd.f32 0.0, %v1474
      %v1476 = vpop.f32.mrf.mxu0
      %v1477 = vadd.f32 0.0, %v1476
      %1478 = vmatmul.bf16.gmra.mxu0 %v574
      %v1479 = vpop.f32.mrf.mxu0
      %v1480 = vadd.f32 0.0, %v1479
      %v1481 = vpop.f32.mrf.mxu0
      %v1482 = vadd.f32 0.0, %v1481
      %1483 = vmatmul.bf16.gmra.mxu0 %v575
      %v1484 = vpop.f32.mrf.mxu0
      %v1485 = vadd.f32 0.0, %v1484
      %v1486 = vpop.f32.mrf.mxu0
      %v1487 = vadd.f32 0.0, %v1486
      %1488 = vmatmul.bf16.gmra.mxu0 %v576
      %v1489 = vpop.f32.mrf.mxu0
      %v1490 = vadd.f32 0.0, %v1489
      %v1491 = vpop.f32.mrf.mxu0
      %v1492 = vadd.f32 0.0, %v1491
      %1493 = vmatmul.bf16.gmra.mxu0 %v577
      %v1494 = vpop.f32.mrf.mxu0
      %v1495 = vadd.f32 0.0, %v1494
      %v1496 = vpop.f32.mrf.mxu0
      %v1497 = vadd.f32 0.0, %v1496
      %1498 = vmatmul.bf16.gmra.mxu0 %v578
      %v1499 = vpop.f32.mrf.mxu0
      %v1500 = vadd.f32 0.0, %v1499
      %v1501 = vpop.f32.mrf.mxu0
      %v1502 = vadd.f32 0.0, %v1501
      %1503 = vmatmul.bf16.gmra.mxu0 %v579
      %v1504 = vpop.f32.mrf.mxu0
      %v1505 = vadd.f32 0.0, %v1504
      %v1506 = vpop.f32.mrf.mxu0
      %v1507 = vadd.f32 0.0, %v1506
      %1508 = vmatmul.bf16.gmra.mxu0 %v580
      %v1509 = vpop.f32.mrf.mxu0
      %v1510 = vadd.f32 0.0, %v1509
      %v1511 = vpop.f32.mrf.mxu0
      %v1512 = vadd.f32 0.0, %v1511
      %1513 = vmatmul.bf16.gmra.mxu0 %v581
      %v1514 = vpop.f32.mrf.mxu0
      %v1515 = vadd.f32 0.0, %v1514
      %v1516 = vpop.f32.mrf.mxu0
      %v1517 = vadd.f32 0.0, %v1516
      %1518 = vmatmul.bf16.gmra.mxu0 %v582
      %v1519 = vpop.f32.mrf.mxu0
      %v1520 = vadd.f32 0.0, %v1519
      %v1521 = vpop.f32.mrf.mxu0
      %v1522 = vadd.f32 0.0, %v1521
      %1523 = vmatmul.bf16.gmra.mxu0 %v583
      %v1524 = vpop.f32.mrf.mxu0
      %v1525 = vadd.f32 0.0, %v1524
      %v1526 = vpop.f32.mrf.mxu0
      %v1527 = vadd.f32 0.0, %v1526
      %1528 = vmatmul.bf16.gmra.mxu0 %v584
      %v1529 = vpop.f32.mrf.mxu0
      %v1530 = vadd.f32 0.0, %v1529
      %v1531 = vpop.f32.mrf.mxu0
      %v1532 = vadd.f32 0.0, %v1531
      %1533 = vmatmul.bf16.gmra.mxu0 %v1384
      %v1534 = vpop.f32.mrf.mxu0
      %v1535 = vadd.f32 0.0, %v1534
      %v1536 = vpop.f32.mrf.mxu0
      %v1537 = vadd.f32 0.0, %v1536
      %1538 = vdwg.mxu0
      %v1539 = vadd.f32 %v1352, %v1460
      %v1540 = vadd.f32 %v1353, %v1462
      %v1541 = vadd.f32 %v1354, %v1465
      %v1542 = vadd.f32 %v1355, %v1467
      %v1543 = vadd.f32 %v1356, %v1470
      %v1544 = vadd.f32 %v1357, %v1472
      %v1545 = vadd.f32 %v1358, %v1475
      %v1546 = vadd.f32 %v1359, %v1477
      %v1547 = vadd.f32 %v1360, %v1480
      %v1548 = vadd.f32 %v1361, %v1482
      %v1549 = vadd.f32 %v1362, %v1485
      %v1550 = vadd.f32 %v1363, %v1487
      %v1551 = vadd.f32 %v1364, %v1490
      %v1552 = vadd.f32 %v1365, %v1492
      %v1553 = vadd.f32 %v1366, %v1495
      %v1554 = vadd.f32 %v1367, %v1497
      %v1555 = vadd.f32 %v1368, %v1500
      %v1556 = vadd.f32 %v1369, %v1502
      %v1557 = vadd.f32 %v1370, %v1505
      %v1558 = vadd.f32 %v1371, %v1507
      %v1559 = vadd.f32 %v1372, %v1510
      %v1560 = vadd.f32 %v1373, %v1512
      %v1561 = vadd.f32 %v1374, %v1515
      %v1562 = vadd.f32 %v1375, %v1517
      %v1563 = vadd.f32 %v1376, %v1520
      %v1564 = vadd.f32 %v1377, %v1522
      %v1565 = vadd.f32 %v1378, %v1525
      %v1566 = vadd.f32 %v1379, %v1527
      %v1567 = vadd.f32 %v1380, %v1530
      %v1568 = vadd.f32 %v1381, %v1532
      %v1569 = vadd.f32 %v1382, %v1535
      %v1570 = vadd.f32 %v1383, %v1537
      %v1574 = vrot.slane %v563, 1
      %v1575 = vrot.slane %v564, 1
      %v1576 = vsel %vm649, %v1574, %v1575
      %v1577 = vrot.slane %v565, 1
      %v1578 = vsel %vm649, %v1575, %v1577
      %v1581 = vpack.c.bf16 %v1578, %v1576
      %s1582 = scalar_lea.vmem %s1, 256
      %v1583 = vld [vmem:[%s1582] sm:$0xf]
      %v1584 = vld [vmem:[%s1582 + $0x4] sm:$0xf]
      %v1585 = vld [vmem:[%s1582 + $0x8] sm:$0xf]
      %v1586 = vld [vmem:[%s1582 + $0xc] sm:$0xf]
      %v1587 = vld [vmem:[%s1582 + $0x10] sm:$0xf]
      %v1588 = vld [vmem:[%s1582 + $0x14] sm:$0xf]
      %v1589 = vld [vmem:[%s1582 + $0x18] sm:$0xf]
      %v1590 = vld [vmem:[%s1582 + $0x1c] sm:$0xf]
      %v1591 = vld [vmem:[%s1582 + $0x20] sm:$0xf]
      %v1592 = vld [vmem:[%s1582 + $0x24] sm:$0xf]
      %v1593 = vld [vmem:[%s1582 + $0x28] sm:$0xf]
      %v1594 = vld [vmem:[%s1582 + $0x2c] sm:$0xf]
      %v1595 = vld [vmem:[%s1582 + $0x30] sm:$0xf]
      %v1596 = vld [vmem:[%s1582 + $0x34] sm:$0xf]
      %v1597 = vld [vmem:[%s1582 + $0x38] sm:$0xf]
      %v1598 = vld [vmem:[%s1582 + $0x3c] sm:$0xf]
      %v1615 = vunpack.c.l.b16 %v1583
      %v1616 = vunpack.c.l.b16 %v1584
      %v1617 = vunpack.c.l.b16 %v1585
      %v1618 = vunpack.c.l.b16 %v1586
      %v1619 = vunpack.c.l.b16 %v1587
      %v1620 = vunpack.c.l.b16 %v1588
      %v1621 = vunpack.c.l.b16 %v1589
      %v1622 = vunpack.c.l.b16 %v1590
      %v1623 = vunpack.c.l.b16 %v1591
      %v1624 = vunpack.c.l.b16 %v1592
      %v1625 = vunpack.c.l.b16 %v1593
      %v1626 = vunpack.c.l.b16 %v1594
      %v1627 = vunpack.c.l.b16 %v1595
      %v1628 = vunpack.c.l.b16 %v1596
      %v1629 = vunpack.c.l.b16 %v1597
      %v1630 = vunpack.c.l.b16 %v1598
      %v1631 = vpack.c.b16 %v1616, %v1615
      %v1632 = vpack.c.b16 %v1618, %v1617
      %v1633 = vpack.c.b16 %v1620, %v1619
      %v1634 = vpack.c.b16 %v1622, %v1621
      %v1635 = vpack.c.b16 %v1624, %v1623
      %v1636 = vpack.c.b16 %v1626, %v1625
      %v1637 = vpack.c.b16 %v1628, %v1627
      %v1638 = vpack.c.b16 %v1630, %v1629
      %1647 = vmatpush.bf16.msra.mxu0 %v1638
      %1648 = vmatpush.bf16.msra.mxu0 %v1637
      %1649 = vmatpush.bf16.msra.mxu0 %v1636
      %1650 = vmatpush.bf16.msra.mxu0 %v1635
      %1651 = vmatpush.bf16.msra.mxu0 %v1634
      %1652 = vmatpush.bf16.msra.mxu0 %v1633
      %1653 = vmatpush.bf16.msra.mxu0 %v1632
      %1654 = vmatpush.bf16.msra.mxu0 %v1631
      %1655 = vmatmul.bf16.gmra.mxu0 %v763
      %v1656 = vpop.f32.mrf.mxu0
      %v1657 = vadd.f32 0.0, %v1656
      %v1658 = vpop.f32.mrf.mxu0
      %v1659 = vadd.f32 0.0, %v1658
      %1660 = vmatmul.bf16.gmra.mxu0 %v764
      %v1661 = vpop.f32.mrf.mxu0
      %v1662 = vadd.f32 0.0, %v1661
      %v1663 = vpop.f32.mrf.mxu0
      %v1664 = vadd.f32 0.0, %v1663
      %1665 = vmatmul.bf16.gmra.mxu0 %v765
      %v1666 = vpop.f32.mrf.mxu0
      %v1667 = vadd.f32 0.0, %v1666
      %v1668 = vpop.f32.mrf.mxu0
      %v1669 = vadd.f32 0.0, %v1668
      %1670 = vmatmul.bf16.gmra.mxu0 %v766
      %v1671 = vpop.f32.mrf.mxu0
      %v1672 = vadd.f32 0.0, %v1671
      %v1673 = vpop.f32.mrf.mxu0
      %v1674 = vadd.f32 0.0, %v1673
      %1675 = vmatmul.bf16.gmra.mxu0 %v767
      %v1676 = vpop.f32.mrf.mxu0
      %v1677 = vadd.f32 0.0, %v1676
      %v1678 = vpop.f32.mrf.mxu0
      %v1679 = vadd.f32 0.0, %v1678
      %1680 = vmatmul.bf16.gmra.mxu0 %v768
      %v1681 = vpop.f32.mrf.mxu0
      %v1682 = vadd.f32 0.0, %v1681
      %v1683 = vpop.f32.mrf.mxu0
      %v1684 = vadd.f32 0.0, %v1683
      %1685 = vmatmul.bf16.gmra.mxu0 %v769
      %v1686 = vpop.f32.mrf.mxu0
      %v1687 = vadd.f32 0.0, %v1686
      %v1688 = vpop.f32.mrf.mxu0
      %v1689 = vadd.f32 0.0, %v1688
      %1690 = vmatmul.bf16.gmra.mxu0 %v770
      %v1691 = vpop.f32.mrf.mxu0
      %v1692 = vadd.f32 0.0, %v1691
      %v1693 = vpop.f32.mrf.mxu0
      %v1694 = vadd.f32 0.0, %v1693
      %1695 = vmatmul.bf16.gmra.mxu0 %v771
      %v1696 = vpop.f32.mrf.mxu0
      %v1697 = vadd.f32 0.0, %v1696
      %v1698 = vpop.f32.mrf.mxu0
      %v1699 = vadd.f32 0.0, %v1698
      %1700 = vmatmul.bf16.gmra.mxu0 %v772
      %v1701 = vpop.f32.mrf.mxu0
      %v1702 = vadd.f32 0.0, %v1701
      %v1703 = vpop.f32.mrf.mxu0
      %v1704 = vadd.f32 0.0, %v1703
      %1705 = vmatmul.bf16.gmra.mxu0 %v773
      %v1706 = vpop.f32.mrf.mxu0
      %v1707 = vadd.f32 0.0, %v1706
      %v1708 = vpop.f32.mrf.mxu0
      %v1709 = vadd.f32 0.0, %v1708
      %1710 = vmatmul.bf16.gmra.mxu0 %v774
      %v1711 = vpop.f32.mrf.mxu0
      %v1712 = vadd.f32 0.0, %v1711
      %v1713 = vpop.f32.mrf.mxu0
      %v1714 = vadd.f32 0.0, %v1713
      %1715 = vmatmul.bf16.gmra.mxu0 %v775
      %v1716 = vpop.f32.mrf.mxu0
      %v1717 = vadd.f32 0.0, %v1716
      %v1718 = vpop.f32.mrf.mxu0
      %v1719 = vadd.f32 0.0, %v1718
      %1720 = vmatmul.bf16.gmra.mxu0 %v776
      %v1721 = vpop.f32.mrf.mxu0
      %v1722 = vadd.f32 0.0, %v1721
      %v1723 = vpop.f32.mrf.mxu0
      %v1724 = vadd.f32 0.0, %v1723
      %1725 = vmatmul.bf16.gmra.mxu0 %v777
      %v1726 = vpop.f32.mrf.mxu0
      %v1727 = vadd.f32 0.0, %v1726
      %v1728 = vpop.f32.mrf.mxu0
      %v1729 = vadd.f32 0.0, %v1728
      %1730 = vmatmul.bf16.gmra.mxu0 %v1581
      %v1731 = vpop.f32.mrf.mxu0
      %v1732 = vadd.f32 0.0, %v1731
      %v1733 = vpop.f32.mrf.mxu0
      %v1734 = vadd.f32 0.0, %v1733
      %1735 = vdwg.mxu0
      %v1736 = vadd.f32 %v1539, %v1657
      %v1737 = vadd.f32 %v1540, %v1659
      %v1738 = vadd.f32 %v1541, %v1662
      %v1739 = vadd.f32 %v1542, %v1664
      %v1740 = vadd.f32 %v1543, %v1667
      %v1741 = vadd.f32 %v1544, %v1669
      %v1742 = vadd.f32 %v1545, %v1672
      %v1743 = vadd.f32 %v1546, %v1674
      %v1744 = vadd.f32 %v1547, %v1677
      %v1745 = vadd.f32 %v1548, %v1679
      %v1746 = vadd.f32 %v1549, %v1682
      %v1747 = vadd.f32 %v1550, %v1684
      %v1748 = vadd.f32 %v1551, %v1687
      %v1749 = vadd.f32 %v1552, %v1689
      %v1750 = vadd.f32 %v1553, %v1692
      %v1751 = vadd.f32 %v1554, %v1694
      %v1752 = vadd.f32 %v1555, %v1697
      %v1753 = vadd.f32 %v1556, %v1699
      %v1754 = vadd.f32 %v1557, %v1702
      %v1755 = vadd.f32 %v1558, %v1704
      %v1756 = vadd.f32 %v1559, %v1707
      %v1757 = vadd.f32 %v1560, %v1709
      %v1758 = vadd.f32 %v1561, %v1712
      %v1759 = vadd.f32 %v1562, %v1714
      %v1760 = vadd.f32 %v1563, %v1717
      %v1761 = vadd.f32 %v1564, %v1719
      %v1762 = vadd.f32 %v1565, %v1722
      %v1763 = vadd.f32 %v1566, %v1724
      %v1764 = vadd.f32 %v1567, %v1727
      %v1765 = vadd.f32 %v1568, %v1729
      %v1766 = vadd.f32 %v1569, %v1732
      %v1767 = vadd.f32 %v1570, %v1734
      %v1768 = vrot.slane %v563, 2
      %v1769 = vrot.slane %v564, 2
      %v1770 = vsel %vm1069, %v1768, %v1769
      %v1771 = vrot.slane %v565, 2
      %v1772 = vsel %vm1069, %v1769, %v1771
      %v1775 = vpack.c.bf16 %v1772, %v1770
      %s1776 = scalar_lea.vmem %s1, 320
      %v1777 = vld [vmem:[%s1776] sm:$0xf]
      %v1778 = vld [vmem:[%s1776 + $0x4] sm:$0xf]
      %v1779 = vld [vmem:[%s1776 + $0x8] sm:$0xf]
      %v1780 = vld [vmem:[%s1776 + $0xc] sm:$0xf]
      %v1781 = vld [vmem:[%s1776 + $0x10] sm:$0xf]
      %v1782 = vld [vmem:[%s1776 + $0x14] sm:$0xf]
      %v1783 = vld [vmem:[%s1776 + $0x18] sm:$0xf]
      %v1784 = vld [vmem:[%s1776 + $0x1c] sm:$0xf]
      %v1785 = vld [vmem:[%s1776 + $0x20] sm:$0xf]
      %v1786 = vld [vmem:[%s1776 + $0x24] sm:$0xf]
      %v1787 = vld [vmem:[%s1776 + $0x28] sm:$0xf]
      %v1788 = vld [vmem:[%s1776 + $0x2c] sm:$0xf]
      %v1789 = vld [vmem:[%s1776 + $0x30] sm:$0xf]
      %v1790 = vld [vmem:[%s1776 + $0x34] sm:$0xf]
      %v1791 = vld [vmem:[%s1776 + $0x38] sm:$0xf]
      %v1792 = vld [vmem:[%s1776 + $0x3c] sm:$0xf]
      %v1809 = vunpack.c.l.b16 %v1777
      %v1810 = vunpack.c.l.b16 %v1778
      %v1811 = vunpack.c.l.b16 %v1779
      %v1812 = vunpack.c.l.b16 %v1780
      %v1813 = vunpack.c.l.b16 %v1781
      %v1814 = vunpack.c.l.b16 %v1782
      %v1815 = vunpack.c.l.b16 %v1783
      %v1816 = vunpack.c.l.b16 %v1784
      %v1817 = vunpack.c.l.b16 %v1785
      %v1818 = vunpack.c.l.b16 %v1786
      %v1819 = vunpack.c.l.b16 %v1787
      %v1820 = vunpack.c.l.b16 %v1788
      %v1821 = vunpack.c.l.b16 %v1789
      %v1822 = vunpack.c.l.b16 %v1790
      %v1823 = vunpack.c.l.b16 %v1791
      %v1824 = vunpack.c.l.b16 %v1792
      %v1825 = vpack.c.b16 %v1810, %v1809
      %v1826 = vpack.c.b16 %v1812, %v1811
      %v1827 = vpack.c.b16 %v1814, %v1813
      %v1828 = vpack.c.b16 %v1816, %v1815
      %v1829 = vpack.c.b16 %v1818, %v1817
      %v1830 = vpack.c.b16 %v1820, %v1819
      %v1831 = vpack.c.b16 %v1822, %v1821
      %v1832 = vpack.c.b16 %v1824, %v1823
      %1841 = vmatpush.bf16.msra.mxu0 %v1832
      %1842 = vmatpush.bf16.msra.mxu0 %v1831
      %1843 = vmatpush.bf16.msra.mxu0 %v1830
      %1844 = vmatpush.bf16.msra.mxu0 %v1829
      %1845 = vmatpush.bf16.msra.mxu0 %v1828
      %1846 = vmatpush.bf16.msra.mxu0 %v1827
      %1847 = vmatpush.bf16.msra.mxu0 %v1826
      %1848 = vmatpush.bf16.msra.mxu0 %v1825
      %1849 = vmatmul.bf16.gmra.mxu0 %v1183
      %v1850 = vpop.f32.mrf.mxu0
      %v1851 = vadd.f32 0.0, %v1850
      %v1852 = vpop.f32.mrf.mxu0
      %v1853 = vadd.f32 0.0, %v1852
      %1854 = vmatmul.bf16.gmra.mxu0 %v1184
      %v1855 = vpop.f32.mrf.mxu0
      %v1856 = vadd.f32 0.0, %v1855
      %v1857 = vpop.f32.mrf.mxu0
      %v1858 = vadd.f32 0.0, %v1857
      %1859 = vmatmul.bf16.gmra.mxu0 %v1185
      %v1860 = vpop.f32.mrf.mxu0
      %v1861 = vadd.f32 0.0, %v1860
      %v1862 = vpop.f32.mrf.mxu0
      %v1863 = vadd.f32 0.0, %v1862
      %1864 = vmatmul.bf16.gmra.mxu0 %v1186
      %v1865 = vpop.f32.mrf.mxu0
      %v1866 = vadd.f32 0.0, %v1865
      %v1867 = vpop.f32.mrf.mxu0
      %v1868 = vadd.f32 0.0, %v1867
      %1869 = vmatmul.bf16.gmra.mxu0 %v1187
      %v1870 = vpop.f32.mrf.mxu0
      %v1871 = vadd.f32 0.0, %v1870
      %v1872 = vpop.f32.mrf.mxu0
      %v1873 = vadd.f32 0.0, %v1872
      %1874 = vmatmul.bf16.gmra.mxu0 %v1188
      %v1875 = vpop.f32.mrf.mxu0
      %v1876 = vadd.f32 0.0, %v1875
      %v1877 = vpop.f32.mrf.mxu0
      %v1878 = vadd.f32 0.0, %v1877
      %1879 = vmatmul.bf16.gmra.mxu0 %v1189
      %v1880 = vpop.f32.mrf.mxu0
      %v1881 = vadd.f32 0.0, %v1880
      %v1882 = vpop.f32.mrf.mxu0
      %v1883 = vadd.f32 0.0, %v1882
      %1884 = vmatmul.bf16.gmra.mxu0 %v1190
      %v1885 = vpop.f32.mrf.mxu0
      %v1886 = vadd.f32 0.0, %v1885
      %v1887 = vpop.f32.mrf.mxu0
      %v1888 = vadd.f32 0.0, %v1887
      %1889 = vmatmul.bf16.gmra.mxu0 %v1191
      %v1890 = vpop.f32.mrf.mxu0
      %v1891 = vadd.f32 0.0, %v1890
      %v1892 = vpop.f32.mrf.mxu0
      %v1893 = vadd.f32 0.0, %v1892
      %1894 = vmatmul.bf16.gmra.mxu0 %v1192
      %v1895 = vpop.f32.mrf.mxu0
      %v1896 = vadd.f32 0.0, %v1895
      %v1897 = vpop.f32.mrf.mxu0
      %v1898 = vadd.f32 0.0, %v1897
      %1899 = vmatmul.bf16.gmra.mxu0 %v1193
      %v1900 = vpop.f32.mrf.mxu0
      %v1901 = vadd.f32 0.0, %v1900
      %v1902 = vpop.f32.mrf.mxu0
      %v1903 = vadd.f32 0.0, %v1902
      %1904 = vmatmul.bf16.gmra.mxu0 %v1194
      %v1905 = vpop.f32.mrf.mxu0
      %v1906 = vadd.f32 0.0, %v1905
      %v1907 = vpop.f32.mrf.mxu0
      %v1908 = vadd.f32 0.0, %v1907
      %1909 = vmatmul.bf16.gmra.mxu0 %v1195
      %v1910 = vpop.f32.mrf.mxu0
      %v1911 = vadd.f32 0.0, %v1910
      %v1912 = vpop.f32.mrf.mxu0
      %v1913 = vadd.f32 0.0, %v1912
      %1914 = vmatmul.bf16.gmra.mxu0 %v1196
      %v1915 = vpop.f32.mrf.mxu0
      %v1916 = vadd.f32 0.0, %v1915
      %v1917 = vpop.f32.mrf.mxu0
      %v1918 = vadd.f32 0.0, %v1917
      %1919 = vmatmul.bf16.gmra.mxu0 %v1197
      %v1920 = vpop.f32.mrf.mxu0
      %v1921 = vadd.f32 0.0, %v1920
      %v1922 = vpop.f32.mrf.mxu0
      %v1923 = vadd.f32 0.0, %v1922
      %1924 = vmatmul.bf16.gmra.mxu0 %v1775
      %v1925 = vpop.f32.mrf.mxu0
      %v1926 = vadd.f32 0.0, %v1925
      %v1927 = vpop.f32.mrf.mxu0
      %v1928 = vadd.f32 0.0, %v1927
      %1929 = vdwg.mxu0
      %v1930 = vadd.f32 %v1736, %v1851
      %v1931 = vadd.f32 %v1737, %v1853
      %v1932 = vadd.f32 %v1738, %v1856
      %v1933 = vadd.f32 %v1739, %v1858
      %v1934 = vadd.f32 %v1740, %v1861
      %v1935 = vadd.f32 %v1741, %v1863
      %v1936 = vadd.f32 %v1742, %v1866
      %v1937 = vadd.f32 %v1743, %v1868
      %v1938 = vadd.f32 %v1744, %v1871
      %v1939 = vadd.f32 %v1745, %v1873
      %v1940 = vadd.f32 %v1746, %v1876
      %v1941 = vadd.f32 %v1747, %v1878
      %v1942 = vadd.f32 %v1748, %v1881
      %v1943 = vadd.f32 %v1749, %v1883
      %v1944 = vadd.f32 %v1750, %v1886
      %v1945 = vadd.f32 %v1751, %v1888
      %v1946 = vadd.f32 %v1752, %v1891
      %v1947 = vadd.f32 %v1753, %v1893
      %v1948 = vadd.f32 %v1754, %v1896
      %v1949 = vadd.f32 %v1755, %v1898
      %v1950 = vadd.f32 %v1756, %v1901
      %v1951 = vadd.f32 %v1757, %v1903
      %v1952 = vadd.f32 %v1758, %v1906
      %v1953 = vadd.f32 %v1759, %v1908
      %v1954 = vadd.f32 %v1760, %v1911
      %v1955 = vadd.f32 %v1761, %v1913
      %v1956 = vadd.f32 %v1762, %v1916
      %v1957 = vadd.f32 %v1763, %v1918
      %v1958 = vadd.f32 %v1764, %v1921
      %v1959 = vadd.f32 %v1765, %v1923
      %v1960 = vadd.f32 %v1766, %v1926
      %v1961 = vadd.f32 %v1767, %v1928
      %v1962 = vpack.c.bf16 %v567, %v566
      %s1963 = scalar_lea.vmem %s1, 384
      %v1964 = vld [vmem:[%s1963] sm:$0xf]
      %v1965 = vld [vmem:[%s1963 + $0x4] sm:$0xf]
      %v1966 = vld [vmem:[%s1963 + $0x8] sm:$0xf]
      %v1967 = vld [vmem:[%s1963 + $0xc] sm:$0xf]
      %v1968 = vld [vmem:[%s1963 + $0x10] sm:$0xf]
      %v1969 = vld [vmem:[%s1963 + $0x14] sm:$0xf]
      %v1970 = vld [vmem:[%s1963 + $0x18] sm:$0xf]
      %v1971 = vld [vmem:[%s1963 + $0x1c] sm:$0xf]
      %v1972 = vld [vmem:[%s1963 + $0x20] sm:$0xf]
      %v1973 = vld [vmem:[%s1963 + $0x24] sm:$0xf]
      %v1974 = vld [vmem:[%s1963 + $0x28] sm:$0xf]
      %v1975 = vld [vmem:[%s1963 + $0x2c] sm:$0xf]
      %v1976 = vld [vmem:[%s1963 + $0x30] sm:$0xf]
      %v1977 = vld [vmem:[%s1963 + $0x34] sm:$0xf]
      %v1978 = vld [vmem:[%s1963 + $0x38] sm:$0xf]
      %v1979 = vld [vmem:[%s1963 + $0x3c] sm:$0xf]
      %v1996 = vunpack.c.l.b16 %v1964
      %v1997 = vunpack.c.l.b16 %v1965
      %v1998 = vunpack.c.l.b16 %v1966
      %v1999 = vunpack.c.l.b16 %v1967
      %v2000 = vunpack.c.l.b16 %v1968
      %v2001 = vunpack.c.l.b16 %v1969
      %v2002 = vunpack.c.l.b16 %v1970
      %v2003 = vunpack.c.l.b16 %v1971
      %v2004 = vunpack.c.l.b16 %v1972
      %v2005 = vunpack.c.l.b16 %v1973
      %v2006 = vunpack.c.l.b16 %v1974
      %v2007 = vunpack.c.l.b16 %v1975
      %v2008 = vunpack.c.l.b16 %v1976
      %v2009 = vunpack.c.l.b16 %v1977
      %v2010 = vunpack.c.l.b16 %v1978
      %v2011 = vunpack.c.l.b16 %v1979
      %v2012 = vpack.c.b16 %v1997, %v1996
      %v2013 = vpack.c.b16 %v1999, %v1998
      %v2014 = vpack.c.b16 %v2001, %v2000
      %v2015 = vpack.c.b16 %v2003, %v2002
      %v2016 = vpack.c.b16 %v2005, %v2004
      %v2017 = vpack.c.b16 %v2007, %v2006
      %v2018 = vpack.c.b16 %v2009, %v2008
      %v2019 = vpack.c.b16 %v2011, %v2010
      %2028 = vmatpush.bf16.msra.mxu0 %v2019
      %2029 = vmatpush.bf16.msra.mxu0 %v2018
      %2030 = vmatpush.bf16.msra.mxu0 %v2017
      %2031 = vmatpush.bf16.msra.mxu0 %v2016
      %2032 = vmatpush.bf16.msra.mxu0 %v2015
      %2033 = vmatpush.bf16.msra.mxu0 %v2014
      %2034 = vmatpush.bf16.msra.mxu0 %v2013
      %2035 = vmatpush.bf16.msra.mxu0 %v2012
      %2036 = vmatmul.bf16.gmra.mxu0 %v571
      %v2037 = vpop.f32.mrf.mxu0
      %v2038 = vadd.f32 0.0, %v2037
      %v2039 = vpop.f32.mrf.mxu0
      %v2040 = vadd.f32 0.0, %v2039
      %2041 = vmatmul.bf16.gmra.mxu0 %v572
      %v2042 = vpop.f32.mrf.mxu0
      %v2043 = vadd.f32 0.0, %v2042
      %v2044 = vpop.f32.mrf.mxu0
      %v2045 = vadd.f32 0.0, %v2044
      %2046 = vmatmul.bf16.gmra.mxu0 %v573
      %v2047 = vpop.f32.mrf.mxu0
      %v2048 = vadd.f32 0.0, %v2047
      %v2049 = vpop.f32.mrf.mxu0
      %v2050 = vadd.f32 0.0, %v2049
      %2051 = vmatmul.bf16.gmra.mxu0 %v574
      %v2052 = vpop.f32.mrf.mxu0
      %v2053 = vadd.f32 0.0, %v2052
      %v2054 = vpop.f32.mrf.mxu0
      %v2055 = vadd.f32 0.0, %v2054
      %2056 = vmatmul.bf16.gmra.mxu0 %v575
      %v2057 = vpop.f32.mrf.mxu0
      %v2058 = vadd.f32 0.0, %v2057
      %v2059 = vpop.f32.mrf.mxu0
      %v2060 = vadd.f32 0.0, %v2059
      %2061 = vmatmul.bf16.gmra.mxu0 %v576
      %v2062 = vpop.f32.mrf.mxu0
      %v2063 = vadd.f32 0.0, %v2062
      %v2064 = vpop.f32.mrf.mxu0
      %v2065 = vadd.f32 0.0, %v2064
      %2066 = vmatmul.bf16.gmra.mxu0 %v577
      %v2067 = vpop.f32.mrf.mxu0
      %v2068 = vadd.f32 0.0, %v2067
      %v2069 = vpop.f32.mrf.mxu0
      %v2070 = vadd.f32 0.0, %v2069
      %2071 = vmatmul.bf16.gmra.mxu0 %v578
      %v2072 = vpop.f32.mrf.mxu0
      %v2073 = vadd.f32 0.0, %v2072
      %v2074 = vpop.f32.mrf.mxu0
      %v2075 = vadd.f32 0.0, %v2074
      %2076 = vmatmul.bf16.gmra.mxu0 %v579
      %v2077 = vpop.f32.mrf.mxu0
      %v2078 = vadd.f32 0.0, %v2077
      %v2079 = vpop.f32.mrf.mxu0
      %v2080 = vadd.f32 0.0, %v2079
      %2081 = vmatmul.bf16.gmra.mxu0 %v580
      %v2082 = vpop.f32.mrf.mxu0
      %v2083 = vadd.f32 0.0, %v2082
      %v2084 = vpop.f32.mrf.mxu0
      %v2085 = vadd.f32 0.0, %v2084
      %2086 = vmatmul.bf16.gmra.mxu0 %v581
      %v2087 = vpop.f32.mrf.mxu0
      %v2088 = vadd.f32 0.0, %v2087
      %v2089 = vpop.f32.mrf.mxu0
      %v2090 = vadd.f32 0.0, %v2089
      %2091 = vmatmul.bf16.gmra.mxu0 %v582
      %v2092 = vpop.f32.mrf.mxu0
      %v2093 = vadd.f32 0.0, %v2092
      %v2094 = vpop.f32.mrf.mxu0
      %v2095 = vadd.f32 0.0, %v2094
      %2096 = vmatmul.bf16.gmra.mxu0 %v583
      %v2097 = vpop.f32.mrf.mxu0
      %v2098 = vadd.f32 0.0, %v2097
      %v2099 = vpop.f32.mrf.mxu0
      %v2100 = vadd.f32 0.0, %v2099
      %2101 = vmatmul.bf16.gmra.mxu0 %v584
      %v2102 = vpop.f32.mrf.mxu0
      %v2103 = vadd.f32 0.0, %v2102
      %v2104 = vpop.f32.mrf.mxu0
      %v2105 = vadd.f32 0.0, %v2104
      %2106 = vmatmul.bf16.gmra.mxu0 %v1384
      %v2107 = vpop.f32.mrf.mxu0
      %v2108 = vadd.f32 0.0, %v2107
      %v2109 = vpop.f32.mrf.mxu0
      %v2110 = vadd.f32 0.0, %v2109
      %2111 = vmatmul.bf16.gmra.mxu0 %v1962
      %v2112 = vpop.f32.mrf.mxu0
      %v2113 = vadd.f32 0.0, %v2112
      %v2114 = vpop.f32.mrf.mxu0
      %v2115 = vadd.f32 0.0, %v2114
      %2116 = vdwg.mxu0
      %v2117 = vadd.f32 %v1930, %v2038
      %v2118 = vadd.f32 %v1931, %v2040
      %v2119 = vadd.f32 %v1932, %v2043
      %v2120 = vadd.f32 %v1933, %v2045
      %v2121 = vadd.f32 %v1934, %v2048
      %v2122 = vadd.f32 %v1935, %v2050
      %v2123 = vadd.f32 %v1936, %v2053
      %v2124 = vadd.f32 %v1937, %v2055
      %v2125 = vadd.f32 %v1938, %v2058
      %v2126 = vadd.f32 %v1939, %v2060
      %v2127 = vadd.f32 %v1940, %v2063
      %v2128 = vadd.f32 %v1941, %v2065
      %v2129 = vadd.f32 %v1942, %v2068
      %v2130 = vadd.f32 %v1943, %v2070
      %v2131 = vadd.f32 %v1944, %v2073
      %v2132 = vadd.f32 %v1945, %v2075
      %v2133 = vadd.f32 %v1946, %v2078
      %v2134 = vadd.f32 %v1947, %v2080
      %v2135 = vadd.f32 %v1948, %v2083
      %v2136 = vadd.f32 %v1949, %v2085
      %v2137 = vadd.f32 %v1950, %v2088
      %v2138 = vadd.f32 %v1951, %v2090
      %v2139 = vadd.f32 %v1952, %v2093
      %v2140 = vadd.f32 %v1953, %v2095
      %v2141 = vadd.f32 %v1954, %v2098
      %v2142 = vadd.f32 %v1955, %v2100
      %v2143 = vadd.f32 %v1956, %v2103
      %v2144 = vadd.f32 %v1957, %v2105
      %v2145 = vadd.f32 %v1958, %v2108
      %v2146 = vadd.f32 %v1959, %v2110
      %v2147 = vadd.f32 %v1960, %v2113
      %v2148 = vadd.f32 %v1961, %v2115
      %v2152 = vrot.slane %v566, 1
      %v2153 = vrot.slane %v567, 1
      %v2154 = vsel %vm649, %v2152, %v2153
      %v2155 = vrot.slane %v568, 1
      %v2156 = vsel %vm649, %v2153, %v2155
      %v2159 = vpack.c.bf16 %v2156, %v2154
      %s2160 = scalar_lea.vmem %s1, 448
      %v2161 = vld [vmem:[%s2160] sm:$0xf]
      %v2162 = vld [vmem:[%s2160 + $0x4] sm:$0xf]
      %v2163 = vld [vmem:[%s2160 + $0x8] sm:$0xf]
      %v2164 = vld [vmem:[%s2160 + $0xc] sm:$0xf]
      %v2165 = vld [vmem:[%s2160 + $0x10] sm:$0xf]
      %v2166 = vld [vmem:[%s2160 + $0x14] sm:$0xf]
      %v2167 = vld [vmem:[%s2160 + $0x18] sm:$0xf]
      %v2168 = vld [vmem:[%s2160 + $0x1c] sm:$0xf]
      %v2169 = vld [vmem:[%s2160 + $0x20] sm:$0xf]
      %v2170 = vld [vmem:[%s2160 + $0x24] sm:$0xf]
      %v2171 = vld [vmem:[%s2160 + $0x28] sm:$0xf]
      %v2172 = vld [vmem:[%s2160 + $0x2c] sm:$0xf]
      %v2173 = vld [vmem:[%s2160 + $0x30] sm:$0xf]
      %v2174 = vld [vmem:[%s2160 + $0x34] sm:$0xf]
      %v2175 = vld [vmem:[%s2160 + $0x38] sm:$0xf]
      %v2176 = vld [vmem:[%s2160 + $0x3c] sm:$0xf]
      %v2193 = vunpack.c.l.b16 %v2161
      %v2194 = vunpack.c.l.b16 %v2162
      %v2195 = vunpack.c.l.b16 %v2163
      %v2196 = vunpack.c.l.b16 %v2164
      %v2197 = vunpack.c.l.b16 %v2165
      %v2198 = vunpack.c.l.b16 %v2166
      %v2199 = vunpack.c.l.b16 %v2167
      %v2200 = vunpack.c.l.b16 %v2168
      %v2201 = vunpack.c.l.b16 %v2169
      %v2202 = vunpack.c.l.b16 %v2170
      %v2203 = vunpack.c.l.b16 %v2171
      %v2204 = vunpack.c.l.b16 %v2172
      %v2205 = vunpack.c.l.b16 %v2173
      %v2206 = vunpack.c.l.b16 %v2174
      %v2207 = vunpack.c.l.b16 %v2175
      %v2208 = vunpack.c.l.b16 %v2176
      %v2209 = vpack.c.b16 %v2194, %v2193
      %v2210 = vpack.c.b16 %v2196, %v2195
      %v2211 = vpack.c.b16 %v2198, %v2197
      %v2212 = vpack.c.b16 %v2200, %v2199
      %v2213 = vpack.c.b16 %v2202, %v2201
      %v2214 = vpack.c.b16 %v2204, %v2203
      %v2215 = vpack.c.b16 %v2206, %v2205
      %v2216 = vpack.c.b16 %v2208, %v2207
      %2225 = vmatpush.bf16.msra.mxu0 %v2216
      %2226 = vmatpush.bf16.msra.mxu0 %v2215
      %2227 = vmatpush.bf16.msra.mxu0 %v2214
      %2228 = vmatpush.bf16.msra.mxu0 %v2213
      %2229 = vmatpush.bf16.msra.mxu0 %v2212
      %2230 = vmatpush.bf16.msra.mxu0 %v2211
      %2231 = vmatpush.bf16.msra.mxu0 %v2210
      %2232 = vmatpush.bf16.msra.mxu0 %v2209
      %2233 = vmatmul.bf16.gmra.mxu0 %v764
      %v2234 = vpop.f32.mrf.mxu0
      %v2235 = vadd.f32 0.0, %v2234
      %v2236 = vpop.f32.mrf.mxu0
      %v2237 = vadd.f32 0.0, %v2236
      %2238 = vmatmul.bf16.gmra.mxu0 %v765
      %v2239 = vpop.f32.mrf.mxu0
      %v2240 = vadd.f32 0.0, %v2239
      %v2241 = vpop.f32.mrf.mxu0
      %v2242 = vadd.f32 0.0, %v2241
      %2243 = vmatmul.bf16.gmra.mxu0 %v766
      %v2244 = vpop.f32.mrf.mxu0
      %v2245 = vadd.f32 0.0, %v2244
      %v2246 = vpop.f32.mrf.mxu0
      %v2247 = vadd.f32 0.0, %v2246
      %2248 = vmatmul.bf16.gmra.mxu0 %v767
      %v2249 = vpop.f32.mrf.mxu0
      %v2250 = vadd.f32 0.0, %v2249
      %v2251 = vpop.f32.mrf.mxu0
      %v2252 = vadd.f32 0.0, %v2251
      %2253 = vmatmul.bf16.gmra.mxu0 %v768
      %v2254 = vpop.f32.mrf.mxu0
      %v2255 = vadd.f32 0.0, %v2254
      %v2256 = vpop.f32.mrf.mxu0
      %v2257 = vadd.f32 0.0, %v2256
      %2258 = vmatmul.bf16.gmra.mxu0 %v769
      %v2259 = vpop.f32.mrf.mxu0
      %v2260 = vadd.f32 0.0, %v2259
      %v2261 = vpop.f32.mrf.mxu0
      %v2262 = vadd.f32 0.0, %v2261
      %2263 = vmatmul.bf16.gmra.mxu0 %v770
      %v2264 = vpop.f32.mrf.mxu0
      %v2265 = vadd.f32 0.0, %v2264
      %v2266 = vpop.f32.mrf.mxu0
      %v2267 = vadd.f32 0.0, %v2266
      %2268 = vmatmul.bf16.gmra.mxu0 %v771
      %v2269 = vpop.f32.mrf.mxu0
      %v2270 = vadd.f32 0.0, %v2269
      %v2271 = vpop.f32.mrf.mxu0
      %v2272 = vadd.f32 0.0, %v2271
      %2273 = vmatmul.bf16.gmra.mxu0 %v772
      %v2274 = vpop.f32.mrf.mxu0
      %v2275 = vadd.f32 0.0, %v2274
      %v2276 = vpop.f32.mrf.mxu0
      %v2277 = vadd.f32 0.0, %v2276
      %2278 = vmatmul.bf16.gmra.mxu0 %v773
      %v2279 = vpop.f32.mrf.mxu0
      %v2280 = vadd.f32 0.0, %v2279
      %v2281 = vpop.f32.mrf.mxu0
      %v2282 = vadd.f32 0.0, %v2281
      %2283 = vmatmul.bf16.gmra.mxu0 %v774
      %v2284 = vpop.f32.mrf.mxu0
      %v2285 = vadd.f32 0.0, %v2284
      %v2286 = vpop.f32.mrf.mxu0
      %v2287 = vadd.f32 0.0, %v2286
      %2288 = vmatmul.bf16.gmra.mxu0 %v775
      %v2289 = vpop.f32.mrf.mxu0
      %v2290 = vadd.f32 0.0, %v2289
      %v2291 = vpop.f32.mrf.mxu0
      %v2292 = vadd.f32 0.0, %v2291
      %2293 = vmatmul.bf16.gmra.mxu0 %v776
      %v2294 = vpop.f32.mrf.mxu0
      %v2295 = vadd.f32 0.0, %v2294
      %v2296 = vpop.f32.mrf.mxu0
      %v2297 = vadd.f32 0.0, %v2296
      %2298 = vmatmul.bf16.gmra.mxu0 %v777
      %v2299 = vpop.f32.mrf.mxu0
      %v2300 = vadd.f32 0.0, %v2299
      %v2301 = vpop.f32.mrf.mxu0
      %v2302 = vadd.f32 0.0, %v2301
      %2303 = vmatmul.bf16.gmra.mxu0 %v1581
      %v2304 = vpop.f32.mrf.mxu0
      %v2305 = vadd.f32 0.0, %v2304
      %v2306 = vpop.f32.mrf.mxu0
      %v2307 = vadd.f32 0.0, %v2306
      %2308 = vmatmul.bf16.gmra.mxu0 %v2159
      %v2309 = vpop.f32.mrf.mxu0
      %v2310 = vadd.f32 0.0, %v2309
      %v2311 = vpop.f32.mrf.mxu0
      %v2312 = vadd.f32 0.0, %v2311
      %2313 = vdwg.mxu0
      %v2314 = vadd.f32 %v2117, %v2235
      %v2315 = vadd.f32 %v2118, %v2237
      %v2316 = vadd.f32 %v2119, %v2240
      %v2317 = vadd.f32 %v2120, %v2242
      %v2318 = vadd.f32 %v2121, %v2245
      %v2319 = vadd.f32 %v2122, %v2247
      %v2320 = vadd.f32 %v2123, %v2250
      %v2321 = vadd.f32 %v2124, %v2252
      %v2322 = vadd.f32 %v2125, %v2255
      %v2323 = vadd.f32 %v2126, %v2257
      %v2324 = vadd.f32 %v2127, %v2260
      %v2325 = vadd.f32 %v2128, %v2262
      %v2326 = vadd.f32 %v2129, %v2265
      %v2327 = vadd.f32 %v2130, %v2267
      %v2328 = vadd.f32 %v2131, %v2270
      %v2329 = vadd.f32 %v2132, %v2272
      %v2330 = vadd.f32 %v2133, %v2275
      %v2331 = vadd.f32 %v2134, %v2277
      %v2332 = vadd.f32 %v2135, %v2280
      %v2333 = vadd.f32 %v2136, %v2282
      %v2334 = vadd.f32 %v2137, %v2285
      %v2335 = vadd.f32 %v2138, %v2287
      %v2336 = vadd.f32 %v2139, %v2290
      %v2337 = vadd.f32 %v2140, %v2292
      %v2338 = vadd.f32 %v2141, %v2295
      %v2339 = vadd.f32 %v2142, %v2297
      %v2340 = vadd.f32 %v2143, %v2300
      %v2341 = vadd.f32 %v2144, %v2302
      %v2342 = vadd.f32 %v2145, %v2305
      %v2343 = vadd.f32 %v2146, %v2307
      %v2344 = vadd.f32 %v2147, %v2310
      %v2345 = vadd.f32 %v2148, %v2312
      %v2346 = vrot.slane %v566, 2
      %v2347 = vrot.slane %v567, 2
      %v2348 = vsel %vm1069, %v2346, %v2347
      %v2349 = vrot.slane %v568, 2
      %v2350 = vsel %vm1069, %v2347, %v2349
      %v2353 = vpack.c.bf16 %v2350, %v2348
      %s2354 = scalar_lea.vmem %s1, 512
      %v2355 = vld [vmem:[%s2354] sm:$0xf]
      %v2356 = vld [vmem:[%s2354 + $0x4] sm:$0xf]
      %v2357 = vld [vmem:[%s2354 + $0x8] sm:$0xf]
      %v2358 = vld [vmem:[%s2354 + $0xc] sm:$0xf]
      %v2359 = vld [vmem:[%s2354 + $0x10] sm:$0xf]
      %v2360 = vld [vmem:[%s2354 + $0x14] sm:$0xf]
      %v2361 = vld [vmem:[%s2354 + $0x18] sm:$0xf]
      %v2362 = vld [vmem:[%s2354 + $0x1c] sm:$0xf]
      %v2363 = vld [vmem:[%s2354 + $0x20] sm:$0xf]
      %v2364 = vld [vmem:[%s2354 + $0x24] sm:$0xf]
      %v2365 = vld [vmem:[%s2354 + $0x28] sm:$0xf]
      %v2366 = vld [vmem:[%s2354 + $0x2c] sm:$0xf]
      %v2367 = vld [vmem:[%s2354 + $0x30] sm:$0xf]
      %v2368 = vld [vmem:[%s2354 + $0x34] sm:$0xf]
      %v2369 = vld [vmem:[%s2354 + $0x38] sm:$0xf]
      %v2370 = vld [vmem:[%s2354 + $0x3c] sm:$0xf]
      %v2387 = vunpack.c.l.b16 %v2355
      %v2388 = vunpack.c.l.b16 %v2356
      %v2389 = vunpack.c.l.b16 %v2357
      %v2390 = vunpack.c.l.b16 %v2358
      %v2391 = vunpack.c.l.b16 %v2359
      %v2392 = vunpack.c.l.b16 %v2360
      %v2393 = vunpack.c.l.b16 %v2361
      %v2394 = vunpack.c.l.b16 %v2362
      %v2395 = vunpack.c.l.b16 %v2363
      %v2396 = vunpack.c.l.b16 %v2364
      %v2397 = vunpack.c.l.b16 %v2365
      %v2398 = vunpack.c.l.b16 %v2366
      %v2399 = vunpack.c.l.b16 %v2367
      %v2400 = vunpack.c.l.b16 %v2368
      %v2401 = vunpack.c.l.b16 %v2369
      %v2402 = vunpack.c.l.b16 %v2370
      %v2403 = vpack.c.b16 %v2388, %v2387
      %v2404 = vpack.c.b16 %v2390, %v2389
      %v2405 = vpack.c.b16 %v2392, %v2391
      %v2406 = vpack.c.b16 %v2394, %v2393
      %v2407 = vpack.c.b16 %v2396, %v2395
      %v2408 = vpack.c.b16 %v2398, %v2397
      %v2409 = vpack.c.b16 %v2400, %v2399
      %v2410 = vpack.c.b16 %v2402, %v2401
      %2419 = vmatpush.bf16.msra.mxu0 %v2410
      %2420 = vmatpush.bf16.msra.mxu0 %v2409
      %2421 = vmatpush.bf16.msra.mxu0 %v2408
      %2422 = vmatpush.bf16.msra.mxu0 %v2407
      %2423 = vmatpush.bf16.msra.mxu0 %v2406
      %2424 = vmatpush.bf16.msra.mxu0 %v2405
      %2425 = vmatpush.bf16.msra.mxu0 %v2404
      %2426 = vmatpush.bf16.msra.mxu0 %v2403
      %2427 = vmatmul.bf16.gmra.mxu0 %v1184
      %v2428 = vpop.f32.mrf.mxu0
      %v2429 = vadd.f32 0.0, %v2428
      %v2430 = vpop.f32.mrf.mxu0
      %v2431 = vadd.f32 0.0, %v2430
      %2432 = vmatmul.bf16.gmra.mxu0 %v1185
      %v2433 = vpop.f32.mrf.mxu0
      %v2434 = vadd.f32 0.0, %v2433
      %v2435 = vpop.f32.mrf.mxu0
      %v2436 = vadd.f32 0.0, %v2435
      %2437 = vmatmul.bf16.gmra.mxu0 %v1186
      %v2438 = vpop.f32.mrf.mxu0
      %v2439 = vadd.f32 0.0, %v2438
      %v2440 = vpop.f32.mrf.mxu0
      %v2441 = vadd.f32 0.0, %v2440
      %2442 = vmatmul.bf16.gmra.mxu0 %v1187
      %v2443 = vpop.f32.mrf.mxu0
      %v2444 = vadd.f32 0.0, %v2443
      %v2445 = vpop.f32.mrf.mxu0
      %v2446 = vadd.f32 0.0, %v2445
      %2447 = vmatmul.bf16.gmra.mxu0 %v1188
      %v2448 = vpop.f32.mrf.mxu0
      %v2449 = vadd.f32 0.0, %v2448
      %v2450 = vpop.f32.mrf.mxu0
      %v2451 = vadd.f32 0.0, %v2450
      %2452 = vmatmul.bf16.gmra.mxu0 %v1189
      %v2453 = vpop.f32.mrf.mxu0
      %v2454 = vadd.f32 0.0, %v2453
      %v2455 = vpop.f32.mrf.mxu0
      %v2456 = vadd.f32 0.0, %v2455
      %2457 = vmatmul.bf16.gmra.mxu0 %v1190
      %v2458 = vpop.f32.mrf.mxu0
      %v2459 = vadd.f32 0.0, %v2458
      %v2460 = vpop.f32.mrf.mxu0
      %v2461 = vadd.f32 0.0, %v2460
      %2462 = vmatmul.bf16.gmra.mxu0 %v1191
      %v2463 = vpop.f32.mrf.mxu0
      %v2464 = vadd.f32 0.0, %v2463
      %v2465 = vpop.f32.mrf.mxu0
      %v2466 = vadd.f32 0.0, %v2465
      %2467 = vmatmul.bf16.gmra.mxu0 %v1192
      %v2468 = vpop.f32.mrf.mxu0
      %v2469 = vadd.f32 0.0, %v2468
      %v2470 = vpop.f32.mrf.mxu0
      %v2471 = vadd.f32 0.0, %v2470
      %2472 = vmatmul.bf16.gmra.mxu0 %v1193
      %v2473 = vpop.f32.mrf.mxu0
      %v2474 = vadd.f32 0.0, %v2473
      %v2475 = vpop.f32.mrf.mxu0
      %v2476 = vadd.f32 0.0, %v2475
      %2477 = vmatmul.bf16.gmra.mxu0 %v1194
      %v2478 = vpop.f32.mrf.mxu0
      %v2479 = vadd.f32 0.0, %v2478
      %v2480 = vpop.f32.mrf.mxu0
      %v2481 = vadd.f32 0.0, %v2480
      %2482 = vmatmul.bf16.gmra.mxu0 %v1195
      %v2483 = vpop.f32.mrf.mxu0
      %v2484 = vadd.f32 0.0, %v2483
      %v2485 = vpop.f32.mrf.mxu0
      %v2486 = vadd.f32 0.0, %v2485
      %2487 = vmatmul.bf16.gmra.mxu0 %v1196
      %v2488 = vpop.f32.mrf.mxu0
      %v2489 = vadd.f32 0.0, %v2488
      %v2490 = vpop.f32.mrf.mxu0
      %v2491 = vadd.f32 0.0, %v2490
      %2492 = vmatmul.bf16.gmra.mxu0 %v1197
      %v2493 = vpop.f32.mrf.mxu0
      %v2494 = vadd.f32 0.0, %v2493
      %v2495 = vpop.f32.mrf.mxu0
      %v2496 = vadd.f32 0.0, %v2495
      %2497 = vmatmul.bf16.gmra.mxu0 %v1775
      %v2498 = vpop.f32.mrf.mxu0
      %v2499 = vadd.f32 0.0, %v2498
      %v2500 = vpop.f32.mrf.mxu0
      %v2501 = vadd.f32 0.0, %v2500
      %2502 = vmatmul.bf16.gmra.mxu0 %v2353
      %v2503 = vpop.f32.mrf.mxu0
      %v2504 = vadd.f32 0.0, %v2503
      %v2505 = vpop.f32.mrf.mxu0
      %v2506 = vadd.f32 0.0, %v2505
      %2507 = vdwg.mxu0
      %v2508 = vadd.f32 %v2314, %v2429
      %v2509 = vadd.f32 %v2315, %v2431
      %v2510 = vadd.f32 %v2316, %v2434
      %v2511 = vadd.f32 %v2317, %v2436
      %v2512 = vadd.f32 %v2318, %v2439
      %v2513 = vadd.f32 %v2319, %v2441
      %v2514 = vadd.f32 %v2320, %v2444
      %v2515 = vadd.f32 %v2321, %v2446
      %v2516 = vadd.f32 %v2322, %v2449
      %v2517 = vadd.f32 %v2323, %v2451
      %v2518 = vadd.f32 %v2324, %v2454
      %v2519 = vadd.f32 %v2325, %v2456
      %v2520 = vadd.f32 %v2326, %v2459
      %v2521 = vadd.f32 %v2327, %v2461
      %v2522 = vadd.f32 %v2328, %v2464
      %v2523 = vadd.f32 %v2329, %v2466
      %v2524 = vadd.f32 %v2330, %v2469
      %v2525 = vadd.f32 %v2331, %v2471
      %v2526 = vadd.f32 %v2332, %v2474
      %v2527 = vadd.f32 %v2333, %v2476
      %v2528 = vadd.f32 %v2334, %v2479
      %v2529 = vadd.f32 %v2335, %v2481
      %v2530 = vadd.f32 %v2336, %v2484
      %v2531 = vadd.f32 %v2337, %v2486
      %v2532 = vadd.f32 %v2338, %v2489
      %v2533 = vadd.f32 %v2339, %v2491
      %v2534 = vadd.f32 %v2340, %v2494
      %v2535 = vadd.f32 %v2341, %v2496
      %v2536 = vadd.f32 %v2342, %v2499
      %v2537 = vadd.f32 %v2343, %v2501
      %v2538 = vadd.f32 %v2344, %v2504
      %v2539 = vadd.f32 %v2345, %v2506
      %2540 = vst [vmem:[%s262] sm:$0xff] %v2508
      %2541 = vst [vmem:[%s262 + $0x8] sm:$0xff] %v2509
      %2542 = vst [vmem:[%s262 + $0x10] sm:$0xff] %v2510
      %2543 = vst [vmem:[%s262 + $0x18] sm:$0xff] %v2511
      %2544 = vst [vmem:[%s262 + $0x20] sm:$0xff] %v2512
      %2545 = vst [vmem:[%s262 + $0x28] sm:$0xff] %v2513
      %2546 = vst [vmem:[%s262 + $0x30] sm:$0xff] %v2514
      %2547 = vst [vmem:[%s262 + $0x38] sm:$0xff] %v2515
      %2548 = vst [vmem:[%s262 + $0x40] sm:$0xff] %v2516
      %2549 = vst [vmem:[%s262 + $0x48] sm:$0xff] %v2517
      %2550 = vst [vmem:[%s262 + $0x50] sm:$0xff] %v2518
      %2551 = vst [vmem:[%s262 + $0x58] sm:$0xff] %v2519
      %2552 = vst [vmem:[%s262 + $0x60] sm:$0xff] %v2520
      %2553 = vst [vmem:[%s262 + $0x68] sm:$0xff] %v2521
      %2554 = vst [vmem:[%s262 + $0x70] sm:$0xff] %v2522
      %2555 = vst [vmem:[%s262 + $0x78] sm:$0xff] %v2523
      %2556 = vst [vmem:[%s262 + $0x80] sm:$0xff] %v2524
      %2557 = vst [vmem:[%s262 + $0x88] sm:$0xff] %v2525
      %2558 = vst [vmem:[%s262 + $0x90] sm:$0xff] %v2526
      %2559 = vst [vmem:[%s262 + $0x98] sm:$0xff] %v2527
      %2560 = vst [vmem:[%s262 + $0xa0] sm:$0xff] %v2528
      %2561 = vst [vmem:[%s262 + $0xa8] sm:$0xff] %v2529
      %2562 = vst [vmem:[%s262 + $0xb0] sm:$0xff] %v2530
      %2563 = vst [vmem:[%s262 + $0xb8] sm:$0xff] %v2531
      %2564 = vst [vmem:[%s262 + $0xc0] sm:$0xff] %v2532
      %2565 = vst [vmem:[%s262 + $0xc8] sm:$0xff] %v2533
      %2566 = vst [vmem:[%s262 + $0xd0] sm:$0xff] %v2534
      %2567 = vst [vmem:[%s262 + $0xd8] sm:$0xff] %v2535
      %2568 = vst [vmem:[%s262 + $0xe0] sm:$0xff] %v2536
      %2569 = vst [vmem:[%s262 + $0xe8] sm:$0xff] %v2537
      %2570 = vst [vmem:[%s262 + $0xf0] sm:$0xff] %v2538
      %2571 = vst [vmem:[%s262 + $0xf8] sm:$0xff] %v2539
      %v2572 = vadd.f32 %v2508, %v2509
      %v2573 = vadd.f32 %v2572, %v2510
      %v2574 = vadd.f32 %v2573, %v2511
      %v2575 = vadd.f32 %v2574, %v2512
      %v2576 = vadd.f32 %v2575, %v2513
      %v2577 = vadd.f32 %v2576, %v2514
      %v2578 = vadd.f32 %v2577, %v2515
      %v2579 = vadd.f32 %v2578, %v2516
      %v2580 = vadd.f32 %v2579, %v2517
      %v2581 = vadd.f32 %v2580, %v2518
      %v2582 = vadd.f32 %v2581, %v2519
      %v2583 = vadd.f32 %v2582, %v2520
      %v2584 = vadd.f32 %v2583, %v2521
      %v2585 = vadd.f32 %v2584, %v2522
      %v2586 = vadd.f32 %v2585, %v2523
      %v2587 = vadd.f32 %v2586, %v2524
      %v2588 = vadd.f32 %v2587, %v2525
      %v2589 = vadd.f32 %v2588, %v2526
      %v2590 = vadd.f32 %v2589, %v2527
      %v2591 = vadd.f32 %v2590, %v2528
      %v2592 = vadd.f32 %v2591, %v2529
      %v2593 = vadd.f32 %v2592, %v2530
      %v2594 = vadd.f32 %v2593, %v2531
      %v2595 = vadd.f32 %v2594, %v2532
      %v2596 = vadd.f32 %v2595, %v2533
      %v2597 = vadd.f32 %v2596, %v2534
      %v2598 = vadd.f32 %v2597, %v2535
      %v2599 = vadd.f32 %v2598, %v2536
      %v2600 = vadd.f32 %v2599, %v2537
      %v2601 = vadd.f32 %v2600, %v2538
      %v2602 = vadd.f32 %v2601, %v2539
      %v2603 = vrot.slane %v2602, 4
      %v2604 = vadd.f32 %v2602, %v2603
      %v2605 = vrot.slane %v2604, 2
      %v2606 = vadd.f32 %v2604, %v2605
      %v2607 = vrot.slane %v2606, 1
      %v2608 = vadd.f32 %v2606, %v2607
      %2609 = vst [vmem:[%s265] sm:$0x1] %v2608
      %v2610 = vmul.f32 %v2508, %v2508
      %v2611 = vmul.f32 %v2509, %v2509
      %v2612 = vmul.f32 %v2510, %v2510
      %v2613 = vmul.f32 %v2511, %v2511
      %v2614 = vmul.f32 %v2512, %v2512
      %v2615 = vmul.f32 %v2513, %v2513
      %v2616 = vmul.f32 %v2514, %v2514
      %v2617 = vmul.f32 %v2515, %v2515
      %v2618 = vmul.f32 %v2516, %v2516
      %v2619 = vmul.f32 %v2517, %v2517
      %v2620 = vmul.f32 %v2518, %v2518
      %v2621 = vmul.f32 %v2519, %v2519
      %v2622 = vmul.f32 %v2520, %v2520
      %v2623 = vmul.f32 %v2521, %v2521
      %v2624 = vmul.f32 %v2522, %v2522
      %v2625 = vmul.f32 %v2523, %v2523
      %v2626 = vmul.f32 %v2524, %v2524
      %v2627 = vmul.f32 %v2525, %v2525
      %v2628 = vmul.f32 %v2526, %v2526
      %v2629 = vmul.f32 %v2527, %v2527
      %v2630 = vmul.f32 %v2528, %v2528
      %v2631 = vmul.f32 %v2529, %v2529
      %v2632 = vmul.f32 %v2530, %v2530
      %v2633 = vmul.f32 %v2531, %v2531
      %v2634 = vmul.f32 %v2532, %v2532
      %v2635 = vmul.f32 %v2533, %v2533
      %v2636 = vmul.f32 %v2534, %v2534
      %v2637 = vmul.f32 %v2535, %v2535
      %v2638 = vmul.f32 %v2536, %v2536
      %v2639 = vmul.f32 %v2537, %v2537
      %v2640 = vmul.f32 %v2538, %v2538
      %v2641 = vmul.f32 %v2539, %v2539
      %v2642 = vadd.f32 %v2610, %v2611
      %v2643 = vadd.f32 %v2642, %v2612
      %v2644 = vadd.f32 %v2643, %v2613
      %v2645 = vadd.f32 %v2644, %v2614
      %v2646 = vadd.f32 %v2645, %v2615
      %v2647 = vadd.f32 %v2646, %v2616
      %v2648 = vadd.f32 %v2647, %v2617
      %v2649 = vadd.f32 %v2648, %v2618
      %v2650 = vadd.f32 %v2649, %v2619
      %v2651 = vadd.f32 %v2650, %v2620
      %v2652 = vadd.f32 %v2651, %v2621
      %v2653 = vadd.f32 %v2652, %v2622
      %v2654 = vadd.f32 %v2653, %v2623
      %v2655 = vadd.f32 %v2654, %v2624
      %v2656 = vadd.f32 %v2655, %v2625
      %v2657 = vadd.f32 %v2656, %v2626
      %v2658 = vadd.f32 %v2657, %v2627
      %v2659 = vadd.f32 %v2658, %v2628
      %v2660 = vadd.f32 %v2659, %v2629
      %v2661 = vadd.f32 %v2660, %v2630
      %v2662 = vadd.f32 %v2661, %v2631
      %v2663 = vadd.f32 %v2662, %v2632
      %v2664 = vadd.f32 %v2663, %v2633
      %v2665 = vadd.f32 %v2664, %v2634
      %v2666 = vadd.f32 %v2665, %v2635
      %v2667 = vadd.f32 %v2666, %v2636
      %v2668 = vadd.f32 %v2667, %v2637
      %v2669 = vadd.f32 %v2668, %v2638
      %v2670 = vadd.f32 %v2669, %v2639
      %v2671 = vadd.f32 %v2670, %v2640
      %v2672 = vadd.f32 %v2671, %v2641
      %v2673 = vrot.slane %v2672, 4
      %v2674 = vadd.f32 %v2672, %v2673
      %v2675 = vrot.slane %v2674, 2
      %v2676 = vadd.f32 %v2674, %v2675
      %v2677 = vrot.slane %v2676, 1
      %v2678 = vadd.f32 %v2676, %v2677
      %2679 = vst [vmem:[%s268] sm:$0x1] %v2678
      %p2680 = scmp.lt.s32.totalorder %s18, 1
      %s2681 = scalar_select %p2680, %s18, 1
      %s2682 = smul.addr %s2681, 32
      %s2683 = smul.addr %s2682, 8
      %s2684 = scalar_lea.vmem %s4, %s2683
      %p2685 = scmp.lt.s32.totalorder %s18, 1
      %s2686 = scalar_select %p2685, %s18, 1
      %s2687 = scalar_lea.vmem %s5, %s2686
      %p2688 = scmp.lt.s32.totalorder %s18, 1
      %s2689 = scalar_select %p2688, %s18, 1
      %s2690 = scalar_lea.vmem %s6, %s2689
      // Predicated region
      $region37: #{basic_block_forward.4} parent=35 // pred_check
        %p2691 = pneg %p125
      $region38: #{basic_block_forward.4} parent=35 // pred_check_branch
        %2693 = sbr.rel (%p2691) target = $region40
      $region39: #{basic_block_forward.4} parent=35 // pred_region
        _
      $region40: #{basic_block_forward.4} parent=35 // pred_fallthru
        _
      // Predicated region
      $region41: #{basic_block_forward.4} parent=35 // pred_check
        %p2694 = pneg %p151
      $region42: #{basic_block_forward.4} parent=35 // pred_check_branch
        %2696 = sbr.rel (%p2694) target = $region44
      $region43: #{basic_block_forward.4} parent=35 // pred_region
        _
      $region44: #{basic_block_forward.4} parent=35 // pred_fallthru
        _
      // Predicated region
      $region45: #{basic_block_forward.4} parent=35 // pred_check
        %p2697 = pneg %p177
      $region46: #{basic_block_forward.4} parent=35 // pred_check_branch
        %2699 = sbr.rel (%p2697) target = $region48
      $region47: #{basic_block_forward.4} parent=35 // pred_region
        _
      $region48: #{basic_block_forward.4} parent=35 // pred_fallthru
        _
    $region36: #{basic_block_forward.4} parent=5 // pred_fallthru
      _
    %p2700 = scmp.le.s32.totalorder 2, %s13
    // Predicated region
    $region49: #{basic_block_forward.4} parent=5 // pred_check
      %p2701 = pneg %p2700
    $region50: #{basic_block_forward.4} parent=5 // pred_check_branch
      %2703 = sbr.rel (%p2701) target = $region52
    $region51: #{basic_block_forward.4} parent=5 // pred_region
      %s2704 = ssub.s32 %s13, 2
      // Predicated region
      $region53: #{basic_block_forward.4} parent=51 // pred_check
        %p2705 = pneg %p131
      $region54: #{basic_block_forward.4} parent=51 // pred_check_branch
        %2707 = sbr.rel (%p2705) target = $region56
      $region55: #{basic_block_forward.4} parent=51 // pred_region
        %p2708 = scmp.lt.s32.totalorder %s19, 1
        %s2709 = scalar_select %p2708, %s19, 1
        %s2710 = smul.addr %s2709, 32
        %s2711 = smul.addr %s2710, 8
        %s2712 = scalar_lea.vmem %s4, %s2711
      $region56: #{basic_block_forward.4} parent=51 // pred_fallthru
        _
      // Predicated region
      $region57: #{basic_block_forward.4} parent=51 // pred_check
        %p2713 = pneg %p157
      $region58: #{basic_block_forward.4} parent=51 // pred_check_branch
        %2715 = sbr.rel (%p2713) target = $region60
      $region59: #{basic_block_forward.4} parent=51 // pred_region
        %p2716 = scmp.lt.s32.totalorder %s19, 1
        %s2717 = scalar_select %p2716, %s19, 1
        %s2718 = scalar_lea.vmem %s5, %s2717
      $region60: #{basic_block_forward.4} parent=51 // pred_fallthru
        _
      // Predicated region
      $region61: #{basic_block_forward.4} parent=51 // pred_check
        %p2719 = pneg %p183
      $region62: #{basic_block_forward.4} parent=51 // pred_check_branch
        %2721 = sbr.rel (%p2719) target = $region64
      $region63: #{basic_block_forward.4} parent=51 // pred_region
        %p2722 = scmp.lt.s32.totalorder %s19, 1
        %s2723 = scalar_select %p2722, %s19, 1
        %s2724 = scalar_lea.vmem %s6, %s2723
      $region64: #{basic_block_forward.4} parent=51 // pred_fallthru
        _
    $region52: #{basic_block_forward.4} parent=5 // pred_fallthru
      _
  $region6: #{basic_block_forward.4} parent=0 // loop_footer
    %s17 = sadd.s32 1, %s13
  $region7: #{basic_block_forward.4} parent=0 // loop_footer_branch
    %12 = sbr.rel target = $region3
  $region8: #{basic_block_forward.4} parent=0 // loop_exit
    _

// kernel: basic_block_forward.3
$region0: #{basic_block_forward.3}
  #allocation0 [shape = 'u32[]', space=smem, size = 0x4, offset = 0x4, fixed_abs, tag = 'smem constant byte address 0x4 - core index']
  #allocation1 [shape = 'u32[72,128]{1,0:T(1,128)}', space=vmem, size = 0x9000, scoped, tag = 'internal scratch']
  %s0 = inlined_call_operand.vmem [shape: f32[2,18,18,128], index: 0, kind: input, shape index: {}]
  %s1 = inlined_call_operand.vmem [shape: bf16[3,3,128,128], index: 1, kind: input, shape index: {}]
  %s2 = inlined_call_operand.vmem [shape: bf16[128,128], index: 2, kind: input, shape index: {}]
  %s3 = inlined_call_operand.vmem [shape: f32[2,16,16,128], index: 3, kind: output, shape index: {0}]
  %s4 = inlined_call_operand.vmem [shape: f32[2,1,128], index: 4, kind: output, shape index: {1}]
  %s5 = inlined_call_operand.vmem [shape: f32[2,1,128], index: 5, kind: output, shape index: {2}]
  %s6 = inlined_call_operand.vmem [shape: f32[2,16,16,128], index: 6, kind: output, shape index: {3}]
  %s7 = inlined_call_operand.vmem [shape: f32[2,1,128], index: 7, kind: output, shape index: {4}]
  %s8 = inlined_call_operand.vmem [shape: f32[2,1,128], index: 8, kind: output, shape index: {5}]
  %9 = xla_tuple %s3, %s4, %s5, %s6, %s7, %s8
  %s10 = sld [smem:[#allocation0]]
  $region85: #{basic_block_forward.3} parent=0
    _
  %s12 = ssub.s32 1, %s10
  %s13 = scalar_select 0, %s12, %s10
  loop: start=0, step=1, limit=4
  $region2: #{basic_block_forward.3} parent=0 // loop_pre_header
    _
  $region3: #{basic_block_forward.3} parent=0 // loop_header
    %s15 = sphi 0, %s19
    %p16 = scmp.ge.s32.totalorder %s15, 4
    %s25 = sphi 0, %s27
    %s28 = sphi 0, %s25
    %s29 = sphi 0, %s28
    %s45 = sphi 0, %s29
    %s49 = sphi 0, %s49
    %s51 = sphi 0, %s49
    %s52 = sphi 0, %s51
    %s66 = sphi 0, %s52
    %s70 = sphi 0, %s70
    %s72 = sphi 0, %s70
    %s73 = sphi 0, %s72
    %s87 = sphi 0, %s73
    %s93 = sphi 0, %s95
    %s96 = sphi 0, %s93
    %s97 = sphi 0, %s96
    %s113 = sphi 0, %s97
    %s119 = sphi 0, %s121
    %s122 = sphi 0, %s119
    %s123 = sphi 0, %s122
    %s139 = sphi 0, %s123
    %s145 = sphi 0, %s147
    %s148 = sphi 0, %s145
    %s149 = sphi 0, %s148
    %s165 = sphi 0, %s149
    %s171 = sphi 0, %s173
    %s174 = sphi 0, %s171
    %s175 = sphi 0, %s174
    %s191 = sphi 0, %s175
    %s197 = sphi 0, %s199
    %s200 = sphi 0, %s197
    %s201 = sphi 0, %s200
    %s217 = sphi 0, %s201
    %s223 = sphi 0, %s225
    %s226 = sphi 0, %s223
    %s227 = sphi 0, %s226
    %s243 = sphi 0, %s227
  $region4: #{basic_block_forward.3} parent=0 // loop_header_branch
    %18 = sbr.rel (%p16) target = $region8
  $region5: #{basic_block_forward.3} parent=0 // loop_body
    %s20 = ssub.s32 %s15, 1
    %s21 = ssub.s32 %s15, 2
    %s22 = sadd.s32 %s15, 1
    %s23 = ssub.s32 %s15, %s22
    %p24 = scmp.eq.s32.totalorder %s23, 0
    %s26 = sadd.s32 %s25, 1
    %s27 = scalar_select %p24, %s25, %s26
    %p30 = pneg %p24
    %p31 = scmp.eq.s32.totalorder %s15, 1
    %p32 = por %p30, %p31
    %p33 = scmp.ne.s32.totalorder %s25, %s28
    %p34 = scmp.eq.s32.totalorder %s15, 0
    %p35 = por %p33, %p34
    %p36 = scmp.ne.s32.totalorder %s25, %s28
    %p37 = scmp.eq.s32.totalorder %s20, 1
    %p38 = por %p36, %p37
    %p39 = scmp.ne.s32.totalorder %s28, %s29
    %p40 = scmp.eq.s32.totalorder %s20, 0
    %p41 = por %p39, %p40
    %p42 = scmp.ne.s32.totalorder %s28, %s29
    %p43 = scmp.eq.s32.totalorder %s21, 1
    %p44 = por %p42, %p43
    %p46 = scmp.ne.s32.totalorder %s29, %s45
    %p47 = scmp.eq.s32.totalorder %s21, 0
    %p48 = por %p46, %p47
    %s50 = sadd.s32 %s49, 1
    %p53 = scmp.eq.s32.totalorder %s15, 1
    %p54 = scmp.ne.s32.totalorder %s49, %s51
    %p55 = scmp.eq.s32.totalorder %s15, 0
    %p56 = por %p54, %p55
    %p57 = scmp.ne.s32.totalorder %s49, %s51
    %p58 = scmp.eq.s32.totalorder %s20, 1
    %p59 = por %p57, %p58
    %p60 = scmp.ne.s32.totalorder %s51, %s52
    %p61 = scmp.eq.s32.totalorder %s20, 0
    %p62 = por %p60, %p61
    %p63 = scmp.ne.s32.totalorder %s51, %s52
    %p64 = scmp.eq.s32.totalorder %s21, 1
    %p65 = por %p63, %p64
    %p67 = scmp.ne.s32.totalorder %s52, %s66
    %p68 = scmp.eq.s32.totalorder %s21, 0
    %p69 = por %p67, %p68
    %s71 = sadd.s32 %s70, 1
    %p74 = scmp.eq.s32.totalorder %s15, 1
    %p75 = scmp.ne.s32.totalorder %s70, %s72
    %p76 = scmp.eq.s32.totalorder %s15, 0
    %p77 = por %p75, %p76
    %p78 = scmp.ne.s32.totalorder %s70, %s72
    %p79 = scmp.eq.s32.totalorder %s20, 1
    %p80 = por %p78, %p79
    %p81 = scmp.ne.s32.totalorder %s72, %s73
    %p82 = scmp.eq.s32.totalorder %s20, 0
    %p83 = por %p81, %p82
    %p84 = scmp.ne.s32.totalorder %s72, %s73
    %p85 = scmp.eq.s32.totalorder %s21, 1
    %p86 = por %p84, %p85
    %p88 = scmp.ne.s32.totalorder %s73, %s87
    %p89 = scmp.eq.s32.totalorder %s21, 0
    %p90 = por %p88, %p89
    %s91 = ssub.s32 %s15, %s22
    %p92 = scmp.eq.s32.totalorder %s91, 0
    %s94 = sadd.s32 %s93, 1
    %s95 = scalar_select %p92, %s93, %s94
    %p98 = pneg %p92
    %p99 = scmp.eq.s32.totalorder %s15, 1
    %p100 = por %p98, %p99
    %p101 = scmp.ne.s32.totalorder %s93, %s96
    %p102 = scmp.eq.s32.totalorder %s15, 0
    %p103 = por %p101, %p102
    %p104 = scmp.ne.s32.totalorder %s93, %s96
    %p105 = scmp.eq.s32.totalorder %s20, 1
    %p106 = por %p104, %p105
    %p107 = scmp.ne.s32.totalorder %s96, %s97
    %p108 = scmp.eq.s32.totalorder %s20, 0
    %p109 = por %p107, %p108
    %p110 = scmp.ne.s32.totalorder %s96, %s97
    %p111 = scmp.eq.s32.totalorder %s21, 1
    %p112 = por %p110, %p111
    %p114 = scmp.ne.s32.totalorder %s97, %s113
    %p115 = scmp.eq.s32.totalorder %s21, 0
    %p116 = por %p114, %p115
    %s117 = ssub.s32 %s15, %s22
    %p118 = scmp.eq.s32.totalorder %s117, 0
    %s120 = sadd.s32 %s119, 1
    %s121 = scalar_select %p118, %s119, %s120
    %p124 = pneg %p118
    %p125 = scmp.eq.s32.totalorder %s15, 1
    %p126 = por %p124, %p125
    %p127 = scmp.ne.s32.totalorder %s119, %s122
    %p128 = scmp.eq.s32.totalorder %s15, 0
    %p129 = por %p127, %p128
    %p130 = scmp.ne.s32.totalorder %s119, %s122
    %p131 = scmp.eq.s32.totalorder %s20, 1
    %p132 = por %p130, %p131
    %p133 = scmp.ne.s32.totalorder %s122, %s123
    %p134 = scmp.eq.s32.totalorder %s20, 0
    %p135 = por %p133, %p134
    %p136 = scmp.ne.s32.totalorder %s122, %s123
    %p137 = scmp.eq.s32.totalorder %s21, 1
    %p138 = por %p136, %p137
    %p140 = scmp.ne.s32.totalorder %s123, %s139
    %p141 = scmp.eq.s32.totalorder %s21, 0
    %p142 = por %p140, %p141
    %s143 = ssub.s32 %s15, %s22
    %p144 = scmp.eq.s32.totalorder %s143, 0
    %s146 = sadd.s32 %s145, 1
    %s147 = scalar_select %p144, %s145, %s146
    %p150 = pneg %p144
    %p151 = scmp.eq.s32.totalorder %s15, 1
    %p152 = por %p150, %p151
    %p153 = scmp.ne.s32.totalorder %s145, %s148
    %p154 = scmp.eq.s32.totalorder %s15, 0
    %p155 = por %p153, %p154
    %p156 = scmp.ne.s32.totalorder %s145, %s148
    %p157 = scmp.eq.s32.totalorder %s20, 1
    %p158 = por %p156, %p157
    %p159 = scmp.ne.s32.totalorder %s148, %s149
    %p160 = scmp.eq.s32.totalorder %s20, 0
    %p161 = por %p159, %p160
    %p162 = scmp.ne.s32.totalorder %s148, %s149
    %p163 = scmp.eq.s32.totalorder %s21, 1
    %p164 = por %p162, %p163
    %p166 = scmp.ne.s32.totalorder %s149, %s165
    %p167 = scmp.eq.s32.totalorder %s21, 0
    %p168 = por %p166, %p167
    %s169 = ssub.s32 %s15, %s22
    %p170 = scmp.eq.s32.totalorder %s169, 0
    %s172 = sadd.s32 %s171, 1
    %s173 = scalar_select %p170, %s171, %s172
    %p176 = pneg %p170
    %p177 = scmp.eq.s32.totalorder %s15, 1
    %p178 = por %p176, %p177
    %p179 = scmp.ne.s32.totalorder %s171, %s174
    %p180 = scmp.eq.s32.totalorder %s15, 0
    %p181 = por %p179, %p180
    %p182 = scmp.ne.s32.totalorder %s171, %s174
    %p183 = scmp.eq.s32.totalorder %s20, 1
    %p184 = por %p182, %p183
    %p185 = scmp.ne.s32.totalorder %s174, %s175
    %p186 = scmp.eq.s32.totalorder %s20, 0
    %p187 = por %p185, %p186
    %p188 = scmp.ne.s32.totalorder %s174, %s175
    %p189 = scmp.eq.s32.totalorder %s21, 1
    %p190 = por %p188, %p189
    %p192 = scmp.ne.s32.totalorder %s175, %s191
    %p193 = scmp.eq.s32.totalorder %s21, 0
    %p194 = por %p192, %p193
    %s195 = ssub.s32 %s15, %s22
    %p196 = scmp.eq.s32.totalorder %s195, 0
    %s198 = sadd.s32 %s197, 1
    %s199 = scalar_select %p196, %s197, %s198
    %p202 = pneg %p196
    %p203 = scmp.eq.s32.totalorder %s15, 1
    %p204 = por %p202, %p203
    %p205 = scmp.ne.s32.totalorder %s197, %s200
    %p206 = scmp.eq.s32.totalorder %s15, 0
    %p207 = por %p205, %p206
    %p208 = scmp.ne.s32.totalorder %s197, %s200
    %p209 = scmp.eq.s32.totalorder %s20, 1
    %p210 = por %p208, %p209
    %p211 = scmp.ne.s32.totalorder %s200, %s201
    %p212 = scmp.eq.s32.totalorder %s20, 0
    %p213 = por %p211, %p212
    %p214 = scmp.ne.s32.totalorder %s200, %s201
    %p215 = scmp.eq.s32.totalorder %s21, 1
    %p216 = por %p214, %p215
    %p218 = scmp.ne.s32.totalorder %s201, %s217
    %p219 = scmp.eq.s32.totalorder %s21, 0
    %p220 = por %p218, %p219
    %s221 = ssub.s32 %s15, %s22
    %p222 = scmp.eq.s32.totalorder %s221, 0
    %s224 = sadd.s32 %s223, 1
    %s225 = scalar_select %p222, %s223, %s224
    %p228 = pneg %p222
    %p229 = scmp.eq.s32.totalorder %s15, 1
    %p230 = por %p228, %p229
    %p231 = scmp.ne.s32.totalorder %s223, %s226
    %p232 = scmp.eq.s32.totalorder %s15, 0
    %p233 = por %p231, %p232
    %p234 = scmp.ne.s32.totalorder %s223, %s226
    %p235 = scmp.eq.s32.totalorder %s20, 1
    %p236 = por %p234, %p235
    %p237 = scmp.ne.s32.totalorder %s226, %s227
    %p238 = scmp.eq.s32.totalorder %s20, 0
    %p239 = por %p237, %p238
    %p240 = scmp.ne.s32.totalorder %s226, %s227
    %p241 = scmp.eq.s32.totalorder %s21, 1
    %p242 = por %p240, %p241
    %p244 = scmp.ne.s32.totalorder %s227, %s243
    %p245 = scmp.eq.s32.totalorder %s21, 0
    %p246 = por %p244, %p245
    %p247 = scmp.le.s32.totalorder 1, %s15
    %p248 = scmp.lt.s32.totalorder %s15, 3
    %p249 = pnand %p247, %p248
    %p250 = pneg %p249
    // Predicated region
    $region9: #{basic_block_forward.3} parent=5 // pred_check
      _
    $region10: #{basic_block_forward.3} parent=5 // pred_check_branch
      %252 = sbr.rel (%p249) target = $region12
    $region11: #{basic_block_forward.3} parent=5 // pred_region
      %s253 = ssub.s32 %s15, 1
      // Predicated region
      $region13: #{basic_block_forward.3} parent=11 // pred_check
        %p254 = pneg %p62
      $region14: #{basic_block_forward.3} parent=11 // pred_check_branch
        %256 = sbr.rel (%p254) target = $region16
      $region15: #{basic_block_forward.3} parent=11 // pred_region
        _
      $region16: #{basic_block_forward.3} parent=11 // pred_fallthru
        _
      // Predicated region
      $region17: #{basic_block_forward.3} parent=11 // pred_check
        %p257 = pneg %p83
      $region18: #{basic_block_forward.3} parent=11 // pred_check_branch
        %259 = sbr.rel (%p257) target = $region20
      $region19: #{basic_block_forward.3} parent=11 // pred_region
        _
      $region20: #{basic_block_forward.3} parent=11 // pred_fallthru
        _
    $region12: #{basic_block_forward.3} parent=5 // pred_fallthru
      _
    %p260 = scmp.lt.s32.totalorder %s15, 2
    // Predicated region
    $region21: #{basic_block_forward.3} parent=5 // pred_check
      %p261 = pneg %p260
    $region22: #{basic_block_forward.3} parent=5 // pred_check_branch
      %263 = sbr.rel (%p261) target = $region24
    $region23: #{basic_block_forward.3} parent=5 // pred_region
      // Predicated region
      $region25: #{basic_block_forward.3} parent=23 // pred_check
        %p264 = pneg %p35
      $region26: #{basic_block_forward.3} parent=23 // pred_check_branch
        %266 = sbr.rel (%p264) target = $region28
      $region27: #{basic_block_forward.3} parent=23 // pred_region
        %p267 = scmp.lt.s32.totalorder %s15, 1
        %s268 = scalar_select %p267, %s15, 1
        %s269 = smul.addr %s268, 54
        %s270 = smul.addr %s269, 8
        %s271 = scalar_lea.vmem %s0, %s270
      $region28: #{basic_block_forward.3} parent=23 // pred_fallthru
        _
    $region24: #{basic_block_forward.3} parent=5 // pred_fallthru
      _
    %p272 = scmp.le.s32.totalorder 1, %s15
    %p273 = scmp.lt.s32.totalorder %s15, 3
    %p274 = pnand %p272, %p273
    %p275 = pneg %p274
    // Predicated region
    $region29: #{basic_block_forward.3} parent=5 // pred_check
      _
    $region30: #{basic_block_forward.3} parent=5 // pred_check_branch
      %277 = sbr.rel (%p274) target = $region32
    $region31: #{basic_block_forward.3} parent=5 // pred_region
      %s278 = ssub.s32 %s15, 1
      %p279 = scmp.lt.s32.totalorder %s20, 1
      %s280 = scalar_select %p279, %s20, 1
      %s281 = smul.addr %s280, 54
      %s282 = smul.addr %s281, 8
      %s283 = scalar_lea.vmem %s0, %s282
      %p284 = pneg %p41
      %p285 = pneg %p38
      %p286 = pneg %p62
      %p287 = pneg %p59
      %p288 = pneg %p83
      %p289 = pneg %p80
      %p290 = pneg %p109
      %p291 = pneg %p106
      %p292 = scmp.lt.s32.totalorder %s20, 1
      %s293 = scalar_select %p292, %s20, 1
      %s294 = smul.addr %s293, 32
      %s295 = smul.addr %s294, 8
      %s296 = scalar_lea.vmem %s3, %s295
      %p297 = pneg %p135
      %p298 = pneg %p132
      %p299 = scmp.lt.s32.totalorder %s20, 1
      %s300 = scalar_select %p299, %s20, 1
      %s301 = scalar_lea.vmem %s4, %s300
      %p302 = pneg %p161
      %p303 = pneg %p158
      %p304 = scmp.lt.s32.totalorder %s20, 1
      %s305 = scalar_select %p304, %s20, 1
      %s306 = scalar_lea.vmem %s5, %s305
      %p307 = pneg %p187
      %p308 = pneg %p184
      %p309 = scmp.lt.s32.totalorder %s20, 1
      %s310 = scalar_select %p309, %s20, 1
      %s311 = smul.addr %s310, 32
      %s312 = smul.addr %s311, 8
      %s313 = scalar_lea.vmem %s6, %s312
      %p314 = pneg %p213
      %p315 = pneg %p210
      %p316 = scmp.lt.s32.totalorder %s20, 1
      %s317 = scalar_select %p316, %s20, 1
      %s318 = scalar_lea.vmem %s7, %s317
      %p319 = pneg %p239
      %p320 = pneg %p236
      %p321 = scmp.lt.s32.totalorder %s20, 1
      %s322 = scalar_select %p321, %s20, 1
      %s323 = scalar_lea.vmem %s8, %s322
      %p324 = scmp.lt.s32.totalorder %s20, 1
      %s325 = scalar_select %p324, %s20, 1
      %s326 = smul.addr %s325, 54
      %s327 = smul.addr %s326, 8
      %s328 = scalar_lea.vmem %s0, %s327
      %p329 = scmp.lt.s32.totalorder %s20, 1
      %s330 = scalar_select %p329, %s20, 1
      %s331 = smul.addr %s330, 32
      %s332 = smul.addr %s331, 8
      %s333 = scalar_lea.vmem %s3, %s332
      %p334 = scmp.lt.s32.totalorder %s20, 1
      %s335 = scalar_select %p334, %s20, 1
      %s336 = scalar_lea.vmem %s4, %s335
      %p337 = scmp.lt.s32.totalorder %s20, 1
      %s338 = scalar_select %p337, %s20, 1
      %s339 = scalar_lea.vmem %s5, %s338
      %p340 = scmp.lt.s32.totalorder %s20, 1
      %s341 = scalar_select %p340, %s20, 1
      %s342 = smul.addr %s341, 32
      %s343 = smul.addr %s342, 8
      %s344 = scalar_lea.vmem %s6, %s343
      %p345 = scmp.lt.s32.totalorder %s20, 1
      %s346 = scalar_select %p345, %s20, 1
      %s347 = scalar_lea.vmem %s7, %s346
      %p348 = scmp.lt.s32.totalorder %s20, 1
      %s349 = scalar_select %p348, %s20, 1
      %s350 = scalar_lea.vmem %s8, %s349
      %v351 = vld [vmem:[%s328] sm:$0xff]
      %v352 = vld [vmem:[%s328 + $0x8] sm:$0xff]
      %v353 = vld [vmem:[%s328 + $0x10] sm:$0x3]
      %v354 = vld [vmem:[%s328 + $0x18] sm:$0xff]
      %v355 = vld [vmem:[%s328 + $0x20] sm:$0xff]
      %v356 = vld [vmem:[%s328 + $0x28] sm:$0x3]
      %v357 = vld [vmem:[%s328 + $0x30] sm:$0xff]
      %v358 = vld [vmem:[%s328 + $0x38] sm:$0xff]
      %v359 = vld [vmem:[%s328 + $0x40] sm:$0x3]
      %v360 = vld [vmem:[%s328 + $0x48] sm:$0xff]
      %v361 = vld [vmem:[%s328 + $0x50] sm:$0xff]
      %v362 = vld [vmem:[%s328 + $0x58] sm:$0x3]
      %v363 = vld [vmem:[%s328 + $0x60] sm:$0xff]
      %v364 = vld [vmem:[%s328 + $0x68] sm:$0xff]
      %v365 = vld [vmem:[%s328 + $0x70] sm:$0x3]
      %v366 = vld [vmem:[%s328 + $0x78] sm:$0xff]
      %v367 = vld [vmem:[%s328 + $0x80] sm:$0xff]
      %v368 = vld [vmem:[%s328 + $0x88] sm:$0x3]
      %v369 = vld [vmem:[%s328 + $0x90] sm:$0xff]
      %v370 = vld [vmem:[%s328 + $0x98] sm:$0xff]
      %v371 = vld [vmem:[%s328 + $0xa0] sm:$0x3]
      %v372 = vld [vmem:[%s328 + $0xa8] sm:$0xff]
      %v373 = vld [vmem:[%s328 + $0xb0] sm:$0xff]
      %v374 = vld [vmem:[%s328 + $0xb8] sm:$0x3]
      %v375 = vld [vmem:[%s328 + $0xc0] sm:$0xff]
      %v376 = vld [vmem:[%s328 + $0xc8] sm:$0xff]
      %v377 = vld [vmem:[%s328 + $0xd0] sm:$0x3]
      %v378 = vld [vmem:[%s328 + $0xd8] sm:$0xff]
      %v379 = vld [vmem:[%s328 + $0xe0] sm:$0xff]
      %v380 = vld [vmem:[%s328 + $0xe8] sm:$0x3]
      %v381 = vld [vmem:[%s328 + $0xf0] sm:$0xff]
      %v382 = vld [vmem:[%s328 + $0xf8] sm:$0xff]
      %v383 = vld [vmem:[%s328 + $0x100] sm:$0x3]
      %v384 = vld [vmem:[%s328 + $0x108] sm:$0xff]
      %v385 = vld [vmem:[%s328 + $0x110] sm:$0xff]
      %v386 = vld [vmem:[%s328 + $0x118] sm:$0x3]
      %v387 = vld [vmem:[%s328 + $0x120] sm:$0xff]
      %v388 = vld [vmem:[%s328 + $0x128] sm:$0xff]
      %v389 = vld [vmem:[%s328 + $0x130] sm:$0x3]
      %v390 = vld [vmem:[%s328 + $0x138] sm:$0xff]
      %v391 = vld [vmem:[%s328 + $0x140] sm:$0xff]
      %v392 = vld [vmem:[%s328 + $0x148] sm:$0x3]
      %v393 = vld [vmem:[%s328 + $0x150] sm:$0xff]
      %v394 = vld [vmem:[%s328 + $0x158] sm:$0xff]
      %v395 = vld [vmem:[%s328 + $0x160] sm:$0x3]
      %v396 = vld [vmem:[%s328 + $0x168] sm:$0xff]
      %v397 = vld [vmem:[%s328 + $0x170] sm:$0xff]
      %v398 = vld [vmem:[%s328 + $0x178] sm:$0x3]
      %v399 = vld [vmem:[%s328 + $0x180] sm:$0xff]
      %v400 = vld [vmem:[%s328 + $0x188] sm:$0xff]
      %v401 = vld [vmem:[%s328 + $0x190] sm:$0x3]
      %v402 = vld [vmem:[%s328 + $0x198] sm:$0xff]
      %v403 = vld [vmem:[%s328 + $0x1a0] sm:$0xff]
      %v404 = vld [vmem:[%s328 + $0x1a8] sm:$0x3]
      %v405 = vpack.c.bf16 %v352, %v351
      %v406 = vpack.c.bf16 %v355, %v354
      %v407 = vpack.c.bf16 %v358, %v357
      %v408 = vpack.c.bf16 %v361, %v360
      %v409 = vpack.c.bf16 %v364, %v363
      %v410 = vpack.c.bf16 %v367, %v366
      %v411 = vpack.c.bf16 %v370, %v369
      %v412 = vpack.c.bf16 %v373, %v372
      %v413 = vpack.c.bf16 %v376, %v375
      %v414 = vpack.c.bf16 %v379, %v378
      %v415 = vpack.c.bf16 %v382, %v381
      %v416 = vpack.c.bf16 %v385, %v384
      %v417 = vpack.c.bf16 %v388, %v387
      %v418 = vpack.c.bf16 %v391, %v390
      %v419 = vpack.c.bf16 %v394, %v393
      %v420 = vpack.c.bf16 %v397, %v396
      %v421 = vld [vmem:[%s1] sm:$0xf]
      %v422 = vld [vmem:[%s1 + $0x4] sm:$0xf]
      %v423 = vld [vmem:[%s1 + $0x8] sm:$0xf]
      %v424 = vld [vmem:[%s1 + $0xc] sm:$0xf]
      %v425 = vld [vmem:[%s1 + $0x10] sm:$0xf]
      %v426 = vld [vmem:[%s1 + $0x14] sm:$0xf]
      %v427 = vld [vmem:[%s1 + $0x18] sm:$0xf]
      %v428 = vld [vmem:[%s1 + $0x1c] sm:$0xf]
      %v429 = vld [vmem:[%s1 + $0x20] sm:$0xf]
      %v430 = vld [vmem:[%s1 + $0x24] sm:$0xf]
      %v431 = vld [vmem:[%s1 + $0x28] sm:$0xf]
      %v432 = vld [vmem:[%s1 + $0x2c] sm:$0xf]
      %v433 = vld [vmem:[%s1 + $0x30] sm:$0xf]
      %v434 = vld [vmem:[%s1 + $0x34] sm:$0xf]
      %v435 = vld [vmem:[%s1 + $0x38] sm:$0xf]
      %v436 = vld [vmem:[%s1 + $0x3c] sm:$0xf]
      %vm485 = vcmask 1046528
      %v486 = vrot.slane %v351, 1
      %v487 = vrot.slane %v352, 1
      %v488 = vsel %vm485, %v486, %v487
      %v489 = vrot.slane %v353, 1
      %v490 = vsel %vm485, %v487, %v489
      %v491 = vrot.slane %v354, 1
      %v492 = vrot.slane %v355, 1
      %v493 = vsel %vm485, %v491, %v492
      %v494 = vrot.slane %v356, 1
      %v495 = vsel %vm485, %v492, %v494
      %v496 = vrot.slane %v357, 1
      %v497 = vrot.slane %v358, 1
      %v498 = vsel %vm485, %v496, %v497
      %v499 = vrot.slane %v359, 1
      %v500 = vsel %vm485, %v497, %v499
      %v501 = vrot.slane %v360, 1
      %v502 = vrot.slane %v361, 1
      %v503 = vsel %vm485, %v501, %v502
      %v504 = vrot.slane %v362, 1
      %v505 = vsel %vm485, %v502, %v504
      %v506 = vrot.slane %v363, 1
      %v507 = vrot.slane %v364, 1
      %v508 = vsel %vm485, %v506, %v507
      %v509 = vrot.slane %v365, 1
      %v510 = vsel %vm485, %v507, %v509
      %v511 = vrot.slane %v366, 1
      %v512 = vrot.slane %v367, 1
      %v513 = vsel %vm485, %v511, %v512
      %v514 = vrot.slane %v368, 1
      %v515 = vsel %vm485, %v512, %v514
      %v516 = vrot.slane %v369, 1
      %v517 = vrot.slane %v370, 1
      %v518 = vsel %vm485, %v516, %v517
      %v519 = vrot.slane %v371, 1
      %v520 = vsel %vm485, %v517, %v519
      %v521 = vrot.slane %v372, 1
      %v522 = vrot.slane %v373, 1
      %v523 = vsel %vm485, %v521, %v522
      %v524 = vrot.slane %v374, 1
      %v525 = vsel %vm485, %v522, %v524
      %v526 = vrot.slane %v375, 1
      %v527 = vrot.slane %v376, 1
      %v528 = vsel %vm485, %v526, %v527
      %v529 = vrot.slane %v377, 1
      %v530 = vsel %vm485, %v527, %v529
      %v531 = vrot.slane %v378, 1
      %v532 = vrot.slane %v379, 1
      %v533 = vsel %vm485, %v531, %v532
      %v534 = vrot.slane %v380, 1
      %v535 = vsel %vm485, %v532, %v534
      %v536 = vrot.slane %v381, 1
      %v537 = vrot.slane %v382, 1
      %v538 = vsel %vm485, %v536, %v537
      %v539 = vrot.slane %v383, 1
      %v540 = vsel %vm485, %v537, %v539
      %v541 = vrot.slane %v384, 1
      %v542 = vrot.slane %v385, 1
      %v543 = vsel %vm485, %v541, %v542
      %v544 = vrot.slane %v386, 1
      %v545 = vsel %vm485, %v542, %v544
      %v546 = vrot.slane %v387, 1
      %v547 = vrot.slane %v388, 1
      %v548 = vsel %vm485, %v546, %v547
      %v549 = vrot.slane %v389, 1
      %v550 = vsel %vm485, %v547, %v549
      %v551 = vrot.slane %v390, 1
      %v552 = vrot.slane %v391, 1
      %v553 = vsel %vm485, %v551, %v552
      %v554 = vrot.slane %v392, 1
      %v555 = vsel %vm485, %v552, %v554
      %v556 = vrot.slane %v393, 1
      %v557 = vrot.slane %v394, 1
      %v558 = vsel %vm485, %v556, %v557
      %v559 = vrot.slane %v395, 1
      %v560 = vsel %vm485, %v557, %v559
      %v561 = vrot.slane %v396, 1
      %v562 = vrot.slane %v397, 1
      %v563 = vsel %vm485, %v561, %v562
      %v564 = vrot.slane %v398, 1
      %v565 = vsel %vm485, %v562, %v564
      %v598 = vpack.c.bf16 %v490, %v488
      %v599 = vpack.c.bf16 %v495, %v493
      %v600 = vpack.c.bf16 %v500, %v498
      %v601 = vpack.c.bf16 %v505, %v503
      %v602 = vpack.c.bf16 %v510, %v508
      %v603 = vpack.c.bf16 %v515, %v513
      %v604 = vpack.c.bf16 %v520, %v518
      %v605 = vpack.c.bf16 %v525, %v523
      %v606 = vpack.c.bf16 %v530, %v528
      %v607 = vpack.c.bf16 %v535, %v533
      %v608 = vpack.c.bf16 %v540, %v538
      %v609 = vpack.c.bf16 %v545, %v543
      %v610 = vpack.c.bf16 %v550, %v548
      %v611 = vpack.c.bf16 %v555, %v553
      %v612 = vpack.c.bf16 %v560, %v558
      %v613 = vpack.c.bf16 %v565, %v563
      %s614 = scalar_lea.vmem %s1, 64
      %v615 = vld [vmem:[%s614] sm:$0xf]
      %v616 = vld [vmem:[%s614 + $0x4] sm:$0xf]
      %v617 = vld [vmem:[%s614 + $0x8] sm:$0xf]
      %v618 = vld [vmem:[%s614 + $0xc] sm:$0xf]
      %v619 = vld [vmem:[%s614 + $0x10] sm:$0xf]
      %v620 = vld [vmem:[%s614 + $0x14] sm:$0xf]
      %v621 = vld [vmem:[%s614 + $0x18] sm:$0xf]
      %v622 = vld [vmem:[%s614 + $0x1c] sm:$0xf]
      %v623 = vld [vmem:[%s614 + $0x20] sm:$0xf]
      %v624 = vld [vmem:[%s614 + $0x24] sm:$0xf]
      %v625 = vld [vmem:[%s614 + $0x28] sm:$0xf]
      %v626 = vld [vmem:[%s614 + $0x2c] sm:$0xf]
      %v627 = vld [vmem:[%s614 + $0x30] sm:$0xf]
      %v628 = vld [vmem:[%s614 + $0x34] sm:$0xf]
      %v629 = vld [vmem:[%s614 + $0x38] sm:$0xf]
      %v630 = vld [vmem:[%s614 + $0x3c] sm:$0xf]
      %v647 = vunpack.c.l.b16 %v615
      %v648 = vunpack.c.l.b16 %v616
      %v649 = vunpack.c.l.b16 %v617
      %v650 = vunpack.c.l.b16 %v618
      %v651 = vunpack.c.l.b16 %v619
      %v652 = vunpack.c.l.b16 %v620
      %v653 = vunpack.c.l.b16 %v621
      %v654 = vunpack.c.l.b16 %v622
      %v655 = vunpack.c.l.b16 %v623
      %v656 = vunpack.c.l.b16 %v624
      %v657 = vunpack.c.l.b16 %v625
      %v658 = vunpack.c.l.b16 %v626
      %v659 = vunpack.c.l.b16 %v627
      %v660 = vunpack.c.l.b16 %v628
      %v661 = vunpack.c.l.b16 %v629
      %v662 = vunpack.c.l.b16 %v630
      %v663 = vpack.c.b16 %v648, %v647
      %v664 = vpack.c.b16 %v650, %v649
      %v665 = vpack.c.b16 %v652, %v651
      %v666 = vpack.c.b16 %v654, %v653
      %v667 = vpack.c.b16 %v656, %v655
      %v668 = vpack.c.b16 %v658, %v657
      %v669 = vpack.c.b16 %v660, %v659
      %v670 = vpack.c.b16 %v662, %v661
      %679 = vmatpush.bf16.msra.mxu0 %v670
      %680 = vmatpush.bf16.msra.mxu0 %v669
      %681 = vmatpush.bf16.msra.mxu0 %v668
      %682 = vmatpush.bf16.msra.mxu0 %v667
      %683 = vmatpush.bf16.msra.mxu0 %v666
      %684 = vmatpush.bf16.msra.mxu0 %v665
      %685 = vmatpush.bf16.msra.mxu0 %v664
      %686 = vmatpush.bf16.msra.mxu0 %v663
      %687 = vmatmul.bf16.gmra.mxu0 %v598
      %v688 = vpop.f32.mrf.mxu0
      %v689 = vadd.f32 0.0, %v688
      %v690 = vpop.f32.mrf.mxu0
      %v691 = vadd.f32 0.0, %v690
      %692 = vmatmul.bf16.gmra.mxu0 %v599
      %v693 = vpop.f32.mrf.mxu0
      %v694 = vadd.f32 0.0, %v693
      %v695 = vpop.f32.mrf.mxu0
      %v696 = vadd.f32 0.0, %v695
      %697 = vmatmul.bf16.gmra.mxu0 %v600
      %v698 = vpop.f32.mrf.mxu0
      %v699 = vadd.f32 0.0, %v698
      %v700 = vpop.f32.mrf.mxu0
      %v701 = vadd.f32 0.0, %v700
      %702 = vmatmul.bf16.gmra.mxu0 %v601
      %v703 = vpop.f32.mrf.mxu0
      %v704 = vadd.f32 0.0, %v703
      %v705 = vpop.f32.mrf.mxu0
      %v706 = vadd.f32 0.0, %v705
      %707 = vmatmul.bf16.gmra.mxu0 %v602
      %v708 = vpop.f32.mrf.mxu0
      %v709 = vadd.f32 0.0, %v708
      %v710 = vpop.f32.mrf.mxu0
      %v711 = vadd.f32 0.0, %v710
      %712 = vmatmul.bf16.gmra.mxu0 %v603
      %v713 = vpop.f32.mrf.mxu0
      %v714 = vadd.f32 0.0, %v713
      %v715 = vpop.f32.mrf.mxu0
      %v716 = vadd.f32 0.0, %v715
      %717 = vmatmul.bf16.gmra.mxu0 %v604
      %v718 = vpop.f32.mrf.mxu0
      %v719 = vadd.f32 0.0, %v718
      %v720 = vpop.f32.mrf.mxu0
      %v721 = vadd.f32 0.0, %v720
      %722 = vmatmul.bf16.gmra.mxu0 %v605
      %v723 = vpop.f32.mrf.mxu0
      %v724 = vadd.f32 0.0, %v723
      %v725 = vpop.f32.mrf.mxu0
      %v726 = vadd.f32 0.0, %v725
      %727 = vmatmul.bf16.gmra.mxu0 %v606
      %v728 = vpop.f32.mrf.mxu0
      %v729 = vadd.f32 0.0, %v728
      %v730 = vpop.f32.mrf.mxu0
      %v731 = vadd.f32 0.0, %v730
      %732 = vmatmul.bf16.gmra.mxu0 %v607
      %v733 = vpop.f32.mrf.mxu0
      %v734 = vadd.f32 0.0, %v733
      %v735 = vpop.f32.mrf.mxu0
      %v736 = vadd.f32 0.0, %v735
      %737 = vmatmul.bf16.gmra.mxu0 %v608
      %v738 = vpop.f32.mrf.mxu0
      %v739 = vadd.f32 0.0, %v738
      %v740 = vpop.f32.mrf.mxu0
      %v741 = vadd.f32 0.0, %v740
      %742 = vmatmul.bf16.gmra.mxu0 %v609
      %v743 = vpop.f32.mrf.mxu0
      %v744 = vadd.f32 0.0, %v743
      %v745 = vpop.f32.mrf.mxu0
      %v746 = vadd.f32 0.0, %v745
      %747 = vmatmul.bf16.gmra.mxu0 %v610
      %v748 = vpop.f32.mrf.mxu0
      %v749 = vadd.f32 0.0, %v748
      %v750 = vpop.f32.mrf.mxu0
      %v751 = vadd.f32 0.0, %v750
      %752 = vmatmul.bf16.gmra.mxu0 %v611
      %v753 = vpop.f32.mrf.mxu0
      %v754 = vadd.f32 0.0, %v753
      %v755 = vpop.f32.mrf.mxu0
      %v756 = vadd.f32 0.0, %v755
      %757 = vmatmul.bf16.gmra.mxu0 %v612
      %v758 = vpop.f32.mrf.mxu0
      %v759 = vadd.f32 0.0, %v758
      %v760 = vpop.f32.mrf.mxu0
      %v761 = vadd.f32 0.0, %v760
      %762 = vmatmul.bf16.gmra.mxu0 %v613
      %v763 = vpop.f32.mrf.mxu0
      %v764 = vadd.f32 0.0, %v763
      %v765 = vpop.f32.mrf.mxu0
      %v766 = vadd.f32 0.0, %v765
      %767 = vdwg.mxu0
      %v784 = vunpack.c.l.b16 %v421
      %v785 = vunpack.c.l.b16 %v422
      %v786 = vunpack.c.l.b16 %v423
      %v787 = vunpack.c.l.b16 %v424
      %v788 = vunpack.c.l.b16 %v425
      %v789 = vunpack.c.l.b16 %v426
      %v790 = vunpack.c.l.b16 %v427
      %v791 = vunpack.c.l.b16 %v428
      %v792 = vunpack.c.l.b16 %v429
      %v793 = vunpack.c.l.b16 %v430
      %v794 = vunpack.c.l.b16 %v431
      %v795 = vunpack.c.l.b16 %v432
      %v796 = vunpack.c.l.b16 %v433
      %v797 = vunpack.c.l.b16 %v434
      %v798 = vunpack.c.l.b16 %v435
      %v799 = vunpack.c.l.b16 %v436
      %v800 = vpack.c.b16 %v785, %v784
      %v801 = vpack.c.b16 %v787, %v786
      %v802 = vpack.c.b16 %v789, %v788
      %v803 = vpack.c.b16 %v791, %v790
      %v804 = vpack.c.b16 %v793, %v792
      %v805 = vpack.c.b16 %v795, %v794
      %v806 = vpack.c.b16 %v797, %v796
      %v807 = vpack.c.b16 %v799, %v798
      %816 = vmatpush.bf16.msra.mxu0 %v807
      %817 = vmatpush.bf16.msra.mxu0 %v806
      %818 = vmatpush.bf16.msra.mxu0 %v805
      %819 = vmatpush.bf16.msra.mxu0 %v804
      %820 = vmatpush.bf16.msra.mxu0 %v803
      %821 = vmatpush.bf16.msra.mxu0 %v802
      %822 = vmatpush.bf16.msra.mxu0 %v801
      %823 = vmatpush.bf16.msra.mxu0 %v800
      %824 = vmatmul.bf16.gmra.mxu0 %v405
      %v825 = vpop.f32.mrf.mxu0
      %v826 = vadd.f32 %v689, %v825
      %v827 = vpop.f32.mrf.mxu0
      %v828 = vadd.f32 %v691, %v827
      %829 = vmatmul.bf16.gmra.mxu0 %v406
      %v830 = vpop.f32.mrf.mxu0
      %v831 = vadd.f32 %v694, %v830
      %v832 = vpop.f32.mrf.mxu0
      %v833 = vadd.f32 %v696, %v832
      %834 = vmatmul.bf16.gmra.mxu0 %v407
      %v835 = vpop.f32.mrf.mxu0
      %v836 = vadd.f32 %v699, %v835
      %v837 = vpop.f32.mrf.mxu0
      %v838 = vadd.f32 %v701, %v837
      %839 = vmatmul.bf16.gmra.mxu0 %v408
      %v840 = vpop.f32.mrf.mxu0
      %v841 = vadd.f32 %v704, %v840
      %v842 = vpop.f32.mrf.mxu0
      %v843 = vadd.f32 %v706, %v842
      %844 = vmatmul.bf16.gmra.mxu0 %v409
      %v845 = vpop.f32.mrf.mxu0
      %v846 = vadd.f32 %v709, %v845
      %v847 = vpop.f32.mrf.mxu0
      %v848 = vadd.f32 %v711, %v847
      %849 = vmatmul.bf16.gmra.mxu0 %v410
      %v850 = vpop.f32.mrf.mxu0
      %v851 = vadd.f32 %v714, %v850
      %v852 = vpop.f32.mrf.mxu0
      %v853 = vadd.f32 %v716, %v852
      %854 = vmatmul.bf16.gmra.mxu0 %v411
      %v855 = vpop.f32.mrf.mxu0
      %v856 = vadd.f32 %v719, %v855
      %v857 = vpop.f32.mrf.mxu0
      %v858 = vadd.f32 %v721, %v857
      %859 = vmatmul.bf16.gmra.mxu0 %v412
      %v860 = vpop.f32.mrf.mxu0
      %v861 = vadd.f32 %v724, %v860
      %v862 = vpop.f32.mrf.mxu0
      %v863 = vadd.f32 %v726, %v862
      %864 = vmatmul.bf16.gmra.mxu0 %v413
      %v865 = vpop.f32.mrf.mxu0
      %v866 = vadd.f32 %v729, %v865
      %v867 = vpop.f32.mrf.mxu0
      %v868 = vadd.f32 %v731, %v867
      %869 = vmatmul.bf16.gmra.mxu0 %v414
      %v870 = vpop.f32.mrf.mxu0
      %v871 = vadd.f32 %v734, %v870
      %v872 = vpop.f32.mrf.mxu0
      %v873 = vadd.f32 %v736, %v872
      %874 = vmatmul.bf16.gmra.mxu0 %v415
      %v875 = vpop.f32.mrf.mxu0
      %v876 = vadd.f32 %v739, %v875
      %v877 = vpop.f32.mrf.mxu0
      %v878 = vadd.f32 %v741, %v877
      %879 = vmatmul.bf16.gmra.mxu0 %v416
      %v880 = vpop.f32.mrf.mxu0
      %v881 = vadd.f32 %v744, %v880
      %v882 = vpop.f32.mrf.mxu0
      %v883 = vadd.f32 %v746, %v882
      %884 = vmatmul.bf16.gmra.mxu0 %v417
      %v885 = vpop.f32.mrf.mxu0
      %v886 = vadd.f32 %v749, %v885
      %v887 = vpop.f32.mrf.mxu0
      %v888 = vadd.f32 %v751, %v887
      %889 = vmatmul.bf16.gmra.mxu0 %v418
      %v890 = vpop.f32.mrf.mxu0
      %v891 = vadd.f32 %v754, %v890
      %v892 = vpop.f32.mrf.mxu0
      %v893 = vadd.f32 %v756, %v892
      %894 = vmatmul.bf16.gmra.mxu0 %v419
      %v895 = vpop.f32.mrf.mxu0
      %v896 = vadd.f32 %v759, %v895
      %v897 = vpop.f32.mrf.mxu0
      %v898 = vadd.f32 %v761, %v897
      %899 = vmatmul.bf16.gmra.mxu0 %v420
      %v900 = vpop.f32.mrf.mxu0
      %v901 = vadd.f32 %v764, %v900
      %v902 = vpop.f32.mrf.mxu0
      %v903 = vadd.f32 %v766, %v902
      %904 = vdwg.mxu0
      %vm905 = vcmask 1045504
      %v906 = vrot.slane %v351, 2
      %v907 = vrot.slane %v352, 2
      %v908 = vsel %vm905, %v906, %v907
      %v909 = vrot.slane %v353, 2
      %v910 = vsel %vm905, %v907, %v909
      %v911 = vrot.slane %v354, 2
      %v912 = vrot.slane %v355, 2
      %v913 = vsel %vm905, %v911, %v912
      %v914 = vrot.slane %v356, 2
      %v915 = vsel %vm905, %v912, %v914
      %v916 = vrot.slane %v357, 2
      %v917 = vrot.slane %v358, 2
      %v918 = vsel %vm905, %v916, %v917
      %v919 = vrot.slane %v359, 2
      %v920 = vsel %vm905, %v917, %v919
      %v921 = vrot.slane %v360, 2
      %v922 = vrot.slane %v361, 2
      %v923 = vsel %vm905, %v921, %v922
      %v924 = vrot.slane %v362, 2
      %v925 = vsel %vm905, %v922, %v924
      %v926 = vrot.slane %v363, 2
      %v927 = vrot.slane %v364, 2
      %v928 = vsel %vm905, %v926, %v927
      %v929 = vrot.slane %v365, 2
      %v930 = vsel %vm905, %v927, %v929
      %v931 = vrot.slane %v366, 2
      %v932 = vrot.slane %v367, 2
      %v933 = vsel %vm905, %v931, %v932
      %v934 = vrot.slane %v368, 2
      %v935 = vsel %vm905, %v932, %v934
      %v936 = vrot.slane %v369, 2
      %v937 = vrot.slane %v370, 2
      %v938 = vsel %vm905, %v936, %v937
      %v939 = vrot.slane %v371, 2
      %v940 = vsel %vm905, %v937, %v939
      %v941 = vrot.slane %v372, 2
      %v942 = vrot.slane %v373, 2
      %v943 = vsel %vm905, %v941, %v942
      %v944 = vrot.slane %v374, 2
      %v945 = vsel %vm905, %v942, %v944
      %v946 = vrot.slane %v375, 2
      %v947 = vrot.slane %v376, 2
      %v948 = vsel %vm905, %v946, %v947
      %v949 = vrot.slane %v377, 2
      %v950 = vsel %vm905, %v947, %v949
      %v951 = vrot.slane %v378, 2
      %v952 = vrot.slane %v379, 2
      %v953 = vsel %vm905, %v951, %v952
      %v954 = vrot.slane %v380, 2
      %v955 = vsel %vm905, %v952, %v954
      %v956 = vrot.slane %v381, 2
      %v957 = vrot.slane %v382, 2
      %v958 = vsel %vm905, %v956, %v957
      %v959 = vrot.slane %v383, 2
      %v960 = vsel %vm905, %v957, %v959
      %v961 = vrot.slane %v384, 2
      %v962 = vrot.slane %v385, 2
      %v963 = vsel %vm905, %v961, %v962
      %v964 = vrot.slane %v386, 2
      %v965 = vsel %vm905, %v962, %v964
      %v966 = vrot.slane %v387, 2
      %v967 = vrot.slane %v388, 2
      %v968 = vsel %vm905, %v966, %v967
      %v969 = vrot.slane %v389, 2
      %v970 = vsel %vm905, %v967, %v969
      %v971 = vrot.slane %v390, 2
      %v972 = vrot.slane %v391, 2
      %v973 = vsel %vm905, %v971, %v972
      %v974 = vrot.slane %v392, 2
      %v975 = vsel %vm905, %v972, %v974
      %v976 = vrot.slane %v393, 2
      %v977 = vrot.slane %v394, 2
      %v978 = vsel %vm905, %v976, %v977
      %v979 = vrot.slane %v395, 2
      %v980 = vsel %vm905, %v977, %v979
      %v981 = vrot.slane %v396, 2
      %v982 = vrot.slane %v397, 2
      %v983 = vsel %vm905, %v981, %v982
      %v984 = vrot.slane %v398, 2
      %v985 = vsel %vm905, %v982, %v984
      %v1018 = vpack.c.bf16 %v910, %v908
      %v1019 = vpack.c.bf16 %v915, %v913
      %v1020 = vpack.c.bf16 %v920, %v918
      %v1021 = vpack.c.bf16 %v925, %v923
      %v1022 = vpack.c.bf16 %v930, %v928
      %v1023 = vpack.c.bf16 %v935, %v933
      %v1024 = vpack.c.bf16 %v940, %v938
      %v1025 = vpack.c.bf16 %v945, %v943
      %v1026 = vpack.c.bf16 %v950, %v948
      %v1027 = vpack.c.bf16 %v955, %v953
      %v1028 = vpack.c.bf16 %v960, %v958
      %v1029 = vpack.c.bf16 %v965, %v963
      %v1030 = vpack.c.bf16 %v970, %v968
      %v1031 = vpack.c.bf16 %v975, %v973
      %v1032 = vpack.c.bf16 %v980, %v978
      %v1033 = vpack.c.bf16 %v985, %v983
      %s1034 = scalar_lea.vmem %s1, 128
      %v1035 = vld [vmem:[%s1034] sm:$0xf]
      %v1036 = vld [vmem:[%s1034 + $0x4] sm:$0xf]
      %v1037 = vld [vmem:[%s1034 + $0x8] sm:$0xf]
      %v1038 = vld [vmem:[%s1034 + $0xc] sm:$0xf]
      %v1039 = vld [vmem:[%s1034 + $0x10] sm:$0xf]
      %v1040 = vld [vmem:[%s1034 + $0x14] sm:$0xf]
      %v1041 = vld [vmem:[%s1034 + $0x18] sm:$0xf]
      %v1042 = vld [vmem:[%s1034 + $0x1c] sm:$0xf]
      %v1043 = vld [vmem:[%s1034 + $0x20] sm:$0xf]
      %v1044 = vld [vmem:[%s1034 + $0x24] sm:$0xf]
      %v1045 = vld [vmem:[%s1034 + $0x28] sm:$0xf]
      %v1046 = vld [vmem:[%s1034 + $0x2c] sm:$0xf]
      %v1047 = vld [vmem:[%s1034 + $0x30] sm:$0xf]
      %v1048 = vld [vmem:[%s1034 + $0x34] sm:$0xf]
      %v1049 = vld [vmem:[%s1034 + $0x38] sm:$0xf]
      %v1050 = vld [vmem:[%s1034 + $0x3c] sm:$0xf]
      %v1067 = vunpack.c.l.b16 %v1035
      %v1068 = vunpack.c.l.b16 %v1036
      %v1069 = vunpack.c.l.b16 %v1037
      %v1070 = vunpack.c.l.b16 %v1038
      %v1071 = vunpack.c.l.b16 %v1039
      %v1072 = vunpack.c.l.b16 %v1040
      %v1073 = vunpack.c.l.b16 %v1041
      %v1074 = vunpack.c.l.b16 %v1042
      %v1075 = vunpack.c.l.b16 %v1043
      %v1076 = vunpack.c.l.b16 %v1044
      %v1077 = vunpack.c.l.b16 %v1045
      %v1078 = vunpack.c.l.b16 %v1046
      %v1079 = vunpack.c.l.b16 %v1047
      %v1080 = vunpack.c.l.b16 %v1048
      %v1081 = vunpack.c.l.b16 %v1049
      %v1082 = vunpack.c.l.b16 %v1050
      %v1083 = vpack.c.b16 %v1068, %v1067
      %v1084 = vpack.c.b16 %v1070, %v1069
      %v1085 = vpack.c.b16 %v1072, %v1071
      %v1086 = vpack.c.b16 %v1074, %v1073
      %v1087 = vpack.c.b16 %v1076, %v1075
      %v1088 = vpack.c.b16 %v1078, %v1077
      %v1089 = vpack.c.b16 %v1080, %v1079
      %v1090 = vpack.c.b16 %v1082, %v1081
      %1099 = vmatpush.bf16.msra.mxu0 %v1090
      %1100 = vmatpush.bf16.msra.mxu0 %v1089
      %1101 = vmatpush.bf16.msra.mxu0 %v1088
      %1102 = vmatpush.bf16.msra.mxu0 %v1087
      %1103 = vmatpush.bf16.msra.mxu0 %v1086
      %1104 = vmatpush.bf16.msra.mxu0 %v1085
      %1105 = vmatpush.bf16.msra.mxu0 %v1084
      %1106 = vmatpush.bf16.msra.mxu0 %v1083
      %1107 = vmatmul.bf16.gmra.mxu0 %v1018
      %v1108 = vpop.f32.mrf.mxu0
      %v1109 = vadd.f32 0.0, %v1108
      %v1110 = vpop.f32.mrf.mxu0
      %v1111 = vadd.f32 0.0, %v1110
      %1112 = vmatmul.bf16.gmra.mxu0 %v1019
      %v1113 = vpop.f32.mrf.mxu0
      %v1114 = vadd.f32 0.0, %v1113
      %v1115 = vpop.f32.mrf.mxu0
      %v1116 = vadd.f32 0.0, %v1115
      %1117 = vmatmul.bf16.gmra.mxu0 %v1020
      %v1118 = vpop.f32.mrf.mxu0
      %v1119 = vadd.f32 0.0, %v1118
      %v1120 = vpop.f32.mrf.mxu0
      %v1121 = vadd.f32 0.0, %v1120
      %1122 = vmatmul.bf16.gmra.mxu0 %v1021
      %v1123 = vpop.f32.mrf.mxu0
      %v1124 = vadd.f32 0.0, %v1123
      %v1125 = vpop.f32.mrf.mxu0
      %v1126 = vadd.f32 0.0, %v1125
      %1127 = vmatmul.bf16.gmra.mxu0 %v1022
      %v1128 = vpop.f32.mrf.mxu0
      %v1129 = vadd.f32 0.0, %v1128
      %v1130 = vpop.f32.mrf.mxu0
      %v1131 = vadd.f32 0.0, %v1130
      %1132 = vmatmul.bf16.gmra.mxu0 %v1023
      %v1133 = vpop.f32.mrf.mxu0
      %v1134 = vadd.f32 0.0, %v1133
      %v1135 = vpop.f32.mrf.mxu0
      %v1136 = vadd.f32 0.0, %v1135
      %1137 = vmatmul.bf16.gmra.mxu0 %v1024
      %v1138 = vpop.f32.mrf.mxu0
      %v1139 = vadd.f32 0.0, %v1138
      %v1140 = vpop.f32.mrf.mxu0
      %v1141 = vadd.f32 0.0, %v1140
      %1142 = vmatmul.bf16.gmra.mxu0 %v1025
      %v1143 = vpop.f32.mrf.mxu0
      %v1144 = vadd.f32 0.0, %v1143
      %v1145 = vpop.f32.mrf.mxu0
      %v1146 = vadd.f32 0.0, %v1145
      %1147 = vmatmul.bf16.gmra.mxu0 %v1026
      %v1148 = vpop.f32.mrf.mxu0
      %v1149 = vadd.f32 0.0, %v1148
      %v1150 = vpop.f32.mrf.mxu0
      %v1151 = vadd.f32 0.0, %v1150
      %1152 = vmatmul.bf16.gmra.mxu0 %v1027
      %v1153 = vpop.f32.mrf.mxu0
      %v1154 = vadd.f32 0.0, %v1153
      %v1155 = vpop.f32.mrf.mxu0
      %v1156 = vadd.f32 0.0, %v1155
      %1157 = vmatmul.bf16.gmra.mxu0 %v1028
      %v1158 = vpop.f32.mrf.mxu0
      %v1159 = vadd.f32 0.0, %v1158
      %v1160 = vpop.f32.mrf.mxu0
      %v1161 = vadd.f32 0.0, %v1160
      %1162 = vmatmul.bf16.gmra.mxu0 %v1029
      %v1163 = vpop.f32.mrf.mxu0
      %v1164 = vadd.f32 0.0, %v1163
      %v1165 = vpop.f32.mrf.mxu0
      %v1166 = vadd.f32 0.0, %v1165
      %1167 = vmatmul.bf16.gmra.mxu0 %v1030
      %v1168 = vpop.f32.mrf.mxu0
      %v1169 = vadd.f32 0.0, %v1168
      %v1170 = vpop.f32.mrf.mxu0
      %v1171 = vadd.f32 0.0, %v1170
      %1172 = vmatmul.bf16.gmra.mxu0 %v1031
      %v1173 = vpop.f32.mrf.mxu0
      %v1174 = vadd.f32 0.0, %v1173
      %v1175 = vpop.f32.mrf.mxu0
      %v1176 = vadd.f32 0.0, %v1175
      %1177 = vmatmul.bf16.gmra.mxu0 %v1032
      %v1178 = vpop.f32.mrf.mxu0
      %v1179 = vadd.f32 0.0, %v1178
      %v1180 = vpop.f32.mrf.mxu0
      %v1181 = vadd.f32 0.0, %v1180
      %1182 = vmatmul.bf16.gmra.mxu0 %v1033
      %v1183 = vpop.f32.mrf.mxu0
      %v1184 = vadd.f32 0.0, %v1183
      %v1185 = vpop.f32.mrf.mxu0
      %v1186 = vadd.f32 0.0, %v1185
      %1187 = vdwg.mxu0
      %v1188 = vadd.f32 %v826, %v1109
      %v1189 = vadd.f32 %v828, %v1111
      %v1190 = vadd.f32 %v831, %v1114
      %v1191 = vadd.f32 %v833, %v1116
      %v1192 = vadd.f32 %v836, %v1119
      %v1193 = vadd.f32 %v838, %v1121
      %v1194 = vadd.f32 %v841, %v1124
      %v1195 = vadd.f32 %v843, %v1126
      %v1196 = vadd.f32 %v846, %v1129
      %v1197 = vadd.f32 %v848, %v1131
      %v1198 = vadd.f32 %v851, %v1134
      %v1199 = vadd.f32 %v853, %v1136
      %v1200 = vadd.f32 %v856, %v1139
      %v1201 = vadd.f32 %v858, %v1141
      %v1202 = vadd.f32 %v861, %v1144
      %v1203 = vadd.f32 %v863, %v1146
      %v1204 = vadd.f32 %v866, %v1149
      %v1205 = vadd.f32 %v868, %v1151
      %v1206 = vadd.f32 %v871, %v1154
      %v1207 = vadd.f32 %v873, %v1156
      %v1208 = vadd.f32 %v876, %v1159
      %v1209 = vadd.f32 %v878, %v1161
      %v1210 = vadd.f32 %v881, %v1164
      %v1211 = vadd.f32 %v883, %v1166
      %v1212 = vadd.f32 %v886, %v1169
      %v1213 = vadd.f32 %v888, %v1171
      %v1214 = vadd.f32 %v891, %v1174
      %v1215 = vadd.f32 %v893, %v1176
      %v1216 = vadd.f32 %v896, %v1179
      %v1217 = vadd.f32 %v898, %v1181
      %v1218 = vadd.f32 %v901, %v1184
      %v1219 = vadd.f32 %v903, %v1186
      %v1220 = vpack.c.bf16 %v400, %v399
      %s1221 = scalar_lea.vmem %s1, 192
      %v1222 = vld [vmem:[%s1221] sm:$0xf]
      %v1223 = vld [vmem:[%s1221 + $0x4] sm:$0xf]
      %v1224 = vld [vmem:[%s1221 + $0x8] sm:$0xf]
      %v1225 = vld [vmem:[%s1221 + $0xc] sm:$0xf]
      %v1226 = vld [vmem:[%s1221 + $0x10] sm:$0xf]
      %v1227 = vld [vmem:[%s1221 + $0x14] sm:$0xf]
      %v1228 = vld [vmem:[%s1221 + $0x18] sm:$0xf]
      %v1229 = vld [vmem:[%s1221 + $0x1c] sm:$0xf]
      %v1230 = vld [vmem:[%s1221 + $0x20] sm:$0xf]
      %v1231 = vld [vmem:[%s1221 + $0x24] sm:$0xf]
      %v1232 = vld [vmem:[%s1221 + $0x28] sm:$0xf]
      %v1233 = vld [vmem:[%s1221 + $0x2c] sm:$0xf]
      %v1234 = vld [vmem:[%s1221 + $0x30] sm:$0xf]
      %v1235 = vld [vmem:[%s1221 + $0x34] sm:$0xf]
      %v1236 = vld [vmem:[%s1221 + $0x38] sm:$0xf]
      %v1237 = vld [vmem:[%s1221 + $0x3c] sm:$0xf]
      %v1254 = vunpack.c.l.b16 %v1222
      %v1255 = vunpack.c.l.b16 %v1223
      %v1256 = vunpack.c.l.b16 %v1224
      %v1257 = vunpack.c.l.b16 %v1225
      %v1258 = vunpack.c.l.b16 %v1226
      %v1259 = vunpack.c.l.b16 %v1227
      %v1260 = vunpack.c.l.b16 %v1228
      %v1261 = vunpack.c.l.b16 %v1229
      %v1262 = vunpack.c.l.b16 %v1230
      %v1263 = vunpack.c.l.b16 %v1231
      %v1264 = vunpack.c.l.b16 %v1232
      %v1265 = vunpack.c.l.b16 %v1233
      %v1266 = vunpack.c.l.b16 %v1234
      %v1267 = vunpack.c.l.b16 %v1235
      %v1268 = vunpack.c.l.b16 %v1236
      %v1269 = vunpack.c.l.b16 %v1237
      %v1270 = vpack.c.b16 %v1255, %v1254
      %v1271 = vpack.c.b16 %v1257, %v1256
      %v1272 = vpack.c.b16 %v1259, %v1258
      %v1273 = vpack.c.b16 %v1261, %v1260
      %v1274 = vpack.c.b16 %v1263, %v1262
      %v1275 = vpack.c.b16 %v1265, %v1264
      %v1276 = vpack.c.b16 %v1267, %v1266
      %v1277 = vpack.c.b16 %v1269, %v1268
      %1286 = vmatpush.bf16.msra.mxu0 %v1277
      %1287 = vmatpush.bf16.msra.mxu0 %v1276
      %1288 = vmatpush.bf16.msra.mxu0 %v1275
      %1289 = vmatpush.bf16.msra.mxu0 %v1274
      %1290 = vmatpush.bf16.msra.mxu0 %v1273
      %1291 = vmatpush.bf16.msra.mxu0 %v1272
      %1292 = vmatpush.bf16.msra.mxu0 %v1271
      %1293 = vmatpush.bf16.msra.mxu0 %v1270
      %1294 = vmatmul.bf16.gmra.mxu0 %v406
      %v1295 = vpop.f32.mrf.mxu0
      %v1296 = vadd.f32 0.0, %v1295
      %v1297 = vpop.f32.mrf.mxu0
      %v1298 = vadd.f32 0.0, %v1297
      %1299 = vmatmul.bf16.gmra.mxu0 %v407
      %v1300 = vpop.f32.mrf.mxu0
      %v1301 = vadd.f32 0.0, %v1300
      %v1302 = vpop.f32.mrf.mxu0
      %v1303 = vadd.f32 0.0, %v1302
      %1304 = vmatmul.bf16.gmra.mxu0 %v408
      %v1305 = vpop.f32.mrf.mxu0
      %v1306 = vadd.f32 0.0, %v1305
      %v1307 = vpop.f32.mrf.mxu0
      %v1308 = vadd.f32 0.0, %v1307
      %1309 = vmatmul.bf16.gmra.mxu0 %v409
      %v1310 = vpop.f32.mrf.mxu0
      %v1311 = vadd.f32 0.0, %v1310
      %v1312 = vpop.f32.mrf.mxu0
      %v1313 = vadd.f32 0.0, %v1312
      %1314 = vmatmul.bf16.gmra.mxu0 %v410
      %v1315 = vpop.f32.mrf.mxu0
      %v1316 = vadd.f32 0.0, %v1315
      %v1317 = vpop.f32.mrf.mxu0
      %v1318 = vadd.f32 0.0, %v1317
      %1319 = vmatmul.bf16.gmra.mxu0 %v411
      %v1320 = vpop.f32.mrf.mxu0
      %v1321 = vadd.f32 0.0, %v1320
      %v1322 = vpop.f32.mrf.mxu0
      %v1323 = vadd.f32 0.0, %v1322
      %1324 = vmatmul.bf16.gmra.mxu0 %v412
      %v1325 = vpop.f32.mrf.mxu0
      %v1326 = vadd.f32 0.0, %v1325
      %v1327 = vpop.f32.mrf.mxu0
      %v1328 = vadd.f32 0.0, %v1327
      %1329 = vmatmul.bf16.gmra.mxu0 %v413
      %v1330 = vpop.f32.mrf.mxu0
      %v1331 = vadd.f32 0.0, %v1330
      %v1332 = vpop.f32.mrf.mxu0
      %v1333 = vadd.f32 0.0, %v1332
      %1334 = vmatmul.bf16.gmra.mxu0 %v414
      %v1335 = vpop.f32.mrf.mxu0
      %v1336 = vadd.f32 0.0, %v1335
      %v1337 = vpop.f32.mrf.mxu0
      %v1338 = vadd.f32 0.0, %v1337
      %1339 = vmatmul.bf16.gmra.mxu0 %v415
      %v1340 = vpop.f32.mrf.mxu0
      %v1341 = vadd.f32 0.0, %v1340
      %v1342 = vpop.f32.mrf.mxu0
      %v1343 = vadd.f32 0.0, %v1342
      %1344 = vmatmul.bf16.gmra.mxu0 %v416
      %v1345 = vpop.f32.mrf.mxu0
      %v1346 = vadd.f32 0.0, %v1345
      %v1347 = vpop.f32.mrf.mxu0
      %v1348 = vadd.f32 0.0, %v1347
      %1349 = vmatmul.bf16.gmra.mxu0 %v417
      %v1350 = vpop.f32.mrf.mxu0
      %v1351 = vadd.f32 0.0, %v1350
      %v1352 = vpop.f32.mrf.mxu0
      %v1353 = vadd.f32 0.0, %v1352
      %1354 = vmatmul.bf16.gmra.mxu0 %v418
      %v1355 = vpop.f32.mrf.mxu0
      %v1356 = vadd.f32 0.0, %v1355
      %v1357 = vpop.f32.mrf.mxu0
      %v1358 = vadd.f32 0.0, %v1357
      %1359 = vmatmul.bf16.gmra.mxu0 %v419
      %v1360 = vpop.f32.mrf.mxu0
      %v1361 = vadd.f32 0.0, %v1360
      %v1362 = vpop.f32.mrf.mxu0
      %v1363 = vadd.f32 0.0, %v1362
      %1364 = vmatmul.bf16.gmra.mxu0 %v420
      %v1365 = vpop.f32.mrf.mxu0
      %v1366 = vadd.f32 0.0, %v1365
      %v1367 = vpop.f32.mrf.mxu0
      %v1368 = vadd.f32 0.0, %v1367
      %1369 = vmatmul.bf16.gmra.mxu0 %v1220
      %v1370 = vpop.f32.mrf.mxu0
      %v1371 = vadd.f32 0.0, %v1370
      %v1372 = vpop.f32.mrf.mxu0
      %v1373 = vadd.f32 0.0, %v1372
      %1374 = vdwg.mxu0
      %v1375 = vadd.f32 %v1188, %v1296
      %v1376 = vadd.f32 %v1189, %v1298
      %v1377 = vadd.f32 %v1190, %v1301
      %v1378 = vadd.f32 %v1191, %v1303
      %v1379 = vadd.f32 %v1192, %v1306
      %v1380 = vadd.f32 %v1193, %v1308
      %v1381 = vadd.f32 %v1194, %v1311
      %v1382 = vadd.f32 %v1195, %v1313
      %v1383 = vadd.f32 %v1196, %v1316
      %v1384 = vadd.f32 %v1197, %v1318
      %v1385 = vadd.f32 %v1198, %v1321
      %v1386 = vadd.f32 %v1199, %v1323
      %v1387 = vadd.f32 %v1200, %v1326
      %v1388 = vadd.f32 %v1201, %v1328
      %v1389 = vadd.f32 %v1202, %v1331
      %v1390 = vadd.f32 %v1203, %v1333
      %v1391 = vadd.f32 %v1204, %v1336
      %v1392 = vadd.f32 %v1205, %v1338
      %v1393 = vadd.f32 %v1206, %v1341
      %v1394 = vadd.f32 %v1207, %v1343
      %v1395 = vadd.f32 %v1208, %v1346
      %v1396 = vadd.f32 %v1209, %v1348
      %v1397 = vadd.f32 %v1210, %v1351
      %v1398 = vadd.f32 %v1211, %v1353
      %v1399 = vadd.f32 %v1212, %v1356
      %v1400 = vadd.f32 %v1213, %v1358
      %v1401 = vadd.f32 %v1214, %v1361
      %v1402 = vadd.f32 %v1215, %v1363
      %v1403 = vadd.f32 %v1216, %v1366
      %v1404 = vadd.f32 %v1217, %v1368
      %v1405 = vadd.f32 %v1218, %v1371
      %v1406 = vadd.f32 %v1219, %v1373
      %v1410 = vrot.slane %v399, 1
      %v1411 = vrot.slane %v400, 1
      %v1412 = vsel %vm485, %v1410, %v1411
      %v1413 = vrot.slane %v401, 1
      %v1414 = vsel %vm485, %v1411, %v1413
      %v1417 = vpack.c.bf16 %v1414, %v1412
      %s1418 = scalar_lea.vmem %s1, 256
      %v1419 = vld [vmem:[%s1418] sm:$0xf]
      %v1420 = vld [vmem:[%s1418 + $0x4] sm:$0xf]
      %v1421 = vld [vmem:[%s1418 + $0x8] sm:$0xf]
      %v1422 = vld [vmem:[%s1418 + $0xc] sm:$0xf]
      %v1423 = vld [vmem:[%s1418 + $0x10] sm:$0xf]
      %v1424 = vld [vmem:[%s1418 + $0x14] sm:$0xf]
      %v1425 = vld [vmem:[%s1418 + $0x18] sm:$0xf]
      %v1426 = vld [vmem:[%s1418 + $0x1c] sm:$0xf]
      %v1427 = vld [vmem:[%s1418 + $0x20] sm:$0xf]
      %v1428 = vld [vmem:[%s1418 + $0x24] sm:$0xf]
      %v1429 = vld [vmem:[%s1418 + $0x28] sm:$0xf]
      %v1430 = vld [vmem:[%s1418 + $0x2c] sm:$0xf]
      %v1431 = vld [vmem:[%s1418 + $0x30] sm:$0xf]
      %v1432 = vld [vmem:[%s1418 + $0x34] sm:$0xf]
      %v1433 = vld [vmem:[%s1418 + $0x38] sm:$0xf]
      %v1434 = vld [vmem:[%s1418 + $0x3c] sm:$0xf]
      %v1451 = vunpack.c.l.b16 %v1419
      %v1452 = vunpack.c.l.b16 %v1420
      %v1453 = vunpack.c.l.b16 %v1421
      %v1454 = vunpack.c.l.b16 %v1422
      %v1455 = vunpack.c.l.b16 %v1423
      %v1456 = vunpack.c.l.b16 %v1424
      %v1457 = vunpack.c.l.b16 %v1425
      %v1458 = vunpack.c.l.b16 %v1426
      %v1459 = vunpack.c.l.b16 %v1427
      %v1460 = vunpack.c.l.b16 %v1428
      %v1461 = vunpack.c.l.b16 %v1429
      %v1462 = vunpack.c.l.b16 %v1430
      %v1463 = vunpack.c.l.b16 %v1431
      %v1464 = vunpack.c.l.b16 %v1432
      %v1465 = vunpack.c.l.b16 %v1433
      %v1466 = vunpack.c.l.b16 %v1434
      %v1467 = vpack.c.b16 %v1452, %v1451
      %v1468 = vpack.c.b16 %v1454, %v1453
      %v1469 = vpack.c.b16 %v1456, %v1455
      %v1470 = vpack.c.b16 %v1458, %v1457
      %v1471 = vpack.c.b16 %v1460, %v1459
      %v1472 = vpack.c.b16 %v1462, %v1461
      %v1473 = vpack.c.b16 %v1464, %v1463
      %v1474 = vpack.c.b16 %v1466, %v1465
      %1483 = vmatpush.bf16.msra.mxu0 %v1474
      %1484 = vmatpush.bf16.msra.mxu0 %v1473
      %1485 = vmatpush.bf16.msra.mxu0 %v1472
      %1486 = vmatpush.bf16.msra.mxu0 %v1471
      %1487 = vmatpush.bf16.msra.mxu0 %v1470
      %1488 = vmatpush.bf16.msra.mxu0 %v1469
      %1489 = vmatpush.bf16.msra.mxu0 %v1468
      %1490 = vmatpush.bf16.msra.mxu0 %v1467
      %1491 = vmatmul.bf16.gmra.mxu0 %v599
      %v1492 = vpop.f32.mrf.mxu0
      %v1493 = vadd.f32 0.0, %v1492
      %v1494 = vpop.f32.mrf.mxu0
      %v1495 = vadd.f32 0.0, %v1494
      %1496 = vmatmul.bf16.gmra.mxu0 %v600
      %v1497 = vpop.f32.mrf.mxu0
      %v1498 = vadd.f32 0.0, %v1497
      %v1499 = vpop.f32.mrf.mxu0
      %v1500 = vadd.f32 0.0, %v1499
      %1501 = vmatmul.bf16.gmra.mxu0 %v601
      %v1502 = vpop.f32.mrf.mxu0
      %v1503 = vadd.f32 0.0, %v1502
      %v1504 = vpop.f32.mrf.mxu0
      %v1505 = vadd.f32 0.0, %v1504
      %1506 = vmatmul.bf16.gmra.mxu0 %v602
      %v1507 = vpop.f32.mrf.mxu0
      %v1508 = vadd.f32 0.0, %v1507
      %v1509 = vpop.f32.mrf.mxu0
      %v1510 = vadd.f32 0.0, %v1509
      %1511 = vmatmul.bf16.gmra.mxu0 %v603
      %v1512 = vpop.f32.mrf.mxu0
      %v1513 = vadd.f32 0.0, %v1512
      %v1514 = vpop.f32.mrf.mxu0
      %v1515 = vadd.f32 0.0, %v1514
      %1516 = vmatmul.bf16.gmra.mxu0 %v604
      %v1517 = vpop.f32.mrf.mxu0
      %v1518 = vadd.f32 0.0, %v1517
      %v1519 = vpop.f32.mrf.mxu0
      %v1520 = vadd.f32 0.0, %v1519
      %1521 = vmatmul.bf16.gmra.mxu0 %v605
      %v1522 = vpop.f32.mrf.mxu0
      %v1523 = vadd.f32 0.0, %v1522
      %v1524 = vpop.f32.mrf.mxu0
      %v1525 = vadd.f32 0.0, %v1524
      %1526 = vmatmul.bf16.gmra.mxu0 %v606
      %v1527 = vpop.f32.mrf.mxu0
      %v1528 = vadd.f32 0.0, %v1527
      %v1529 = vpop.f32.mrf.mxu0
      %v1530 = vadd.f32 0.0, %v1529
      %1531 = vmatmul.bf16.gmra.mxu0 %v607
      %v1532 = vpop.f32.mrf.mxu0
      %v1533 = vadd.f32 0.0, %v1532
      %v1534 = vpop.f32.mrf.mxu0
      %v1535 = vadd.f32 0.0, %v1534
      %1536 = vmatmul.bf16.gmra.mxu0 %v608
      %v1537 = vpop.f32.mrf.mxu0
      %v1538 = vadd.f32 0.0, %v1537
      %v1539 = vpop.f32.mrf.mxu0
      %v1540 = vadd.f32 0.0, %v1539
      %1541 = vmatmul.bf16.gmra.mxu0 %v609
      %v1542 = vpop.f32.mrf.mxu0
      %v1543 = vadd.f32 0.0, %v1542
      %v1544 = vpop.f32.mrf.mxu0
      %v1545 = vadd.f32 0.0, %v1544
      %1546 = vmatmul.bf16.gmra.mxu0 %v610
      %v1547 = vpop.f32.mrf.mxu0
      %v1548 = vadd.f32 0.0, %v1547
      %v1549 = vpop.f32.mrf.mxu0
      %v1550 = vadd.f32 0.0, %v1549
      %1551 = vmatmul.bf16.gmra.mxu0 %v611
      %v1552 = vpop.f32.mrf.mxu0
      %v1553 = vadd.f32 0.0, %v1552
      %v1554 = vpop.f32.mrf.mxu0
      %v1555 = vadd.f32 0.0, %v1554
      %1556 = vmatmul.bf16.gmra.mxu0 %v612
      %v1557 = vpop.f32.mrf.mxu0
      %v1558 = vadd.f32 0.0, %v1557
      %v1559 = vpop.f32.mrf.mxu0
      %v1560 = vadd.f32 0.0, %v1559
      %1561 = vmatmul.bf16.gmra.mxu0 %v613
      %v1562 = vpop.f32.mrf.mxu0
      %v1563 = vadd.f32 0.0, %v1562
      %v1564 = vpop.f32.mrf.mxu0
      %v1565 = vadd.f32 0.0, %v1564
      %1566 = vmatmul.bf16.gmra.mxu0 %v1417
      %v1567 = vpop.f32.mrf.mxu0
      %v1568 = vadd.f32 0.0, %v1567
      %v1569 = vpop.f32.mrf.mxu0
      %v1570 = vadd.f32 0.0, %v1569
      %1571 = vdwg.mxu0
      %v1572 = vadd.f32 %v1375, %v1493
      %v1573 = vadd.f32 %v1376, %v1495
      %v1574 = vadd.f32 %v1377, %v1498
      %v1575 = vadd.f32 %v1378, %v1500
      %v1576 = vadd.f32 %v1379, %v1503
      %v1577 = vadd.f32 %v1380, %v1505
      %v1578 = vadd.f32 %v1381, %v1508
      %v1579 = vadd.f32 %v1382, %v1510
      %v1580 = vadd.f32 %v1383, %v1513
      %v1581 = vadd.f32 %v1384, %v1515
      %v1582 = vadd.f32 %v1385, %v1518
      %v1583 = vadd.f32 %v1386, %v1520
      %v1584 = vadd.f32 %v1387, %v1523
      %v1585 = vadd.f32 %v1388, %v1525
      %v1586 = vadd.f32 %v1389, %v1528
      %v1587 = vadd.f32 %v1390, %v1530
      %v1588 = vadd.f32 %v1391, %v1533
      %v1589 = vadd.f32 %v1392, %v1535
      %v1590 = vadd.f32 %v1393, %v1538
      %v1591 = vadd.f32 %v1394, %v1540
      %v1592 = vadd.f32 %v1395, %v1543
      %v1593 = vadd.f32 %v1396, %v1545
      %v1594 = vadd.f32 %v1397, %v1548
      %v1595 = vadd.f32 %v1398, %v1550
      %v1596 = vadd.f32 %v1399, %v1553
      %v1597 = vadd.f32 %v1400, %v1555
      %v1598 = vadd.f32 %v1401, %v1558
      %v1599 = vadd.f32 %v1402, %v1560
      %v1600 = vadd.f32 %v1403, %v1563
      %v1601 = vadd.f32 %v1404, %v1565
      %v1602 = vadd.f32 %v1405, %v1568
      %v1603 = vadd.f32 %v1406, %v1570
      %v1604 = vrot.slane %v399, 2
      %v1605 = vrot.slane %v400, 2
      %v1606 = vsel %vm905, %v1604, %v1605
      %v1607 = vrot.slane %v401, 2
      %v1608 = vsel %vm905, %v1605, %v1607
      %v1611 = vpack.c.bf16 %v1608, %v1606
      %s1612 = scalar_lea.vmem %s1, 320
      %v1613 = vld [vmem:[%s1612] sm:$0xf]
      %v1614 = vld [vmem:[%s1612 + $0x4] sm:$0xf]
      %v1615 = vld [vmem:[%s1612 + $0x8] sm:$0xf]
      %v1616 = vld [vmem:[%s1612 + $0xc] sm:$0xf]
      %v1617 = vld [vmem:[%s1612 + $0x10] sm:$0xf]
      %v1618 = vld [vmem:[%s1612 + $0x14] sm:$0xf]
      %v1619 = vld [vmem:[%s1612 + $0x18] sm:$0xf]
      %v1620 = vld [vmem:[%s1612 + $0x1c] sm:$0xf]
      %v1621 = vld [vmem:[%s1612 + $0x20] sm:$0xf]
      %v1622 = vld [vmem:[%s1612 + $0x24] sm:$0xf]
      %v1623 = vld [vmem:[%s1612 + $0x28] sm:$0xf]
      %v1624 = vld [vmem:[%s1612 + $0x2c] sm:$0xf]
      %v1625 = vld [vmem:[%s1612 + $0x30] sm:$0xf]
      %v1626 = vld [vmem:[%s1612 + $0x34] sm:$0xf]
      %v1627 = vld [vmem:[%s1612 + $0x38] sm:$0xf]
      %v1628 = vld [vmem:[%s1612 + $0x3c] sm:$0xf]
      %v1645 = vunpack.c.l.b16 %v1613
      %v1646 = vunpack.c.l.b16 %v1614
      %v1647 = vunpack.c.l.b16 %v1615
      %v1648 = vunpack.c.l.b16 %v1616
      %v1649 = vunpack.c.l.b16 %v1617
      %v1650 = vunpack.c.l.b16 %v1618
      %v1651 = vunpack.c.l.b16 %v1619
      %v1652 = vunpack.c.l.b16 %v1620
      %v1653 = vunpack.c.l.b16 %v1621
      %v1654 = vunpack.c.l.b16 %v1622
      %v1655 = vunpack.c.l.b16 %v1623
      %v1656 = vunpack.c.l.b16 %v1624
      %v1657 = vunpack.c.l.b16 %v1625
      %v1658 = vunpack.c.l.b16 %v1626
      %v1659 = vunpack.c.l.b16 %v1627
      %v1660 = vunpack.c.l.b16 %v1628
      %v1661 = vpack.c.b16 %v1646, %v1645
      %v1662 = vpack.c.b16 %v1648, %v1647
      %v1663 = vpack.c.b16 %v1650, %v1649
      %v1664 = vpack.c.b16 %v1652, %v1651
      %v1665 = vpack.c.b16 %v1654, %v1653
      %v1666 = vpack.c.b16 %v1656, %v1655
      %v1667 = vpack.c.b16 %v1658, %v1657
      %v1668 = vpack.c.b16 %v1660, %v1659
      %1677 = vmatpush.bf16.msra.mxu0 %v1668
      %1678 = vmatpush.bf16.msra.mxu0 %v1667
      %1679 = vmatpush.bf16.msra.mxu0 %v1666
      %1680 = vmatpush.bf16.msra.mxu0 %v1665
      %1681 = vmatpush.bf16.msra.mxu0 %v1664
      %1682 = vmatpush.bf16.msra.mxu0 %v1663
      %1683 = vmatpush.bf16.msra.mxu0 %v1662
      %1684 = vmatpush.bf16.msra.mxu0 %v1661
      %1685 = vmatmul.bf16.gmra.mxu0 %v1019
      %v1686 = vpop.f32.mrf.mxu0
      %v1687 = vadd.f32 0.0, %v1686
      %v1688 = vpop.f32.mrf.mxu0
      %v1689 = vadd.f32 0.0, %v1688
      %1690 = vmatmul.bf16.gmra.mxu0 %v1020
      %v1691 = vpop.f32.mrf.mxu0
      %v1692 = vadd.f32 0.0, %v1691
      %v1693 = vpop.f32.mrf.mxu0
      %v1694 = vadd.f32 0.0, %v1693
      %1695 = vmatmul.bf16.gmra.mxu0 %v1021
      %v1696 = vpop.f32.mrf.mxu0
      %v1697 = vadd.f32 0.0, %v1696
      %v1698 = vpop.f32.mrf.mxu0
      %v1699 = vadd.f32 0.0, %v1698
      %1700 = vmatmul.bf16.gmra.mxu0 %v1022
      %v1701 = vpop.f32.mrf.mxu0
      %v1702 = vadd.f32 0.0, %v1701
      %v1703 = vpop.f32.mrf.mxu0
      %v1704 = vadd.f32 0.0, %v1703
      %1705 = vmatmul.bf16.gmra.mxu0 %v1023
      %v1706 = vpop.f32.mrf.mxu0
      %v1707 = vadd.f32 0.0, %v1706
      %v1708 = vpop.f32.mrf.mxu0
      %v1709 = vadd.f32 0.0, %v1708
      %1710 = vmatmul.bf16.gmra.mxu0 %v1024
      %v1711 = vpop.f32.mrf.mxu0
      %v1712 = vadd.f32 0.0, %v1711
      %v1713 = vpop.f32.mrf.mxu0
      %v1714 = vadd.f32 0.0, %v1713
      %1715 = vmatmul.bf16.gmra.mxu0 %v1025
      %v1716 = vpop.f32.mrf.mxu0
      %v1717 = vadd.f32 0.0, %v1716
      %v1718 = vpop.f32.mrf.mxu0
      %v1719 = vadd.f32 0.0, %v1718
      %1720 = vmatmul.bf16.gmra.mxu0 %v1026
      %v1721 = vpop.f32.mrf.mxu0
      %v1722 = vadd.f32 0.0, %v1721
      %v1723 = vpop.f32.mrf.mxu0
      %v1724 = vadd.f32 0.0, %v1723
      %1725 = vmatmul.bf16.gmra.mxu0 %v1027
      %v1726 = vpop.f32.mrf.mxu0
      %v1727 = vadd.f32 0.0, %v1726
      %v1728 = vpop.f32.mrf.mxu0
      %v1729 = vadd.f32 0.0, %v1728
      %1730 = vmatmul.bf16.gmra.mxu0 %v1028
      %v1731 = vpop.f32.mrf.mxu0
      %v1732 = vadd.f32 0.0, %v1731
      %v1733 = vpop.f32.mrf.mxu0
      %v1734 = vadd.f32 0.0, %v1733
      %1735 = vmatmul.bf16.gmra.mxu0 %v1029
      %v1736 = vpop.f32.mrf.mxu0
      %v1737 = vadd.f32 0.0, %v1736
      %v1738 = vpop.f32.mrf.mxu0
      %v1739 = vadd.f32 0.0, %v1738
      %1740 = vmatmul.bf16.gmra.mxu0 %v1030
      %v1741 = vpop.f32.mrf.mxu0
      %v1742 = vadd.f32 0.0, %v1741
      %v1743 = vpop.f32.mrf.mxu0
      %v1744 = vadd.f32 0.0, %v1743
      %1745 = vmatmul.bf16.gmra.mxu0 %v1031
      %v1746 = vpop.f32.mrf.mxu0
      %v1747 = vadd.f32 0.0, %v1746
      %v1748 = vpop.f32.mrf.mxu0
      %v1749 = vadd.f32 0.0, %v1748
      %1750 = vmatmul.bf16.gmra.mxu0 %v1032
      %v1751 = vpop.f32.mrf.mxu0
      %v1752 = vadd.f32 0.0, %v1751
      %v1753 = vpop.f32.mrf.mxu0
      %v1754 = vadd.f32 0.0, %v1753
      %1755 = vmatmul.bf16.gmra.mxu0 %v1033
      %v1756 = vpop.f32.mrf.mxu0
      %v1757 = vadd.f32 0.0, %v1756
      %v1758 = vpop.f32.mrf.mxu0
      %v1759 = vadd.f32 0.0, %v1758
      %1760 = vmatmul.bf16.gmra.mxu0 %v1611
      %v1761 = vpop.f32.mrf.mxu0
      %v1762 = vadd.f32 0.0, %v1761
      %v1763 = vpop.f32.mrf.mxu0
      %v1764 = vadd.f32 0.0, %v1763
      %1765 = vdwg.mxu0
      %v1766 = vadd.f32 %v1572, %v1687
      %v1767 = vadd.f32 %v1573, %v1689
      %v1768 = vadd.f32 %v1574, %v1692
      %v1769 = vadd.f32 %v1575, %v1694
      %v1770 = vadd.f32 %v1576, %v1697
      %v1771 = vadd.f32 %v1577, %v1699
      %v1772 = vadd.f32 %v1578, %v1702
      %v1773 = vadd.f32 %v1579, %v1704
      %v1774 = vadd.f32 %v1580, %v1707
      %v1775 = vadd.f32 %v1581, %v1709
      %v1776 = vadd.f32 %v1582, %v1712
      %v1777 = vadd.f32 %v1583, %v1714
      %v1778 = vadd.f32 %v1584, %v1717
      %v1779 = vadd.f32 %v1585, %v1719
      %v1780 = vadd.f32 %v1586, %v1722
      %v1781 = vadd.f32 %v1587, %v1724
      %v1782 = vadd.f32 %v1588, %v1727
      %v1783 = vadd.f32 %v1589, %v1729
      %v1784 = vadd.f32 %v1590, %v1732
      %v1785 = vadd.f32 %v1591, %v1734
      %v1786 = vadd.f32 %v1592, %v1737
      %v1787 = vadd.f32 %v1593, %v1739
      %v1788 = vadd.f32 %v1594, %v1742
      %v1789 = vadd.f32 %v1595, %v1744
      %v1790 = vadd.f32 %v1596, %v1747
      %v1791 = vadd.f32 %v1597, %v1749
      %v1792 = vadd.f32 %v1598, %v1752
      %v1793 = vadd.f32 %v1599, %v1754
      %v1794 = vadd.f32 %v1600, %v1757
      %v1795 = vadd.f32 %v1601, %v1759
      %v1796 = vadd.f32 %v1602, %v1762
      %v1797 = vadd.f32 %v1603, %v1764
      %v1798 = vpack.c.bf16 %v403, %v402
      %s1799 = scalar_lea.vmem %s1, 384
      %v1800 = vld [vmem:[%s1799] sm:$0xf]
      %v1801 = vld [vmem:[%s1799 + $0x4] sm:$0xf]
      %v1802 = vld [vmem:[%s1799 + $0x8] sm:$0xf]
      %v1803 = vld [vmem:[%s1799 + $0xc] sm:$0xf]
      %v1804 = vld [vmem:[%s1799 + $0x10] sm:$0xf]
      %v1805 = vld [vmem:[%s1799 + $0x14] sm:$0xf]
      %v1806 = vld [vmem:[%s1799 + $0x18] sm:$0xf]
      %v1807 = vld [vmem:[%s1799 + $0x1c] sm:$0xf]
      %v1808 = vld [vmem:[%s1799 + $0x20] sm:$0xf]
      %v1809 = vld [vmem:[%s1799 + $0x24] sm:$0xf]
      %v1810 = vld [vmem:[%s1799 + $0x28] sm:$0xf]
      %v1811 = vld [vmem:[%s1799 + $0x2c] sm:$0xf]
      %v1812 = vld [vmem:[%s1799 + $0x30] sm:$0xf]
      %v1813 = vld [vmem:[%s1799 + $0x34] sm:$0xf]
      %v1814 = vld [vmem:[%s1799 + $0x38] sm:$0xf]
      %v1815 = vld [vmem:[%s1799 + $0x3c] sm:$0xf]
      %v1832 = vunpack.c.l.b16 %v1800
      %v1833 = vunpack.c.l.b16 %v1801
      %v1834 = vunpack.c.l.b16 %v1802
      %v1835 = vunpack.c.l.b16 %v1803
      %v1836 = vunpack.c.l.b16 %v1804
      %v1837 = vunpack.c.l.b16 %v1805
      %v1838 = vunpack.c.l.b16 %v1806
      %v1839 = vunpack.c.l.b16 %v1807
      %v1840 = vunpack.c.l.b16 %v1808
      %v1841 = vunpack.c.l.b16 %v1809
      %v1842 = vunpack.c.l.b16 %v1810
      %v1843 = vunpack.c.l.b16 %v1811
      %v1844 = vunpack.c.l.b16 %v1812
      %v1845 = vunpack.c.l.b16 %v1813
      %v1846 = vunpack.c.l.b16 %v1814
      %v1847 = vunpack.c.l.b16 %v1815
      %v1848 = vpack.c.b16 %v1833, %v1832
      %v1849 = vpack.c.b16 %v1835, %v1834
      %v1850 = vpack.c.b16 %v1837, %v1836
      %v1851 = vpack.c.b16 %v1839, %v1838
      %v1852 = vpack.c.b16 %v1841, %v1840
      %v1853 = vpack.c.b16 %v1843, %v1842
      %v1854 = vpack.c.b16 %v1845, %v1844
      %v1855 = vpack.c.b16 %v1847, %v1846
      %1864 = vmatpush.bf16.msra.mxu0 %v1855
      %1865 = vmatpush.bf16.msra.mxu0 %v1854
      %1866 = vmatpush.bf16.msra.mxu0 %v1853
      %1867 = vmatpush.bf16.msra.mxu0 %v1852
      %1868 = vmatpush.bf16.msra.mxu0 %v1851
      %1869 = vmatpush.bf16.msra.mxu0 %v1850
      %1870 = vmatpush.bf16.msra.mxu0 %v1849
      %1871 = vmatpush.bf16.msra.mxu0 %v1848
      %1872 = vmatmul.bf16.gmra.mxu0 %v407
      %v1873 = vpop.f32.mrf.mxu0
      %v1874 = vadd.f32 0.0, %v1873
      %v1875 = vpop.f32.mrf.mxu0
      %v1876 = vadd.f32 0.0, %v1875
      %1877 = vmatmul.bf16.gmra.mxu0 %v408
      %v1878 = vpop.f32.mrf.mxu0
      %v1879 = vadd.f32 0.0, %v1878
      %v1880 = vpop.f32.mrf.mxu0
      %v1881 = vadd.f32 0.0, %v1880
      %1882 = vmatmul.bf16.gmra.mxu0 %v409
      %v1883 = vpop.f32.mrf.mxu0
      %v1884 = vadd.f32 0.0, %v1883
      %v1885 = vpop.f32.mrf.mxu0
      %v1886 = vadd.f32 0.0, %v1885
      %1887 = vmatmul.bf16.gmra.mxu0 %v410
      %v1888 = vpop.f32.mrf.mxu0
      %v1889 = vadd.f32 0.0, %v1888
      %v1890 = vpop.f32.mrf.mxu0
      %v1891 = vadd.f32 0.0, %v1890
      %1892 = vmatmul.bf16.gmra.mxu0 %v411
      %v1893 = vpop.f32.mrf.mxu0
      %v1894 = vadd.f32 0.0, %v1893
      %v1895 = vpop.f32.mrf.mxu0
      %v1896 = vadd.f32 0.0, %v1895
      %1897 = vmatmul.bf16.gmra.mxu0 %v412
      %v1898 = vpop.f32.mrf.mxu0
      %v1899 = vadd.f32 0.0, %v1898
      %v1900 = vpop.f32.mrf.mxu0
      %v1901 = vadd.f32 0.0, %v1900
      %1902 = vmatmul.bf16.gmra.mxu0 %v413
      %v1903 = vpop.f32.mrf.mxu0
      %v1904 = vadd.f32 0.0, %v1903
      %v1905 = vpop.f32.mrf.mxu0
      %v1906 = vadd.f32 0.0, %v1905
      %1907 = vmatmul.bf16.gmra.mxu0 %v414
      %v1908 = vpop.f32.mrf.mxu0
      %v1909 = vadd.f32 0.0, %v1908
      %v1910 = vpop.f32.mrf.mxu0
      %v1911 = vadd.f32 0.0, %v1910
      %1912 = vmatmul.bf16.gmra.mxu0 %v415
      %v1913 = vpop.f32.mrf.mxu0
      %v1914 = vadd.f32 0.0, %v1913
      %v1915 = vpop.f32.mrf.mxu0
      %v1916 = vadd.f32 0.0, %v1915
      %1917 = vmatmul.bf16.gmra.mxu0 %v416
      %v1918 = vpop.f32.mrf.mxu0
      %v1919 = vadd.f32 0.0, %v1918
      %v1920 = vpop.f32.mrf.mxu0
      %v1921 = vadd.f32 0.0, %v1920
      %1922 = vmatmul.bf16.gmra.mxu0 %v417
      %v1923 = vpop.f32.mrf.mxu0
      %v1924 = vadd.f32 0.0, %v1923
      %v1925 = vpop.f32.mrf.mxu0
      %v1926 = vadd.f32 0.0, %v1925
      %1927 = vmatmul.bf16.gmra.mxu0 %v418
      %v1928 = vpop.f32.mrf.mxu0
      %v1929 = vadd.f32 0.0, %v1928
      %v1930 = vpop.f32.mrf.mxu0
      %v1931 = vadd.f32 0.0, %v1930
      %1932 = vmatmul.bf16.gmra.mxu0 %v419
      %v1933 = vpop.f32.mrf.mxu0
      %v1934 = vadd.f32 0.0, %v1933
      %v1935 = vpop.f32.mrf.mxu0
      %v1936 = vadd.f32 0.0, %v1935
      %1937 = vmatmul.bf16.gmra.mxu0 %v420
      %v1938 = vpop.f32.mrf.mxu0
      %v1939 = vadd.f32 0.0, %v1938
      %v1940 = vpop.f32.mrf.mxu0
      %v1941 = vadd.f32 0.0, %v1940
      %1942 = vmatmul.bf16.gmra.mxu0 %v1220
      %v1943 = vpop.f32.mrf.mxu0
      %v1944 = vadd.f32 0.0, %v1943
      %v1945 = vpop.f32.mrf.mxu0
      %v1946 = vadd.f32 0.0, %v1945
      %1947 = vmatmul.bf16.gmra.mxu0 %v1798
      %v1948 = vpop.f32.mrf.mxu0
      %v1949 = vadd.f32 0.0, %v1948
      %v1950 = vpop.f32.mrf.mxu0
      %v1951 = vadd.f32 0.0, %v1950
      %1952 = vdwg.mxu0
      %v1953 = vadd.f32 %v1766, %v1874
      %v1954 = vadd.f32 %v1767, %v1876
      %v1955 = vadd.f32 %v1768, %v1879
      %v1956 = vadd.f32 %v1769, %v1881
      %v1957 = vadd.f32 %v1770, %v1884
      %v1958 = vadd.f32 %v1771, %v1886
      %v1959 = vadd.f32 %v1772, %v1889
      %v1960 = vadd.f32 %v1773, %v1891
      %v1961 = vadd.f32 %v1774, %v1894
      %v1962 = vadd.f32 %v1775, %v1896
      %v1963 = vadd.f32 %v1776, %v1899
      %v1964 = vadd.f32 %v1777, %v1901
      %v1965 = vadd.f32 %v1778, %v1904
      %v1966 = vadd.f32 %v1779, %v1906
      %v1967 = vadd.f32 %v1780, %v1909
      %v1968 = vadd.f32 %v1781, %v1911
      %v1969 = vadd.f32 %v1782, %v1914
      %v1970 = vadd.f32 %v1783, %v1916
      %v1971 = vadd.f32 %v1784, %v1919
      %v1972 = vadd.f32 %v1785, %v1921
      %v1973 = vadd.f32 %v1786, %v1924
      %v1974 = vadd.f32 %v1787, %v1926
      %v1975 = vadd.f32 %v1788, %v1929
      %v1976 = vadd.f32 %v1789, %v1931
      %v1977 = vadd.f32 %v1790, %v1934
      %v1978 = vadd.f32 %v1791, %v1936
      %v1979 = vadd.f32 %v1792, %v1939
      %v1980 = vadd.f32 %v1793, %v1941
      %v1981 = vadd.f32 %v1794, %v1944
      %v1982 = vadd.f32 %v1795, %v1946
      %v1983 = vadd.f32 %v1796, %v1949
      %v1984 = vadd.f32 %v1797, %v1951
      %v1988 = vrot.slane %v402, 1
      %v1989 = vrot.slane %v403, 1
      %v1990 = vsel %vm485, %v1988, %v1989
      %v1991 = vrot.slane %v404, 1
      %v1992 = vsel %vm485, %v1989, %v1991
      %v1995 = vpack.c.bf16 %v1992, %v1990
      %s1996 = scalar_lea.vmem %s1, 448
      %v1997 = vld [vmem:[%s1996] sm:$0xf]
      %v1998 = vld [vmem:[%s1996 + $0x4] sm:$0xf]
      %v1999 = vld [vmem:[%s1996 + $0x8] sm:$0xf]
      %v2000 = vld [vmem:[%s1996 + $0xc] sm:$0xf]
      %v2001 = vld [vmem:[%s1996 + $0x10] sm:$0xf]
      %v2002 = vld [vmem:[%s1996 + $0x14] sm:$0xf]
      %v2003 = vld [vmem:[%s1996 + $0x18] sm:$0xf]
      %v2004 = vld [vmem:[%s1996 + $0x1c] sm:$0xf]
      %v2005 = vld [vmem:[%s1996 + $0x20] sm:$0xf]
      %v2006 = vld [vmem:[%s1996 + $0x24] sm:$0xf]
      %v2007 = vld [vmem:[%s1996 + $0x28] sm:$0xf]
      %v2008 = vld [vmem:[%s1996 + $0x2c] sm:$0xf]
      %v2009 = vld [vmem:[%s1996 + $0x30] sm:$0xf]
      %v2010 = vld [vmem:[%s1996 + $0x34] sm:$0xf]
      %v2011 = vld [vmem:[%s1996 + $0x38] sm:$0xf]
      %v2012 = vld [vmem:[%s1996 + $0x3c] sm:$0xf]
      %v2029 = vunpack.c.l.b16 %v1997
      %v2030 = vunpack.c.l.b16 %v1998
      %v2031 = vunpack.c.l.b16 %v1999
      %v2032 = vunpack.c.l.b16 %v2000
      %v2033 = vunpack.c.l.b16 %v2001
      %v2034 = vunpack.c.l.b16 %v2002
      %v2035 = vunpack.c.l.b16 %v2003
      %v2036 = vunpack.c.l.b16 %v2004
      %v2037 = vunpack.c.l.b16 %v2005
      %v2038 = vunpack.c.l.b16 %v2006
      %v2039 = vunpack.c.l.b16 %v2007
      %v2040 = vunpack.c.l.b16 %v2008
      %v2041 = vunpack.c.l.b16 %v2009
      %v2042 = vunpack.c.l.b16 %v2010
      %v2043 = vunpack.c.l.b16 %v2011
      %v2044 = vunpack.c.l.b16 %v2012
      %v2045 = vpack.c.b16 %v2030, %v2029
      %v2046 = vpack.c.b16 %v2032, %v2031
      %v2047 = vpack.c.b16 %v2034, %v2033
      %v2048 = vpack.c.b16 %v2036, %v2035
      %v2049 = vpack.c.b16 %v2038, %v2037
      %v2050 = vpack.c.b16 %v2040, %v2039
      %v2051 = vpack.c.b16 %v2042, %v2041
      %v2052 = vpack.c.b16 %v2044, %v2043
      %2061 = vmatpush.bf16.msra.mxu0 %v2052
      %2062 = vmatpush.bf16.msra.mxu0 %v2051
      %2063 = vmatpush.bf16.msra.mxu0 %v2050
      %2064 = vmatpush.bf16.msra.mxu0 %v2049
      %2065 = vmatpush.bf16.msra.mxu0 %v2048
      %2066 = vmatpush.bf16.msra.mxu0 %v2047
      %2067 = vmatpush.bf16.msra.mxu0 %v2046
      %2068 = vmatpush.bf16.msra.mxu0 %v2045
      %2069 = vmatmul.bf16.gmra.mxu0 %v600
      %v2070 = vpop.f32.mrf.mxu0
      %v2071 = vadd.f32 0.0, %v2070
      %v2072 = vpop.f32.mrf.mxu0
      %v2073 = vadd.f32 0.0, %v2072
      %2074 = vmatmul.bf16.gmra.mxu0 %v601
      %v2075 = vpop.f32.mrf.mxu0
      %v2076 = vadd.f32 0.0, %v2075
      %v2077 = vpop.f32.mrf.mxu0
      %v2078 = vadd.f32 0.0, %v2077
      %2079 = vmatmul.bf16.gmra.mxu0 %v602
      %v2080 = vpop.f32.mrf.mxu0
      %v2081 = vadd.f32 0.0, %v2080
      %v2082 = vpop.f32.mrf.mxu0
      %v2083 = vadd.f32 0.0, %v2082
      %2084 = vmatmul.bf16.gmra.mxu0 %v603
      %v2085 = vpop.f32.mrf.mxu0
      %v2086 = vadd.f32 0.0, %v2085
      %v2087 = vpop.f32.mrf.mxu0
      %v2088 = vadd.f32 0.0, %v2087
      %2089 = vmatmul.bf16.gmra.mxu0 %v604
      %v2090 = vpop.f32.mrf.mxu0
      %v2091 = vadd.f32 0.0, %v2090
      %v2092 = vpop.f32.mrf.mxu0
      %v2093 = vadd.f32 0.0, %v2092
      %2094 = vmatmul.bf16.gmra.mxu0 %v605
      %v2095 = vpop.f32.mrf.mxu0
      %v2096 = vadd.f32 0.0, %v2095
      %v2097 = vpop.f32.mrf.mxu0
      %v2098 = vadd.f32 0.0, %v2097
      %2099 = vmatmul.bf16.gmra.mxu0 %v606
      %v2100 = vpop.f32.mrf.mxu0
      %v2101 = vadd.f32 0.0, %v2100
      %v2102 = vpop.f32.mrf.mxu0
      %v2103 = vadd.f32 0.0, %v2102
      %2104 = vmatmul.bf16.gmra.mxu0 %v607
      %v2105 = vpop.f32.mrf.mxu0
      %v2106 = vadd.f32 0.0, %v2105
      %v2107 = vpop.f32.mrf.mxu0
      %v2108 = vadd.f32 0.0, %v2107
      %2109 = vmatmul.bf16.gmra.mxu0 %v608
      %v2110 = vpop.f32.mrf.mxu0
      %v2111 = vadd.f32 0.0, %v2110
      %v2112 = vpop.f32.mrf.mxu0
      %v2113 = vadd.f32 0.0, %v2112
      %2114 = vmatmul.bf16.gmra.mxu0 %v609
      %v2115 = vpop.f32.mrf.mxu0
      %v2116 = vadd.f32 0.0, %v2115
      %v2117 = vpop.f32.mrf.mxu0
      %v2118 = vadd.f32 0.0, %v2117
      %2119 = vmatmul.bf16.gmra.mxu0 %v610
      %v2120 = vpop.f32.mrf.mxu0
      %v2121 = vadd.f32 0.0, %v2120
      %v2122 = vpop.f32.mrf.mxu0
      %v2123 = vadd.f32 0.0, %v2122
      %2124 = vmatmul.bf16.gmra.mxu0 %v611
      %v2125 = vpop.f32.mrf.mxu0
      %v2126 = vadd.f32 0.0, %v2125
      %v2127 = vpop.f32.mrf.mxu0
      %v2128 = vadd.f32 0.0, %v2127
      %2129 = vmatmul.bf16.gmra.mxu0 %v612
      %v2130 = vpop.f32.mrf.mxu0
      %v2131 = vadd.f32 0.0, %v2130
      %v2132 = vpop.f32.mrf.mxu0
      %v2133 = vadd.f32 0.0, %v2132
      %2134 = vmatmul.bf16.gmra.mxu0 %v613
      %v2135 = vpop.f32.mrf.mxu0
      %v2136 = vadd.f32 0.0, %v2135
      %v2137 = vpop.f32.mrf.mxu0
      %v2138 = vadd.f32 0.0, %v2137
      %2139 = vmatmul.bf16.gmra.mxu0 %v1417
      %v2140 = vpop.f32.mrf.mxu0
      %v2141 = vadd.f32 0.0, %v2140
      %v2142 = vpop.f32.mrf.mxu0
      %v2143 = vadd.f32 0.0, %v2142
      %2144 = vmatmul.bf16.gmra.mxu0 %v1995
      %v2145 = vpop.f32.mrf.mxu0
      %v2146 = vadd.f32 0.0, %v2145
      %v2147 = vpop.f32.mrf.mxu0
      %v2148 = vadd.f32 0.0, %v2147
      %2149 = vdwg.mxu0
      %v2150 = vadd.f32 %v1953, %v2071
      %v2151 = vadd.f32 %v1954, %v2073
      %v2152 = vadd.f32 %v1955, %v2076
      %v2153 = vadd.f32 %v1956, %v2078
      %v2154 = vadd.f32 %v1957, %v2081
      %v2155 = vadd.f32 %v1958, %v2083
      %v2156 = vadd.f32 %v1959, %v2086
      %v2157 = vadd.f32 %v1960, %v2088
      %v2158 = vadd.f32 %v1961, %v2091
      %v2159 = vadd.f32 %v1962, %v2093
      %v2160 = vadd.f32 %v1963, %v2096
      %v2161 = vadd.f32 %v1964, %v2098
      %v2162 = vadd.f32 %v1965, %v2101
      %v2163 = vadd.f32 %v1966, %v2103
      %v2164 = vadd.f32 %v1967, %v2106
      %v2165 = vadd.f32 %v1968, %v2108
      %v2166 = vadd.f32 %v1969, %v2111
      %v2167 = vadd.f32 %v1970, %v2113
      %v2168 = vadd.f32 %v1971, %v2116
      %v2169 = vadd.f32 %v1972, %v2118
      %v2170 = vadd.f32 %v1973, %v2121
      %v2171 = vadd.f32 %v1974, %v2123
      %v2172 = vadd.f32 %v1975, %v2126
      %v2173 = vadd.f32 %v1976, %v2128
      %v2174 = vadd.f32 %v1977, %v2131
      %v2175 = vadd.f32 %v1978, %v2133
      %v2176 = vadd.f32 %v1979, %v2136
      %v2177 = vadd.f32 %v1980, %v2138
      %v2178 = vadd.f32 %v1981, %v2141
      %v2179 = vadd.f32 %v1982, %v2143
      %v2180 = vadd.f32 %v1983, %v2146
      %v2181 = vadd.f32 %v1984, %v2148
      %v2182 = vrot.slane %v402, 2
      %v2183 = vrot.slane %v403, 2
      %v2184 = vsel %vm905, %v2182, %v2183
      %v2185 = vrot.slane %v404, 2
      %v2186 = vsel %vm905, %v2183, %v2185
      %v2189 = vpack.c.bf16 %v2186, %v2184
      %s2190 = scalar_lea.vmem %s1, 512
      %v2191 = vld [vmem:[%s2190] sm:$0xf]
      %v2192 = vld [vmem:[%s2190 + $0x4] sm:$0xf]
      %v2193 = vld [vmem:[%s2190 + $0x8] sm:$0xf]
      %v2194 = vld [vmem:[%s2190 + $0xc] sm:$0xf]
      %v2195 = vld [vmem:[%s2190 + $0x10] sm:$0xf]
      %v2196 = vld [vmem:[%s2190 + $0x14] sm:$0xf]
      %v2197 = vld [vmem:[%s2190 + $0x18] sm:$0xf]
      %v2198 = vld [vmem:[%s2190 + $0x1c] sm:$0xf]
      %v2199 = vld [vmem:[%s2190 + $0x20] sm:$0xf]
      %v2200 = vld [vmem:[%s2190 + $0x24] sm:$0xf]
      %v2201 = vld [vmem:[%s2190 + $0x28] sm:$0xf]
      %v2202 = vld [vmem:[%s2190 + $0x2c] sm:$0xf]
      %v2203 = vld [vmem:[%s2190 + $0x30] sm:$0xf]
      %v2204 = vld [vmem:[%s2190 + $0x34] sm:$0xf]
      %v2205 = vld [vmem:[%s2190 + $0x38] sm:$0xf]
      %v2206 = vld [vmem:[%s2190 + $0x3c] sm:$0xf]
      %v2223 = vunpack.c.l.b16 %v2191
      %v2224 = vunpack.c.l.b16 %v2192
      %v2225 = vunpack.c.l.b16 %v2193
      %v2226 = vunpack.c.l.b16 %v2194
      %v2227 = vunpack.c.l.b16 %v2195
      %v2228 = vunpack.c.l.b16 %v2196
      %v2229 = vunpack.c.l.b16 %v2197
      %v2230 = vunpack.c.l.b16 %v2198
      %v2231 = vunpack.c.l.b16 %v2199
      %v2232 = vunpack.c.l.b16 %v2200
      %v2233 = vunpack.c.l.b16 %v2201
      %v2234 = vunpack.c.l.b16 %v2202
      %v2235 = vunpack.c.l.b16 %v2203
      %v2236 = vunpack.c.l.b16 %v2204
      %v2237 = vunpack.c.l.b16 %v2205
      %v2238 = vunpack.c.l.b16 %v2206
      %v2239 = vpack.c.b16 %v2224, %v2223
      %v2240 = vpack.c.b16 %v2226, %v2225
      %v2241 = vpack.c.b16 %v2228, %v2227
      %v2242 = vpack.c.b16 %v2230, %v2229
      %v2243 = vpack.c.b16 %v2232, %v2231
      %v2244 = vpack.c.b16 %v2234, %v2233
      %v2245 = vpack.c.b16 %v2236, %v2235
      %v2246 = vpack.c.b16 %v2238, %v2237
      %2255 = vmatpush.bf16.msra.mxu0 %v2246
      %2256 = vmatpush.bf16.msra.mxu0 %v2245
      %2257 = vmatpush.bf16.msra.mxu0 %v2244
      %2258 = vmatpush.bf16.msra.mxu0 %v2243
      %2259 = vmatpush.bf16.msra.mxu0 %v2242
      %2260 = vmatpush.bf16.msra.mxu0 %v2241
      %2261 = vmatpush.bf16.msra.mxu0 %v2240
      %2262 = vmatpush.bf16.msra.mxu0 %v2239
      %2263 = vmatmul.bf16.gmra.mxu0 %v1020
      %v2264 = vpop.f32.mrf.mxu0
      %v2265 = vadd.f32 0.0, %v2264
      %v2266 = vpop.f32.mrf.mxu0
      %v2267 = vadd.f32 0.0, %v2266
      %2268 = vmatmul.bf16.gmra.mxu0 %v1021
      %v2269 = vpop.f32.mrf.mxu0
      %v2270 = vadd.f32 0.0, %v2269
      %v2271 = vpop.f32.mrf.mxu0
      %v2272 = vadd.f32 0.0, %v2271
      %2273 = vmatmul.bf16.gmra.mxu0 %v1022
      %v2274 = vpop.f32.mrf.mxu0
      %v2275 = vadd.f32 0.0, %v2274
      %v2276 = vpop.f32.mrf.mxu0
      %v2277 = vadd.f32 0.0, %v2276
      %2278 = vmatmul.bf16.gmra.mxu0 %v1023
      %v2279 = vpop.f32.mrf.mxu0
      %v2280 = vadd.f32 0.0, %v2279
      %v2281 = vpop.f32.mrf.mxu0
      %v2282 = vadd.f32 0.0, %v2281
      %2283 = vmatmul.bf16.gmra.mxu0 %v1024
      %v2284 = vpop.f32.mrf.mxu0
      %v2285 = vadd.f32 0.0, %v2284
      %v2286 = vpop.f32.mrf.mxu0
      %v2287 = vadd.f32 0.0, %v2286
      %2288 = vmatmul.bf16.gmra.mxu0 %v1025
      %v2289 = vpop.f32.mrf.mxu0
      %v2290 = vadd.f32 0.0, %v2289
      %v2291 = vpop.f32.mrf.mxu0
      %v2292 = vadd.f32 0.0, %v2291
      %2293 = vmatmul.bf16.gmra.mxu0 %v1026
      %v2294 = vpop.f32.mrf.mxu0
      %v2295 = vadd.f32 0.0, %v2294
      %v2296 = vpop.f32.mrf.mxu0
      %v2297 = vadd.f32 0.0, %v2296
      %2298 = vmatmul.bf16.gmra.mxu0 %v1027
      %v2299 = vpop.f32.mrf.mxu0
      %v2300 = vadd.f32 0.0, %v2299
      %v2301 = vpop.f32.mrf.mxu0
      %v2302 = vadd.f32 0.0, %v2301
      %2303 = vmatmul.bf16.gmra.mxu0 %v1028
      %v2304 = vpop.f32.mrf.mxu0
      %v2305 = vadd.f32 0.0, %v2304
      %v2306 = vpop.f32.mrf.mxu0
      %v2307 = vadd.f32 0.0, %v2306
      %2308 = vmatmul.bf16.gmra.mxu0 %v1029
      %v2309 = vpop.f32.mrf.mxu0
      %v2310 = vadd.f32 0.0, %v2309
      %v2311 = vpop.f32.mrf.mxu0
      %v2312 = vadd.f32 0.0, %v2311
      %2313 = vmatmul.bf16.gmra.mxu0 %v1030
      %v2314 = vpop.f32.mrf.mxu0
      %v2315 = vadd.f32 0.0, %v2314
      %v2316 = vpop.f32.mrf.mxu0
      %v2317 = vadd.f32 0.0, %v2316
      %2318 = vmatmul.bf16.gmra.mxu0 %v1031
      %v2319 = vpop.f32.mrf.mxu0
      %v2320 = vadd.f32 0.0, %v2319
      %v2321 = vpop.f32.mrf.mxu0
      %v2322 = vadd.f32 0.0, %v2321
      %2323 = vmatmul.bf16.gmra.mxu0 %v1032
      %v2324 = vpop.f32.mrf.mxu0
      %v2325 = vadd.f32 0.0, %v2324
      %v2326 = vpop.f32.mrf.mxu0
      %v2327 = vadd.f32 0.0, %v2326
      %2328 = vmatmul.bf16.gmra.mxu0 %v1033
      %v2329 = vpop.f32.mrf.mxu0
      %v2330 = vadd.f32 0.0, %v2329
      %v2331 = vpop.f32.mrf.mxu0
      %v2332 = vadd.f32 0.0, %v2331
      %2333 = vmatmul.bf16.gmra.mxu0 %v1611
      %v2334 = vpop.f32.mrf.mxu0
      %v2335 = vadd.f32 0.0, %v2334
      %v2336 = vpop.f32.mrf.mxu0
      %v2337 = vadd.f32 0.0, %v2336
      %2338 = vmatmul.bf16.gmra.mxu0 %v2189
      %v2339 = vpop.f32.mrf.mxu0
      %v2340 = vadd.f32 0.0, %v2339
      %v2341 = vpop.f32.mrf.mxu0
      %v2342 = vadd.f32 0.0, %v2341
      %2343 = vdwg.mxu0
      %v2344 = vadd.f32 %v2150, %v2265
      %v2345 = vadd.f32 %v2151, %v2267
      %v2346 = vadd.f32 %v2152, %v2270
      %v2347 = vadd.f32 %v2153, %v2272
      %v2348 = vadd.f32 %v2154, %v2275
      %v2349 = vadd.f32 %v2155, %v2277
      %v2350 = vadd.f32 %v2156, %v2280
      %v2351 = vadd.f32 %v2157, %v2282
      %v2352 = vadd.f32 %v2158, %v2285
      %v2353 = vadd.f32 %v2159, %v2287
      %v2354 = vadd.f32 %v2160, %v2290
      %v2355 = vadd.f32 %v2161, %v2292
      %v2356 = vadd.f32 %v2162, %v2295
      %v2357 = vadd.f32 %v2163, %v2297
      %v2358 = vadd.f32 %v2164, %v2300
      %v2359 = vadd.f32 %v2165, %v2302
      %v2360 = vadd.f32 %v2166, %v2305
      %v2361 = vadd.f32 %v2167, %v2307
      %v2362 = vadd.f32 %v2168, %v2310
      %v2363 = vadd.f32 %v2169, %v2312
      %v2364 = vadd.f32 %v2170, %v2315
      %v2365 = vadd.f32 %v2171, %v2317
      %v2366 = vadd.f32 %v2172, %v2320
      %v2367 = vadd.f32 %v2173, %v2322
      %v2368 = vadd.f32 %v2174, %v2325
      %v2369 = vadd.f32 %v2175, %v2327
      %v2370 = vadd.f32 %v2176, %v2330
      %v2371 = vadd.f32 %v2177, %v2332
      %v2372 = vadd.f32 %v2178, %v2335
      %v2373 = vadd.f32 %v2179, %v2337
      %v2374 = vadd.f32 %v2180, %v2340
      %v2375 = vadd.f32 %v2181, %v2342
      %2376 = vst [vmem:[%s333] sm:$0xff] %v2344
      %2377 = vst [vmem:[%s333 + $0x8] sm:$0xff] %v2345
      %2378 = vst [vmem:[%s333 + $0x10] sm:$0xff] %v2346
      %2379 = vst [vmem:[%s333 + $0x18] sm:$0xff] %v2347
      %2380 = vst [vmem:[%s333 + $0x20] sm:$0xff] %v2348
      %2381 = vst [vmem:[%s333 + $0x28] sm:$0xff] %v2349
      %2382 = vst [vmem:[%s333 + $0x30] sm:$0xff] %v2350
      %2383 = vst [vmem:[%s333 + $0x38] sm:$0xff] %v2351
      %2384 = vst [vmem:[%s333 + $0x40] sm:$0xff] %v2352
      %2385 = vst [vmem:[%s333 + $0x48] sm:$0xff] %v2353
      %2386 = vst [vmem:[%s333 + $0x50] sm:$0xff] %v2354
      %2387 = vst [vmem:[%s333 + $0x58] sm:$0xff] %v2355
      %2388 = vst [vmem:[%s333 + $0x60] sm:$0xff] %v2356
      %2389 = vst [vmem:[%s333 + $0x68] sm:$0xff] %v2357
      %2390 = vst [vmem:[%s333 + $0x70] sm:$0xff] %v2358
      %2391 = vst [vmem:[%s333 + $0x78] sm:$0xff] %v2359
      %2392 = vst [vmem:[%s333 + $0x80] sm:$0xff] %v2360
      %2393 = vst [vmem:[%s333 + $0x88] sm:$0xff] %v2361
      %2394 = vst [vmem:[%s333 + $0x90] sm:$0xff] %v2362
      %2395 = vst [vmem:[%s333 + $0x98] sm:$0xff] %v2363
      %2396 = vst [vmem:[%s333 + $0xa0] sm:$0xff] %v2364
      %2397 = vst [vmem:[%s333 + $0xa8] sm:$0xff] %v2365
      %2398 = vst [vmem:[%s333 + $0xb0] sm:$0xff] %v2366
      %2399 = vst [vmem:[%s333 + $0xb8] sm:$0xff] %v2367
      %2400 = vst [vmem:[%s333 + $0xc0] sm:$0xff] %v2368
      %2401 = vst [vmem:[%s333 + $0xc8] sm:$0xff] %v2369
      %2402 = vst [vmem:[%s333 + $0xd0] sm:$0xff] %v2370
      %2403 = vst [vmem:[%s333 + $0xd8] sm:$0xff] %v2371
      %2404 = vst [vmem:[%s333 + $0xe0] sm:$0xff] %v2372
      %2405 = vst [vmem:[%s333 + $0xe8] sm:$0xff] %v2373
      %2406 = vst [vmem:[%s333 + $0xf0] sm:$0xff] %v2374
      %2407 = vst [vmem:[%s333 + $0xf8] sm:$0xff] %v2375
      %v2408 = vadd.f32 %v2344, %v2345
      %v2409 = vadd.f32 %v2408, %v2346
      %v2410 = vadd.f32 %v2409, %v2347
      %v2411 = vadd.f32 %v2410, %v2348
      %v2412 = vadd.f32 %v2411, %v2349
      %v2413 = vadd.f32 %v2412, %v2350
      %v2414 = vadd.f32 %v2413, %v2351
      %v2415 = vadd.f32 %v2414, %v2352
      %v2416 = vadd.f32 %v2415, %v2353
      %v2417 = vadd.f32 %v2416, %v2354
      %v2418 = vadd.f32 %v2417, %v2355
      %v2419 = vadd.f32 %v2418, %v2356
      %v2420 = vadd.f32 %v2419, %v2357
      %v2421 = vadd.f32 %v2420, %v2358
      %v2422 = vadd.f32 %v2421, %v2359
      %v2423 = vadd.f32 %v2422, %v2360
      %v2424 = vadd.f32 %v2423, %v2361
      %v2425 = vadd.f32 %v2424, %v2362
      %v2426 = vadd.f32 %v2425, %v2363
      %v2427 = vadd.f32 %v2426, %v2364
      %v2428 = vadd.f32 %v2427, %v2365
      %v2429 = vadd.f32 %v2428, %v2366
      %v2430 = vadd.f32 %v2429, %v2367
      %v2431 = vadd.f32 %v2430, %v2368
      %v2432 = vadd.f32 %v2431, %v2369
      %v2433 = vadd.f32 %v2432, %v2370
      %v2434 = vadd.f32 %v2433, %v2371
      %v2435 = vadd.f32 %v2434, %v2372
      %v2436 = vadd.f32 %v2435, %v2373
      %v2437 = vadd.f32 %v2436, %v2374
      %v2438 = vadd.f32 %v2437, %v2375
      %v2439 = vrot.slane %v2438, 4
      %v2440 = vadd.f32 %v2438, %v2439
      %v2441 = vrot.slane %v2440, 2
      %v2442 = vadd.f32 %v2440, %v2441
      %v2443 = vrot.slane %v2442, 1
      %v2444 = vadd.f32 %v2442, %v2443
      %2445 = vst [vmem:[%s336] sm:$0x1] %v2444
      %v2446 = vmul.f32 %v2344, %v2344
      %v2447 = vmul.f32 %v2345, %v2345
      %v2448 = vmul.f32 %v2346, %v2346
      %v2449 = vmul.f32 %v2347, %v2347
      %v2450 = vmul.f32 %v2348, %v2348
      %v2451 = vmul.f32 %v2349, %v2349
      %v2452 = vmul.f32 %v2350, %v2350
      %v2453 = vmul.f32 %v2351, %v2351
      %v2454 = vmul.f32 %v2352, %v2352
      %v2455 = vmul.f32 %v2353, %v2353
      %v2456 = vmul.f32 %v2354, %v2354
      %v2457 = vmul.f32 %v2355, %v2355
      %v2458 = vmul.f32 %v2356, %v2356
      %v2459 = vmul.f32 %v2357, %v2357
      %v2460 = vmul.f32 %v2358, %v2358
      %v2461 = vmul.f32 %v2359, %v2359
      %v2462 = vmul.f32 %v2360, %v2360
      %v2463 = vmul.f32 %v2361, %v2361
      %v2464 = vmul.f32 %v2362, %v2362
      %v2465 = vmul.f32 %v2363, %v2363
      %v2466 = vmul.f32 %v2364, %v2364
      %v2467 = vmul.f32 %v2365, %v2365
      %v2468 = vmul.f32 %v2366, %v2366
      %v2469 = vmul.f32 %v2367, %v2367
      %v2470 = vmul.f32 %v2368, %v2368
      %v2471 = vmul.f32 %v2369, %v2369
      %v2472 = vmul.f32 %v2370, %v2370
      %v2473 = vmul.f32 %v2371, %v2371
      %v2474 = vmul.f32 %v2372, %v2372
      %v2475 = vmul.f32 %v2373, %v2373
      %v2476 = vmul.f32 %v2374, %v2374
      %v2477 = vmul.f32 %v2375, %v2375
      %v2478 = vadd.f32 %v2446, %v2447
      %v2479 = vadd.f32 %v2478, %v2448
      %v2480 = vadd.f32 %v2479, %v2449
      %v2481 = vadd.f32 %v2480, %v2450
      %v2482 = vadd.f32 %v2481, %v2451
      %v2483 = vadd.f32 %v2482, %v2452
      %v2484 = vadd.f32 %v2483, %v2453
      %v2485 = vadd.f32 %v2484, %v2454
      %v2486 = vadd.f32 %v2485, %v2455
      %v2487 = vadd.f32 %v2486, %v2456
      %v2488 = vadd.f32 %v2487, %v2457
      %v2489 = vadd.f32 %v2488, %v2458
      %v2490 = vadd.f32 %v2489, %v2459
      %v2491 = vadd.f32 %v2490, %v2460
      %v2492 = vadd.f32 %v2491, %v2461
      %v2493 = vadd.f32 %v2492, %v2462
      %v2494 = vadd.f32 %v2493, %v2463
      %v2495 = vadd.f32 %v2494, %v2464
      %v2496 = vadd.f32 %v2495, %v2465
      %v2497 = vadd.f32 %v2496, %v2466
      %v2498 = vadd.f32 %v2497, %v2467
      %v2499 = vadd.f32 %v2498, %v2468
      %v2500 = vadd.f32 %v2499, %v2469
      %v2501 = vadd.f32 %v2500, %v2470
      %v2502 = vadd.f32 %v2501, %v2471
      %v2503 = vadd.f32 %v2502, %v2472
      %v2504 = vadd.f32 %v2503, %v2473
      %v2505 = vadd.f32 %v2504, %v2474
      %v2506 = vadd.f32 %v2505, %v2475
      %v2507 = vadd.f32 %v2506, %v2476
      %v2508 = vadd.f32 %v2507, %v2477
      %v2509 = vrot.slane %v2508, 4
      %v2510 = vadd.f32 %v2508, %v2509
      %v2511 = vrot.slane %v2510, 2
      %v2512 = vadd.f32 %v2510, %v2511
      %v2513 = vrot.slane %v2512, 1
      %v2514 = vadd.f32 %v2512, %v2513
      %2515 = vst [vmem:[%s339] sm:$0x1] %v2514
      %v2516 = vld [vmem:[%s2] sm:$0xf]
      %v2517 = vld [vmem:[%s2 + $0x4] sm:$0xf]
      %v2518 = vld [vmem:[%s2 + $0x8] sm:$0xf]
      %v2519 = vld [vmem:[%s2 + $0xc] sm:$0xf]
      %v2520 = vld [vmem:[%s2 + $0x10] sm:$0xf]
      %v2521 = vld [vmem:[%s2 + $0x14] sm:$0xf]
      %v2522 = vld [vmem:[%s2 + $0x18] sm:$0xf]
      %v2523 = vld [vmem:[%s2 + $0x1c] sm:$0xf]
      %v2524 = vld [vmem:[%s2 + $0x20] sm:$0xf]
      %v2525 = vld [vmem:[%s2 + $0x24] sm:$0xf]
      %v2526 = vld [vmem:[%s2 + $0x28] sm:$0xf]
      %v2527 = vld [vmem:[%s2 + $0x2c] sm:$0xf]
      %v2528 = vld [vmem:[%s2 + $0x30] sm:$0xf]
      %v2529 = vld [vmem:[%s2 + $0x34] sm:$0xf]
      %v2530 = vld [vmem:[%s2 + $0x38] sm:$0xf]
      %v2531 = vld [vmem:[%s2 + $0x3c] sm:$0xf]
      %v2548 = vunpack.c.l.b16 %v2516
      %v2549 = vunpack.c.l.b16 %v2517
      %v2550 = vunpack.c.l.b16 %v2518
      %v2551 = vunpack.c.l.b16 %v2519
      %v2552 = vunpack.c.l.b16 %v2520
      %v2553 = vunpack.c.l.b16 %v2521
      %v2554 = vunpack.c.l.b16 %v2522
      %v2555 = vunpack.c.l.b16 %v2523
      %v2556 = vunpack.c.l.b16 %v2524
      %v2557 = vunpack.c.l.b16 %v2525
      %v2558 = vunpack.c.l.b16 %v2526
      %v2559 = vunpack.c.l.b16 %v2527
      %v2560 = vunpack.c.l.b16 %v2528
      %v2561 = vunpack.c.l.b16 %v2529
      %v2562 = vunpack.c.l.b16 %v2530
      %v2563 = vunpack.c.l.b16 %v2531
      %v2564 = vpack.c.b16 %v2549, %v2548
      %v2565 = vpack.c.b16 %v2551, %v2550
      %v2566 = vpack.c.b16 %v2553, %v2552
      %v2567 = vpack.c.b16 %v2555, %v2554
      %v2568 = vpack.c.b16 %v2557, %v2556
      %v2569 = vpack.c.b16 %v2559, %v2558
      %v2570 = vpack.c.b16 %v2561, %v2560
      %v2571 = vpack.c.b16 %v2563, %v2562
      %2580 = vmatpush.bf16.msra.mxu0 %v2571
      %2581 = vmatpush.bf16.msra.mxu0 %v2570
      %2582 = vmatpush.bf16.msra.mxu0 %v2569
      %2583 = vmatpush.bf16.msra.mxu0 %v2568
      %2584 = vmatpush.bf16.msra.mxu0 %v2567
      %2585 = vmatpush.bf16.msra.mxu0 %v2566
      %2586 = vmatpush.bf16.msra.mxu0 %v2565
      %2587 = vmatpush.bf16.msra.mxu0 %v2564
      %2588 = vmatmul.bf16.gmra.mxu0 %v599
      %v2589 = vpop.f32.mrf.mxu0
      %v2590 = vadd.f32 0.0, %v2589
      %v2591 = vpop.f32.mrf.mxu0
      %v2592 = vadd.f32 0.0, %v2591
      %2593 = vmatmul.bf16.gmra.mxu0 %v600
      %v2594 = vpop.f32.mrf.mxu0
      %v2595 = vadd.f32 0.0, %v2594
      %v2596 = vpop.f32.mrf.mxu0
      %v2597 = vadd.f32 0.0, %v2596
      %2598 = vmatmul.bf16.gmra.mxu0 %v601
      %v2599 = vpop.f32.mrf.mxu0
      %v2600 = vadd.f32 0.0, %v2599
      %v2601 = vpop.f32.mrf.mxu0
      %v2602 = vadd.f32 0.0, %v2601
      %2603 = vmatmul.bf16.gmra.mxu0 %v602
      %v2604 = vpop.f32.mrf.mxu0
      %v2605 = vadd.f32 0.0, %v2604
      %v2606 = vpop.f32.mrf.mxu0
      %v2607 = vadd.f32 0.0, %v2606
      %2608 = vmatmul.bf16.gmra.mxu0 %v603
      %v2609 = vpop.f32.mrf.mxu0
      %v2610 = vadd.f32 0.0, %v2609
      %v2611 = vpop.f32.mrf.mxu0
      %v2612 = vadd.f32 0.0, %v2611
      %2613 = vmatmul.bf16.gmra.mxu0 %v604
      %v2614 = vpop.f32.mrf.mxu0
      %v2615 = vadd.f32 0.0, %v2614
      %v2616 = vpop.f32.mrf.mxu0
      %v2617 = vadd.f32 0.0, %v2616
      %2618 = vmatmul.bf16.gmra.mxu0 %v605
      %v2619 = vpop.f32.mrf.mxu0
      %v2620 = vadd.f32 0.0, %v2619
      %v2621 = vpop.f32.mrf.mxu0
      %v2622 = vadd.f32 0.0, %v2621
      %2623 = vmatmul.bf16.gmra.mxu0 %v606
      %v2624 = vpop.f32.mrf.mxu0
      %v2625 = vadd.f32 0.0, %v2624
      %v2626 = vpop.f32.mrf.mxu0
      %v2627 = vadd.f32 0.0, %v2626
      %2628 = vmatmul.bf16.gmra.mxu0 %v607
      %v2629 = vpop.f32.mrf.mxu0
      %v2630 = vadd.f32 0.0, %v2629
      %v2631 = vpop.f32.mrf.mxu0
      %v2632 = vadd.f32 0.0, %v2631
      %2633 = vmatmul.bf16.gmra.mxu0 %v608
      %v2634 = vpop.f32.mrf.mxu0
      %v2635 = vadd.f32 0.0, %v2634
      %v2636 = vpop.f32.mrf.mxu0
      %v2637 = vadd.f32 0.0, %v2636
      %2638 = vmatmul.bf16.gmra.mxu0 %v609
      %v2639 = vpop.f32.mrf.mxu0
      %v2640 = vadd.f32 0.0, %v2639
      %v2641 = vpop.f32.mrf.mxu0
      %v2642 = vadd.f32 0.0, %v2641
      %2643 = vmatmul.bf16.gmra.mxu0 %v610
      %v2644 = vpop.f32.mrf.mxu0
      %v2645 = vadd.f32 0.0, %v2644
      %v2646 = vpop.f32.mrf.mxu0
      %v2647 = vadd.f32 0.0, %v2646
      %2648 = vmatmul.bf16.gmra.mxu0 %v611
      %v2649 = vpop.f32.mrf.mxu0
      %v2650 = vadd.f32 0.0, %v2649
      %v2651 = vpop.f32.mrf.mxu0
      %v2652 = vadd.f32 0.0, %v2651
      %2653 = vmatmul.bf16.gmra.mxu0 %v612
      %v2654 = vpop.f32.mrf.mxu0
      %v2655 = vadd.f32 0.0, %v2654
      %v2656 = vpop.f32.mrf.mxu0
      %v2657 = vadd.f32 0.0, %v2656
      %2658 = vmatmul.bf16.gmra.mxu0 %v613
      %v2659 = vpop.f32.mrf.mxu0
      %v2660 = vadd.f32 0.0, %v2659
      %v2661 = vpop.f32.mrf.mxu0
      %v2662 = vadd.f32 0.0, %v2661
      %2663 = vmatmul.bf16.gmra.mxu0 %v1417
      %v2664 = vpop.f32.mrf.mxu0
      %v2665 = vadd.f32 0.0, %v2664
      %v2666 = vpop.f32.mrf.mxu0
      %v2667 = vadd.f32 0.0, %v2666
      %2668 = vdwg.mxu0
      %2669 = vst [vmem:[%s344] sm:$0xff] %v2590
      %2670 = vst [vmem:[%s344 + $0x8] sm:$0xff] %v2592
      %2671 = vst [vmem:[%s344 + $0x10] sm:$0xff] %v2595
      %2672 = vst [vmem:[%s344 + $0x18] sm:$0xff] %v2597
      %2673 = vst [vmem:[%s344 + $0x20] sm:$0xff] %v2600
      %2674 = vst [vmem:[%s344 + $0x28] sm:$0xff] %v2602
      %2675 = vst [vmem:[%s344 + $0x30] sm:$0xff] %v2605
      %2676 = vst [vmem:[%s344 + $0x38] sm:$0xff] %v2607
      %2677 = vst [vmem:[%s344 + $0x40] sm:$0xff] %v2610
      %2678 = vst [vmem:[%s344 + $0x48] sm:$0xff] %v2612
      %2679 = vst [vmem:[%s344 + $0x50] sm:$0xff] %v2615
      %2680 = vst [vmem:[%s344 + $0x58] sm:$0xff] %v2617
      %2681 = vst [vmem:[%s344 + $0x60] sm:$0xff] %v2620
      %2682 = vst [vmem:[%s344 + $0x68] sm:$0xff] %v2622
      %2683 = vst [vmem:[%s344 + $0x70] sm:$0xff] %v2625
      %2684 = vst [vmem:[%s344 + $0x78] sm:$0xff] %v2627
      %2685 = vst [vmem:[%s344 + $0x80] sm:$0xff] %v2630
      %2686 = vst [vmem:[%s344 + $0x88] sm:$0xff] %v2632
      %2687 = vst [vmem:[%s344 + $0x90] sm:$0xff] %v2635
      %2688 = vst [vmem:[%s344 + $0x98] sm:$0xff] %v2637
      %2689 = vst [vmem:[%s344 + $0xa0] sm:$0xff] %v2640
      %2690 = vst [vmem:[%s344 + $0xa8] sm:$0xff] %v2642
      %2691 = vst [vmem:[%s344 + $0xb0] sm:$0xff] %v2645
      %2692 = vst [vmem:[%s344 + $0xb8] sm:$0xff] %v2647
      %2693 = vst [vmem:[%s344 + $0xc0] sm:$0xff] %v2650
      %2694 = vst [vmem:[%s344 + $0xc8] sm:$0xff] %v2652
      %2695 = vst [vmem:[%s344 + $0xd0] sm:$0xff] %v2655
      %2696 = vst [vmem:[%s344 + $0xd8] sm:$0xff] %v2657
      %2697 = vst [vmem:[%s344 + $0xe0] sm:$0xff] %v2660
      %2698 = vst [vmem:[%s344 + $0xe8] sm:$0xff] %v2662
      %2699 = vst [vmem:[%s344 + $0xf0] sm:$0xff] %v2665
      %2700 = vst [vmem:[%s344 + $0xf8] sm:$0xff] %v2667
      %v2701 = vadd.f32 %v2590, %v2592
      %v2702 = vadd.f32 %v2701, %v2595
      %v2703 = vadd.f32 %v2702, %v2597
      %v2704 = vadd.f32 %v2703, %v2600
      %v2705 = vadd.f32 %v2704, %v2602
      %v2706 = vadd.f32 %v2705, %v2605
      %v2707 = vadd.f32 %v2706, %v2607
      %v2708 = vadd.f32 %v2707, %v2610
      %v2709 = vadd.f32 %v2708, %v2612
      %v2710 = vadd.f32 %v2709, %v2615
      %v2711 = vadd.f32 %v2710, %v2617
      %v2712 = vadd.f32 %v2711, %v2620
      %v2713 = vadd.f32 %v2712, %v2622
      %v2714 = vadd.f32 %v2713, %v2625
      %v2715 = vadd.f32 %v2714, %v2627
      %v2716 = vadd.f32 %v2715, %v2630
      %v2717 = vadd.f32 %v2716, %v2632
      %v2718 = vadd.f32 %v2717, %v2635
      %v2719 = vadd.f32 %v2718, %v2637
      %v2720 = vadd.f32 %v2719, %v2640
      %v2721 = vadd.f32 %v2720, %v2642
      %v2722 = vadd.f32 %v2721, %v2645
      %v2723 = vadd.f32 %v2722, %v2647
      %v2724 = vadd.f32 %v2723, %v2650
      %v2725 = vadd.f32 %v2724, %v2652
      %v2726 = vadd.f32 %v2725, %v2655
      %v2727 = vadd.f32 %v2726, %v2657
      %v2728 = vadd.f32 %v2727, %v2660
      %v2729 = vadd.f32 %v2728, %v2662
      %v2730 = vadd.f32 %v2729, %v2665
      %v2731 = vadd.f32 %v2730, %v2667
      %v2732 = vrot.slane %v2731, 4
      %v2733 = vadd.f32 %v2731, %v2732
      %v2734 = vrot.slane %v2733, 2
      %v2735 = vadd.f32 %v2733, %v2734
      %v2736 = vrot.slane %v2735, 1
      %v2737 = vadd.f32 %v2735, %v2736
      %2738 = vst [vmem:[%s347] sm:$0x1] %v2737
      %v2739 = vmul.f32 %v2590, %v2590
      %v2740 = vmul.f32 %v2592, %v2592
      %v2741 = vmul.f32 %v2595, %v2595
      %v2742 = vmul.f32 %v2597, %v2597
      %v2743 = vmul.f32 %v2600, %v2600
      %v2744 = vmul.f32 %v2602, %v2602
      %v2745 = vmul.f32 %v2605, %v2605
      %v2746 = vmul.f32 %v2607, %v2607
      %v2747 = vmul.f32 %v2610, %v2610
      %v2748 = vmul.f32 %v2612, %v2612
      %v2749 = vmul.f32 %v2615, %v2615
      %v2750 = vmul.f32 %v2617, %v2617
      %v2751 = vmul.f32 %v2620, %v2620
      %v2752 = vmul.f32 %v2622, %v2622
      %v2753 = vmul.f32 %v2625, %v2625
      %v2754 = vmul.f32 %v2627, %v2627
      %v2755 = vmul.f32 %v2630, %v2630
      %v2756 = vmul.f32 %v2632, %v2632
      %v2757 = vmul.f32 %v2635, %v2635
      %v2758 = vmul.f32 %v2637, %v2637
      %v2759 = vmul.f32 %v2640, %v2640
      %v2760 = vmul.f32 %v2642, %v2642
      %v2761 = vmul.f32 %v2645, %v2645
      %v2762 = vmul.f32 %v2647, %v2647
      %v2763 = vmul.f32 %v2650, %v2650
      %v2764 = vmul.f32 %v2652, %v2652
      %v2765 = vmul.f32 %v2655, %v2655
      %v2766 = vmul.f32 %v2657, %v2657
      %v2767 = vmul.f32 %v2660, %v2660
      %v2768 = vmul.f32 %v2662, %v2662
      %v2769 = vmul.f32 %v2665, %v2665
      %v2770 = vmul.f32 %v2667, %v2667
      %v2771 = vadd.f32 %v2739, %v2740
      %v2772 = vadd.f32 %v2771, %v2741
      %v2773 = vadd.f32 %v2772, %v2742
      %v2774 = vadd.f32 %v2773, %v2743
      %v2775 = vadd.f32 %v2774, %v2744
      %v2776 = vadd.f32 %v2775, %v2745
      %v2777 = vadd.f32 %v2776, %v2746
      %v2778 = vadd.f32 %v2777, %v2747
      %v2779 = vadd.f32 %v2778, %v2748
      %v2780 = vadd.f32 %v2779, %v2749
      %v2781 = vadd.f32 %v2780, %v2750
      %v2782 = vadd.f32 %v2781, %v2751
      %v2783 = vadd.f32 %v2782, %v2752
      %v2784 = vadd.f32 %v2783, %v2753
      %v2785 = vadd.f32 %v2784, %v2754
      %v2786 = vadd.f32 %v2785, %v2755
      %v2787 = vadd.f32 %v2786, %v2756
      %v2788 = vadd.f32 %v2787, %v2757
      %v2789 = vadd.f32 %v2788, %v2758
      %v2790 = vadd.f32 %v2789, %v2759
      %v2791 = vadd.f32 %v2790, %v2760
      %v2792 = vadd.f32 %v2791, %v2761
      %v2793 = vadd.f32 %v2792, %v2762
      %v2794 = vadd.f32 %v2793, %v2763
      %v2795 = vadd.f32 %v2794, %v2764
      %v2796 = vadd.f32 %v2795, %v2765
      %v2797 = vadd.f32 %v2796, %v2766
      %v2798 = vadd.f32 %v2797, %v2767
      %v2799 = vadd.f32 %v2798, %v2768
      %v2800 = vadd.f32 %v2799, %v2769
      %v2801 = vadd.f32 %v2800, %v2770
      %v2802 = vrot.slane %v2801, 4
      %v2803 = vadd.f32 %v2801, %v2802
      %v2804 = vrot.slane %v2803, 2
      %v2805 = vadd.f32 %v2803, %v2804
      %v2806 = vrot.slane %v2805, 1
      %v2807 = vadd.f32 %v2805, %v2806
      %2808 = vst [vmem:[%s350] sm:$0x1] %v2807
      %p2809 = scmp.lt.s32.totalorder %s20, 1
      %s2810 = scalar_select %p2809, %s20, 1
      %s2811 = smul.addr %s2810, 32
      %s2812 = smul.addr %s2811, 8
      %s2813 = scalar_lea.vmem %s3, %s2812
      %p2814 = scmp.lt.s32.totalorder %s20, 1
      %s2815 = scalar_select %p2814, %s20, 1
      %s2816 = scalar_lea.vmem %s4, %s2815
      %p2817 = scmp.lt.s32.totalorder %s20, 1
      %s2818 = scalar_select %p2817, %s20, 1
      %s2819 = scalar_lea.vmem %s5, %s2818
      %p2820 = scmp.lt.s32.totalorder %s20, 1
      %s2821 = scalar_select %p2820, %s20, 1
      %s2822 = smul.addr %s2821, 32
      %s2823 = smul.addr %s2822, 8
      %s2824 = scalar_lea.vmem %s6, %s2823
      %p2825 = scmp.lt.s32.totalorder %s20, 1
      %s2826 = scalar_select %p2825, %s20, 1
      %s2827 = scalar_lea.vmem %s7, %s2826
      %p2828 = scmp.lt.s32.totalorder %s20, 1
      %s2829 = scalar_select %p2828, %s20, 1
      %s2830 = scalar_lea.vmem %s8, %s2829
      // Predicated region
      $region33: #{basic_block_forward.3} parent=31 // pred_check
        %p2831 = pneg %p106
      $region34: #{basic_block_forward.3} parent=31 // pred_check_branch
        %2833 = sbr.rel (%p2831) target = $region36
      $region35: #{basic_block_forward.3} parent=31 // pred_region
        _
      $region36: #{basic_block_forward.3} parent=31 // pred_fallthru
        _
      // Predicated region
      $region37: #{basic_block_forward.3} parent=31 // pred_check
        %p2834 = pneg %p132
      $region38: #{basic_block_forward.3} parent=31 // pred_check_branch
        %2836 = sbr.rel (%p2834) target = $region40
      $region39: #{basic_block_forward.3} parent=31 // pred_region
        _
      $region40: #{basic_block_forward.3} parent=31 // pred_fallthru
        _
      // Predicated region
      $region41: #{basic_block_forward.3} parent=31 // pred_check
        %p2837 = pneg %p158
      $region42: #{basic_block_forward.3} parent=31 // pred_check_branch
        %2839 = sbr.rel (%p2837) target = $region44
      $region43: #{basic_block_forward.3} parent=31 // pred_region
        _
      $region44: #{basic_block_forward.3} parent=31 // pred_fallthru
        _
      // Predicated region
      $region45: #{basic_block_forward.3} parent=31 // pred_check
        %p2840 = pneg %p184
      $region46: #{basic_block_forward.3} parent=31 // pred_check_branch
        %2842 = sbr.rel (%p2840) target = $region48
      $region47: #{basic_block_forward.3} parent=31 // pred_region
        _
      $region48: #{basic_block_forward.3} parent=31 // pred_fallthru
        _
      // Predicated region
      $region49: #{basic_block_forward.3} parent=31 // pred_check
        %p2843 = pneg %p210
      $region50: #{basic_block_forward.3} parent=31 // pred_check_branch
        %2845 = sbr.rel (%p2843) target = $region52
      $region51: #{basic_block_forward.3} parent=31 // pred_region
        _
      $region52: #{basic_block_forward.3} parent=31 // pred_fallthru
        _
      // Predicated region
      $region53: #{basic_block_forward.3} parent=31 // pred_check
        %p2846 = pneg %p236
      $region54: #{basic_block_forward.3} parent=31 // pred_check_branch
        %2848 = sbr.rel (%p2846) target = $region56
      $region55: #{basic_block_forward.3} parent=31 // pred_region
        _
      $region56: #{basic_block_forward.3} parent=31 // pred_fallthru
        _
    $region32: #{basic_block_forward.3} parent=5 // pred_fallthru
      _
    %p2849 = scmp.le.s32.totalorder 2, %s15
    // Predicated region
    $region57: #{basic_block_forward.3} parent=5 // pred_check
      %p2850 = pneg %p2849
    $region58: #{basic_block_forward.3} parent=5 // pred_check_branch
      %2852 = sbr.rel (%p2850) target = $region60
    $region59: #{basic_block_forward.3} parent=5 // pred_region
      %s2853 = ssub.s32 %s15, 2
      // Predicated region
      $region61: #{basic_block_forward.3} parent=59 // pred_check
        %p2854 = pneg %p112
      $region62: #{basic_block_forward.3} parent=59 // pred_check_branch
        %2856 = sbr.rel (%p2854) target = $region64
      $region63: #{basic_block_forward.3} parent=59 // pred_region
        %p2857 = scmp.lt.s32.totalorder %s21, 1
        %s2858 = scalar_select %p2857, %s21, 1
        %s2859 = smul.addr %s2858, 32
        %s2860 = smul.addr %s2859, 8
        %s2861 = scalar_lea.vmem %s3, %s2860
      $region64: #{basic_block_forward.3} parent=59 // pred_fallthru
        _
      // Predicated region
      $region65: #{basic_block_forward.3} parent=59 // pred_check
        %p2862 = pneg %p138
      $region66: #{basic_block_forward.3} parent=59 // pred_check_branch
        %2864 = sbr.rel (%p2862) target = $region68
      $region67: #{basic_block_forward.3} parent=59 // pred_region
        %p2865 = scmp.lt.s32.totalorder %s21, 1
        %s2866 = scalar_select %p2865, %s21, 1
        %s2867 = scalar_lea.vmem %s4, %s2866
      $region68: #{basic_block_forward.3} parent=59 // pred_fallthru
        _
      // Predicated region
      $region69: #{basic_block_forward.3} parent=59 // pred_check
        %p2868 = pneg %p164
      $region70: #{basic_block_forward.3} parent=59 // pred_check_branch
        %2870 = sbr.rel (%p2868) target = $region72
      $region71: #{basic_block_forward.3} parent=59 // pred_region
        %p2871 = scmp.lt.s32.totalorder %s21, 1
        %s2872 = scalar_select %p2871, %s21, 1
        %s2873 = scalar_lea.vmem %s5, %s2872
      $region72: #{basic_block_forward.3} parent=59 // pred_fallthru
        _
      // Predicated region
      $region73: #{basic_block_forward.3} parent=59 // pred_check
        %p2874 = pneg %p190
      $region74: #{basic_block_forward.3} parent=59 // pred_check_branch
        %2876 = sbr.rel (%p2874) target = $region76
      $region75: #{basic_block_forward.3} parent=59 // pred_region
        %p2877 = scmp.lt.s32.totalorder %s21, 1
        %s2878 = scalar_select %p2877, %s21, 1
        %s2879 = smul.addr %s2878, 32
        %s2880 = smul.addr %s2879, 8
        %s2881 = scalar_lea.vmem %s6, %s2880
      $region76: #{basic_block_forward.3} parent=59 // pred_fallthru
        _
      // Predicated region
      $region77: #{basic_block_forward.3} parent=59 // pred_check
        %p2882 = pneg %p216
      $region78: #{basic_block_forward.3} parent=59 // pred_check_branch
        %2884 = sbr.rel (%p2882) target = $region80
      $region79: #{basic_block_forward.3} parent=59 // pred_region
        %p2885 = scmp.lt.s32.totalorder %s21, 1
        %s2886 = scalar_select %p2885, %s21, 1
        %s2887 = scalar_lea.vmem %s7, %s2886
      $region80: #{basic_block_forward.3} parent=59 // pred_fallthru
        _
      // Predicated region
      $region81: #{basic_block_forward.3} parent=59 // pred_check
        %p2888 = pneg %p242
      $region82: #{basic_block_forward.3} parent=59 // pred_check_branch
        %2890 = sbr.rel (%p2888) target = $region84
      $region83: #{basic_block_forward.3} parent=59 // pred_region
        %p2891 = scmp.lt.s32.totalorder %s21, 1
        %s2892 = scalar_select %p2891, %s21, 1
        %s2893 = scalar_lea.vmem %s8, %s2892
      $region84: #{basic_block_forward.3} parent=59 // pred_fallthru
        _
    $region60: #{basic_block_forward.3} parent=5 // pred_fallthru
      _
  $region6: #{basic_block_forward.3} parent=0 // loop_footer
    %s19 = sadd.s32 1, %s15
  $region7: #{basic_block_forward.3} parent=0 // loop_footer_branch
    %14 = sbr.rel target = $region3
  $region8: #{basic_block_forward.3} parent=0 // loop_exit
    _

</llo_original>
